<compile_context>
chip_gen: v5e
topology: v5e:2x2
jax: 0.10.0
libtpu: 0.0.40
codegen_flags: <defaults>
</compile_context>

<pallas_src>
import math
from functools import partial

import jax
import jax.numpy as jnp
from jax.experimental import pallas as pl
from jax.experimental.pallas import tpu as pltpu

# ----------------------------------------------------------------------------
# Config (globals `provNum/alphaNum/adNum` are free symbols in the reference
# module -- pick deterministic small values; `last_channel` is a ctor arg).
# ----------------------------------------------------------------------------
provNum, alphaNum, adNum = 34, 25, 35
LAST_CHANNEL = 128
BN_EPS = 1e-3
HEAD_SIZES = (provNum, alphaNum, adNum, adNum, adNum, adNum, adNum)
LANE = 128

# Tiny working sets (<2 MiB/step); 48 MiB cap is safe on v5e/v6e (128 MiB
# physical) and under v7x's 64 MiB.
VMEM_LIMIT = 48 * 1024 * 1024
MOSAIC_1D = pltpu.CompilerParams(dimension_semantics=("parallel",),
                                 vmem_limit_bytes=VMEM_LIMIT)


def _make_divisible(v, divisor=8, min_value=None):
    if min_value is None:
        min_value = divisor
    new_v = max(min_value, int(v + divisor / 2) // divisor * divisor)
    if new_v < 0.9 * v:
        new_v += divisor
    return new_v


def _irc(inp, k, exp, out, use_se, act, stride, dilation=1, width_mult=1.0):
    adj = lambda c: _make_divisible(c * width_mult, 8)
    return dict(inp=adj(inp), k=k, exp=adj(exp), out=adj(out), use_se=use_se,
                use_hs=(act == 'HS'), stride=stride, dilation=dilation)


# Small inverted_residual_setting (MobileNetV3-small-like, truncated).
SETTING = [
    _irc(16, 3, 16, 16, True, 'RE', 2),
    _irc(16, 3, 72, 24, False, 'RE', 2),
    _irc(24, 5, 96, 40, True, 'HS', 1),
]


def _round_up(v, m):
    return ((v + m - 1) // m) * m


def _pad_lane(c):
    return _round_up(c, LANE)


# ----------------------------------------------------------------------------
# In-kernel activation helpers (static selection, f32 math).
# ----------------------------------------------------------------------------
def _apply_act(y, act):
    if act == 'hardswish':
        return y * jnp.clip(y + 3.0, 0.0, 6.0) / 6.0
    if act == 'relu':
        return jnp.maximum(y, 0.0)
    return y  # identity


# ----------------------------------------------------------------------------
# Kernel 1: fused matmul (+bias +act) -- used for conv1 (K=27 im2col).
# ----------------------------------------------------------------------------
def _matmul_fused_kernel(x_ref, w_ref, b_ref, o_ref, *, act):
    y = jnp.dot(x_ref[...], w_ref[...], preferred_element_type=jnp.float32)
    y = _apply_act(y + b_ref[...], act)
    o_ref[...] = y.astype(o_ref.dtype)


def matmul_fused(x, w, bias, act='identity', out_dtype=jnp.bfloat16):
    M, K = x.shape
    N = w.shape[1]
    x = x.astype(jnp.bfloat16)
    w = w.astype(jnp.bfloat16)
    b = bias.reshape(1, N).astype(jnp.float32)
    # TM chosen so M=512 gives 2 grid steps (megacore on v7x, pipelining).
    TM = max(128, min(256, _round_up(M, 128)))
    return pl.pallas_call(
        partial(_matmul_fused_kernel, act=act),
        out_shape=jax.ShapeDtypeStruct((M, N), out_dtype),
        grid=(pl.cdiv(M, TM),),
        in_specs=[
            pl.BlockSpec((TM, K), lambda i: (i, 0)),
            pl.BlockSpec((K, N), lambda i: (0, 0)),
            pl.BlockSpec((1, N), lambda i: (0, 0)),
        ],
        out_specs=pl.BlockSpec((TM, N), lambda i: (i, 0)),
        compiler_params=MOSAIC_1D,
    )(x, w, b)


# ----------------------------------------------------------------------------
# Kernel 2: fused inverted-residual block (one call per block, grid = batch).
#   expand(1x1) -> depthwise conv -> SE -> project(1x1) -> (+residual)
# Inputs are tap-shifted copies of the block input (built in the wrapper);
# since the expand conv is pointwise, expand(tap_t(x)) == tap_t(expand(x)),
# so the kernel recomputes the tiny expand per tap and stays purely 2D.
# ----------------------------------------------------------------------------
def _block_kernel(*refs, T, has_expand, use_se, residual, act):
    it = iter(refs)
    x_ref = next(it)                          # (1, T, Mo, Cin)  bf16
    if has_expand:
        mask_ref = next(it)                   # (T, Mo, 1)       f32
        we_ref = next(it)                     # (Cin, Cexp)      bf16
        be_ref = next(it)                     # (1, Cexp)        f32
    wdw_ref = next(it)                        # (T, 1, Cexp)     f32
    bdw_ref = next(it)                        # (1, Cexp)        f32
    if use_se:
        w1_ref = next(it); b1_ref = next(it)  # (Cexp, Cs), (1, Cs)
        w2_ref = next(it); b2_ref = next(it)  # (Cs, Cexp), (1, Cexp)
    wp_ref = next(it)                         # (Cexp, Cout)     bf16
    bp_ref = next(it)                         # (1, Cout)        f32
    o_ref = next(it)                          # (1, Mo, Cout)    bf16

    Mo = o_ref.shape[1]
    Cexp = wdw_ref.shape[2]

    wdw = wdw_ref[...]                        # hoisted loads
    if has_expand:
        we = we_ref[...]
        be = be_ref[...]
        mask = mask_ref[...]

    # Depthwise conv as per-tap channel-scaled accumulation (f32).
    acc = jnp.zeros((Mo, Cexp), jnp.float32)
    for t in range(T):
        xt = x_ref[0, t]                                      # (Mo, Cin) bf16
        if has_expand:
            e = jnp.dot(xt, we, preferred_element_type=jnp.float32)
            e = _apply_act(e + be, act)
            e = e * mask[t]          # zero where the tap reads conv padding
        else:
            e = xt.astype(jnp.float32)
        acc = acc + e * wdw[t]                                # (1,Cexp) bcast
    dw = _apply_act(acc + bdw_ref[...], act)                  # (Mo, Cexp) f32

    # Squeeze-excite fused in: pool over the Mo true output pixels.
    if use_se:
        pooled = jnp.mean(dw, axis=0, keepdims=True)          # (1, Cexp)
        h = jnp.dot(pooled.astype(jnp.bfloat16), w1_ref[...],
                    preferred_element_type=jnp.float32) + b1_ref[...]
        h = jnp.maximum(h, 0.0)                               # ReLU
        sc = jnp.dot(h.astype(jnp.bfloat16), w2_ref[...],
                     preferred_element_type=jnp.float32) + b2_ref[...]
        sc = jnp.clip(sc + 3.0, 0.0, 6.0) / 6.0               # hardsigmoid
        dw = dw * sc

    # Project 1x1 conv + fused residual add (center tap == input when s==1).
    y = jnp.dot(dw.astype(jnp.bfloat16), wp_ref[...],
                preferred_element_type=jnp.float32) + bp_ref[...]
    if residual:
        y = y + x_ref[0, T // 2].astype(jnp.float32)
    o_ref[0] = y.astype(o_ref.dtype)


def fused_block(x, cnf, bp):
    """One pallas_call per inverted-residual block, gridded over batch."""
    N, H, W, Cp = x.shape
    k, d = cnf['k'], cnf['dilation']
    s = 1 if d > 1 else cnf['stride']
    act = 'hardswish' if cnf['use_hs'] else 'relu'
    pad = (k - 1) // 2 * d
    Ho = (H + 2 * pad - d * (k - 1) - 1) // s + 1
    Wo = (W + 2 * pad - d * (k - 1) - 1) // s + 1
    Mo = Ho * Wo
    T = k * k
    has_expand = 'expand' in bp
    use_se = cnf['use_se']
    residual = (cnf['stride'] == 1 and cnf['inp'] == cnf['out'])

    # Wrapper-side tap extraction (tiny XLA glue; constant-folded mask).
    xpad = jnp.pad(x, ((0, 0), (pad, pad), (pad, pad), (0, 0)))
    ind = jnp.zeros((H + 2 * pad, W + 2 * pad), jnp.float32)
    ind = ind.at[pad:pad + H, pad:pad + W].set(1.0)
    taps, masks = [], []
    for ki in range(k):
        for kj in range(k):
            oi, oj = ki * d, kj * d
            taps.append(xpad[:, oi: oi + (Ho - 1) * s + 1: s,
                                oj: oj + (Wo - 1) * s + 1: s, :]
                        .reshape(N, Mo, Cp))
            masks.append(ind[oi: oi + (Ho - 1) * s + 1: s,
                             oj: oj + (Wo - 1) * s + 1: s].reshape(Mo, 1))
    xt = jnp.stack(taps, axis=1).astype(jnp.bfloat16)       # (N, T, Mo, Cp)
    mask = jnp.stack(masks, axis=0)                         # (T, Mo, 1)

    Cexp = bp['dw']['w'].shape[-1]
    Cout = bp['project']['w'].shape[-1]

    inputs = [xt]
    in_specs = [pl.BlockSpec((1, T, Mo, Cp), lambda n: (n, 0, 0, 0))]
    if has_expand:
        inputs += [mask, bp['expand']['w'], bp['expand']['bias']]
        in_specs += [pl.BlockSpec((T, Mo, 1), lambda n: (0, 0, 0)),
                     pl.BlockSpec((Cp, Cexp), lambda n: (0, 0)),
                     pl.BlockSpec((1, Cexp), lambda n: (0, 0))]
    inputs += [bp['dw']['w'], bp['dw']['bias']]
    in_specs += [pl.BlockSpec((T, 1, Cexp), lambda n: (0, 0, 0)),
                 pl.BlockSpec((1, Cexp), lambda n: (0, 0))]
    if use_se:
        se = bp['se']
        inputs += [se['w1'], se['b1'], se['w2'], se['b2']]
        in_specs += [pl.BlockSpec(se['w1'].shape, lambda n: (0, 0)),
                     pl.BlockSpec(se['b1'].shape, lambda n: (0, 0)),
                     pl.BlockSpec(se['w2'].shape, lambda n: (0, 0)),
                     pl.BlockSpec(se['b2'].shape, lambda n: (0, 0))]
    inputs += [bp['project']['w'], bp['project']['bias']]
    in_specs += [pl.BlockSpec((Cexp, Cout), lambda n: (0, 0)),
                 pl.BlockSpec((1, Cout), lambda n: (0, 0))]

    out = pl.pallas_call(
        partial(_block_kernel, T=T, has_expand=has_expand, use_se=use_se,
                residual=residual, act=act),
        out_shape=jax.ShapeDtypeStruct((N, Mo, Cout), jnp.bfloat16),
        grid=(N,),
        in_specs=in_specs,
        out_specs=pl.BlockSpec((1, Mo, Cout), lambda n: (n, 0, 0)),
        compiler_params=MOSAIC_1D,
    )(*inputs)
    return out.reshape(N, Ho, Wo, Cout)


# ----------------------------------------------------------------------------
# Kernel 3: fused tail -- lastconv(1x1)+BN+hardswish, global avg pool, and the
# 7 classifier heads collapsed into two matmuls (concat W1, block-diag W2).
# TODO(synk): nn.Dropout(p=0.2) omitted -- eval-mode semantics (identity).
# ----------------------------------------------------------------------------
def _tail_kernel(x_ref, wl_ref, bl_ref, w1_ref, b1_ref, w2_ref, b2_ref, o_ref):
    x = x_ref[0]                                              # (HW, C) bf16
    y = jnp.dot(x, wl_ref[...], preferred_element_type=jnp.float32) + bl_ref[...]
    y = _apply_act(y, 'hardswish')                            # lastconv
    pooled = jnp.mean(y, axis=0, keepdims=True)               # avgpool -> (1, C6)
    h = jnp.dot(pooled.astype(jnp.bfloat16), w1_ref[...],
                preferred_element_type=jnp.float32) + b1_ref[...]
    h = _apply_act(h, 'hardswish')                            # Linear+Hardswish x7
    z = jnp.dot(h.astype(jnp.bfloat16), w2_ref[...],
                preferred_element_type=jnp.float32) + b2_ref[...]
    o_ref[0] = z                                              # (1, total) f32


def tail_fused(x_flat, lastp, hp):
    N, HW, Cp = x_flat.shape
    C6 = lastp['w'].shape[1]
    H1 = hp['w1'].shape[1]
    CT = hp['w2'].shape[1]
    out = pl.pallas_call(
        _tail_kernel,
        out_shape=jax.ShapeDtypeStruct((N, 1, CT), jnp.float32),
        grid=(N,),
        in_specs=[
            pl.BlockSpec((1, HW, Cp), lambda n: (n, 0, 0)),
            pl.BlockSpec((Cp, C6), lambda n: (0, 0)),
            pl.BlockSpec((1, C6), lambda n: (0, 0)),
            pl.BlockSpec((C6, H1), lambda n: (0, 0)),
            pl.BlockSpec((1, H1), lambda n: (0, 0)),
            pl.BlockSpec((H1, CT), lambda n: (0, 0)),
            pl.BlockSpec((1, CT), lambda n: (0, 0)),
        ],
        out_specs=pl.BlockSpec((1, 1, CT), lambda n: (n, 0, 0)),
        compiler_params=MOSAIC_1D,
    )(x_flat.astype(jnp.bfloat16), lastp['w'], lastp['bias'],
      hp['w1'], hp['b1'], hp['w2'], hp['b2'])
    return out[:, 0, :]


# ----------------------------------------------------------------------------
# conv1: im2col (K = k*k*Cin = 27) built in the wrapper, single fused matmul.
# ----------------------------------------------------------------------------
def conv1_forward(x, p):
    N, H, W, C = x.shape
    k, s, pad = 3, 2, 1
    Ho = (H + 2 * pad - k) // s + 1
    Wo = (W + 2 * pad - k) // s + 1
    xp = jnp.pad(x, ((0, 0), (pad, pad), (pad, pad), (0, 0)))
    cols = []
    for ki in range(k):
        for kj in range(k):
            cols.append(xp[:, ki: ki + (Ho - 1) * s + 1: s,
                              kj: kj + (Wo - 1) * s + 1: s, :])
    col = jnp.stack(cols, axis=3)                         # (N, Ho, Wo, 9, 3)
    col = col.reshape(N * Ho * Wo, k * k * C)             # (M, 27)
    y = matmul_fused(col, p['w'], p['bias'], 'hardswish')
    return y.reshape(N, Ho, Wo, -1)


# ----------------------------------------------------------------------------
# Deterministic parameter construction (matches __init__ shapes & init rules).
# BatchNorm (gamma=1, beta=0, mean=0, var=1) folded into conv weights + bias.
# All channel dims zero-padded to multiples of 128 (lane-dense kernels);
# padded channels carry exact zeros through the whole network.
# ----------------------------------------------------------------------------
def _fold_bn(cout):
    gamma = jnp.ones((cout,), jnp.float32)
    beta = jnp.zeros((cout,), jnp.float32)
    mean = jnp.zeros((cout,), jnp.float32)
    var = jnp.ones((cout,), jnp.float32)
    scale = gamma / jnp.sqrt(var + BN_EPS)
    bias = beta - mean * scale
    return scale, bias


def _pad2(a, rows, cols):
    return jnp.pad(a, ((0, rows - a.shape[0]), (0, cols - a.shape[1])))


def _conv1_params(key, cin, cout, k):
    std = math.sqrt(2.0 / (cout * k * k))                     # kaiming fan_out
    w = jax.random.normal(key, (k, k, cin, cout), jnp.float32) * std
    scale, bias = _fold_bn(cout)
    w = (w * scale).reshape(k * k * cin, cout)
    cop = _pad_lane(cout)
    return dict(w=_pad2(w, k * k * cin, cop).astype(jnp.bfloat16),
                bias=jnp.pad(bias, (0, cop - cout)).reshape(1, cop).astype(jnp.float32))


def _pw_params(key, cin, cout):
    std = math.sqrt(2.0 / cout)
    w = jax.random.normal(key, (cin, cout), jnp.float32) * std
    scale, bias = _fold_bn(cout)
    w = w * scale
    cip, cop = _pad_lane(cin), _pad_lane(cout)
    return dict(w=_pad2(w, cip, cop).astype(jnp.bfloat16),
                bias=jnp.pad(bias, (0, cop - cout)).reshape(1, cop).astype(jnp.float32))


def _dw_params(key, c, k):
    std = math.sqrt(2.0 / (k * k))
    w = jax.random.normal(key, (k * k, c), jnp.float32) * std
    scale, bias = _fold_bn(c)
    w = w * scale
    cp = _pad_lane(c)
    w = jnp.pad(w, ((0, 0), (0, cp - c))).reshape(k * k, 1, cp).astype(jnp.float32)
    return dict(w=w,
                bias=jnp.pad(bias, (0, cp - c)).reshape(1, cp).astype(jnp.float32))


def _se_params(key, c):
    cs = _make_divisible(c // 4, 8)
    cp, csp = _pad_lane(c), _pad_lane(cs)
    k1, k2 = jax.random.split(key)
    w1 = jax.random.normal(k1, (c, cs), jnp.float32) * math.sqrt(2.0 / cs)
    w2 = jax.random.normal(k2, (cs, c), jnp.float32) * math.sqrt(2.0 / c)
    return dict(w1=_pad2(w1, cp, csp).astype(jnp.bfloat16),
                b1=jnp.zeros((1, csp), jnp.float32),
                w2=_pad2(w2, csp, cp).astype(jnp.bfloat16),
                b2=jnp.zeros((1, cp), jnp.float32))


def _head_params(nk, c_in):
    """7 classifier heads fused: concat W1, block-diagonal W2 (lane-padded)."""
    c_in_pad = _pad_lane(c_in)
    w1s, w2s = [], []
    for num in HEAD_SIZES:
        w1s.append(jax.random.normal(nk(), (c_in, LAST_CHANNEL), jnp.float32) * 0.01)
        w2s.append(jax.random.normal(nk(), (LAST_CHANNEL, num), jnp.float32) * 0.01)
    w1cat = jnp.pad(jnp.concatenate(w1s, axis=1), ((0, c_in_pad - c_in), (0, 0)))
    H1 = len(HEAD_SIZES) * LAST_CHANNEL
    total = sum(HEAD_SIZES)
    total_pad = _pad_lane(total)
    w2blk = jnp.zeros((H1, total_pad), jnp.float32)
    off = 0
    for i, num in enumerate(HEAD_SIZES):
        w2blk = w2blk.at[i * LAST_CHANNEL:(i + 1) * LAST_CHANNEL,
                         off:off + num].set(w2s[i])
        off += num
    return dict(w1=w1cat.astype(jnp.bfloat16), b1=jnp.zeros((1, H1), jnp.float32),
                w2=w2blk.astype(jnp.bfloat16), b2=jnp.zeros((1, total_pad), jnp.float32))


def build_params(root_key):
    counter = [0]

    def nk():
        counter[0] += 1
        return jax.random.fold_in(root_key, counter[0])

    params = {}
    c0 = SETTING[0]['inp']
    params['conv1'] = _conv1_params(nk(), 3, c0, 3)

    blocks = []
    for cnf in SETTING:
        bp = {}
        if cnf['exp'] != cnf['inp']:
            bp['expand'] = _pw_params(nk(), cnf['inp'], cnf['exp'])
        bp['dw'] = _dw_params(nk(), cnf['exp'], cnf['k'])
        if cnf['use_se']:
            bp['se'] = _se_params(nk(), cnf['exp'])
        bp['project'] = _pw_params(nk(), cnf['exp'], cnf['out'])
        blocks.append(bp)
    params['blocks'] = blocks

    c_in = SETTING[-1]['out']
    params['lastconv'] = _pw_params(nk(), c_in, 6 * c_in)
    params['heads'] = _head_params(nk, 6 * c_in)
    return params


# ----------------------------------------------------------------------------
# Full forward (mirrors MobileNetV3._forward_impl)
# ----------------------------------------------------------------------------
def forward(params, x_nchw):
    x = jnp.transpose(x_nchw, (0, 2, 3, 1)).astype(jnp.bfloat16)   # NCHW -> NHWC

    # features
    x = conv1_forward(x, params['conv1'])                          # (N,16,16,128)
    for cnf, bp in zip(SETTING, params['blocks']):
        x = fused_block(x, cnf, bp)

    # lastconv + avgpool + flatten + 7 heads, fully fused over batch
    N, H, W, C = x.shape
    z = tail_fused(x.reshape(N, H * W, C), params['lastconv'], params['heads'])
    z = z[:, :sum(HEAD_SIZES)]                                     # drop lane pad

    logits = []
    off = 0
    for num in HEAD_SIZES:
        logits.append(z[:, off:off + num])
        off += num

    ys = [jnp.argmax(zi, axis=1).reshape(-1, 1).astype(jnp.int32) for zi in logits]
    output = jnp.concatenate(ys, axis=1)                           # (N, 7)
    return logits, output


if __name__ == '__main__':
    key = jax.random.PRNGKey(0)
    k_params, k_input = jax.random.split(key)

    params = build_params(k_params)
    x = jax.random.normal(k_input, (2, 3, 32, 32), jnp.float32)    # NCHW, like PyTorch

    logits, output = jax.jit(forward)(params, x)
    jax.block_until_ready((logits, output))

    assert output.shape == (2, 7)
    assert logits[0].shape == (2, provNum)
    assert logits[1].shape == (2, alphaNum)
    assert all(z.shape == (2, adNum) for z in logits[2:])
    print("KERNEL_OK")
</pallas_src>

<mosaic_0001>
module attributes {stable_mosaic.version = 11 : i64} {
  func.func @_matmul_fused_kernel(%arg0: i32, %arg1: memref<256x27xbf16, #tpu.memory_space<vmem>>, %arg2: memref<27x128xbf16, #tpu.memory_space<vmem>>, %arg3: memref<1x128xf32, #tpu.memory_space<vmem>>, %arg4: memref<256x128xbf16, #tpu.memory_space<vmem>>) attributes {dimension_semantics = [#tpu.dimension_semantics<parallel>], iteration_bounds = array<i64: 2>, scalar_prefetch = 0 : i64, scratch_operands = 0 : i64, tpu.core_type = #tpu.core_type<tc>, window_params = [{transform_indices = @transform_0, window_bounds = array<i64: 256, 27>}, {pipeline_mode = #tpu.pipeline_mode<synchronous>, transform_indices = @transform_1, window_bounds = array<i64: 27, 128>}, {pipeline_mode = #tpu.pipeline_mode<synchronous>, transform_indices = @transform_2, window_bounds = array<i64: 1, 128>}, {transform_indices = @transform_3, window_bounds = array<i64: 256, 128>}]} {
    %c0 = arith.constant 0 : index
    %c0_0 = arith.constant 0 : index
    %0 = vector.load %arg1[%c0, %c0_0] : memref<256x27xbf16, #tpu.memory_space<vmem>>, vector<256x27xbf16>
    %c0_1 = arith.constant 0 : index
    %c0_2 = arith.constant 0 : index
    %1 = vector.load %arg2[%c0_1, %c0_2] : memref<27x128xbf16, #tpu.memory_space<vmem>>, vector<27x128xbf16>
    %cst = arith.constant dense<0.000000e+00> : vector<256x128xf32>
    %2 = tpu.matmul %0, %1, %cst {dimension_numbers = #tpu.dot_dimension_numbers<[1], [0], [0], [1], [0, 0, 1, 1], [], []>} : vector<256x27xbf16>, vector<27x128xbf16>, vector<256x128xf32> -> vector<256x128xf32>
    %c0_3 = arith.constant 0 : index
    %c0_4 = arith.constant 0 : index
    %3 = vector.load %arg3[%c0_3, %c0_4] : memref<1x128xf32, #tpu.memory_space<vmem>>, vector<1x128xf32>
    %4 = vector.broadcast %3 : vector<1x128xf32> to vector<256x128xf32>
    %5 = arith.addf %2, %4 : vector<256x128xf32>
    %cst_5 = arith.constant 3.000000e+00 : f32
    %6 = vector.broadcast %cst_5 : f32 to vector<256x128xf32>
    %7 = arith.addf %5, %6 : vector<256x128xf32>
    %cst_6 = arith.constant 0.000000e+00 : f32
    %cst_7 = arith.constant 6.000000e+00 : f32
    %8 = vector.broadcast %cst_6 : f32 to vector<256x128xf32>
    %9 = arith.maximumf %8, %7 : vector<256x128xf32>
    %10 = vector.broadcast %cst_7 : f32 to vector<256x128xf32>
    %11 = arith.minimumf %10, %9 : vector<256x128xf32>
    %12 = arith.mulf %5, %11 : vector<256x128xf32>
    %cst_8 = arith.constant 6.000000e+00 : f32
    %13 = vector.broadcast %cst_8 : f32 to vector<256x128xf32>
    %14 = arith.divf %12, %13 : vector<256x128xf32>
    %15 = arith.truncf %14 : vector<256x128xf32> to vector<256x128xbf16>
    %c0_9 = arith.constant 0 : index
    %c0_10 = arith.constant 0 : index
    %16 = vector.load %arg4[%c0_9, %c0_10] : memref<256x128xbf16, #tpu.memory_space<vmem>>, vector<256x128xbf16>
    tpu.vector_store %arg4[%c0_9, %c0_10], %15 {strides = array<i32>} : memref<256x128xbf16, #tpu.memory_space<vmem>>, vector<256x128xbf16>,
    return
  }
  func.func @transform_0(%arg0: i32) -> (i32, i32) {
    %c0_i32 = arith.constant 0 : i32
    %c0_i32_0 = arith.constant 0 : i32
    return %arg0, %c0_i32 : i32, i32
  }
  func.func @transform_1(%arg0: i32) -> (i32, i32) {
    %c0_i32 = arith.constant 0 : i32
    %c0_i32_0 = arith.constant 0 : i32
    %c0_i32_1 = arith.constant 0 : i32
    return %c0_i32, %c0_i32_0 : i32, i32
  }
  func.func @transform_2(%arg0: i32) -> (i32, i32) {
    %c0_i32 = arith.constant 0 : i32
    %c0_i32_0 = arith.constant 0 : i32
    %c0_i32_1 = arith.constant 0 : i32
    return %c0_i32, %c0_i32_0 : i32, i32
  }
  func.func @transform_3(%arg0: i32) -> (i32, i32) {
    %c0_i32 = arith.constant 0 : i32
    %c0_i32_0 = arith.constant 0 : i32
    return %arg0, %c0_i32 : i32, i32
  }
}

module attributes {stable_mosaic.version = 11 : i64} {
  func.func @_block_kernel(%arg0: i32, %arg1: memref<1x9x64x128xbf16, #tpu.memory_space<vmem>>, %arg2: memref<9x1x128xf32, #tpu.memory_space<vmem>>, %arg3: memref<1x128xf32, #tpu.memory_space<vmem>>, %arg4: memref<128x128xbf16, #tpu.memory_space<vmem>>, %arg5: memref<1x128xf32, #tpu.memory_space<vmem>>, %arg6: memref<128x128xbf16, #tpu.memory_space<vmem>>, %arg7: memref<1x128xf32, #tpu.memory_space<vmem>>, %arg8: memref<128x128xbf16, #tpu.memory_space<vmem>>, %arg9: memref<1x128xf32, #tpu.memory_space<vmem>>, %arg10: memref<1x64x128xbf16, #tpu.memory_space<vmem>>) attributes {dimension_semantics = [#tpu.dimension_semantics<parallel>], iteration_bounds = array<i64: 2>, scalar_prefetch = 0 : i64, scratch_operands = 0 : i64, tpu.core_type = #tpu.core_type<tc>, window_params = [{transform_indices = @transform_0, window_bounds = array<i64: 1, 9, 64, 128>}, {pipeline_mode = #tpu.pipeline_mode<synchronous>, transform_indices = @transform_1, window_bounds = array<i64: 9, 1, 128>}, {pipeline_mode = #tpu.pipeline_mode<synchronous>, transform_indices = @transform_2, window_bounds = array<i64: 1, 128>}, {pipeline_mode = #tpu.pipeline_mode<synchronous>, transform_indices = @transform_3, window_bounds = array<i64: 128, 128>}, {pipeline_mode = #tpu.pipeline_mode<synchronous>, transform_indices = @transform_4, window_bounds = array<i64: 1, 128>}, {pipeline_mode = #tpu.pipeline_mode<synchronous>, transform_indices = @transform_5, window_bounds = array<i64: 128, 128>}, {pipeline_mode = #tpu.pipeline_mode<synchronous>, transform_indices = @transform_6, window_bounds = array<i64: 1, 128>}, {pipeline_mode = #tpu.pipeline_mode<synchronous>, transform_indices = @transform_7, window_bounds = array<i64: 128, 128>}, {pipeline_mode = #tpu.pipeline_mode<synchronous>, transform_indices = @transform_8, window_bounds = array<i64: 1, 128>}, {transform_indices = @transform_9, window_bounds = array<i64: 1, 64, 128>}]} {
    %c0 = arith.constant 0 : index
    %c0_0 = arith.constant 0 : index
    %c0_1 = arith.constant 0 : index
    %0 = vector.load %arg2[%c0, %c0_0, %c0_1] : memref<9x1x128xf32, #tpu.memory_space<vmem>>, vector<9x1x128xf32>
    %cst = arith.constant 0.000000e+00 : f32
    %1 = vector.broadcast %cst : f32 to vector<64x128xf32>
    %c0_2 = arith.constant 0 : index
    %c0_3 = arith.constant 0 : index
    %c0_4 = arith.constant 0 : index
    %c0_5 = arith.constant 0 : index
    %2 = vector.load %arg1[%c0_2, %c0_3, %c0_4, %c0_5] : memref<1x9x64x128xbf16, #tpu.memory_space<vmem>>, vector<1x1x64x128xbf16>
    %3 = vector.shape_cast %2 : vector<1x1x64x128xbf16> to vector<64x128xbf16>
    %4 = arith.extf %3 : vector<64x128xbf16> to vector<64x128xf32>
    %5 = vector.extract_strided_slice %0 {offsets = [0, 0, 0], sizes = [1, 1, 128], strides = [1, 1, 1]} : vector<9x1x128xf32> to vector<1x1x128xf32>
    %6 = vector.shape_cast %5 : vector<1x1x128xf32> to vector<1x128xf32>
    %7 = vector.broadcast %6 : vector<1x128xf32> to vector<64x128xf32>
    %8 = arith.mulf %4, %7 : vector<64x128xf32>
    %9 = arith.addf %1, %8 : vector<64x128xf32>
    %c0_6 = arith.constant 0 : index
    %c1 = arith.constant 1 : index
    %c0_7 = arith.constant 0 : index
    %c0_8 = arith.constant 0 : index
    %10 = vector.load %arg1[%c0_6, %c1, %c0_7, %c0_8] : memref<1x9x64x128xbf16, #tpu.memory_space<vmem>>, vector<1x1x64x128xbf16>
    %11 = vector.shape_cast %10 : vector<1x1x64x128xbf16> to vector<64x128xbf16>
    %12 = arith.extf %11 : vector<64x128xbf16> to vector<64x128xf32>
    %13 = vector.extract_strided_slice %0 {offsets = [1, 0, 0], sizes = [1, 1, 128], strides = [1, 1, 1]} : vector<9x1x128xf32> to vector<1x1x128xf32>
    %14 = vector.shape_cast %13 : vector<1x1x128xf32> to vector<1x128xf32>
    %15 = vector.broadcast %14 : vector<1x128xf32> to vector<64x128xf32>
    %16 = arith.mulf %12, %15 : vector<64x128xf32>
    %17 = arith.addf %9, %16 : vector<64x128xf32>
    %c0_9 = arith.constant 0 : index
    %c2 = arith.constant 2 : index
    %c0_10 = arith.constant 0 : index
    %c0_11 = arith.constant 0 : index
    %18 = vector.load %arg1[%c0_9, %c2, %c0_10, %c0_11] : memref<1x9x64x128xbf16, #tpu.memory_space<vmem>>, vector<1x1x64x128xbf16>
    %19 = vector.shape_cast %18 : vector<1x1x64x128xbf16> to vector<64x128xbf16>
    %20 = arith.extf %19 : vector<64x128xbf16> to vector<64x128xf32>
    %21 = vector.extract_strided_slice %0 {offsets = [2, 0, 0], sizes = [1, 1, 128], strides = [1, 1, 1]} : vector<9x1x128xf32> to vector<1x1x128xf32>
    %22 = vector.shape_cast %21 : vector<1x1x128xf32> to vector<1x128xf32>
    %23 = vector.broadcast %22 : vector<1x128xf32> to vector<64x128xf32>
    %24 = arith.mulf %20, %23 : vector<64x128xf32>
    %25 = arith.addf %17, %24 : vector<64x128xf32>
    %c0_12 = arith.constant 0 : index
    %c3 = arith.constant 3 : index
    %c0_13 = arith.constant 0 : index
    %c0_14 = arith.constant 0 : index
    %26 = vector.load %arg1[%c0_12, %c3, %c0_13, %c0_14] : memref<1x9x64x128xbf16, #tpu.memory_space<vmem>>, vector<1x1x64x128xbf16>
    %27 = vector.shape_cast %26 : vector<1x1x64x128xbf16> to vector<64x128xbf16>
    %28 = arith.extf %27 : vector<64x128xbf16> to vector<64x128xf32>
    %29 = vector.extract_strided_slice %0 {offsets = [3, 0, 0], sizes = [1, 1, 128], strides = [1, 1, 1]} : vector<9x1x128xf32> to vector<1x1x128xf32>
    %30 = vector.shape_cast %29 : vector<1x1x128xf32> to vector<1x128xf32>
    %31 = vector.broadcast %30 : vector<1x128xf32> to vector<64x128xf32>
    %32 = arith.mulf %28, %31 : vector<64x128xf32>
    %33 = arith.addf %25, %32 : vector<64x128xf32>
    %c0_15 = arith.constant 0 : index
    %c4 = arith.constant 4 : index
    %c0_16 = arith.constant 0 : index
    %c0_17 = arith.constant 0 : index
    %34 = vector.load %arg1[%c0_15, %c4, %c0_16, %c0_17] : memref<1x9x64x128xbf16, #tpu.memory_space<vmem>>, vector<1x1x64x128xbf16>
    %35 = vector.shape_cast %34 : vector<1x1x64x128xbf16> to vector<64x128xbf16>
    %36 = arith.extf %35 : vector<64x128xbf16> to vector<64x128xf32>
    %37 = vector.extract_strided_slice %0 {offsets = [4, 0, 0], sizes = [1, 1, 128], strides = [1, 1, 1]} : vector<9x1x128xf32> to vector<1x1x128xf32>
    %38 = vector.shape_cast %37 : vector<1x1x128xf32> to vector<1x128xf32>
    %39 = vector.broadcast %38 : vector<1x128xf32> to vector<64x128xf32>
    %40 = arith.mulf %36, %39 : vector<64x128xf32>
    %41 = arith.addf %33, %40 : vector<64x128xf32>
    %c0_18 = arith.constant 0 : index
    %c5 = arith.constant 5 : index
    %c0_19 = arith.constant 0 : index
    %c0_20 = arith.constant 0 : index
    %42 = vector.load %arg1[%c0_18, %c5, %c0_19, %c0_20] : memref<1x9x64x128xbf16, #tpu.memory_space<vmem>>, vector<1x1x64x128xbf16>
    %43 = vector.shape_cast %42 : vector<1x1x64x128xbf16> to vector<64x128xbf16>
    %44 = arith.extf %43 : vector<64x128xbf16> to vector<64x128xf32>
    %45 = vector.extract_strided_slice %0 {offsets = [5, 0, 0], sizes = [1, 1, 128], strides = [1, 1, 1]} : vector<9x1x128xf32> to vector<1x1x128xf32>
    %46 = vector.shape_cast %45 : vector<1x1x128xf32> to vector<1x128xf32>
    %47 = vector.broadcast %46 : vector<1x128xf32> to vector<64x128xf32>
    %48 = arith.mulf %44, %47 : vector<64x128xf32>
    %49 = arith.addf %41, %48 : vector<64x128xf32>
    %c0_21 = arith.constant 0 : index
    %c6 = arith.constant 6 : index
    %c0_22 = arith.constant 0 : index
    %c0_23 = arith.constant 0 : index
    %50 = vector.load %arg1[%c0_21, %c6, %c0_22, %c0_23] : memref<1x9x64x128xbf16, #tpu.memory_space<vmem>>, vector<1x1x64x128xbf16>
    %51 = vector.shape_cast %50 : vector<1x1x64x128xbf16> to vector<64x128xbf16>
    %52 = arith.extf %51 : vector<64x128xbf16> to vector<64x128xf32>
    %53 = vector.extract_strided_slice %0 {offsets = [6, 0, 0], sizes = [1, 1, 128], strides = [1, 1, 1]} : vector<9x1x128xf32> to vector<1x1x128xf32>
    %54 = vector.shape_cast %53 : vector<1x1x128xf32> to vector<1x128xf32>
    %55 = vector.broadcast %54 : vector<1x128xf32> to vector<64x128xf32>
    %56 = arith.mulf %52, %55 : vector<64x128xf32>
    %57 = arith.addf %49, %56 : vector<64x128xf32>
    %c0_24 = arith.constant 0 : index
    %c7 = arith.constant 7 : index
    %c0_25 = arith.constant 0 : index
    %c0_26 = arith.constant 0 : index
    %58 = vector.load %arg1[%c0_24, %c7, %c0_25, %c0_26] : memref<1x9x64x128xbf16, #tpu.memory_space<vmem>>, vector<1x1x64x128xbf16>
    %59 = vector.shape_cast %58 : vector<1x1x64x128xbf16> to vector<64x128xbf16>
    %60 = arith.extf %59 : vector<64x128xbf16> to vector<64x128xf32>
    %61 = vector.extract_strided_slice %0 {offsets = [7, 0, 0], sizes = [1, 1, 128], strides = [1, 1, 1]} : vector<9x1x128xf32> to vector<1x1x128xf32>
    %62 = vector.shape_cast %61 : vector<1x1x128xf32> to vector<1x128xf32>
    %63 = vector.broadcast %62 : vector<1x128xf32> to vector<64x128xf32>
    %64 = arith.mulf %60, %63 : vector<64x128xf32>
    %65 = arith.addf %57, %64 : vector<64x128xf32>
    %c0_27 = arith.constant 0 : index
    %c8 = arith.constant 8 : index
    %c0_28 = arith.constant 0 : index
    %c0_29 = arith.constant 0 : index
    %66 = vector.load %arg1[%c0_27, %c8, %c0_28, %c0_29] : memref<1x9x64x128xbf16, #tpu.memory_space<vmem>>, vector<1x1x64x128xbf16>
    %67 = vector.shape_cast %66 : vector<1x1x64x128xbf16> to vector<64x128xbf16>
    %68 = arith.extf %67 : vector<64x128xbf16> to vector<64x128xf32>
    %69 = vector.extract_strided_slice %0 {offsets = [8, 0, 0], sizes = [1, 1, 128], strides = [1, 1, 1]} : vector<9x1x128xf32> to vector<1x1x128xf32>
    %70 = vector.shape_cast %69 : vector<1x1x128xf32> to vector<1x128xf32>
    %71 = vector.broadcast %70 : vector<1x128xf32> to vector<64x128xf32>
    %72 = arith.mulf %68, %71 : vector<64x128xf32>
    %73 = arith.addf %65, %72 : vector<64x128xf32>
    %c0_30 = arith.constant 0 : index
    %c0_31 = arith.constant 0 : index
    %74 = vector.load %arg3[%c0_30, %c0_31] : memref<1x128xf32, #tpu.memory_space<vmem>>, vector<1x128xf32>
    %75 = vector.broadcast %74 : vector<1x128xf32> to vector<64x128xf32>
    %76 = arith.addf %73, %75 : vector<64x128xf32>
    %cst_32 = arith.constant 0.000000e+00 : f32
    %77 = vector.broadcast %cst_32 : f32 to vector<64x128xf32>
    %78 = arith.maximumf %76, %77 : vector<64x128xf32>
    %cst_33 = arith.constant dense<0.000000e+00> : vector<128xf32>
    %79 = vector.multi_reduction <add>, %78, %cst_33 [0] : vector<64x128xf32> to vector<128xf32>
    %80 = vector.shape_cast %79 : vector<128xf32> to vector<1x128xf32>
    %cst_34 = arith.constant 6.400000e+01 : f32
    %81 = vector.broadcast %cst_34 : f32 to vector<1x128xf32>
    %82 = arith.divf %80, %81 : vector<1x128xf32>
    %83 = arith.truncf %82 : vector<1x128xf32> to vector<1x128xbf16>
    %c0_35 = arith.constant 0 : index
    %c0_36 = arith.constant 0 : index
    %84 = vector.load %arg4[%c0_35, %c0_36] : memref<128x128xbf16, #tpu.memory_space<vmem>>, vector<128x128xbf16>
    %cst_37 = arith.constant dense<0.000000e+00> : vector<1x128xf32>
    %85 = tpu.matmul %83, %84, %cst_37 {dimension_numbers = #tpu.dot_dimension_numbers<[1], [0], [0], [1], [0, 0, 1, 1], [], []>} : vector<1x128xbf16>, vector<128x128xbf16>, vector<1x128xf32> -> vector<1x128xf32>
    %c0_38 = arith.constant 0 : index
    %c0_39 = arith.constant 0 : index
    %86 = vector.load %arg5[%c0_38, %c0_39] : memref<1x128xf32, #tpu.memory_space<vmem>>, vector<1x128xf32>
    %87 = arith.addf %85, %86 : vector<1x128xf32>
    %cst_40 = arith.constant 0.000000e+00 : f32
    %88 = vector.broadcast %cst_40 : f32 to vector<1x128xf32>
    %89 = arith.maximumf %87, %88 : vector<1x128xf32>
    %90 = arith.truncf %89 : vector<1x128xf32> to vector<1x128xbf16>
    %c0_41 = arith.constant 0 : index
    %c0_42 = arith.constant 0 : index
    %91 = vector.load %arg6[%c0_41, %c0_42] : memref<128x128xbf16, #tpu.memory_space<vmem>>, vector<128x128xbf16>
    %cst_43 = arith.constant dense<0.000000e+00> : vector<1x128xf32>
    %92 = tpu.matmul %90, %91, %cst_43 {dimension_numbers = #tpu.dot_dimension_numbers<[1], [0], [0], [1], [0, 0, 1, 1], [], []>} : vector<1x128xbf16>, vector<128x128xbf16>, vector<1x128xf32> -> vector<1x128xf32>
    %c0_44 = arith.constant 0 : index
    %c0_45 = arith.constant 0 : index
    %93 = vector.load %arg7[%c0_44, %c0_45] : memref<1x128xf32, #tpu.memory_space<vmem>>, vector<1x128xf32>
    %94 = arith.addf %92, %93 : vector<1x128xf32>
    %cst_46 = arith.constant 3.000000e+00 : f32
    %95 = vector.broadcast %cst_46 : f32 to vector<1x128xf32>
    %96 = arith.addf %94, %95 : vector<1x128xf32>
    %cst_47 = arith.constant 0.000000e+00 : f32
    %cst_48 = arith.constant 6.000000e+00 : f32
    %97 = vector.broadcast %cst_47 : f32 to vector<1x128xf32>
    %98 = arith.maximumf %97, %96 : vector<1x128xf32>
    %99 = vector.broadcast %cst_48 : f32 to vector<1x128xf32>
    %100 = arith.minimumf %99, %98 : vector<1x128xf32>
    %cst_49 = arith.constant 6.000000e+00 : f32
    %101 = vector.broadcast %cst_49 : f32 to vector<1x128xf32>
    %102 = arith.divf %100, %101 : vector<1x128xf32>
    %103 = vector.broadcast %102 : vector<1x128xf32> to vector<64x128xf32>
    %104 = arith.mulf %78, %103 : vector<64x128xf32>
    %105 = arith.truncf %104 : vector<64x128xf32> to vector<64x128xbf16>
    %c0_50 = arith.constant 0 : index
    %c0_51 = arith.constant 0 : index
    %106 = vector.load %arg8[%c0_50, %c0_51] : memref<128x128xbf16, #tpu.memory_space<vmem>>, vector<128x128xbf16>
    %cst_52 = arith.constant dense<0.000000e+00> : vector<64x128xf32>
    %107 = tpu.matmul %105, %106, %cst_52 {dimension_numbers = #tpu.dot_dimension_numbers<[1], [0], [0], [1], [0, 0, 1, 1], [], []>} : vector<64x128xbf16>, vector<128x128xbf16>, vector<64x128xf32> -> vector<64x128xf32>
    %c0_53 = arith.constant 0 : index
    %c0_54 = arith.constant 0 : index
    %108 = vector.load %arg9[%c0_53, %c0_54] : memref<1x128xf32, #tpu.memory_space<vmem>>, vector<1x128xf32>
    %109 = vector.broadcast %108 : vector<1x128xf32> to vector<64x128xf32>
    %110 = arith.addf %107, %109 : vector<64x128xf32>
    %111 = arith.truncf %110 : vector<64x128xf32> to vector<64x128xbf16>
    %c0_55 = arith.constant 0 : index
    %c0_56 = arith.constant 0 : index
    %c0_57 = arith.constant 0 : index
    %112 = vector.load %arg10[%c0_55, %c0_56, %c0_57] : memref<1x64x128xbf16, #tpu.memory_space<vmem>>, vector<1x64x128xbf16>
    %113 = vector.shape_cast %112 : vector<1x64x128xbf16> to vector<64x128xbf16>
    %114 = vector.shape_cast %111 : vector<64x128xbf16> to vector<1x64x128xbf16>
    tpu.vector_store %arg10[%c0_55, %c0_56, %c0_57], %114 {strides = array<i32>} : memref<1x64x128xbf16, #tpu.memory_space<vmem>>, vector<1x64x128xbf16>,
    return
  }
  func.func @transform_0(%arg0: i32) -> (i32, i32, i32, i32) {
    %c0_i32 = arith.constant 0 : i32
    %c0_i32_0 = arith.constant 0 : i32
    %c0_i32_1 = arith.constant 0 : i32
    %c0_i32_2 = arith.constant 0 : i32
    return %arg0, %c0_i32, %c0_i32_0, %c0_i32_1 : i32, i32, i32, i32
  }
  func.func @transform_1(%arg0: i32) -> (i32, i32, i32) {
    %c0_i32 = arith.constant 0 : i32
    %c0_i32_0 = arith.constant 0 : i32
    %c0_i32_1 = arith.constant 0 : i32
    %c0_i32_2 = arith.constant 0 : i32
    return %c0_i32, %c0_i32_0, %c0_i32_1 : i32, i32, i32
  }
  func.func @transform_2(%arg0: i32) -> (i32, i32) {
    %c0_i32 = arith.constant 0 : i32
    %c0_i32_0 = arith.constant 0 : i32
    %c0_i32_1 = arith.constant 0 : i32
    return %c0_i32, %c0_i32_0 : i32, i32
  }
  func.func @transform_3(%arg0: i32) -> (i32, i32) {
    %c0_i32 = arith.constant 0 : i32
    %c0_i32_0 = arith.constant 0 : i32
    %c0_i32_1 = arith.constant 0 : i32
    return %c0_i32, %c0_i32_0 : i32, i32
  }
  func.func @transform_4(%arg0: i32) -> (i32, i32) {
    %c0_i32 = arith.constant 0 : i32
    %c0_i32_0 = arith.constant 0 : i32
    %c0_i32_1 = arith.constant 0 : i32
    return %c0_i32, %c0_i32_0 : i32, i32
  }
  func.func @transform_5(%arg0: i32) -> (i32, i32) {
    %c0_i32 = arith.constant 0 : i32
    %c0_i32_0 = arith.constant 0 : i32
    %c0_i32_1 = arith.constant 0 : i32
    return %c0_i32, %c0_i32_0 : i32, i32
  }
  func.func @transform_6(%arg0: i32) -> (i32, i32) {
    %c0_i32 = arith.constant 0 : i32
    %c0_i32_0 = arith.constant 0 : i32
    %c0_i32_1 = arith.constant 0 : i32
    return %c0_i32, %c0_i32_0 : i32, i32
  }
  func.func @transform_7(%arg0: i32) -> (i32, i32) {
    %c0_i32 = arith.constant 0 : i32
    %c0_i32_0 = arith.constant 0 : i32
    %c0_i32_1 = arith.constant 0 : i32
    return %c0_i32, %c0_i32_0 : i32, i32
  }
  func.func @transform_8(%arg0: i32) -> (i32, i32) {
    %c0_i32 = arith.constant 0 : i32
    %c0_i32_0 = arith.constant 0 : i32
    %c0_i32_1 = arith.constant 0 : i32
    return %c0_i32, %c0_i32_0 : i32, i32
  }
  func.func @transform_9(%arg0: i32) -> (i32, i32, i32) {
    %c0_i32 = arith.constant 0 : i32
    %c0_i32_0 = arith.constant 0 : i32
    %c0_i32_1 = arith.constant 0 : i32
    return %arg0, %c0_i32, %c0_i32_0 : i32, i32, i32
  }
}

module attributes {stable_mosaic.version = 11 : i64} {
  func.func @_block_kernel(%arg0: i32, %arg1: memref<1x9x16x128xbf16, #tpu.memory_space<vmem>>, %arg2: memref<9x16x1xf32, #tpu.memory_space<vmem>>, %arg3: memref<128x128xbf16, #tpu.memory_space<vmem>>, %arg4: memref<1x128xf32, #tpu.memory_space<vmem>>, %arg5: memref<9x1x128xf32, #tpu.memory_space<vmem>>, %arg6: memref<1x128xf32, #tpu.memory_space<vmem>>, %arg7: memref<128x128xbf16, #tpu.memory_space<vmem>>, %arg8: memref<1x128xf32, #tpu.memory_space<vmem>>, %arg9: memref<1x16x128xbf16, #tpu.memory_space<vmem>>) attributes {dimension_semantics = [#tpu.dimension_semantics<parallel>], iteration_bounds = array<i64: 2>, scalar_prefetch = 0 : i64, scratch_operands = 0 : i64, tpu.core_type = #tpu.core_type<tc>, window_params = [{transform_indices = @transform_0, window_bounds = array<i64: 1, 9, 16, 128>}, {pipeline_mode = #tpu.pipeline_mode<synchronous>, transform_indices = @transform_1, window_bounds = array<i64: 9, 16, 1>}, {pipeline_mode = #tpu.pipeline_mode<synchronous>, transform_indices = @transform_2, window_bounds = array<i64: 128, 128>}, {pipeline_mode = #tpu.pipeline_mode<synchronous>, transform_indices = @transform_3, window_bounds = array<i64: 1, 128>}, {pipeline_mode = #tpu.pipeline_mode<synchronous>, transform_indices = @transform_4, window_bounds = array<i64: 9, 1, 128>}, {pipeline_mode = #tpu.pipeline_mode<synchronous>, transform_indices = @transform_5, window_bounds = array<i64: 1, 128>}, {pipeline_mode = #tpu.pipeline_mode<synchronous>, transform_indices = @transform_6, window_bounds = array<i64: 128, 128>}, {pipeline_mode = #tpu.pipeline_mode<synchronous>, transform_indices = @transform_7, window_bounds = array<i64: 1, 128>}, {transform_indices = @transform_8, window_bounds = array<i64: 1, 16, 128>}]} {
    %c0 = arith.constant 0 : index
    %c0_0 = arith.constant 0 : index
    %c0_1 = arith.constant 0 : index
    %0 = vector.load %arg5[%c0, %c0_0, %c0_1] : memref<9x1x128xf32, #tpu.memory_space<vmem>>, vector<9x1x128xf32>
    %c0_2 = arith.constant 0 : index
    %c0_3 = arith.constant 0 : index
    %1 = vector.load %arg3[%c0_2, %c0_3] : memref<128x128xbf16, #tpu.memory_space<vmem>>, vector<128x128xbf16>
    %c0_4 = arith.constant 0 : index
    %c0_5 = arith.constant 0 : index
    %2 = vector.load %arg4[%c0_4, %c0_5] : memref<1x128xf32, #tpu.memory_space<vmem>>, vector<1x128xf32>
    %c0_6 = arith.constant 0 : index
    %c0_7 = arith.constant 0 : index
    %c0_8 = arith.constant 0 : index
    %3 = vector.load %arg2[%c0_6, %c0_7, %c0_8] : memref<9x16x1xf32, #tpu.memory_space<vmem>>, vector<9x16x1xf32>
    %cst = arith.constant 0.000000e+00 : f32
    %4 = vector.broadcast %cst : f32 to vector<16x128xf32>
    %c0_9 = arith.constant 0 : index
    %c0_10 = arith.constant 0 : index
    %c0_11 = arith.constant 0 : index
    %c0_12 = arith.constant 0 : index
    %5 = vector.load %arg1[%c0_9, %c0_10, %c0_11, %c0_12] : memref<1x9x16x128xbf16, #tpu.memory_space<vmem>>, vector<1x1x16x128xbf16>
    %6 = vector.shape_cast %5 : vector<1x1x16x128xbf16> to vector<16x128xbf16>
    %cst_13 = arith.constant dense<0.000000e+00> : vector<16x128xf32>
    %7 = tpu.matmul %6, %1, %cst_13 {dimension_numbers = #tpu.dot_dimension_numbers<[1], [0], [0], [1], [0, 0, 1, 1], [], []>} : vector<16x128xbf16>, vector<128x128xbf16>, vector<16x128xf32> -> vector<16x128xf32>
    %8 = vector.broadcast %2 : vector<1x128xf32> to vector<16x128xf32>
    %9 = arith.addf %7, %8 : vector<16x128xf32>
    %cst_14 = arith.constant 0.000000e+00 : f32
    %10 = vector.broadcast %cst_14 : f32 to vector<16x128xf32>
    %11 = arith.maximumf %9, %10 : vector<16x128xf32>
    %12 = vector.extract_strided_slice %3 {offsets = [0, 0, 0], sizes = [1, 16, 1], strides = [1, 1, 1]} : vector<9x16x1xf32> to vector<1x16x1xf32>
    %13 = vector.shape_cast %12 : vector<1x16x1xf32> to vector<16x1xf32>
    %14 = vector.broadcast %13 : vector<16x1xf32> to vector<16x128xf32>
    %15 = arith.mulf %11, %14 : vector<16x128xf32>
    %16 = vector.extract_strided_slice %0 {offsets = [0, 0, 0], sizes = [1, 1, 128], strides = [1, 1, 1]} : vector<9x1x128xf32> to vector<1x1x128xf32>
    %17 = vector.shape_cast %16 : vector<1x1x128xf32> to vector<1x128xf32>
    %18 = vector.broadcast %17 : vector<1x128xf32> to vector<16x128xf32>
    %19 = arith.mulf %15, %18 : vector<16x128xf32>
    %20 = arith.addf %4, %19 : vector<16x128xf32>
    %c0_15 = arith.constant 0 : index
    %c1 = arith.constant 1 : index
    %c0_16 = arith.constant 0 : index
    %c0_17 = arith.constant 0 : index
    %21 = vector.load %arg1[%c0_15, %c1, %c0_16, %c0_17] : memref<1x9x16x128xbf16, #tpu.memory_space<vmem>>, vector<1x1x16x128xbf16>
    %22 = vector.shape_cast %21 : vector<1x1x16x128xbf16> to vector<16x128xbf16>
    %cst_18 = arith.constant dense<0.000000e+00> : vector<16x128xf32>
    %23 = tpu.matmul %22, %1, %cst_18 {dimension_numbers = #tpu.dot_dimension_numbers<[1], [0], [0], [1], [0, 0, 1, 1], [], []>} : vector<16x128xbf16>, vector<128x128xbf16>, vector<16x128xf32> -> vector<16x128xf32>
    %24 = vector.broadcast %2 : vector<1x128xf32> to vector<16x128xf32>
    %25 = arith.addf %23, %24 : vector<16x128xf32>
    %cst_19 = arith.constant 0.000000e+00 : f32
    %26 = vector.broadcast %cst_19 : f32 to vector<16x128xf32>
    %27 = arith.maximumf %25, %26 : vector<16x128xf32>
    %28 = vector.extract_strided_slice %3 {offsets = [1, 0, 0], sizes = [1, 16, 1], strides = [1, 1, 1]} : vector<9x16x1xf32> to vector<1x16x1xf32>
    %29 = vector.shape_cast %28 : vector<1x16x1xf32> to vector<16x1xf32>
    %30 = vector.broadcast %29 : vector<16x1xf32> to vector<16x128xf32>
    %31 = arith.mulf %27, %30 : vector<16x128xf32>
    %32 = vector.extract_strided_slice %0 {offsets = [1, 0, 0], sizes = [1, 1, 128], strides = [1, 1, 1]} : vector<9x1x128xf32> to vector<1x1x128xf32>
    %33 = vector.shape_cast %32 : vector<1x1x128xf32> to vector<1x128xf32>
    %34 = vector.broadcast %33 : vector<1x128xf32> to vector<16x128xf32>
    %35 = arith.mulf %31, %34 : vector<16x128xf32>
    %36 = arith.addf %20, %35 : vector<16x128xf32>
    %c0_20 = arith.constant 0 : index
    %c2 = arith.constant 2 : index
    %c0_21 = arith.constant 0 : index
    %c0_22 = arith.constant 0 : index
    %37 = vector.load %arg1[%c0_20, %c2, %c0_21, %c0_22] : memref<1x9x16x128xbf16, #tpu.memory_space<vmem>>, vector<1x1x16x128xbf16>
    %38 = vector.shape_cast %37 : vector<1x1x16x128xbf16> to vector<16x128xbf16>
    %cst_23 = arith.constant dense<0.000000e+00> : vector<16x128xf32>
    %39 = tpu.matmul %38, %1, %cst_23 {dimension_numbers = #tpu.dot_dimension_numbers<[1], [0], [0], [1], [0, 0, 1, 1], [], []>} : vector<16x128xbf16>, vector<128x128xbf16>, vector<16x128xf32> -> vector<16x128xf32>
    %40 = vector.broadcast %2 : vector<1x128xf32> to vector<16x128xf32>
    %41 = arith.addf %39, %40 : vector<16x128xf32>
    %cst_24 = arith.constant 0.000000e+00 : f32
    %42 = vector.broadcast %cst_24 : f32 to vector<16x128xf32>
    %43 = arith.maximumf %41, %42 : vector<16x128xf32>
    %44 = vector.extract_strided_slice %3 {offsets = [2, 0, 0], sizes = [1, 16, 1], strides = [1, 1, 1]} : vector<9x16x1xf32> to vector<1x16x1xf32>
    %45 = vector.shape_cast %44 : vector<1x16x1xf32> to vector<16x1xf32>
    %46 = vector.broadcast %45 : vector<16x1xf32> to vector<16x128xf32>
    %47 = arith.mulf %43, %46 : vector<16x128xf32>
    %48 = vector.extract_strided_slice %0 {offsets = [2, 0, 0], sizes = [1, 1, 128], strides = [1, 1, 1]} : vector<9x1x128xf32> to vector<1x1x128xf32>
    %49 = vector.shape_cast %48 : vector<1x1x128xf32> to vector<1x128xf32>
    %50 = vector.broadcast %49 : vector<1x128xf32> to vector<16x128xf32>
    %51 = arith.mulf %47, %50 : vector<16x128xf32>
    %52 = arith.addf %36, %51 : vector<16x128xf32>
    %c0_25 = arith.constant 0 : index
    %c3 = arith.constant 3 : index
    %c0_26 = arith.constant 0 : index
    %c0_27 = arith.constant 0 : index
    %53 = vector.load %arg1[%c0_25, %c3, %c0_26, %c0_27] : memref<1x9x16x128xbf16, #tpu.memory_space<vmem>>, vector<1x1x16x128xbf16>
    %54 = vector.shape_cast %53 : vector<1x1x16x128xbf16> to vector<16x128xbf16>
    %cst_28 = arith.constant dense<0.000000e+00> : vector<16x128xf32>
    %55 = tpu.matmul %54, %1, %cst_28 {dimension_numbers = #tpu.dot_dimension_numbers<[1], [0], [0], [1], [0, 0, 1, 1], [], []>} : vector<16x128xbf16>, vector<128x128xbf16>, vector<16x128xf32> -> vector<16x128xf32>
    %56 = vector.broadcast %2 : vector<1x128xf32> to vector<16x128xf32>
    %57 = arith.addf %55, %56 : vector<16x128xf32>
    %cst_29 = arith.constant 0.000000e+00 : f32
    %58 = vector.broadcast %cst_29 : f32 to vector<16x128xf32>
    %59 = arith.maximumf %57, %58 : vector<16x128xf32>
    %60 = vector.extract_strided_slice %3 {offsets = [3, 0, 0], sizes = [1, 16, 1], strides = [1, 1, 1]} : vector<9x16x1xf32> to vector<1x16x1xf32>
    %61 = vector.shape_cast %60 : vector<1x16x1xf32> to vector<16x1xf32>
    %62 = vector.broadcast %61 : vector<16x1xf32> to vector<16x128xf32>
    %63 = arith.mulf %59, %62 : vector<16x128xf32>
    %64 = vector.extract_strided_slice %0 {offsets = [3, 0, 0], sizes = [1, 1, 128], strides = [1, 1, 1]} : vector<9x1x128xf32> to vector<1x1x128xf32>
    %65 = vector.shape_cast %64 : vector<1x1x128xf32> to vector<1x128xf32>
    %66 = vector.broadcast %65 : vector<1x128xf32> to vector<16x128xf32>
    %67 = arith.mulf %63, %66 : vector<16x128xf32>
    %68 = arith.addf %52, %67 : vector<16x128xf32>
    %c0_30 = arith.constant 0 : index
    %c4 = arith.constant 4 : index
    %c0_31 = arith.constant 0 : index
    %c0_32 = arith.constant 0 : index
    %69 = vector.load %arg1[%c0_30, %c4, %c0_31, %c0_32] : memref<1x9x16x128xbf16, #tpu.memory_space<vmem>>, vector<1x1x16x128xbf16>
    %70 = vector.shape_cast %69 : vector<1x1x16x128xbf16> to vector<16x128xbf16>
    %cst_33 = arith.constant dense<0.000000e+00> : vector<16x128xf32>
    %71 = tpu.matmul %70, %1, %cst_33 {dimension_numbers = #tpu.dot_dimension_numbers<[1], [0], [0], [1], [0, 0, 1, 1], [], []>} : vector<16x128xbf16>, vector<128x128xbf16>, vector<16x128xf32> -> vector<16x128xf32>
    %72 = vector.broadcast %2 : vector<1x128xf32> to vector<16x128xf32>
    %73 = arith.addf %71, %72 : vector<16x128xf32>
    %cst_34 = arith.constant 0.000000e+00 : f32
    %74 = vector.broadcast %cst_34 : f32 to vector<16x128xf32>
    %75 = arith.maximumf %73, %74 : vector<16x128xf32>
    %76 = vector.extract_strided_slice %3 {offsets = [4, 0, 0], sizes = [1, 16, 1], strides = [1, 1, 1]} : vector<9x16x1xf32> to vector<1x16x1xf32>
    %77 = vector.shape_cast %76 : vector<1x16x1xf32> to vector<16x1xf32>
    %78 = vector.broadcast %77 : vector<16x1xf32> to vector<16x128xf32>
    %79 = arith.mulf %75, %78 : vector<16x128xf32>
    %80 = vector.extract_strided_slice %0 {offsets = [4, 0, 0], sizes = [1, 1, 128], strides = [1, 1, 1]} : vector<9x1x128xf32> to vector<1x1x128xf32>
    %81 = vector.shape_cast %80 : vector<1x1x128xf32> to vector<1x128xf32>
    %82 = vector.broadcast %81 : vector<1x128xf32> to vector<16x128xf32>
    %83 = arith.mulf %79, %82 : vector<16x128xf32>
    %84 = arith.addf %68, %83 : vector<16x128xf32>
    %c0_35 = arith.constant 0 : index
    %c5 = arith.constant 5 : index
    %c0_36 = arith.constant 0 : index
    %c0_37 = arith.constant 0 : index
    %85 = vector.load %arg1[%c0_35, %c5, %c0_36, %c0_37] : memref<1x9x16x128xbf16, #tpu.memory_space<vmem>>, vector<1x1x16x128xbf16>
    %86 = vector.shape_cast %85 : vector<1x1x16x128xbf16> to vector<16x128xbf16>
    %cst_38 = arith.constant dense<0.000000e+00> : vector<16x128xf32>
    %87 = tpu.matmul %86, %1, %cst_38 {dimension_numbers = #tpu.dot_dimension_numbers<[1], [0], [0], [1], [0, 0, 1, 1], [], []>} : vector<16x128xbf16>, vector<128x128xbf16>, vector<16x128xf32> -> vector<16x128xf32>
    %88 = vector.broadcast %2 : vector<1x128xf32> to vector<16x128xf32>
    %89 = arith.addf %87, %88 : vector<16x128xf32>
    %cst_39 = arith.constant 0.000000e+00 : f32
    %90 = vector.broadcast %cst_39 : f32 to vector<16x128xf32>
    %91 = arith.maximumf %89, %90 : vector<16x128xf32>
    %92 = vector.extract_strided_slice %3 {offsets = [5, 0, 0], sizes = [1, 16, 1], strides = [1, 1, 1]} : vector<9x16x1xf32> to vector<1x16x1xf32>
    %93 = vector.shape_cast %92 : vector<1x16x1xf32> to vector<16x1xf32>
    %94 = vector.broadcast %93 : vector<16x1xf32> to vector<16x128xf32>
    %95 = arith.mulf %91, %94 : vector<16x128xf32>
    %96 = vector.extract_strided_slice %0 {offsets = [5, 0, 0], sizes = [1, 1, 128], strides = [1, 1, 1]} : vector<9x1x128xf32> to vector<1x1x128xf32>
    %97 = vector.shape_cast %96 : vector<1x1x128xf32> to vector<1x128xf32>
    %98 = vector.broadcast %97 : vector<1x128xf32> to vector<16x128xf32>
    %99 = arith.mulf %95, %98 : vector<16x128xf32>
    %100 = arith.addf %84, %99 : vector<16x128xf32>
    %c0_40 = arith.constant 0 : index
    %c6 = arith.constant 6 : index
    %c0_41 = arith.constant 0 : index
    %c0_42 = arith.constant 0 : index
    %101 = vector.load %arg1[%c0_40, %c6, %c0_41, %c0_42] : memref<1x9x16x128xbf16, #tpu.memory_space<vmem>>, vector<1x1x16x128xbf16>
    %102 = vector.shape_cast %101 : vector<1x1x16x128xbf16> to vector<16x128xbf16>
    %cst_43 = arith.constant dense<0.000000e+00> : vector<16x128xf32>
    %103 = tpu.matmul %102, %1, %cst_43 {dimension_numbers = #tpu.dot_dimension_numbers<[1], [0], [0], [1], [0, 0, 1, 1], [], []>} : vector<16x128xbf16>, vector<128x128xbf16>, vector<16x128xf32> -> vector<16x128xf32>
    %104 = vector.broadcast %2 : vector<1x128xf32> to vector<16x128xf32>
    %105 = arith.addf %103, %104 : vector<16x128xf32>
    %cst_44 = arith.constant 0.000000e+00 : f32
    %106 = vector.broadcast %cst_44 : f32 to vector<16x128xf32>
    %107 = arith.maximumf %105, %106 : vector<16x128xf32>
    %108 = vector.extract_strided_slice %3 {offsets = [6, 0, 0], sizes = [1, 16, 1], strides = [1, 1, 1]} : vector<9x16x1xf32> to vector<1x16x1xf32>
    %109 = vector.shape_cast %108 : vector<1x16x1xf32> to vector<16x1xf32>
    %110 = vector.broadcast %109 : vector<16x1xf32> to vector<16x128xf32>
    %111 = arith.mulf %107, %110 : vector<16x128xf32>
    %112 = vector.extract_strided_slice %0 {offsets = [6, 0, 0], sizes = [1, 1, 128], strides = [1, 1, 1]} : vector<9x1x128xf32> to vector<1x1x128xf32>
    %113 = vector.shape_cast %112 : vector<1x1x128xf32> to vector<1x128xf32>
    %114 = vector.broadcast %113 : vector<1x128xf32> to vector<16x128xf32>
    %115 = arith.mulf %111, %114 : vector<16x128xf32>
    %116 = arith.addf %100, %115 : vector<16x128xf32>
    %c0_45 = arith.constant 0 : index
    %c7 = arith.constant 7 : index
    %c0_46 = arith.constant 0 : index
    %c0_47 = arith.constant 0 : index
    %117 = vector.load %arg1[%c0_45, %c7, %c0_46, %c0_47] : memref<1x9x16x128xbf16, #tpu.memory_space<vmem>>, vector<1x1x16x128xbf16>
    %118 = vector.shape_cast %117 : vector<1x1x16x128xbf16> to vector<16x128xbf16>
    %cst_48 = arith.constant dense<0.000000e+00> : vector<16x128xf32>
    %119 = tpu.matmul %118, %1, %cst_48 {dimension_numbers = #tpu.dot_dimension_numbers<[1], [0], [0], [1], [0, 0, 1, 1], [], []>} : vector<16x128xbf16>, vector<128x128xbf16>, vector<16x128xf32> -> vector<16x128xf32>
    %120 = vector.broadcast %2 : vector<1x128xf32> to vector<16x128xf32>
    %121 = arith.addf %119, %120 : vector<16x128xf32>
    %cst_49 = arith.constant 0.000000e+00 : f32
    %122 = vector.broadcast %cst_49 : f32 to vector<16x128xf32>
    %123 = arith.maximumf %121, %122 : vector<16x128xf32>
    %124 = vector.extract_strided_slice %3 {offsets = [7, 0, 0], sizes = [1, 16, 1], strides = [1, 1, 1]} : vector<9x16x1xf32> to vector<1x16x1xf32>
    %125 = vector.shape_cast %124 : vector<1x16x1xf32> to vector<16x1xf32>
    %126 = vector.broadcast %125 : vector<16x1xf32> to vector<16x128xf32>
    %127 = arith.mulf %123, %126 : vector<16x128xf32>
    %128 = vector.extract_strided_slice %0 {offsets = [7, 0, 0], sizes = [1, 1, 128], strides = [1, 1, 1]} : vector<9x1x128xf32> to vector<1x1x128xf32>
    %129 = vector.shape_cast %128 : vector<1x1x128xf32> to vector<1x128xf32>
    %130 = vector.broadcast %129 : vector<1x128xf32> to vector<16x128xf32>
    %131 = arith.mulf %127, %130 : vector<16x128xf32>
    %132 = arith.addf %116, %131 : vector<16x128xf32>
    %c0_50 = arith.constant 0 : index
    %c8 = arith.constant 8 : index
    %c0_51 = arith.constant 0 : index
    %c0_52 = arith.constant 0 : index
    %133 = vector.load %arg1[%c0_50, %c8, %c0_51, %c0_52] : memref<1x9x16x128xbf16, #tpu.memory_space<vmem>>, vector<1x1x16x128xbf16>
    %134 = vector.shape_cast %133 : vector<1x1x16x128xbf16> to vector<16x128xbf16>
    %cst_53 = arith.constant dense<0.000000e+00> : vector<16x128xf32>
    %135 = tpu.matmul %134, %1, %cst_53 {dimension_numbers = #tpu.dot_dimension_numbers<[1], [0], [0], [1], [0, 0, 1, 1], [], []>} : vector<16x128xbf16>, vector<128x128xbf16>, vector<16x128xf32> -> vector<16x128xf32>
    %136 = vector.broadcast %2 : vector<1x128xf32> to vector<16x128xf32>
    %137 = arith.addf %135, %136 : vector<16x128xf32>
    %cst_54 = arith.constant 0.000000e+00 : f32
    %138 = vector.broadcast %cst_54 : f32 to vector<16x128xf32>
    %139 = arith.maximumf %137, %138 : vector<16x128xf32>
    %140 = vector.extract_strided_slice %3 {offsets = [8, 0, 0], sizes = [1, 16, 1], strides = [1, 1, 1]} : vector<9x16x1xf32> to vector<1x16x1xf32>
    %141 = vector.shape_cast %140 : vector<1x16x1xf32> to vector<16x1xf32>
    %142 = vector.broadcast %141 : vector<16x1xf32> to vector<16x128xf32>
    %143 = arith.mulf %139, %142 : vector<16x128xf32>
    %144 = vector.extract_strided_slice %0 {offsets = [8, 0, 0], sizes = [1, 1, 128], strides = [1, 1, 1]} : vector<9x1x128xf32> to vector<1x1x128xf32>
    %145 = vector.shape_cast %144 : vector<1x1x128xf32> to vector<1x128xf32>
    %146 = vector.broadcast %145 : vector<1x128xf32> to vector<16x128xf32>
    %147 = arith.mulf %143, %146 : vector<16x128xf32>
    %148 = arith.addf %132, %147 : vector<16x128xf32>
    %c0_55 = arith.constant 0 : index
    %c0_56 = arith.constant 0 : index
    %149 = vector.load %arg6[%c0_55, %c0_56] : memref<1x128xf32, #tpu.memory_space<vmem>>, vector<1x128xf32>
    %150 = vector.broadcast %149 : vector<1x128xf32> to vector<16x128xf32>
    %151 = arith.addf %148, %150 : vector<16x128xf32>
    %cst_57 = arith.constant 0.000000e+00 : f32
    %152 = vector.broadcast %cst_57 : f32 to vector<16x128xf32>
    %153 = arith.maximumf %151, %152 : vector<16x128xf32>
    %154 = arith.truncf %153 : vector<16x128xf32> to vector<16x128xbf16>
    %c0_58 = arith.constant 0 : index
    %c0_59 = arith.constant 0 : index
    %155 = vector.load %arg7[%c0_58, %c0_59] : memref<128x128xbf16, #tpu.memory_space<vmem>>, vector<128x128xbf16>
    %cst_60 = arith.constant dense<0.000000e+00> : vector<16x128xf32>
    %156 = tpu.matmul %154, %155, %cst_60 {dimension_numbers = #tpu.dot_dimension_numbers<[1], [0], [0], [1], [0, 0, 1, 1], [], []>} : vector<16x128xbf16>, vector<128x128xbf16>, vector<16x128xf32> -> vector<16x128xf32>
    %c0_61 = arith.constant 0 : index
    %c0_62 = arith.constant 0 : index
    %157 = vector.load %arg8[%c0_61, %c0_62] : memref<1x128xf32, #tpu.memory_space<vmem>>, vector<1x128xf32>
    %158 = vector.broadcast %157 : vector<1x128xf32> to vector<16x128xf32>
    %159 = arith.addf %156, %158 : vector<16x128xf32>
    %160 = arith.truncf %159 : vector<16x128xf32> to vector<16x128xbf16>
    %c0_63 = arith.constant 0 : index
    %c0_64 = arith.constant 0 : index
    %c0_65 = arith.constant 0 : index
    %161 = vector.load %arg9[%c0_63, %c0_64, %c0_65] : memref<1x16x128xbf16, #tpu.memory_space<vmem>>, vector<1x16x128xbf16>
    %162 = vector.shape_cast %161 : vector<1x16x128xbf16> to vector<16x128xbf16>
    %163 = vector.shape_cast %160 : vector<16x128xbf16> to vector<1x16x128xbf16>
    tpu.vector_store %arg9[%c0_63, %c0_64, %c0_65], %163 {strides = array<i32>} : memref<1x16x128xbf16, #tpu.memory_space<vmem>>, vector<1x16x128xbf16>,
    return
  }
  func.func @transform_0(%arg0: i32) -> (i32, i32, i32, i32) {
    %c0_i32 = arith.constant 0 : i32
    %c0_i32_0 = arith.constant 0 : i32
    %c0_i32_1 = arith.constant 0 : i32
    %c0_i32_2 = arith.constant 0 : i32
    return %arg0, %c0_i32, %c0_i32_0, %c0_i32_1 : i32, i32, i32, i32
  }
  func.func @transform_1(%arg0: i32) -> (i32, i32, i32) {
    %c0_i32 = arith.constant 0 : i32
    %c0_i32_0 = arith.constant 0 : i32
    %c0_i32_1 = arith.constant 0 : i32
    %c0_i32_2 = arith.constant 0 : i32
    return %c0_i32, %c0_i32_0, %c0_i32_1 : i32, i32, i32
  }
  func.func @transform_2(%arg0: i32) -> (i32, i32) {
    %c0_i32 = arith.constant 0 : i32
    %c0_i32_0 = arith.constant 0 : i32
    %c0_i32_1 = arith.constant 0 : i32
    return %c0_i32, %c0_i32_0 : i32, i32
  }
  func.func @transform_3(%arg0: i32) -> (i32, i32) {
    %c0_i32 = arith.constant 0 : i32
    %c0_i32_0 = arith.constant 0 : i32
    %c0_i32_1 = arith.constant 0 : i32
    return %c0_i32, %c0_i32_0 : i32, i32
  }
  func.func @transform_4(%arg0: i32) -> (i32, i32, i32) {
    %c0_i32 = arith.constant 0 : i32
    %c0_i32_0 = arith.constant 0 : i32
    %c0_i32_1 = arith.constant 0 : i32
    %c0_i32_2 = arith.constant 0 : i32
    return %c0_i32, %c0_i32_0, %c0_i32_1 : i32, i32, i32
  }
  func.func @transform_5(%arg0: i32) -> (i32, i32) {
    %c0_i32 = arith.constant 0 : i32
    %c0_i32_0 = arith.constant 0 : i32
    %c0_i32_1 = arith.constant 0 : i32
    return %c0_i32, %c0_i32_0 : i32, i32
  }
  func.func @transform_6(%arg0: i32) -> (i32, i32) {
    %c0_i32 = arith.constant 0 : i32
    %c0_i32_0 = arith.constant 0 : i32
    %c0_i32_1 = arith.constant 0 : i32
    return %c0_i32, %c0_i32_0 : i32, i32
  }
  func.func @transform_7(%arg0: i32) -> (i32, i32) {
    %c0_i32 = arith.constant 0 : i32
    %c0_i32_0 = arith.constant 0 : i32
    %c0_i32_1 = arith.constant 0 : i32
    return %c0_i32, %c0_i32_0 : i32, i32
  }
  func.func @transform_8(%arg0: i32) -> (i32, i32, i32) {
    %c0_i32 = arith.constant 0 : i32
    %c0_i32_0 = arith.constant 0 : i32
    %c0_i32_1 = arith.constant 0 : i32
    return %arg0, %c0_i32, %c0_i32_0 : i32, i32, i32
  }
}

module attributes {stable_mosaic.version = 11 : i64} {
  func.func @_tail_kernel(%arg0: i32, %arg1: memref<1x16x128xbf16, #tpu.memory_space<vmem>>, %arg2: memref<128x256xbf16, #tpu.memory_space<vmem>>, %arg3: memref<1x256xf32, #tpu.memory_space<vmem>>, %arg4: memref<256x896xbf16, #tpu.memory_space<vmem>>, %arg5: memref<1x896xf32, #tpu.memory_space<vmem>>, %arg6: memref<896x256xbf16, #tpu.memory_space<vmem>>, %arg7: memref<1x256xf32, #tpu.memory_space<vmem>>, %arg8: memref<1x1x256xf32, #tpu.memory_space<vmem>>) attributes {dimension_semantics = [#tpu.dimension_semantics<parallel>], iteration_bounds = array<i64: 2>, scalar_prefetch = 0 : i64, scratch_operands = 0 : i64, tpu.core_type = #tpu.core_type<tc>, window_params = [{transform_indices = @transform_0, window_bounds = array<i64: 1, 16, 128>}, {pipeline_mode = #tpu.pipeline_mode<synchronous>, transform_indices = @transform_1, window_bounds = array<i64: 128, 256>}, {pipeline_mode = #tpu.pipeline_mode<synchronous>, transform_indices = @transform_2, window_bounds = array<i64: 1, 256>}, {pipeline_mode = #tpu.pipeline_mode<synchronous>, transform_indices = @transform_3, window_bounds = array<i64: 256, 896>}, {pipeline_mode = #tpu.pipeline_mode<synchronous>, transform_indices = @transform_4, window_bounds = array<i64: 1, 896>}, {pipeline_mode = #tpu.pipeline_mode<synchronous>, transform_indices = @transform_5, window_bounds = array<i64: 896, 256>}, {pipeline_mode = #tpu.pipeline_mode<synchronous>, transform_indices = @transform_6, window_bounds = array<i64: 1, 256>}, {transform_indices = @transform_7, window_bounds = array<i64: 1, 1, 256>}]} {
    %c0 = arith.constant 0 : index
    %c0_0 = arith.constant 0 : index
    %c0_1 = arith.constant 0 : index
    %0 = vector.load %arg1[%c0, %c0_0, %c0_1] : memref<1x16x128xbf16, #tpu.memory_space<vmem>>, vector<1x16x128xbf16>
    %1 = vector.shape_cast %0 : vector<1x16x128xbf16> to vector<16x128xbf16>
    %c0_2 = arith.constant 0 : index
    %c0_3 = arith.constant 0 : index
    %2 = vector.load %arg2[%c0_2, %c0_3] : memref<128x256xbf16, #tpu.memory_space<vmem>>, vector<128x256xbf16>
    %cst = arith.constant dense<0.000000e+00> : vector<16x256xf32>
    %3 = tpu.matmul %1, %2, %cst {dimension_numbers = #tpu.dot_dimension_numbers<[1], [0], [0], [1], [0, 0, 1, 1], [], []>} : vector<16x128xbf16>, vector<128x256xbf16>, vector<16x256xf32> -> vector<16x256xf32>
    %c0_4 = arith.constant 0 : index
    %c0_5 = arith.constant 0 : index
    %4 = vector.load %arg3[%c0_4, %c0_5] : memref<1x256xf32, #tpu.memory_space<vmem>>, vector<1x256xf32>
    %5 = vector.broadcast %4 : vector<1x256xf32> to vector<16x256xf32>
    %6 = arith.addf %3, %5 : vector<16x256xf32>
    %cst_6 = arith.constant 3.000000e+00 : f32
    %7 = vector.broadcast %cst_6 : f32 to vector<16x256xf32>
    %8 = arith.addf %6, %7 : vector<16x256xf32>
    %cst_7 = arith.constant 0.000000e+00 : f32
    %cst_8 = arith.constant 6.000000e+00 : f32
    %9 = vector.broadcast %cst_7 : f32 to vector<16x256xf32>
    %10 = arith.maximumf %9, %8 : vector<16x256xf32>
    %11 = vector.broadcast %cst_8 : f32 to vector<16x256xf32>
    %12 = arith.minimumf %11, %10 : vector<16x256xf32>
    %13 = arith.mulf %6, %12 : vector<16x256xf32>
    %cst_9 = arith.constant 6.000000e+00 : f32
    %14 = vector.broadcast %cst_9 : f32 to vector<16x256xf32>
    %15 = arith.divf %13, %14 : vector<16x256xf32>
    %cst_10 = arith.constant dense<0.000000e+00> : vector<256xf32>
    %16 = vector.multi_reduction <add>, %15, %cst_10 [0] : vector<16x256xf32> to vector<256xf32>
    %17 = vector.shape_cast %16 : vector<256xf32> to vector<1x256xf32>
    %cst_11 = arith.constant 1.600000e+01 : f32
    %18 = vector.broadcast %cst_11 : f32 to vector<1x256xf32>
    %19 = arith.divf %17, %18 : vector<1x256xf32>
    %20 = arith.truncf %19 : vector<1x256xf32> to vector<1x256xbf16>
    %c0_12 = arith.constant 0 : index
    %c0_13 = arith.constant 0 : index
    %21 = vector.load %arg4[%c0_12, %c0_13] : memref<256x896xbf16, #tpu.memory_space<vmem>>, vector<256x896xbf16>
    %cst_14 = arith.constant dense<0.000000e+00> : vector<1x896xf32>
    %22 = tpu.matmul %20, %21, %cst_14 {dimension_numbers = #tpu.dot_dimension_numbers<[1], [0], [0], [1], [0, 0, 1, 1], [], []>} : vector<1x256xbf16>, vector<256x896xbf16>, vector<1x896xf32> -> vector<1x896xf32>
    %c0_15 = arith.constant 0 : index
    %c0_16 = arith.constant 0 : index
    %23 = vector.load %arg5[%c0_15, %c0_16] : memref<1x896xf32, #tpu.memory_space<vmem>>, vector<1x896xf32>
    %24 = arith.addf %22, %23 : vector<1x896xf32>
    %cst_17 = arith.constant 3.000000e+00 : f32
    %25 = vector.broadcast %cst_17 : f32 to vector<1x896xf32>
    %26 = arith.addf %24, %25 : vector<1x896xf32>
    %cst_18 = arith.constant 0.000000e+00 : f32
    %cst_19 = arith.constant 6.000000e+00 : f32
    %27 = vector.broadcast %cst_18 : f32 to vector<1x896xf32>
    %28 = arith.maximumf %27, %26 : vector<1x896xf32>
    %29 = vector.broadcast %cst_19 : f32 to vector<1x896xf32>
    %30 = arith.minimumf %29, %28 : vector<1x896xf32>
    %31 = arith.mulf %24, %30 : vector<1x896xf32>
    %cst_20 = arith.constant 6.000000e+00 : f32
    %32 = vector.broadcast %cst_20 : f32 to vector<1x896xf32>
    %33 = arith.divf %31, %32 : vector<1x896xf32>
    %34 = arith.truncf %33 : vector<1x896xf32> to vector<1x896xbf16>
    %c0_21 = arith.constant 0 : index
    %c0_22 = arith.constant 0 : index
    %35 = vector.load %arg6[%c0_21, %c0_22] : memref<896x256xbf16, #tpu.memory_space<vmem>>, vector<896x256xbf16>
    %cst_23 = arith.constant dense<0.000000e+00> : vector<1x256xf32>
    %36 = tpu.matmul %34, %35, %cst_23 {dimension_numbers = #tpu.dot_dimension_numbers<[1], [0], [0], [1], [0, 0, 1, 1], [], []>} : vector<1x896xbf16>, vector<896x256xbf16>, vector<1x256xf32> -> vector<1x256xf32>
    %c0_24 = arith.constant 0 : index
    %c0_25 = arith.constant 0 : index
    %37 = vector.load %arg7[%c0_24, %c0_25] : memref<1x256xf32, #tpu.memory_space<vmem>>, vector<1x256xf32>
    %38 = arith.addf %36, %37 : vector<1x256xf32>
    %c0_26 = arith.constant 0 : index
    %c0_27 = arith.constant 0 : index
    %c0_28 = arith.constant 0 : index
    %39 = vector.load %arg8[%c0_26, %c0_27, %c0_28] : memref<1x1x256xf32, #tpu.memory_space<vmem>>, vector<1x1x256xf32>
    %40 = vector.shape_cast %39 : vector<1x1x256xf32> to vector<1x256xf32>
    %41 = vector.shape_cast %38 : vector<1x256xf32> to vector<1x1x256xf32>
    tpu.vector_store %arg8[%c0_26, %c0_27, %c0_28], %41 {strides = array<i32>} : memref<1x1x256xf32, #tpu.memory_space<vmem>>, vector<1x1x256xf32>,
    return
  }
  func.func @transform_0(%arg0: i32) -> (i32, i32, i32) {
    %c0_i32 = arith.constant 0 : i32
    %c0_i32_0 = arith.constant 0 : i32
    %c0_i32_1 = arith.constant 0 : i32
    return %arg0, %c0_i32, %c0_i32_0 : i32, i32, i32
  }
  func.func @transform_1(%arg0: i32) -> (i32, i32) {
    %c0_i32 = arith.constant 0 : i32
    %c0_i32_0 = arith.constant 0 : i32
    %c0_i32_1 = arith.constant 0 : i32
    return %c0_i32, %c0_i32_0 : i32, i32
  }
  func.func @transform_2(%arg0: i32) -> (i32, i32) {
    %c0_i32 = arith.constant 0 : i32
    %c0_i32_0 = arith.constant 0 : i32
    %c0_i32_1 = arith.constant 0 : i32
    return %c0_i32, %c0_i32_0 : i32, i32
  }
  func.func @transform_3(%arg0: i32) -> (i32, i32) {
    %c0_i32 = arith.constant 0 : i32
    %c0_i32_0 = arith.constant 0 : i32
    %c0_i32_1 = arith.constant 0 : i32
    return %c0_i32, %c0_i32_0 : i32, i32
  }
  func.func @transform_4(%arg0: i32) -> (i32, i32) {
    %c0_i32 = arith.constant 0 : i32
    %c0_i32_0 = arith.constant 0 : i32
    %c0_i32_1 = arith.constant 0 : i32
    return %c0_i32, %c0_i32_0 : i32, i32
  }
  func.func @transform_5(%arg0: i32) -> (i32, i32) {
    %c0_i32 = arith.constant 0 : i32
    %c0_i32_0 = arith.constant 0 : i32
    %c0_i32_1 = arith.constant 0 : i32
    return %c0_i32, %c0_i32_0 : i32, i32
  }
  func.func @transform_6(%arg0: i32) -> (i32, i32) {
    %c0_i32 = arith.constant 0 : i32
    %c0_i32_0 = arith.constant 0 : i32
    %c0_i32_1 = arith.constant 0 : i32
    return %c0_i32, %c0_i32_0 : i32, i32
  }
  func.func @transform_7(%arg0: i32) -> (i32, i32, i32) {
    %c0_i32 = arith.constant 0 : i32
    %c0_i32_0 = arith.constant 0 : i32
    %c0_i32_1 = arith.constant 0 : i32
    return %arg0, %c0_i32, %c0_i32_0 : i32, i32, i32
  }
}

module attributes {stable_mosaic.version = 11 : i64} {
  func.func @_block_kernel(%arg0: i32, %arg1: memref<1x25x16x128xbf16, #tpu.memory_space<vmem>>, %arg2: memref<25x16x1xf32, #tpu.memory_space<vmem>>, %arg3: memref<128x128xbf16, #tpu.memory_space<vmem>>, %arg4: memref<1x128xf32, #tpu.memory_space<vmem>>, %arg5: memref<25x1x128xf32, #tpu.memory_space<vmem>>, %arg6: memref<1x128xf32, #tpu.memory_space<vmem>>, %arg7: memref<128x128xbf16, #tpu.memory_space<vmem>>, %arg8: memref<1x128xf32, #tpu.memory_space<vmem>>, %arg9: memref<128x128xbf16, #tpu.memory_space<vmem>>, %arg10: memref<1x128xf32, #tpu.memory_space<vmem>>, %arg11: memref<128x128xbf16, #tpu.memory_space<vmem>>, %arg12: memref<1x128xf32, #tpu.memory_space<vmem>>, %arg13: memref<1x16x128xbf16, #tpu.memory_space<vmem>>) attributes {dimension_semantics = [#tpu.dimension_semantics<parallel>], iteration_bounds = array<i64: 2>, scalar_prefetch = 0 : i64, scratch_operands = 0 : i64, tpu.core_type = #tpu.core_type<tc>, window_params = [{transform_indices = @transform_0, window_bounds = array<i64: 1, 25, 16, 128>}, {pipeline_mode = #tpu.pipeline_mode<synchronous>, transform_indices = @transform_1, window_bounds = array<i64: 25, 16, 1>}, {pipeline_mode = #tpu.pipeline_mode<synchronous>, transform_indices = @transform_2, window_bounds = array<i64: 128, 128>}, {pipeline_mode = #tpu.pipeline_mode<synchronous>, transform_indices = @transform_3, window_bounds = array<i64: 1, 128>}, {pipeline_mode = #tpu.pipeline_mode<synchronous>, transform_indices = @transform_4, window_bounds = array<i64: 25, 1, 128>}, {pipeline_mode = #tpu.pipeline_mode<synchronous>, transform_indices = @transform_5, window_bounds = array<i64: 1, 128>}, {pipeline_mode = #tpu.pipeline_mode<synchronous>, transform_indices = @transform_6, window_bounds = array<i64: 128, 128>}, {pipeline_mode = #tpu.pipeline_mode<synchronous>, transform_indices = @transform_7, window_bounds = array<i64: 1, 128>}, {pipeline_mode = #tpu.pipeline_mode<synchronous>, transform_indices = @transform_8, window_bounds = array<i64: 128, 128>}, {pipeline_mode = #tpu.pipeline_mode<synchronous>, transform_indices = @transform_9, window_bounds = array<i64: 1, 128>}, {pipeline_mode = #tpu.pipeline_mode<synchronous>, transform_indices = @transform_10, window_bounds = array<i64: 128, 128>}, {pipeline_mode = #tpu.pipeline_mode<synchronous>, transform_indices = @transform_11, window_bounds = array<i64: 1, 128>}, {transform_indices = @transform_12, window_bounds = array<i64: 1, 16, 128>}]} {
    %c0 = arith.constant 0 : index
    %c0_0 = arith.constant 0 : index
    %c0_1 = arith.constant 0 : index
    %0 = vector.load %arg5[%c0, %c0_0, %c0_1] : memref<25x1x128xf32, #tpu.memory_space<vmem>>, vector<25x1x128xf32>
    %c0_2 = arith.constant 0 : index
    %c0_3 = arith.constant 0 : index
    %1 = vector.load %arg3[%c0_2, %c0_3] : memref<128x128xbf16, #tpu.memory_space<vmem>>, vector<128x128xbf16>
    %c0_4 = arith.constant 0 : index
    %c0_5 = arith.constant 0 : index
    %2 = vector.load %arg4[%c0_4, %c0_5] : memref<1x128xf32, #tpu.memory_space<vmem>>, vector<1x128xf32>
    %c0_6 = arith.constant 0 : index
    %c0_7 = arith.constant 0 : index
    %c0_8 = arith.constant 0 : index
    %3 = vector.load %arg2[%c0_6, %c0_7, %c0_8] : memref<25x16x1xf32, #tpu.memory_space<vmem>>, vector<25x16x1xf32>
    %cst = arith.constant 0.000000e+00 : f32
    %4 = vector.broadcast %cst : f32 to vector<16x128xf32>
    %c0_9 = arith.constant 0 : index
    %c0_10 = arith.constant 0 : index
    %c0_11 = arith.constant 0 : index
    %c0_12 = arith.constant 0 : index
    %5 = vector.load %arg1[%c0_9, %c0_10, %c0_11, %c0_12] : memref<1x25x16x128xbf16, #tpu.memory_space<vmem>>, vector<1x1x16x128xbf16>
    %6 = vector.shape_cast %5 : vector<1x1x16x128xbf16> to vector<16x128xbf16>
    %cst_13 = arith.constant dense<0.000000e+00> : vector<16x128xf32>
    %7 = tpu.matmul %6, %1, %cst_13 {dimension_numbers = #tpu.dot_dimension_numbers<[1], [0], [0], [1], [0, 0, 1, 1], [], []>} : vector<16x128xbf16>, vector<128x128xbf16>, vector<16x128xf32> -> vector<16x128xf32>
    %8 = vector.broadcast %2 : vector<1x128xf32> to vector<16x128xf32>
    %9 = arith.addf %7, %8 : vector<16x128xf32>
    %cst_14 = arith.constant 3.000000e+00 : f32
    %10 = vector.broadcast %cst_14 : f32 to vector<16x128xf32>
    %11 = arith.addf %9, %10 : vector<16x128xf32>
    %cst_15 = arith.constant 0.000000e+00 : f32
    %cst_16 = arith.constant 6.000000e+00 : f32
    %12 = vector.broadcast %cst_15 : f32 to vector<16x128xf32>
    %13 = arith.maximumf %12, %11 : vector<16x128xf32>
    %14 = vector.broadcast %cst_16 : f32 to vector<16x128xf32>
    %15 = arith.minimumf %14, %13 : vector<16x128xf32>
    %16 = arith.mulf %9, %15 : vector<16x128xf32>
    %cst_17 = arith.constant 6.000000e+00 : f32
    %17 = vector.broadcast %cst_17 : f32 to vector<16x128xf32>
    %18 = arith.divf %16, %17 : vector<16x128xf32>
    %19 = vector.extract_strided_slice %3 {offsets = [0, 0, 0], sizes = [1, 16, 1], strides = [1, 1, 1]} : vector<25x16x1xf32> to vector<1x16x1xf32>
    %20 = vector.shape_cast %19 : vector<1x16x1xf32> to vector<16x1xf32>
    %21 = vector.broadcast %20 : vector<16x1xf32> to vector<16x128xf32>
    %22 = arith.mulf %18, %21 : vector<16x128xf32>
    %23 = vector.extract_strided_slice %0 {offsets = [0, 0, 0], sizes = [1, 1, 128], strides = [1, 1, 1]} : vector<25x1x128xf32> to vector<1x1x128xf32>
    %24 = vector.shape_cast %23 : vector<1x1x128xf32> to vector<1x128xf32>
    %25 = vector.broadcast %24 : vector<1x128xf32> to vector<16x128xf32>
    %26 = arith.mulf %22, %25 : vector<16x128xf32>
    %27 = arith.addf %4, %26 : vector<16x128xf32>
    %c0_18 = arith.constant 0 : index
    %c1 = arith.constant 1 : index
    %c0_19 = arith.constant 0 : index
    %c0_20 = arith.constant 0 : index
    %28 = vector.load %arg1[%c0_18, %c1, %c0_19, %c0_20] : memref<1x25x16x128xbf16, #tpu.memory_space<vmem>>, vector<1x1x16x128xbf16>
    %29 = vector.shape_cast %28 : vector<1x1x16x128xbf16> to vector<16x128xbf16>
    %cst_21 = arith.constant dense<0.000000e+00> : vector<16x128xf32>
    %30 = tpu.matmul %29, %1, %cst_21 {dimension_numbers = #tpu.dot_dimension_numbers<[1], [0], [0], [1], [0, 0, 1, 1], [], []>} : vector<16x128xbf16>, vector<128x128xbf16>, vector<16x128xf32> -> vector<16x128xf32>
    %31 = vector.broadcast %2 : vector<1x128xf32> to vector<16x128xf32>
    %32 = arith.addf %30, %31 : vector<16x128xf32>
    %cst_22 = arith.constant 3.000000e+00 : f32
    %33 = vector.broadcast %cst_22 : f32 to vector<16x128xf32>
    %34 = arith.addf %32, %33 : vector<16x128xf32>
    %cst_23 = arith.constant 0.000000e+00 : f32
    %cst_24 = arith.constant 6.000000e+00 : f32
    %35 = vector.broadcast %cst_23 : f32 to vector<16x128xf32>
    %36 = arith.maximumf %35, %34 : vector<16x128xf32>
    %37 = vector.broadcast %cst_24 : f32 to vector<16x128xf32>
    %38 = arith.minimumf %37, %36 : vector<16x128xf32>
    %39 = arith.mulf %32, %38 : vector<16x128xf32>
    %cst_25 = arith.constant 6.000000e+00 : f32
    %40 = vector.broadcast %cst_25 : f32 to vector<16x128xf32>
    %41 = arith.divf %39, %40 : vector<16x128xf32>
    %42 = vector.extract_strided_slice %3 {offsets = [1, 0, 0], sizes = [1, 16, 1], strides = [1, 1, 1]} : vector<25x16x1xf32> to vector<1x16x1xf32>
    %43 = vector.shape_cast %42 : vector<1x16x1xf32> to vector<16x1xf32>
    %44 = vector.broadcast %43 : vector<16x1xf32> to vector<16x128xf32>
    %45 = arith.mulf %41, %44 : vector<16x128xf32>
    %46 = vector.extract_strided_slice %0 {offsets = [1, 0, 0], sizes = [1, 1, 128], strides = [1, 1, 1]} : vector<25x1x128xf32> to vector<1x1x128xf32>
    %47 = vector.shape_cast %46 : vector<1x1x128xf32> to vector<1x128xf32>
    %48 = vector.broadcast %47 : vector<1x128xf32> to vector<16x128xf32>
    %49 = arith.mulf %45, %48 : vector<16x128xf32>
    %50 = arith.addf %27, %49 : vector<16x128xf32>
    %c0_26 = arith.constant 0 : index
    %c2 = arith.constant 2 : index
    %c0_27 = arith.constant 0 : index
    %c0_28 = arith.constant 0 : index
    %51 = vector.load %arg1[%c0_26, %c2, %c0_27, %c0_28] : memref<1x25x16x128xbf16, #tpu.memory_space<vmem>>, vector<1x1x16x128xbf16>
    %52 = vector.shape_cast %51 : vector<1x1x16x128xbf16> to vector<16x128xbf16>
    %cst_29 = arith.constant dense<0.000000e+00> : vector<16x128xf32>
    %53 = tpu.matmul %52, %1, %cst_29 {dimension_numbers = #tpu.dot_dimension_numbers<[1], [0], [0], [1], [0, 0, 1, 1], [], []>} : vector<16x128xbf16>, vector<128x128xbf16>, vector<16x128xf32> -> vector<16x128xf32>
    %54 = vector.broadcast %2 : vector<1x128xf32> to vector<16x128xf32>
    %55 = arith.addf %53, %54 : vector<16x128xf32>
    %cst_30 = arith.constant 3.000000e+00 : f32
    %56 = vector.broadcast %cst_30 : f32 to vector<16x128xf32>
    %57 = arith.addf %55, %56 : vector<16x128xf32>
    %cst_31 = arith.constant 0.000000e+00 : f32
    %cst_32 = arith.constant 6.000000e+00 : f32
    %58 = vector.broadcast %cst_31 : f32 to vector<16x128xf32>
    %59 = arith.maximumf %58, %57 : vector<16x128xf32>
    %60 = vector.broadcast %cst_32 : f32 to vector<16x128xf32>
    %61 = arith.minimumf %60, %59 : vector<16x128xf32>
    %62 = arith.mulf %55, %61 : vector<16x128xf32>
    %cst_33 = arith.constant 6.000000e+00 : f32
    %63 = vector.broadcast %cst_33 : f32 to vector<16x128xf32>
    %64 = arith.divf %62, %63 : vector<16x128xf32>
    %65 = vector.extract_strided_slice %3 {offsets = [2, 0, 0], sizes = [1, 16, 1], strides = [1, 1, 1]} : vector<25x16x1xf32> to vector<1x16x1xf32>
    %66 = vector.shape_cast %65 : vector<1x16x1xf32> to vector<16x1xf32>
    %67 = vector.broadcast %66 : vector<16x1xf32> to vector<16x128xf32>
    %68 = arith.mulf %64, %67 : vector<16x128xf32>
    %69 = vector.extract_strided_slice %0 {offsets = [2, 0, 0], sizes = [1, 1, 128], strides = [1, 1, 1]} : vector<25x1x128xf32> to vector<1x1x128xf32>
    %70 = vector.shape_cast %69 : vector<1x1x128xf32> to vector<1x128xf32>
    %71 = vector.broadcast %70 : vector<1x128xf32> to vector<16x128xf32>
    %72 = arith.mulf %68, %71 : vector<16x128xf32>
    %73 = arith.addf %50, %72 : vector<16x128xf32>
    %c0_34 = arith.constant 0 : index
    %c3 = arith.constant 3 : index
    %c0_35 = arith.constant 0 : index
    %c0_36 = arith.constant 0 : index
    %74 = vector.load %arg1[%c0_34, %c3, %c0_35, %c0_36] : memref<1x25x16x128xbf16, #tpu.memory_space<vmem>>, vector<1x1x16x128xbf16>
    %75 = vector.shape_cast %74 : vector<1x1x16x128xbf16> to vector<16x128xbf16>
    %cst_37 = arith.constant dense<0.000000e+00> : vector<16x128xf32>
    %76 = tpu.matmul %75, %1, %cst_37 {dimension_numbers = #tpu.dot_dimension_numbers<[1], [0], [0], [1], [0, 0, 1, 1], [], []>} : vector<16x128xbf16>, vector<128x128xbf16>, vector<16x128xf32> -> vector<16x128xf32>
    %77 = vector.broadcast %2 : vector<1x128xf32> to vector<16x128xf32>
    %78 = arith.addf %76, %77 : vector<16x128xf32>
    %cst_38 = arith.constant 3.000000e+00 : f32
    %79 = vector.broadcast %cst_38 : f32 to vector<16x128xf32>
    %80 = arith.addf %78, %79 : vector<16x128xf32>
    %cst_39 = arith.constant 0.000000e+00 : f32
    %cst_40 = arith.constant 6.000000e+00 : f32
    %81 = vector.broadcast %cst_39 : f32 to vector<16x128xf32>
    %82 = arith.maximumf %81, %80 : vector<16x128xf32>
    %83 = vector.broadcast %cst_40 : f32 to vector<16x128xf32>
    %84 = arith.minimumf %83, %82 : vector<16x128xf32>
    %85 = arith.mulf %78, %84 : vector<16x128xf32>
    %cst_41 = arith.constant 6.000000e+00 : f32
    %86 = vector.broadcast %cst_41 : f32 to vector<16x128xf32>
    %87 = arith.divf %85, %86 : vector<16x128xf32>
    %88 = vector.extract_strided_slice %3 {offsets = [3, 0, 0], sizes = [1, 16, 1], strides = [1, 1, 1]} : vector<25x16x1xf32> to vector<1x16x1xf32>
    %89 = vector.shape_cast %88 : vector<1x16x1xf32> to vector<16x1xf32>
    %90 = vector.broadcast %89 : vector<16x1xf32> to vector<16x128xf32>
    %91 = arith.mulf %87, %90 : vector<16x128xf32>
    %92 = vector.extract_strided_slice %0 {offsets = [3, 0, 0], sizes = [1, 1, 128], strides = [1, 1, 1]} : vector<25x1x128xf32> to vector<1x1x128xf32>
    %93 = vector.shape_cast %92 : vector<1x1x128xf32> to vector<1x128xf32>
    %94 = vector.broadcast %93 : vector<1x128xf32> to vector<16x128xf32>
    %95 = arith.mulf %91, %94 : vector<16x128xf32>
    %96 = arith.addf %73, %95 : vector<16x128xf32>
    %c0_42 = arith.constant 0 : index
    %c4 = arith.constant 4 : index
    %c0_43 = arith.constant 0 : index
    %c0_44 = arith.constant 0 : index
    %97 = vector.load %arg1[%c0_42, %c4, %c0_43, %c0_44] : memref<1x25x16x128xbf16, #tpu.memory_space<vmem>>, vector<1x1x16x128xbf16>
    %98 = vector.shape_cast %97 : vector<1x1x16x128xbf16> to vector<16x128xbf16>
    %cst_45 = arith.constant dense<0.000000e+00> : vector<16x128xf32>
    %99 = tpu.matmul %98, %1, %cst_45 {dimension_numbers = #tpu.dot_dimension_numbers<[1], [0], [0], [1], [0, 0, 1, 1], [], []>} : vector<16x128xbf16>, vector<128x128xbf16>, vector<16x128xf32> -> vector<16x128xf32>
    %100 = vector.broadcast %2 : vector<1x128xf32> to vector<16x128xf32>
    %101 = arith.addf %99, %100 : vector<16x128xf32>
    %cst_46 = arith.constant 3.000000e+00 : f32
    %102 = vector.broadcast %cst_46 : f32 to vector<16x128xf32>
    %103 = arith.addf %101, %102 : vector<16x128xf32>
    %cst_47 = arith.constant 0.000000e+00 : f32
    %cst_48 = arith.constant 6.000000e+00 : f32
    %104 = vector.broadcast %cst_47 : f32 to vector<16x128xf32>
    %105 = arith.maximumf %104, %103 : vector<16x128xf32>
    %106 = vector.broadcast %cst_48 : f32 to vector<16x128xf32>
    %107 = arith.minimumf %106, %105 : vector<16x128xf32>
    %108 = arith.mulf %101, %107 : vector<16x128xf32>
    %cst_49 = arith.constant 6.000000e+00 : f32
    %109 = vector.broadcast %cst_49 : f32 to vector<16x128xf32>
    %110 = arith.divf %108, %109 : vector<16x128xf32>
    %111 = vector.extract_strided_slice %3 {offsets = [4, 0, 0], sizes = [1, 16, 1], strides = [1, 1, 1]} : vector<25x16x1xf32> to vector<1x16x1xf32>
    %112 = vector.shape_cast %111 : vector<1x16x1xf32> to vector<16x1xf32>
    %113 = vector.broadcast %112 : vector<16x1xf32> to vector<16x128xf32>
    %114 = arith.mulf %110, %113 : vector<16x128xf32>
    %115 = vector.extract_strided_slice %0 {offsets = [4, 0, 0], sizes = [1, 1, 128], strides = [1, 1, 1]} : vector<25x1x128xf32> to vector<1x1x128xf32>
    %116 = vector.shape_cast %115 : vector<1x1x128xf32> to vector<1x128xf32>
    %117 = vector.broadcast %116 : vector<1x128xf32> to vector<16x128xf32>
    %118 = arith.mulf %114, %117 : vector<16x128xf32>
    %119 = arith.addf %96, %118 : vector<16x128xf32>
    %c0_50 = arith.constant 0 : index
    %c5 = arith.constant 5 : index
    %c0_51 = arith.constant 0 : index
    %c0_52 = arith.constant 0 : index
    %120 = vector.load %arg1[%c0_50, %c5, %c0_51, %c0_52] : memref<1x25x16x128xbf16, #tpu.memory_space<vmem>>, vector<1x1x16x128xbf16>
    %121 = vector.shape_cast %120 : vector<1x1x16x128xbf16> to vector<16x128xbf16>
    %cst_53 = arith.constant dense<0.000000e+00> : vector<16x128xf32>
    %122 = tpu.matmul %121, %1, %cst_53 {dimension_numbers = #tpu.dot_dimension_numbers<[1], [0], [0], [1], [0, 0, 1, 1], [], []>} : vector<16x128xbf16>, vector<128x128xbf16>, vector<16x128xf32> -> vector<16x128xf32>
    %123 = vector.broadcast %2 : vector<1x128xf32> to vector<16x128xf32>
    %124 = arith.addf %122, %123 : vector<16x128xf32>
    %cst_54 = arith.constant 3.000000e+00 : f32
    %125 = vector.broadcast %cst_54 : f32 to vector<16x128xf32>
    %126 = arith.addf %124, %125 : vector<16x128xf32>
    %cst_55 = arith.constant 0.000000e+00 : f32
    %cst_56 = arith.constant 6.000000e+00 : f32
    %127 = vector.broadcast %cst_55 : f32 to vector<16x128xf32>
    %128 = arith.maximumf %127, %126 : vector<16x128xf32>
    %129 = vector.broadcast %cst_56 : f32 to vector<16x128xf32>
    %130 = arith.minimumf %129, %128 : vector<16x128xf32>
    %131 = arith.mulf %124, %130 : vector<16x128xf32>
    %cst_57 = arith.constant 6.000000e+00 : f32
    %132 = vector.broadcast %cst_57 : f32 to vector<16x128xf32>
    %133 = arith.divf %131, %132 : vector<16x128xf32>
    %134 = vector.extract_strided_slice %3 {offsets = [5, 0, 0], sizes = [1, 16, 1], strides = [1, 1, 1]} : vector<25x16x1xf32> to vector<1x16x1xf32>
    %135 = vector.shape_cast %134 : vector<1x16x1xf32> to vector<16x1xf32>
    %136 = vector.broadcast %135 : vector<16x1xf32> to vector<16x128xf32>
    %137 = arith.mulf %133, %136 : vector<16x128xf32>
    %138 = vector.extract_strided_slice %0 {offsets = [5, 0, 0], sizes = [1, 1, 128], strides = [1, 1, 1]} : vector<25x1x128xf32> to vector<1x1x128xf32>
    %139 = vector.shape_cast %138 : vector<1x1x128xf32> to vector<1x128xf32>
    %140 = vector.broadcast %139 : vector<1x128xf32> to vector<16x128xf32>
    %141 = arith.mulf %137, %140 : vector<16x128xf32>
    %142 = arith.addf %119, %141 : vector<16x128xf32>
    %c0_58 = arith.constant 0 : index
    %c6 = arith.constant 6 : index
    %c0_59 = arith.constant 0 : index
    %c0_60 = arith.constant 0 : index
    %143 = vector.load %arg1[%c0_58, %c6, %c0_59, %c0_60] : memref<1x25x16x128xbf16, #tpu.memory_space<vmem>>, vector<1x1x16x128xbf16>
    %144 = vector.shape_cast %143 : vector<1x1x16x128xbf16> to vector<16x128xbf16>
    %cst_61 = arith.constant dense<0.000000e+00> : vector<16x128xf32>
    %145 = tpu.matmul %144, %1, %cst_61 {dimension_numbers = #tpu.dot_dimension_numbers<[1], [0], [0], [1], [0, 0, 1, 1], [], []>} : vector<16x128xbf16>, vector<128x128xbf16>, vector<16x128xf32> -> vector<16x128xf32>
    %146 = vector.broadcast %2 : vector<1x128xf32> to vector<16x128xf32>
    %147 = arith.addf %145, %146 : vector<16x128xf32>
    %cst_62 = arith.constant 3.000000e+00 : f32
    %148 = vector.broadcast %cst_62 : f32 to vector<16x128xf32>
    %149 = arith.addf %147, %148 : vector<16x128xf32>
    %cst_63 = arith.constant 0.000000e+00 : f32
    %cst_64 = arith.constant 6.000000e+00 : f32
    %150 = vector.broadcast %cst_63 : f32 to vector<16x128xf32>
    %151 = arith.maximumf %150, %149 : vector<16x128xf32>
    %152 = vector.broadcast %cst_64 : f32 to vector<16x128xf32>
    %153 = arith.minimumf %152, %151 : vector<16x128xf32>
    %154 = arith.mulf %147, %153 : vector<16x128xf32>
    %cst_65 = arith.constant 6.000000e+00 : f32
    %155 = vector.broadcast %cst_65 : f32 to vector<16x128xf32>
    %156 = arith.divf %154, %155 : vector<16x128xf32>
    %157 = vector.extract_strided_slice %3 {offsets = [6, 0, 0], sizes = [1, 16, 1], strides = [1, 1, 1]} : vector<25x16x1xf32> to vector<1x16x1xf32>
    %158 = vector.shape_cast %157 : vector<1x16x1xf32> to vector<16x1xf32>
    %159 = vector.broadcast %158 : vector<16x1xf32> to vector<16x128xf32>
    %160 = arith.mulf %156, %159 : vector<16x128xf32>
    %161 = vector.extract_strided_slice %0 {offsets = [6, 0, 0], sizes = [1, 1, 128], strides = [1, 1, 1]} : vector<25x1x128xf32> to vector<1x1x128xf32>
    %162 = vector.shape_cast %161 : vector<1x1x128xf32> to vector<1x128xf32>
    %163 = vector.broadcast %162 : vector<1x128xf32> to vector<16x128xf32>
    %164 = arith.mulf %160, %163 : vector<16x128xf32>
    %165 = arith.addf %142, %164 : vector<16x128xf32>
    %c0_66 = arith.constant 0 : index
    %c7 = arith.constant 7 : index
    %c0_67 = arith.constant 0 : index
    %c0_68 = arith.constant 0 : index
    %166 = vector.load %arg1[%c0_66, %c7, %c0_67, %c0_68] : memref<1x25x16x128xbf16, #tpu.memory_space<vmem>>, vector<1x1x16x128xbf16>
    %167 = vector.shape_cast %166 : vector<1x1x16x128xbf16> to vector<16x128xbf16>
    %cst_69 = arith.constant dense<0.000000e+00> : vector<16x128xf32>
    %168 = tpu.matmul %167, %1, %cst_69 {dimension_numbers = #tpu.dot_dimension_numbers<[1], [0], [0], [1], [0, 0, 1, 1], [], []>} : vector<16x128xbf16>, vector<128x128xbf16>, vector<16x128xf32> -> vector<16x128xf32>
    %169 = vector.broadcast %2 : vector<1x128xf32> to vector<16x128xf32>
    %170 = arith.addf %168, %169 : vector<16x128xf32>
    %cst_70 = arith.constant 3.000000e+00 : f32
    %171 = vector.broadcast %cst_70 : f32 to vector<16x128xf32>
    %172 = arith.addf %170, %171 : vector<16x128xf32>
    %cst_71 = arith.constant 0.000000e+00 : f32
    %cst_72 = arith.constant 6.000000e+00 : f32
    %173 = vector.broadcast %cst_71 : f32 to vector<16x128xf32>
    %174 = arith.maximumf %173, %172 : vector<16x128xf32>
    %175 = vector.broadcast %cst_72 : f32 to vector<16x128xf32>
    %176 = arith.minimumf %175, %174 : vector<16x128xf32>
    %177 = arith.mulf %170, %176 : vector<16x128xf32>
    %cst_73 = arith.constant 6.000000e+00 : f32
    %178 = vector.broadcast %cst_73 : f32 to vector<16x128xf32>
    %179 = arith.divf %177, %178 : vector<16x128xf32>
    %180 = vector.extract_strided_slice %3 {offsets = [7, 0, 0], sizes = [1, 16, 1], strides = [1, 1, 1]} : vector<25x16x1xf32> to vector<1x16x1xf32>
    %181 = vector.shape_cast %180 : vector<1x16x1xf32> to vector<16x1xf32>
    %182 = vector.broadcast %181 : vector<16x1xf32> to vector<16x128xf32>
    %183 = arith.mulf %179, %182 : vector<16x128xf32>
    %184 = vector.extract_strided_slice %0 {offsets = [7, 0, 0], sizes = [1, 1, 128], strides = [1, 1, 1]} : vector<25x1x128xf32> to vector<1x1x128xf32>
    %185 = vector.shape_cast %184 : vector<1x1x128xf32> to vector<1x128xf32>
    %186 = vector.broadcast %185 : vector<1x128xf32> to vector<16x128xf32>
    %187 = arith.mulf %183, %186 : vector<16x128xf32>
    %188 = arith.addf %165, %187 : vector<16x128xf32>
    %c0_74 = arith.constant 0 : index
    %c8 = arith.constant 8 : index
    %c0_75 = arith.constant 0 : index
    %c0_76 = arith.constant 0 : index
    %189 = vector.load %arg1[%c0_74, %c8, %c0_75, %c0_76] : memref<1x25x16x128xbf16, #tpu.memory_space<vmem>>, vector<1x1x16x128xbf16>
    %190 = vector.shape_cast %189 : vector<1x1x16x128xbf16> to vector<16x128xbf16>
    %cst_77 = arith.constant dense<0.000000e+00> : vector<16x128xf32>
    %191 = tpu.matmul %190, %1, %cst_77 {dimension_numbers = #tpu.dot_dimension_numbers<[1], [0], [0], [1], [0, 0, 1, 1], [], []>} : vector<16x128xbf16>, vector<128x128xbf16>, vector<16x128xf32> -> vector<16x128xf32>
    %192 = vector.broadcast %2 : vector<1x128xf32> to vector<16x128xf32>
    %193 = arith.addf %191, %192 : vector<16x128xf32>
    %cst_78 = arith.constant 3.000000e+00 : f32
    %194 = vector.broadcast %cst_78 : f32 to vector<16x128xf32>
    %195 = arith.addf %193, %194 : vector<16x128xf32>
    %cst_79 = arith.constant 0.000000e+00 : f32
    %cst_80 = arith.constant 6.000000e+00 : f32
    %196 = vector.broadcast %cst_79 : f32 to vector<16x128xf32>
    %197 = arith.maximumf %196, %195 : vector<16x128xf32>
    %198 = vector.broadcast %cst_80 : f32 to vector<16x128xf32>
    %199 = arith.minimumf %198, %197 : vector<16x128xf32>
    %200 = arith.mulf %193, %199 : vector<16x128xf32>
    %cst_81 = arith.constant 6.000000e+00 : f32
    %201 = vector.broadcast %cst_81 : f32 to vector<16x128xf32>
    %202 = arith.divf %200, %201 : vector<16x128xf32>
    %203 = vector.extract_strided_slice %3 {offsets = [8, 0, 0], sizes = [1, 16, 1], strides = [1, 1, 1]} : vector<25x16x1xf32> to vector<1x16x1xf32>
    %204 = vector.shape_cast %203 : vector<1x16x1xf32> to vector<16x1xf32>
    %205 = vector.broadcast %204 : vector<16x1xf32> to vector<16x128xf32>
    %206 = arith.mulf %202, %205 : vector<16x128xf32>
    %207 = vector.extract_strided_slice %0 {offsets = [8, 0, 0], sizes = [1, 1, 128], strides = [1, 1, 1]} : vector<25x1x128xf32> to vector<1x1x128xf32>
    %208 = vector.shape_cast %207 : vector<1x1x128xf32> to vector<1x128xf32>
    %209 = vector.broadcast %208 : vector<1x128xf32> to vector<16x128xf32>
    %210 = arith.mulf %206, %209 : vector<16x128xf32>
    %211 = arith.addf %188, %210 : vector<16x128xf32>
    %c0_82 = arith.constant 0 : index
    %c9 = arith.constant 9 : index
    %c0_83 = arith.constant 0 : index
    %c0_84 = arith.constant 0 : index
    %212 = vector.load %arg1[%c0_82, %c9, %c0_83, %c0_84] : memref<1x25x16x128xbf16, #tpu.memory_space<vmem>>, vector<1x1x16x128xbf16>
    %213 = vector.shape_cast %212 : vector<1x1x16x128xbf16> to vector<16x128xbf16>
    %cst_85 = arith.constant dense<0.000000e+00> : vector<16x128xf32>
    %214 = tpu.matmul %213, %1, %cst_85 {dimension_numbers = #tpu.dot_dimension_numbers<[1], [0], [0], [1], [0, 0, 1, 1], [], []>} : vector<16x128xbf16>, vector<128x128xbf16>, vector<16x128xf32> -> vector<16x128xf32>
    %215 = vector.broadcast %2 : vector<1x128xf32> to vector<16x128xf32>
    %216 = arith.addf %214, %215 : vector<16x128xf32>
    %cst_86 = arith.constant 3.000000e+00 : f32
    %217 = vector.broadcast %cst_86 : f32 to vector<16x128xf32>
    %218 = arith.addf %216, %217 : vector<16x128xf32>
    %cst_87 = arith.constant 0.000000e+00 : f32
    %cst_88 = arith.constant 6.000000e+00 : f32
    %219 = vector.broadcast %cst_87 : f32 to vector<16x128xf32>
    %220 = arith.maximumf %219, %218 : vector<16x128xf32>
    %221 = vector.broadcast %cst_88 : f32 to vector<16x128xf32>
    %222 = arith.minimumf %221, %220 : vector<16x128xf32>
    %223 = arith.mulf %216, %222 : vector<16x128xf32>
    %cst_89 = arith.constant 6.000000e+00 : f32
    %224 = vector.broadcast %cst_89 : f32 to vector<16x128xf32>
    %225 = arith.divf %223, %224 : vector<16x128xf32>
    %226 = vector.extract_strided_slice %3 {offsets = [9, 0, 0], sizes = [1, 16, 1], strides = [1, 1, 1]} : vector<25x16x1xf32> to vector<1x16x1xf32>
    %227 = vector.shape_cast %226 : vector<1x16x1xf32> to vector<16x1xf32>
    %228 = vector.broadcast %227 : vector<16x1xf32> to vector<16x128xf32>
    %229 = arith.mulf %225, %228 : vector<16x128xf32>
    %230 = vector.extract_strided_slice %0 {offsets = [9, 0, 0], sizes = [1, 1, 128], strides = [1, 1, 1]} : vector<25x1x128xf32> to vector<1x1x128xf32>
    %231 = vector.shape_cast %230 : vector<1x1x128xf32> to vector<1x128xf32>
    %232 = vector.broadcast %231 : vector<1x128xf32> to vector<16x128xf32>
    %233 = arith.mulf %229, %232 : vector<16x128xf32>
    %234 = arith.addf %211, %233 : vector<16x128xf32>
    %c0_90 = arith.constant 0 : index
    %c10 = arith.constant 10 : index
    %c0_91 = arith.constant 0 : index
    %c0_92 = arith.constant 0 : index
    %235 = vector.load %arg1[%c0_90, %c10, %c0_91, %c0_92] : memref<1x25x16x128xbf16, #tpu.memory_space<vmem>>, vector<1x1x16x128xbf16>
    %236 = vector.shape_cast %235 : vector<1x1x16x128xbf16> to vector<16x128xbf16>
    %cst_93 = arith.constant dense<0.000000e+00> : vector<16x128xf32>
    %237 = tpu.matmul %236, %1, %cst_93 {dimension_numbers = #tpu.dot_dimension_numbers<[1], [0], [0], [1], [0, 0, 1, 1], [], []>} : vector<16x128xbf16>, vector<128x128xbf16>, vector<16x128xf32> -> vector<16x128xf32>
    %238 = vector.broadcast %2 : vector<1x128xf32> to vector<16x128xf32>
    %239 = arith.addf %237, %238 : vector<16x128xf32>
    %cst_94 = arith.constant 3.000000e+00 : f32
    %240 = vector.broadcast %cst_94 : f32 to vector<16x128xf32>
    %241 = arith.addf %239, %240 : vector<16x128xf32>
    %cst_95 = arith.constant 0.000000e+00 : f32
    %cst_96 = arith.constant 6.000000e+00 : f32
    %242 = vector.broadcast %cst_95 : f32 to vector<16x128xf32>
    %243 = arith.maximumf %242, %241 : vector<16x128xf32>
    %244 = vector.broadcast %cst_96 : f32 to vector<16x128xf32>
    %245 = arith.minimumf %244, %243 : vector<16x128xf32>
    %246 = arith.mulf %239, %245 : vector<16x128xf32>
    %cst_97 = arith.constant 6.000000e+00 : f32
    %247 = vector.broadcast %cst_97 : f32 to vector<16x128xf32>
    %248 = arith.divf %246, %247 : vector<16x128xf32>
    %249 = vector.extract_strided_slice %3 {offsets = [10, 0, 0], sizes = [1, 16, 1], strides = [1, 1, 1]} : vector<25x16x1xf32> to vector<1x16x1xf32>
    %250 = vector.shape_cast %249 : vector<1x16x1xf32> to vector<16x1xf32>
    %251 = vector.broadcast %250 : vector<16x1xf32> to vector<16x128xf32>
    %252 = arith.mulf %248, %251 : vector<16x128xf32>
    %253 = vector.extract_strided_slice %0 {offsets = [10, 0, 0], sizes = [1, 1, 128], strides = [1, 1, 1]} : vector<25x1x128xf32> to vector<1x1x128xf32>
    %254 = vector.shape_cast %253 : vector<1x1x128xf32> to vector<1x128xf32>
    %255 = vector.broadcast %254 : vector<1x128xf32> to vector<16x128xf32>
    %256 = arith.mulf %252, %255 : vector<16x128xf32>
    %257 = arith.addf %234, %256 : vector<16x128xf32>
    %c0_98 = arith.constant 0 : index
    %c11 = arith.constant 11 : index
    %c0_99 = arith.constant 0 : index
    %c0_100 = arith.constant 0 : index
    %258 = vector.load %arg1[%c0_98, %c11, %c0_99, %c0_100] : memref<1x25x16x128xbf16, #tpu.memory_space<vmem>>, vector<1x1x16x128xbf16>
    %259 = vector.shape_cast %258 : vector<1x1x16x128xbf16> to vector<16x128xbf16>
    %cst_101 = arith.constant dense<0.000000e+00> : vector<16x128xf32>
    %260 = tpu.matmul %259, %1, %cst_101 {dimension_numbers = #tpu.dot_dimension_numbers<[1], [0], [0], [1], [0, 0, 1, 1], [], []>} : vector<16x128xbf16>, vector<128x128xbf16>, vector<16x128xf32> -> vector<16x128xf32>
    %261 = vector.broadcast %2 : vector<1x128xf32> to vector<16x128xf32>
    %262 = arith.addf %260, %261 : vector<16x128xf32>
    %cst_102 = arith.constant 3.000000e+00 : f32
    %263 = vector.broadcast %cst_102 : f32 to vector<16x128xf32>
    %264 = arith.addf %262, %263 : vector<16x128xf32>
    %cst_103 = arith.constant 0.000000e+00 : f32
    %cst_104 = arith.constant 6.000000e+00 : f32
    %265 = vector.broadcast %cst_103 : f32 to vector<16x128xf32>
    %266 = arith.maximumf %265, %264 : vector<16x128xf32>
    %267 = vector.broadcast %cst_104 : f32 to vector<16x128xf32>
    %268 = arith.minimumf %267, %266 : vector<16x128xf32>
    %269 = arith.mulf %262, %268 : vector<16x128xf32>
    %cst_105 = arith.constant 6.000000e+00 : f32
    %270 = vector.broadcast %cst_105 : f32 to vector<16x128xf32>
    %271 = arith.divf %269, %270 : vector<16x128xf32>
    %272 = vector.extract_strided_slice %3 {offsets = [11, 0, 0], sizes = [1, 16, 1], strides = [1, 1, 1]} : vector<25x16x1xf32> to vector<1x16x1xf32>
    %273 = vector.shape_cast %272 : vector<1x16x1xf32> to vector<16x1xf32>
    %274 = vector.broadcast %273 : vector<16x1xf32> to vector<16x128xf32>
    %275 = arith.mulf %271, %274 : vector<16x128xf32>
    %276 = vector.extract_strided_slice %0 {offsets = [11, 0, 0], sizes = [1, 1, 128], strides = [1, 1, 1]} : vector<25x1x128xf32> to vector<1x1x128xf32>
    %277 = vector.shape_cast %276 : vector<1x1x128xf32> to vector<1x128xf32>
    %278 = vector.broadcast %277 : vector<1x128xf32> to vector<16x128xf32>
    %279 = arith.mulf %275, %278 : vector<16x128xf32>
    %280 = arith.addf %257, %279 : vector<16x128xf32>
    %c0_106 = arith.constant 0 : index
    %c12 = arith.constant 12 : index
    %c0_107 = arith.constant 0 : index
    %c0_108 = arith.constant 0 : index
    %281 = vector.load %arg1[%c0_106, %c12, %c0_107, %c0_108] : memref<1x25x16x128xbf16, #tpu.memory_space<vmem>>, vector<1x1x16x128xbf16>
    %282 = vector.shape_cast %281 : vector<1x1x16x128xbf16> to vector<16x128xbf16>
    %cst_109 = arith.constant dense<0.000000e+00> : vector<16x128xf32>
    %283 = tpu.matmul %282, %1, %cst_109 {dimension_numbers = #tpu.dot_dimension_numbers<[1], [0], [0], [1], [0, 0, 1, 1], [], []>} : vector<16x128xbf16>, vector<128x128xbf16>, vector<16x128xf32> -> vector<16x128xf32>
    %284 = vector.broadcast %2 : vector<1x128xf32> to vector<16x128xf32>
    %285 = arith.addf %283, %284 : vector<16x128xf32>
    %cst_110 = arith.constant 3.000000e+00 : f32
    %286 = vector.broadcast %cst_110 : f32 to vector<16x128xf32>
    %287 = arith.addf %285, %286 : vector<16x128xf32>
    %cst_111 = arith.constant 0.000000e+00 : f32
    %cst_112 = arith.constant 6.000000e+00 : f32
    %288 = vector.broadcast %cst_111 : f32 to vector<16x128xf32>
    %289 = arith.maximumf %288, %287 : vector<16x128xf32>
    %290 = vector.broadcast %cst_112 : f32 to vector<16x128xf32>
    %291 = arith.minimumf %290, %289 : vector<16x128xf32>
    %292 = arith.mulf %285, %291 : vector<16x128xf32>
    %cst_113 = arith.constant 6.000000e+00 : f32
    %293 = vector.broadcast %cst_113 : f32 to vector<16x128xf32>
    %294 = arith.divf %292, %293 : vector<16x128xf32>
    %295 = vector.extract_strided_slice %3 {offsets = [12, 0, 0], sizes = [1, 16, 1], strides = [1, 1, 1]} : vector<25x16x1xf32> to vector<1x16x1xf32>
    %296 = vector.shape_cast %295 : vector<1x16x1xf32> to vector<16x1xf32>
    %297 = vector.broadcast %296 : vector<16x1xf32> to vector<16x128xf32>
    %298 = arith.mulf %294, %297 : vector<16x128xf32>
    %299 = vector.extract_strided_slice %0 {offsets = [12, 0, 0], sizes = [1, 1, 128], strides = [1, 1, 1]} : vector<25x1x128xf32> to vector<1x1x128xf32>
    %300 = vector.shape_cast %299 : vector<1x1x128xf32> to vector<1x128xf32>
    %301 = vector.broadcast %300 : vector<1x128xf32> to vector<16x128xf32>
    %302 = arith.mulf %298, %301 : vector<16x128xf32>
    %303 = arith.addf %280, %302 : vector<16x128xf32>
    %c0_114 = arith.constant 0 : index
    %c13 = arith.constant 13 : index
    %c0_115 = arith.constant 0 : index
    %c0_116 = arith.constant 0 : index
    %304 = vector.load %arg1[%c0_114, %c13, %c0_115, %c0_116] : memref<1x25x16x128xbf16, #tpu.memory_space<vmem>>, vector<1x1x16x128xbf16>
    %305 = vector.shape_cast %304 : vector<1x1x16x128xbf16> to vector<16x128xbf16>
    %cst_117 = arith.constant dense<0.000000e+00> : vector<16x128xf32>
    %306 = tpu.matmul %305, %1, %cst_117 {dimension_numbers = #tpu.dot_dimension_numbers<[1], [0], [0], [1], [0, 0, 1, 1], [], []>} : vector<16x128xbf16>, vector<128x128xbf16>, vector<16x128xf32> -> vector<16x128xf32>
    %307 = vector.broadcast %2 : vector<1x128xf32> to vector<16x128xf32>
    %308 = arith.addf %306, %307 : vector<16x128xf32>
    %cst_118 = arith.constant 3.000000e+00 : f32
    %309 = vector.broadcast %cst_118 : f32 to vector<16x128xf32>
    %310 = arith.addf %308, %309 : vector<16x128xf32>
    %cst_119 = arith.constant 0.000000e+00 : f32
    %cst_120 = arith.constant 6.000000e+00 : f32
    %311 = vector.broadcast %cst_119 : f32 to vector<16x128xf32>
    %312 = arith.maximumf %311, %310 : vector<16x128xf32>
    %313 = vector.broadcast %cst_120 : f32 to vector<16x128xf32>
    %314 = arith.minimumf %313, %312 : vector<16x128xf32>
    %315 = arith.mulf %308, %314 : vector<16x128xf32>
    %cst_121 = arith.constant 6.000000e+00 : f32
    %316 = vector.broadcast %cst_121 : f32 to vector<16x128xf32>
    %317 = arith.divf %315, %316 : vector<16x128xf32>
    %318 = vector.extract_strided_slice %3 {offsets = [13, 0, 0], sizes = [1, 16, 1], strides = [1, 1, 1]} : vector<25x16x1xf32> to vector<1x16x1xf32>
    %319 = vector.shape_cast %318 : vector<1x16x1xf32> to vector<16x1xf32>
    %320 = vector.broadcast %319 : vector<16x1xf32> to vector<16x128xf32>
    %321 = arith.mulf %317, %320 : vector<16x128xf32>
    %322 = vector.extract_strided_slice %0 {offsets = [13, 0, 0], sizes = [1, 1, 128], strides = [1, 1, 1]} : vector<25x1x128xf32> to vector<1x1x128xf32>
    %323 = vector.shape_cast %322 : vector<1x1x128xf32> to vector<1x128xf32>
    %324 = vector.broadcast %323 : vector<1x128xf32> to vector<16x128xf32>
    %325 = arith.mulf %321, %324 : vector<16x128xf32>
    %326 = arith.addf %303, %325 : vector<16x128xf32>
    %c0_122 = arith.constant 0 : index
    %c14 = arith.constant 14 : index
    %c0_123 = arith.constant 0 : index
    %c0_124 = arith.constant 0 : index
    %327 = vector.load %arg1[%c0_122, %c14, %c0_123, %c0_124] : memref<1x25x16x128xbf16, #tpu.memory_space<vmem>>, vector<1x1x16x128xbf16>
    %328 = vector.shape_cast %327 : vector<1x1x16x128xbf16> to vector<16x128xbf16>
    %cst_125 = arith.constant dense<0.000000e+00> : vector<16x128xf32>
    %329 = tpu.matmul %328, %1, %cst_125 {dimension_numbers = #tpu.dot_dimension_numbers<[1], [0], [0], [1], [0, 0, 1, 1], [], []>} : vector<16x128xbf16>, vector<128x128xbf16>, vector<16x128xf32> -> vector<16x128xf32>
    %330 = vector.broadcast %2 : vector<1x128xf32> to vector<16x128xf32>
    %331 = arith.addf %329, %330 : vector<16x128xf32>
    %cst_126 = arith.constant 3.000000e+00 : f32
    %332 = vector.broadcast %cst_126 : f32 to vector<16x128xf32>
    %333 = arith.addf %331, %332 : vector<16x128xf32>
    %cst_127 = arith.constant 0.000000e+00 : f32
    %cst_128 = arith.constant 6.000000e+00 : f32
    %334 = vector.broadcast %cst_127 : f32 to vector<16x128xf32>
    %335 = arith.maximumf %334, %333 : vector<16x128xf32>
    %336 = vector.broadcast %cst_128 : f32 to vector<16x128xf32>
    %337 = arith.minimumf %336, %335 : vector<16x128xf32>
    %338 = arith.mulf %331, %337 : vector<16x128xf32>
    %cst_129 = arith.constant 6.000000e+00 : f32
    %339 = vector.broadcast %cst_129 : f32 to vector<16x128xf32>
    %340 = arith.divf %338, %339 : vector<16x128xf32>
    %341 = vector.extract_strided_slice %3 {offsets = [14, 0, 0], sizes = [1, 16, 1], strides = [1, 1, 1]} : vector<25x16x1xf32> to vector<1x16x1xf32>
    %342 = vector.shape_cast %341 : vector<1x16x1xf32> to vector<16x1xf32>
    %343 = vector.broadcast %342 : vector<16x1xf32> to vector<16x128xf32>
    %344 = arith.mulf %340, %343 : vector<16x128xf32>
    %345 = vector.extract_strided_slice %0 {offsets = [14, 0, 0], sizes = [1, 1, 128], strides = [1, 1, 1]} : vector<25x1x128xf32> to vector<1x1x128xf32>
    %346 = vector.shape_cast %345 : vector<1x1x128xf32> to vector<1x128xf32>
    %347 = vector.broadcast %346 : vector<1x128xf32> to vector<16x128xf32>
    %348 = arith.mulf %344, %347 : vector<16x128xf32>
    %349 = arith.addf %326, %348 : vector<16x128xf32>
    %c0_130 = arith.constant 0 : index
    %c15 = arith.constant 15 : index
    %c0_131 = arith.constant 0 : index
    %c0_132 = arith.constant 0 : index
    %350 = vector.load %arg1[%c0_130, %c15, %c0_131, %c0_132] : memref<1x25x16x128xbf16, #tpu.memory_space<vmem>>, vector<1x1x16x128xbf16>
    %351 = vector.shape_cast %350 : vector<1x1x16x128xbf16> to vector<16x128xbf16>
    %cst_133 = arith.constant dense<0.000000e+00> : vector<16x128xf32>
    %352 = tpu.matmul %351, %1, %cst_133 {dimension_numbers = #tpu.dot_dimension_numbers<[1], [0], [0], [1], [0, 0, 1, 1], [], []>} : vector<16x128xbf16>, vector<128x128xbf16>, vector<16x128xf32> -> vector<16x128xf32>
    %353 = vector.broadcast %2 : vector<1x128xf32> to vector<16x128xf32>
    %354 = arith.addf %352, %353 : vector<16x128xf32>
    %cst_134 = arith.constant 3.000000e+00 : f32
    %355 = vector.broadcast %cst_134 : f32 to vector<16x128xf32>
    %356 = arith.addf %354, %355 : vector<16x128xf32>
    %cst_135 = arith.constant 0.000000e+00 : f32
    %cst_136 = arith.constant 6.000000e+00 : f32
    %357 = vector.broadcast %cst_135 : f32 to vector<16x128xf32>
    %358 = arith.maximumf %357, %356 : vector<16x128xf32>
    %359 = vector.broadcast %cst_136 : f32 to vector<16x128xf32>
    %360 = arith.minimumf %359, %358 : vector<16x128xf32>
    %361 = arith.mulf %354, %360 : vector<16x128xf32>
    %cst_137 = arith.constant 6.000000e+00 : f32
    %362 = vector.broadcast %cst_137 : f32 to vector<16x128xf32>
    %363 = arith.divf %361, %362 : vector<16x128xf32>
    %364 = vector.extract_strided_slice %3 {offsets = [15, 0, 0], sizes = [1, 16, 1], strides = [1, 1, 1]} : vector<25x16x1xf32> to vector<1x16x1xf32>
    %365 = vector.shape_cast %364 : vector<1x16x1xf32> to vector<16x1xf32>
    %366 = vector.broadcast %365 : vector<16x1xf32> to vector<16x128xf32>
    %367 = arith.mulf %363, %366 : vector<16x128xf32>
    %368 = vector.extract_strided_slice %0 {offsets = [15, 0, 0], sizes = [1, 1, 128], strides = [1, 1, 1]} : vector<25x1x128xf32> to vector<1x1x128xf32>
    %369 = vector.shape_cast %368 : vector<1x1x128xf32> to vector<1x128xf32>
    %370 = vector.broadcast %369 : vector<1x128xf32> to vector<16x128xf32>
    %371 = arith.mulf %367, %370 : vector<16x128xf32>
    %372 = arith.addf %349, %371 : vector<16x128xf32>
    %c0_138 = arith.constant 0 : index
    %c16 = arith.constant 16 : index
    %c0_139 = arith.constant 0 : index
    %c0_140 = arith.constant 0 : index
    %373 = vector.load %arg1[%c0_138, %c16, %c0_139, %c0_140] : memref<1x25x16x128xbf16, #tpu.memory_space<vmem>>, vector<1x1x16x128xbf16>
    %374 = vector.shape_cast %373 : vector<1x1x16x128xbf16> to vector<16x128xbf16>
    %cst_141 = arith.constant dense<0.000000e+00> : vector<16x128xf32>
    %375 = tpu.matmul %374, %1, %cst_141 {dimension_numbers = #tpu.dot_dimension_numbers<[1], [0], [0], [1], [0, 0, 1, 1], [], []>} : vector<16x128xbf16>, vector<128x128xbf16>, vector<16x128xf32> -> vector<16x128xf32>
    %376 = vector.broadcast %2 : vector<1x128xf32> to vector<16x128xf32>
    %377 = arith.addf %375, %376 : vector<16x128xf32>
    %cst_142 = arith.constant 3.000000e+00 : f32
    %378 = vector.broadcast %cst_142 : f32 to vector<16x128xf32>
    %379 = arith.addf %377, %378 : vector<16x128xf32>
    %cst_143 = arith.constant 0.000000e+00 : f32
    %cst_144 = arith.constant 6.000000e+00 : f32
    %380 = vector.broadcast %cst_143 : f32 to vector<16x128xf32>
    %381 = arith.maximumf %380, %379 : vector<16x128xf32>
    %382 = vector.broadcast %cst_144 : f32 to vector<16x128xf32>
    %383 = arith.minimumf %382, %381 : vector<16x128xf32>
    %384 = arith.mulf %377, %383 : vector<16x128xf32>
    %cst_145 = arith.constant 6.000000e+00 : f32
    %385 = vector.broadcast %cst_145 : f32 to vector<16x128xf32>
    %386 = arith.divf %384, %385 : vector<16x128xf32>
    %387 = vector.extract_strided_slice %3 {offsets = [16, 0, 0], sizes = [1, 16, 1], strides = [1, 1, 1]} : vector<25x16x1xf32> to vector<1x16x1xf32>
    %388 = vector.shape_cast %387 : vector<1x16x1xf32> to vector<16x1xf32>
    %389 = vector.broadcast %388 : vector<16x1xf32> to vector<16x128xf32>
    %390 = arith.mulf %386, %389 : vector<16x128xf32>
    %391 = vector.extract_strided_slice %0 {offsets = [16, 0, 0], sizes = [1, 1, 128], strides = [1, 1, 1]} : vector<25x1x128xf32> to vector<1x1x128xf32>
    %392 = vector.shape_cast %391 : vector<1x1x128xf32> to vector<1x128xf32>
    %393 = vector.broadcast %392 : vector<1x128xf32> to vector<16x128xf32>
    %394 = arith.mulf %390, %393 : vector<16x128xf32>
    %395 = arith.addf %372, %394 : vector<16x128xf32>
    %c0_146 = arith.constant 0 : index
    %c17 = arith.constant 17 : index
    %c0_147 = arith.constant 0 : index
    %c0_148 = arith.constant 0 : index
    %396 = vector.load %arg1[%c0_146, %c17, %c0_147, %c0_148] : memref<1x25x16x128xbf16, #tpu.memory_space<vmem>>, vector<1x1x16x128xbf16>
    %397 = vector.shape_cast %396 : vector<1x1x16x128xbf16> to vector<16x128xbf16>
    %cst_149 = arith.constant dense<0.000000e+00> : vector<16x128xf32>
    %398 = tpu.matmul %397, %1, %cst_149 {dimension_numbers = #tpu.dot_dimension_numbers<[1], [0], [0], [1], [0, 0, 1, 1], [], []>} : vector<16x128xbf16>, vector<128x128xbf16>, vector<16x128xf32> -> vector<16x128xf32>
    %399 = vector.broadcast %2 : vector<1x128xf32> to vector<16x128xf32>
    %400 = arith.addf %398, %399 : vector<16x128xf32>
    %cst_150 = arith.constant 3.000000e+00 : f32
    %401 = vector.broadcast %cst_150 : f32 to vector<16x128xf32>
    %402 = arith.addf %400, %401 : vector<16x128xf32>
    %cst_151 = arith.constant 0.000000e+00 : f32
    %cst_152 = arith.constant 6.000000e+00 : f32
    %403 = vector.broadcast %cst_151 : f32 to vector<16x128xf32>
    %404 = arith.maximumf %403, %402 : vector<16x128xf32>
    %405 = vector.broadcast %cst_152 : f32 to vector<16x128xf32>
    %406 = arith.minimumf %405, %404 : vector<16x128xf32>
    %407 = arith.mulf %400, %406 : vector<16x128xf32>
    %cst_153 = arith.constant 6.000000e+00 : f32
    %408 = vector.broadcast %cst_153 : f32 to vector<16x128xf32>
    %409 = arith.divf %407, %408 : vector<16x128xf32>
    %410 = vector.extract_strided_slice %3 {offsets = [17, 0, 0], sizes = [1, 16, 1], strides = [1, 1, 1]} : vector<25x16x1xf32> to vector<1x16x1xf32>
    %411 = vector.shape_cast %410 : vector<1x16x1xf32> to vector<16x1xf32>
    %412 = vector.broadcast %411 : vector<16x1xf32> to vector<16x128xf32>
    %413 = arith.mulf %409, %412 : vector<16x128xf32>
    %414 = vector.extract_strided_slice %0 {offsets = [17, 0, 0], sizes = [1, 1, 128], strides = [1, 1, 1]} : vector<25x1x128xf32> to vector<1x1x128xf32>
    %415 = vector.shape_cast %414 : vector<1x1x128xf32> to vector<1x128xf32>
    %416 = vector.broadcast %415 : vector<1x128xf32> to vector<16x128xf32>
    %417 = arith.mulf %413, %416 : vector<16x128xf32>
    %418 = arith.addf %395, %417 : vector<16x128xf32>
    %c0_154 = arith.constant 0 : index
    %c18 = arith.constant 18 : index
    %c0_155 = arith.constant 0 : index
    %c0_156 = arith.constant 0 : index
    %419 = vector.load %arg1[%c0_154, %c18, %c0_155, %c0_156] : memref<1x25x16x128xbf16, #tpu.memory_space<vmem>>, vector<1x1x16x128xbf16>
    %420 = vector.shape_cast %419 : vector<1x1x16x128xbf16> to vector<16x128xbf16>
    %cst_157 = arith.constant dense<0.000000e+00> : vector<16x128xf32>
    %421 = tpu.matmul %420, %1, %cst_157 {dimension_numbers = #tpu.dot_dimension_numbers<[1], [0], [0], [1], [0, 0, 1, 1], [], []>} : vector<16x128xbf16>, vector<128x128xbf16>, vector<16x128xf32> -> vector<16x128xf32>
    %422 = vector.broadcast %2 : vector<1x128xf32> to vector<16x128xf32>
    %423 = arith.addf %421, %422 : vector<16x128xf32>
    %cst_158 = arith.constant 3.000000e+00 : f32
    %424 = vector.broadcast %cst_158 : f32 to vector<16x128xf32>
    %425 = arith.addf %423, %424 : vector<16x128xf32>
    %cst_159 = arith.constant 0.000000e+00 : f32
    %cst_160 = arith.constant 6.000000e+00 : f32
    %426 = vector.broadcast %cst_159 : f32 to vector<16x128xf32>
    %427 = arith.maximumf %426, %425 : vector<16x128xf32>
    %428 = vector.broadcast %cst_160 : f32 to vector<16x128xf32>
    %429 = arith.minimumf %428, %427 : vector<16x128xf32>
    %430 = arith.mulf %423, %429 : vector<16x128xf32>
    %cst_161 = arith.constant 6.000000e+00 : f32
    %431 = vector.broadcast %cst_161 : f32 to vector<16x128xf32>
    %432 = arith.divf %430, %431 : vector<16x128xf32>
    %433 = vector.extract_strided_slice %3 {offsets = [18, 0, 0], sizes = [1, 16, 1], strides = [1, 1, 1]} : vector<25x16x1xf32> to vector<1x16x1xf32>
    %434 = vector.shape_cast %433 : vector<1x16x1xf32> to vector<16x1xf32>
    %435 = vector.broadcast %434 : vector<16x1xf32> to vector<16x128xf32>
    %436 = arith.mulf %432, %435 : vector<16x128xf32>
    %437 = vector.extract_strided_slice %0 {offsets = [18, 0, 0], sizes = [1, 1, 128], strides = [1, 1, 1]} : vector<25x1x128xf32> to vector<1x1x128xf32>
    %438 = vector.shape_cast %437 : vector<1x1x128xf32> to vector<1x128xf32>
    %439 = vector.broadcast %438 : vector<1x128xf32> to vector<16x128xf32>
    %440 = arith.mulf %436, %439 : vector<16x128xf32>
    %441 = arith.addf %418, %440 : vector<16x128xf32>
    %c0_162 = arith.constant 0 : index
    %c19 = arith.constant 19 : index
    %c0_163 = arith.constant 0 : index
    %c0_164 = arith.constant 0 : index
    %442 = vector.load %arg1[%c0_162, %c19, %c0_163, %c0_164] : memref<1x25x16x128xbf16, #tpu.memory_space<vmem>>, vector<1x1x16x128xbf16>
    %443 = vector.shape_cast %442 : vector<1x1x16x128xbf16> to vector<16x128xbf16>
    %cst_165 = arith.constant dense<0.000000e+00> : vector<16x128xf32>
    %444 = tpu.matmul %443, %1, %cst_165 {dimension_numbers = #tpu.dot_dimension_numbers<[1], [0], [0], [1], [0, 0, 1, 1], [], []>} : vector<16x128xbf16>, vector<128x128xbf16>, vector<16x128xf32> -> vector<16x128xf32>
    %445 = vector.broadcast %2 : vector<1x128xf32> to vector<16x128xf32>
    %446 = arith.addf %444, %445 : vector<16x128xf32>
    %cst_166 = arith.constant 3.000000e+00 : f32
    %447 = vector.broadcast %cst_166 : f32 to vector<16x128xf32>
    %448 = arith.addf %446, %447 : vector<16x128xf32>
    %cst_167 = arith.constant 0.000000e+00 : f32
    %cst_168 = arith.constant 6.000000e+00 : f32
    %449 = vector.broadcast %cst_167 : f32 to vector<16x128xf32>
    %450 = arith.maximumf %449, %448 : vector<16x128xf32>
    %451 = vector.broadcast %cst_168 : f32 to vector<16x128xf32>
    %452 = arith.minimumf %451, %450 : vector<16x128xf32>
    %453 = arith.mulf %446, %452 : vector<16x128xf32>
    %cst_169 = arith.constant 6.000000e+00 : f32
    %454 = vector.broadcast %cst_169 : f32 to vector<16x128xf32>
    %455 = arith.divf %453, %454 : vector<16x128xf32>
    %456 = vector.extract_strided_slice %3 {offsets = [19, 0, 0], sizes = [1, 16, 1], strides = [1, 1, 1]} : vector<25x16x1xf32> to vector<1x16x1xf32>
    %457 = vector.shape_cast %456 : vector<1x16x1xf32> to vector<16x1xf32>
    %458 = vector.broadcast %457 : vector<16x1xf32> to vector<16x128xf32>
    %459 = arith.mulf %455, %458 : vector<16x128xf32>
    %460 = vector.extract_strided_slice %0 {offsets = [19, 0, 0], sizes = [1, 1, 128], strides = [1, 1, 1]} : vector<25x1x128xf32> to vector<1x1x128xf32>
    %461 = vector.shape_cast %460 : vector<1x1x128xf32> to vector<1x128xf32>
    %462 = vector.broadcast %461 : vector<1x128xf32> to vector<16x128xf32>
    %463 = arith.mulf %459, %462 : vector<16x128xf32>
    %464 = arith.addf %441, %463 : vector<16x128xf32>
    %c0_170 = arith.constant 0 : index
    %c20 = arith.constant 20 : index
    %c0_171 = arith.constant 0 : index
    %c0_172 = arith.constant 0 : index
    %465 = vector.load %arg1[%c0_170, %c20, %c0_171, %c0_172] : memref<1x25x16x128xbf16, #tpu.memory_space<vmem>>, vector<1x1x16x128xbf16>
    %466 = vector.shape_cast %465 : vector<1x1x16x128xbf16> to vector<16x128xbf16>
    %cst_173 = arith.constant dense<0.000000e+00> : vector<16x128xf32>
    %467 = tpu.matmul %466, %1, %cst_173 {dimension_numbers = #tpu.dot_dimension_numbers<[1], [0], [0], [1], [0, 0, 1, 1], [], []>} : vector<16x128xbf16>, vector<128x128xbf16>, vector<16x128xf32> -> vector<16x128xf32>
    %468 = vector.broadcast %2 : vector<1x128xf32> to vector<16x128xf32>
    %469 = arith.addf %467, %468 : vector<16x128xf32>
    %cst_174 = arith.constant 3.000000e+00 : f32
    %470 = vector.broadcast %cst_174 : f32 to vector<16x128xf32>
    %471 = arith.addf %469, %470 : vector<16x128xf32>
    %cst_175 = arith.constant 0.000000e+00 : f32
    %cst_176 = arith.constant 6.000000e+00 : f32
    %472 = vector.broadcast %cst_175 : f32 to vector<16x128xf32>
    %473 = arith.maximumf %472, %471 : vector<16x128xf32>
    %474 = vector.broadcast %cst_176 : f32 to vector<16x128xf32>
    %475 = arith.minimumf %474, %473 : vector<16x128xf32>
    %476 = arith.mulf %469, %475 : vector<16x128xf32>
    %cst_177 = arith.constant 6.000000e+00 : f32
    %477 = vector.broadcast %cst_177 : f32 to vector<16x128xf32>
    %478 = arith.divf %476, %477 : vector<16x128xf32>
    %479 = vector.extract_strided_slice %3 {offsets = [20, 0, 0], sizes = [1, 16, 1], strides = [1, 1, 1]} : vector<25x16x1xf32> to vector<1x16x1xf32>
    %480 = vector.shape_cast %479 : vector<1x16x1xf32> to vector<16x1xf32>
    %481 = vector.broadcast %480 : vector<16x1xf32> to vector<16x128xf32>
    %482 = arith.mulf %478, %481 : vector<16x128xf32>
    %483 = vector.extract_strided_slice %0 {offsets = [20, 0, 0], sizes = [1, 1, 128], strides = [1, 1, 1]} : vector<25x1x128xf32> to vector<1x1x128xf32>
    %484 = vector.shape_cast %483 : vector<1x1x128xf32> to vector<1x128xf32>
    %485 = vector.broadcast %484 : vector<1x128xf32> to vector<16x128xf32>
    %486 = arith.mulf %482, %485 : vector<16x128xf32>
    %487 = arith.addf %464, %486 : vector<16x128xf32>
    %c0_178 = arith.constant 0 : index
    %c21 = arith.constant 21 : index
    %c0_179 = arith.constant 0 : index
    %c0_180 = arith.constant 0 : index
    %488 = vector.load %arg1[%c0_178, %c21, %c0_179, %c0_180] : memref<1x25x16x128xbf16, #tpu.memory_space<vmem>>, vector<1x1x16x128xbf16>
    %489 = vector.shape_cast %488 : vector<1x1x16x128xbf16> to vector<16x128xbf16>
    %cst_181 = arith.constant dense<0.000000e+00> : vector<16x128xf32>
    %490 = tpu.matmul %489, %1, %cst_181 {dimension_numbers = #tpu.dot_dimension_numbers<[1], [0], [0], [1], [0, 0, 1, 1], [], []>} : vector<16x128xbf16>, vector<128x128xbf16>, vector<16x128xf32> -> vector<16x128xf32>
    %491 = vector.broadcast %2 : vector<1x128xf32> to vector<16x128xf32>
    %492 = arith.addf %490, %491 : vector<16x128xf32>
    %cst_182 = arith.constant 3.000000e+00 : f32
    %493 = vector.broadcast %cst_182 : f32 to vector<16x128xf32>
    %494 = arith.addf %492, %493 : vector<16x128xf32>
    %cst_183 = arith.constant 0.000000e+00 : f32
    %cst_184 = arith.constant 6.000000e+00 : f32
    %495 = vector.broadcast %cst_183 : f32 to vector<16x128xf32>
    %496 = arith.maximumf %495, %494 : vector<16x128xf32>
    %497 = vector.broadcast %cst_184 : f32 to vector<16x128xf32>
    %498 = arith.minimumf %497, %496 : vector<16x128xf32>
    %499 = arith.mulf %492, %498 : vector<16x128xf32>
    %cst_185 = arith.constant 6.000000e+00 : f32
    %500 = vector.broadcast %cst_185 : f32 to vector<16x128xf32>
    %501 = arith.divf %499, %500 : vector<16x128xf32>
    %502 = vector.extract_strided_slice %3 {offsets = [21, 0, 0], sizes = [1, 16, 1], strides = [1, 1, 1]} : vector<25x16x1xf32> to vector<1x16x1xf32>
    %503 = vector.shape_cast %502 : vector<1x16x1xf32> to vector<16x1xf32>
    %504 = vector.broadcast %503 : vector<16x1xf32> to vector<16x128xf32>
    %505 = arith.mulf %501, %504 : vector<16x128xf32>
    %506 = vector.extract_strided_slice %0 {offsets = [21, 0, 0], sizes = [1, 1, 128], strides = [1, 1, 1]} : vector<25x1x128xf32> to vector<1x1x128xf32>
    %507 = vector.shape_cast %506 : vector<1x1x128xf32> to vector<1x128xf32>
    %508 = vector.broadcast %507 : vector<1x128xf32> to vector<16x128xf32>
    %509 = arith.mulf %505, %508 : vector<16x128xf32>
    %510 = arith.addf %487, %509 : vector<16x128xf32>
    %c0_186 = arith.constant 0 : index
    %c22 = arith.constant 22 : index
    %c0_187 = arith.constant 0 : index
    %c0_188 = arith.constant 0 : index
    %511 = vector.load %arg1[%c0_186, %c22, %c0_187, %c0_188] : memref<1x25x16x128xbf16, #tpu.memory_space<vmem>>, vector<1x1x16x128xbf16>
    %512 = vector.shape_cast %511 : vector<1x1x16x128xbf16> to vector<16x128xbf16>
    %cst_189 = arith.constant dense<0.000000e+00> : vector<16x128xf32>
    %513 = tpu.matmul %512, %1, %cst_189 {dimension_numbers = #tpu.dot_dimension_numbers<[1], [0], [0], [1], [0, 0, 1, 1], [], []>} : vector<16x128xbf16>, vector<128x128xbf16>, vector<16x128xf32> -> vector<16x128xf32>
    %514 = vector.broadcast %2 : vector<1x128xf32> to vector<16x128xf32>
    %515 = arith.addf %513, %514 : vector<16x128xf32>
    %cst_190 = arith.constant 3.000000e+00 : f32
    %516 = vector.broadcast %cst_190 : f32 to vector<16x128xf32>
    %517 = arith.addf %515, %516 : vector<16x128xf32>
    %cst_191 = arith.constant 0.000000e+00 : f32
    %cst_192 = arith.constant 6.000000e+00 : f32
    %518 = vector.broadcast %cst_191 : f32 to vector<16x128xf32>
    %519 = arith.maximumf %518, %517 : vector<16x128xf32>
    %520 = vector.broadcast %cst_192 : f32 to vector<16x128xf32>
    %521 = arith.minimumf %520, %519 : vector<16x128xf32>
    %522 = arith.mulf %515, %521 : vector<16x128xf32>
    %cst_193 = arith.constant 6.000000e+00 : f32
    %523 = vector.broadcast %cst_193 : f32 to vector<16x128xf32>
    %524 = arith.divf %522, %523 : vector<16x128xf32>
    %525 = vector.extract_strided_slice %3 {offsets = [22, 0, 0], sizes = [1, 16, 1], strides = [1, 1, 1]} : vector<25x16x1xf32> to vector<1x16x1xf32>
    %526 = vector.shape_cast %525 : vector<1x16x1xf32> to vector<16x1xf32>
    %527 = vector.broadcast %526 : vector<16x1xf32> to vector<16x128xf32>
    %528 = arith.mulf %524, %527 : vector<16x128xf32>
    %529 = vector.extract_strided_slice %0 {offsets = [22, 0, 0], sizes = [1, 1, 128], strides = [1, 1, 1]} : vector<25x1x128xf32> to vector<1x1x128xf32>
    %530 = vector.shape_cast %529 : vector<1x1x128xf32> to vector<1x128xf32>
    %531 = vector.broadcast %530 : vector<1x128xf32> to vector<16x128xf32>
    %532 = arith.mulf %528, %531 : vector<16x128xf32>
    %533 = arith.addf %510, %532 : vector<16x128xf32>
    %c0_194 = arith.constant 0 : index
    %c23 = arith.constant 23 : index
    %c0_195 = arith.constant 0 : index
    %c0_196 = arith.constant 0 : index
    %534 = vector.load %arg1[%c0_194, %c23, %c0_195, %c0_196] : memref<1x25x16x128xbf16, #tpu.memory_space<vmem>>, vector<1x1x16x128xbf16>
    %535 = vector.shape_cast %534 : vector<1x1x16x128xbf16> to vector<16x128xbf16>
    %cst_197 = arith.constant dense<0.000000e+00> : vector<16x128xf32>
    %536 = tpu.matmul %535, %1, %cst_197 {dimension_numbers = #tpu.dot_dimension_numbers<[1], [0], [0], [1], [0, 0, 1, 1], [], []>} : vector<16x128xbf16>, vector<128x128xbf16>, vector<16x128xf32> -> vector<16x128xf32>
    %537 = vector.broadcast %2 : vector<1x128xf32> to vector<16x128xf32>
    %538 = arith.addf %536, %537 : vector<16x128xf32>
    %cst_198 = arith.constant 3.000000e+00 : f32
    %539 = vector.broadcast %cst_198 : f32 to vector<16x128xf32>
    %540 = arith.addf %538, %539 : vector<16x128xf32>
    %cst_199 = arith.constant 0.000000e+00 : f32
    %cst_200 = arith.constant 6.000000e+00 : f32
    %541 = vector.broadcast %cst_199 : f32 to vector<16x128xf32>
    %542 = arith.maximumf %541, %540 : vector<16x128xf32>
    %543 = vector.broadcast %cst_200 : f32 to vector<16x128xf32>
    %544 = arith.minimumf %543, %542 : vector<16x128xf32>
    %545 = arith.mulf %538, %544 : vector<16x128xf32>
    %cst_201 = arith.constant 6.000000e+00 : f32
    %546 = vector.broadcast %cst_201 : f32 to vector<16x128xf32>
    %547 = arith.divf %545, %546 : vector<16x128xf32>
    %548 = vector.extract_strided_slice %3 {offsets = [23, 0, 0], sizes = [1, 16, 1], strides = [1, 1, 1]} : vector<25x16x1xf32> to vector<1x16x1xf32>
    %549 = vector.shape_cast %548 : vector<1x16x1xf32> to vector<16x1xf32>
    %550 = vector.broadcast %549 : vector<16x1xf32> to vector<16x128xf32>
    %551 = arith.mulf %547, %550 : vector<16x128xf32>
    %552 = vector.extract_strided_slice %0 {offsets = [23, 0, 0], sizes = [1, 1, 128], strides = [1, 1, 1]} : vector<25x1x128xf32> to vector<1x1x128xf32>
    %553 = vector.shape_cast %552 : vector<1x1x128xf32> to vector<1x128xf32>
    %554 = vector.broadcast %553 : vector<1x128xf32> to vector<16x128xf32>
    %555 = arith.mulf %551, %554 : vector<16x128xf32>
    %556 = arith.addf %533, %555 : vector<16x128xf32>
    %c0_202 = arith.constant 0 : index
    %c24 = arith.constant 24 : index
    %c0_203 = arith.constant 0 : index
    %c0_204 = arith.constant 0 : index
    %557 = vector.load %arg1[%c0_202, %c24, %c0_203, %c0_204] : memref<1x25x16x128xbf16, #tpu.memory_space<vmem>>, vector<1x1x16x128xbf16>
    %558 = vector.shape_cast %557 : vector<1x1x16x128xbf16> to vector<16x128xbf16>
    %cst_205 = arith.constant dense<0.000000e+00> : vector<16x128xf32>
    %559 = tpu.matmul %558, %1, %cst_205 {dimension_numbers = #tpu.dot_dimension_numbers<[1], [0], [0], [1], [0, 0, 1, 1], [], []>} : vector<16x128xbf16>, vector<128x128xbf16>, vector<16x128xf32> -> vector<16x128xf32>
    %560 = vector.broadcast %2 : vector<1x128xf32> to vector<16x128xf32>
    %561 = arith.addf %559, %560 : vector<16x128xf32>
    %cst_206 = arith.constant 3.000000e+00 : f32
    %562 = vector.broadcast %cst_206 : f32 to vector<16x128xf32>
    %563 = arith.addf %561, %562 : vector<16x128xf32>
    %cst_207 = arith.constant 0.000000e+00 : f32
    %cst_208 = arith.constant 6.000000e+00 : f32
    %564 = vector.broadcast %cst_207 : f32 to vector<16x128xf32>
    %565 = arith.maximumf %564, %563 : vector<16x128xf32>
    %566 = vector.broadcast %cst_208 : f32 to vector<16x128xf32>
    %567 = arith.minimumf %566, %565 : vector<16x128xf32>
    %568 = arith.mulf %561, %567 : vector<16x128xf32>
    %cst_209 = arith.constant 6.000000e+00 : f32
    %569 = vector.broadcast %cst_209 : f32 to vector<16x128xf32>
    %570 = arith.divf %568, %569 : vector<16x128xf32>
    %571 = vector.extract_strided_slice %3 {offsets = [24, 0, 0], sizes = [1, 16, 1], strides = [1, 1, 1]} : vector<25x16x1xf32> to vector<1x16x1xf32>
    %572 = vector.shape_cast %571 : vector<1x16x1xf32> to vector<16x1xf32>
    %573 = vector.broadcast %572 : vector<16x1xf32> to vector<16x128xf32>
    %574 = arith.mulf %570, %573 : vector<16x128xf32>
    %575 = vector.extract_strided_slice %0 {offsets = [24, 0, 0], sizes = [1, 1, 128], strides = [1, 1, 1]} : vector<25x1x128xf32> to vector<1x1x128xf32>
    %576 = vector.shape_cast %575 : vector<1x1x128xf32> to vector<1x128xf32>
    %577 = vector.broadcast %576 : vector<1x128xf32> to vector<16x128xf32>
    %578 = arith.mulf %574, %577 : vector<16x128xf32>
    %579 = arith.addf %556, %578 : vector<16x128xf32>
    %c0_210 = arith.constant 0 : index
    %c0_211 = arith.constant 0 : index
    %580 = vector.load %arg6[%c0_210, %c0_211] : memref<1x128xf32, #tpu.memory_space<vmem>>, vector<1x128xf32>
    %581 = vector.broadcast %580 : vector<1x128xf32> to vector<16x128xf32>
    %582 = arith.addf %579, %581 : vector<16x128xf32>
    %cst_212 = arith.constant 3.000000e+00 : f32
    %583 = vector.broadcast %cst_212 : f32 to vector<16x128xf32>
    %584 = arith.addf %582, %583 : vector<16x128xf32>
    %cst_213 = arith.constant 0.000000e+00 : f32
    %cst_214 = arith.constant 6.000000e+00 : f32
    %585 = vector.broadcast %cst_213 : f32 to vector<16x128xf32>
    %586 = arith.maximumf %585, %584 : vector<16x128xf32>
    %587 = vector.broadcast %cst_214 : f32 to vector<16x128xf32>
    %588 = arith.minimumf %587, %586 : vector<16x128xf32>
    %589 = arith.mulf %582, %588 : vector<16x128xf32>
    %cst_215 = arith.constant 6.000000e+00 : f32
    %590 = vector.broadcast %cst_215 : f32 to vector<16x128xf32>
    %591 = arith.divf %589, %590 : vector<16x128xf32>
    %cst_216 = arith.constant dense<0.000000e+00> : vector<128xf32>
    %592 = vector.multi_reduction <add>, %591, %cst_216 [0] : vector<16x128xf32> to vector<128xf32>
    %593 = vector.shape_cast %592 : vector<128xf32> to vector<1x128xf32>
    %cst_217 = arith.constant 1.600000e+01 : f32
    %594 = vector.broadcast %cst_217 : f32 to vector<1x128xf32>
    %595 = arith.divf %593, %594 : vector<1x128xf32>
    %596 = arith.truncf %595 : vector<1x128xf32> to vector<1x128xbf16>
    %c0_218 = arith.constant 0 : index
    %c0_219 = arith.constant 0 : index
    %597 = vector.load %arg7[%c0_218, %c0_219] : memref<128x128xbf16, #tpu.memory_space<vmem>>, vector<128x128xbf16>
    %cst_220 = arith.constant dense<0.000000e+00> : vector<1x128xf32>
    %598 = tpu.matmul %596, %597, %cst_220 {dimension_numbers = #tpu.dot_dimension_numbers<[1], [0], [0], [1], [0, 0, 1, 1], [], []>} : vector<1x128xbf16>, vector<128x128xbf16>, vector<1x128xf32> -> vector<1x128xf32>
    %c0_221 = arith.constant 0 : index
    %c0_222 = arith.constant 0 : index
    %599 = vector.load %arg8[%c0_221, %c0_222] : memref<1x128xf32, #tpu.memory_space<vmem>>, vector<1x128xf32>
    %600 = arith.addf %598, %599 : vector<1x128xf32>
    %cst_223 = arith.constant 0.000000e+00 : f32
    %601 = vector.broadcast %cst_223 : f32 to vector<1x128xf32>
    %602 = arith.maximumf %600, %601 : vector<1x128xf32>
    %603 = arith.truncf %602 : vector<1x128xf32> to vector<1x128xbf16>
    %c0_224 = arith.constant 0 : index
    %c0_225 = arith.constant 0 : index
    %604 = vector.load %arg9[%c0_224, %c0_225] : memref<128x128xbf16, #tpu.memory_space<vmem>>, vector<128x128xbf16>
    %cst_226 = arith.constant dense<0.000000e+00> : vector<1x128xf32>
    %605 = tpu.matmul %603, %604, %cst_226 {dimension_numbers = #tpu.dot_dimension_numbers<[1], [0], [0], [1], [0, 0, 1, 1], [], []>} : vector<1x128xbf16>, vector<128x128xbf16>, vector<1x128xf32> -> vector<1x128xf32>
    %c0_227 = arith.constant 0 : index
    %c0_228 = arith.constant 0 : index
    %606 = vector.load %arg10[%c0_227, %c0_228] : memref<1x128xf32, #tpu.memory_space<vmem>>, vector<1x128xf32>
    %607 = arith.addf %605, %606 : vector<1x128xf32>
    %cst_229 = arith.constant 3.000000e+00 : f32
    %608 = vector.broadcast %cst_229 : f32 to vector<1x128xf32>
    %609 = arith.addf %607, %608 : vector<1x128xf32>
    %cst_230 = arith.constant 0.000000e+00 : f32
    %cst_231 = arith.constant 6.000000e+00 : f32
    %610 = vector.broadcast %cst_230 : f32 to vector<1x128xf32>
    %611 = arith.maximumf %610, %609 : vector<1x128xf32>
    %612 = vector.broadcast %cst_231 : f32 to vector<1x128xf32>
    %613 = arith.minimumf %612, %611 : vector<1x128xf32>
    %cst_232 = arith.constant 6.000000e+00 : f32
    %614 = vector.broadcast %cst_232 : f32 to vector<1x128xf32>
    %615 = arith.divf %613, %614 : vector<1x128xf32>
    %616 = vector.broadcast %615 : vector<1x128xf32> to vector<16x128xf32>
    %617 = arith.mulf %591, %616 : vector<16x128xf32>
    %618 = arith.truncf %617 : vector<16x128xf32> to vector<16x128xbf16>
    %c0_233 = arith.constant 0 : index
    %c0_234 = arith.constant 0 : index
    %619 = vector.load %arg11[%c0_233, %c0_234] : memref<128x128xbf16, #tpu.memory_space<vmem>>, vector<128x128xbf16>
    %cst_235 = arith.constant dense<0.000000e+00> : vector<16x128xf32>
    %620 = tpu.matmul %618, %619, %cst_235 {dimension_numbers = #tpu.dot_dimension_numbers<[1], [0], [0], [1], [0, 0, 1, 1], [], []>} : vector<16x128xbf16>, vector<128x128xbf16>, vector<16x128xf32> -> vector<16x128xf32>
    %c0_236 = arith.constant 0 : index
    %c0_237 = arith.constant 0 : index
    %621 = vector.load %arg12[%c0_236, %c0_237] : memref<1x128xf32, #tpu.memory_space<vmem>>, vector<1x128xf32>
    %622 = vector.broadcast %621 : vector<1x128xf32> to vector<16x128xf32>
    %623 = arith.addf %620, %622 : vector<16x128xf32>
    %624 = arith.truncf %623 : vector<16x128xf32> to vector<16x128xbf16>
    %c0_238 = arith.constant 0 : index
    %c0_239 = arith.constant 0 : index
    %c0_240 = arith.constant 0 : index
    %625 = vector.load %arg13[%c0_238, %c0_239, %c0_240] : memref<1x16x128xbf16, #tpu.memory_space<vmem>>, vector<1x16x128xbf16>
    %626 = vector.shape_cast %625 : vector<1x16x128xbf16> to vector<16x128xbf16>
    %627 = vector.shape_cast %624 : vector<16x128xbf16> to vector<1x16x128xbf16>
    tpu.vector_store %arg13[%c0_238, %c0_239, %c0_240], %627 {strides = array<i32>} : memref<1x16x128xbf16, #tpu.memory_space<vmem>>, vector<1x16x128xbf16>,
    return
  }
  func.func @transform_0(%arg0: i32) -> (i32, i32, i32, i32) {
    %c0_i32 = arith.constant 0 : i32
    %c0_i32_0 = arith.constant 0 : i32
    %c0_i32_1 = arith.constant 0 : i32
    %c0_i32_2 = arith.constant 0 : i32
    return %arg0, %c0_i32, %c0_i32_0, %c0_i32_1 : i32, i32, i32, i32
  }
  func.func @transform_1(%arg0: i32) -> (i32, i32, i32) {
    %c0_i32 = arith.constant 0 : i32
    %c0_i32_0 = arith.constant 0 : i32
    %c0_i32_1 = arith.constant 0 : i32
    %c0_i32_2 = arith.constant 0 : i32
    return %c0_i32, %c0_i32_0, %c0_i32_1 : i32, i32, i32
  }
  func.func @transform_2(%arg0: i32) -> (i32, i32) {
    %c0_i32 = arith.constant 0 : i32
    %c0_i32_0 = arith.constant 0 : i32
    %c0_i32_1 = arith.constant 0 : i32
    return %c0_i32, %c0_i32_0 : i32, i32
  }
  func.func @transform_3(%arg0: i32) -> (i32, i32) {
    %c0_i32 = arith.constant 0 : i32
    %c0_i32_0 = arith.constant 0 : i32
    %c0_i32_1 = arith.constant 0 : i32
    return %c0_i32, %c0_i32_0 : i32, i32
  }
  func.func @transform_4(%arg0: i32) -> (i32, i32, i32) {
    %c0_i32 = arith.constant 0 : i32
    %c0_i32_0 = arith.constant 0 : i32
    %c0_i32_1 = arith.constant 0 : i32
    %c0_i32_2 = arith.constant 0 : i32
    return %c0_i32, %c0_i32_0, %c0_i32_1 : i32, i32, i32
  }
  func.func @transform_5(%arg0: i32) -> (i32, i32) {
    %c0_i32 = arith.constant 0 : i32
    %c0_i32_0 = arith.constant 0 : i32
    %c0_i32_1 = arith.constant 0 : i32
    return %c0_i32, %c0_i32_0 : i32, i32
  }
  func.func @transform_6(%arg0: i32) -> (i32, i32) {
    %c0_i32 = arith.constant 0 : i32
    %c0_i32_0 = arith.constant 0 : i32
    %c0_i32_1 = arith.constant 0 : i32
    return %c0_i32, %c0_i32_0 : i32, i32
  }
  func.func @transform_7(%arg0: i32) -> (i32, i32) {
    %c0_i32 = arith.constant 0 : i32
    %c0_i32_0 = arith.constant 0 : i32
    %c0_i32_1 = arith.constant 0 : i32
    return %c0_i32, %c0_i32_0 : i32, i32
  }
  func.func @transform_8(%arg0: i32) -> (i32, i32) {
    %c0_i32 = arith.constant 0 : i32
    %c0_i32_0 = arith.constant 0 : i32
    %c0_i32_1 = arith.constant 0 : i32
    return %c0_i32, %c0_i32_0 : i32, i32
  }
  func.func @transform_9(%arg0: i32) -> (i32, i32) {
    %c0_i32 = arith.constant 0 : i32
    %c0_i32_0 = arith.constant 0 : i32
    %c0_i32_1 = arith.constant 0 : i32
    return %c0_i32, %c0_i32_0 : i32, i32
  }
  func.func @transform_10(%arg0: i32) -> (i32, i32) {
    %c0_i32 = arith.constant 0 : i32
    %c0_i32_0 = arith.constant 0 : i32
    %c0_i32_1 = arith.constant 0 : i32
    return %c0_i32, %c0_i32_0 : i32, i32
  }
  func.func @transform_11(%arg0: i32) -> (i32, i32) {
    %c0_i32 = arith.constant 0 : i32
    %c0_i32_0 = arith.constant 0 : i32
    %c0_i32_1 = arith.constant 0 : i32
    return %c0_i32, %c0_i32_0 : i32, i32
  }
  func.func @transform_12(%arg0: i32) -> (i32, i32, i32) {
    %c0_i32 = arith.constant 0 : i32
    %c0_i32_0 = arith.constant 0 : i32
    %c0_i32_1 = arith.constant 0 : i32
    return %arg0, %c0_i32, %c0_i32_0 : i32, i32, i32
  }
}

</mosaic_0001>

<llo_original>
// kernel: forward.5
$region0: #{forward.5}
  #allocation0 [shape = 'u32[]', space=smem, size = 0x4, offset = 0x4, fixed_abs, tag = 'smem constant byte address 0x4 - core index']
  #allocation1 [shape = 'u32[72,128]{1,0:T(1,128)}', space=vmem, size = 0x9000, scoped, tag = 'internal scratch']
  %s0 = inlined_call_operand.vmem [shape: bf16[512,27], index: 0, kind: input, shape index: {}]
  %s1 = inlined_call_operand.vmem [shape: bf16[27,128], index: 1, kind: input, shape index: {}]
  %s2 = inlined_call_operand.vmem [shape: f32[1,128], index: 2, kind: input, shape index: {}]
  %s3 = inlined_call_operand.vmem [shape: bf16[512,128], index: 3, kind: output, shape index: {}]
  %s4 = sld [smem:[#allocation0]]
  $region45: #{forward.5} parent=0
    _
  %s6 = ssub.s32 1, %s4
  %s7 = scalar_select 0, %s6, %s4
  loop: start=0, step=1, limit=4
  $region2: #{forward.5} parent=0 // loop_pre_header
    _
  $region3: #{forward.5} parent=0 // loop_header
    %s9 = sphi 0, %s13
    %p10 = scmp.ge.s32.totalorder %s9, 4
    %s19 = sphi 0, %s21
    %s22 = sphi 0, %s19
    %s23 = sphi 0, %s22
    %s39 = sphi 0, %s23
    %s43 = sphi 0, %s43
    %s45 = sphi 0, %s43
    %s46 = sphi 0, %s45
    %s60 = sphi 0, %s46
    %s64 = sphi 0, %s64
    %s66 = sphi 0, %s64
    %s67 = sphi 0, %s66
    %s81 = sphi 0, %s67
    %s87 = sphi 0, %s89
    %s90 = sphi 0, %s87
    %s91 = sphi 0, %s90
    %s107 = sphi 0, %s91
  $region4: #{forward.5} parent=0 // loop_header_branch
    %12 = sbr.rel (%p10) target = $region8
  $region5: #{forward.5} parent=0 // loop_body
    %s14 = ssub.s32 %s9, 1
    %s15 = ssub.s32 %s9, 2
    %s16 = sadd.s32 %s9, 1
    %s17 = ssub.s32 %s9, %s16
    %p18 = scmp.eq.s32.totalorder %s17, 0
    %s20 = sadd.s32 %s19, 1
    %s21 = scalar_select %p18, %s19, %s20
    %p24 = pneg %p18
    %p25 = scmp.eq.s32.totalorder %s9, 1
    %p26 = por %p24, %p25
    %p27 = scmp.ne.s32.totalorder %s19, %s22
    %p28 = scmp.eq.s32.totalorder %s9, 0
    %p29 = por %p27, %p28
    %p30 = scmp.ne.s32.totalorder %s19, %s22
    %p31 = scmp.eq.s32.totalorder %s14, 1
    %p32 = por %p30, %p31
    %p33 = scmp.ne.s32.totalorder %s22, %s23
    %p34 = scmp.eq.s32.totalorder %s14, 0
    %p35 = por %p33, %p34
    %p36 = scmp.ne.s32.totalorder %s22, %s23
    %p37 = scmp.eq.s32.totalorder %s15, 1
    %p38 = por %p36, %p37
    %p40 = scmp.ne.s32.totalorder %s23, %s39
    %p41 = scmp.eq.s32.totalorder %s15, 0
    %p42 = por %p40, %p41
    %s44 = sadd.s32 %s43, 1
    %p47 = scmp.eq.s32.totalorder %s9, 1
    %p48 = scmp.ne.s32.totalorder %s43, %s45
    %p49 = scmp.eq.s32.totalorder %s9, 0
    %p50 = por %p48, %p49
    %p51 = scmp.ne.s32.totalorder %s43, %s45
    %p52 = scmp.eq.s32.totalorder %s14, 1
    %p53 = por %p51, %p52
    %p54 = scmp.ne.s32.totalorder %s45, %s46
    %p55 = scmp.eq.s32.totalorder %s14, 0
    %p56 = por %p54, %p55
    %p57 = scmp.ne.s32.totalorder %s45, %s46
    %p58 = scmp.eq.s32.totalorder %s15, 1
    %p59 = por %p57, %p58
    %p61 = scmp.ne.s32.totalorder %s46, %s60
    %p62 = scmp.eq.s32.totalorder %s15, 0
    %p63 = por %p61, %p62
    %s65 = sadd.s32 %s64, 1
    %p68 = scmp.eq.s32.totalorder %s9, 1
    %p69 = scmp.ne.s32.totalorder %s64, %s66
    %p70 = scmp.eq.s32.totalorder %s9, 0
    %p71 = por %p69, %p70
    %p72 = scmp.ne.s32.totalorder %s64, %s66
    %p73 = scmp.eq.s32.totalorder %s14, 1
    %p74 = por %p72, %p73
    %p75 = scmp.ne.s32.totalorder %s66, %s67
    %p76 = scmp.eq.s32.totalorder %s14, 0
    %p77 = por %p75, %p76
    %p78 = scmp.ne.s32.totalorder %s66, %s67
    %p79 = scmp.eq.s32.totalorder %s15, 1
    %p80 = por %p78, %p79
    %p82 = scmp.ne.s32.totalorder %s67, %s81
    %p83 = scmp.eq.s32.totalorder %s15, 0
    %p84 = por %p82, %p83
    %s85 = ssub.s32 %s9, %s16
    %p86 = scmp.eq.s32.totalorder %s85, 0
    %s88 = sadd.s32 %s87, 1
    %s89 = scalar_select %p86, %s87, %s88
    %p92 = pneg %p86
    %p93 = scmp.eq.s32.totalorder %s9, 1
    %p94 = por %p92, %p93
    %p95 = scmp.ne.s32.totalorder %s87, %s90
    %p96 = scmp.eq.s32.totalorder %s9, 0
    %p97 = por %p95, %p96
    %p98 = scmp.ne.s32.totalorder %s87, %s90
    %p99 = scmp.eq.s32.totalorder %s14, 1
    %p100 = por %p98, %p99
    %p101 = scmp.ne.s32.totalorder %s90, %s91
    %p102 = scmp.eq.s32.totalorder %s14, 0
    %p103 = por %p101, %p102
    %p104 = scmp.ne.s32.totalorder %s90, %s91
    %p105 = scmp.eq.s32.totalorder %s15, 1
    %p106 = por %p104, %p105
    %p108 = scmp.ne.s32.totalorder %s91, %s107
    %p109 = scmp.eq.s32.totalorder %s15, 0
    %p110 = por %p108, %p109
    %p111 = scmp.le.s32.totalorder 1, %s9
    %p112 = scmp.lt.s32.totalorder %s9, 3
    %p113 = pnand %p111, %p112
    %p114 = pneg %p113
    // Predicated region
    $region9: #{forward.5} parent=5 // pred_check
      _
    $region10: #{forward.5} parent=5 // pred_check_branch
      %116 = sbr.rel (%p113) target = $region12
    $region11: #{forward.5} parent=5 // pred_region
      %s117 = ssub.s32 %s9, 1
      // Predicated region
      $region13: #{forward.5} parent=11 // pred_check
        %p118 = pneg %p56
      $region14: #{forward.5} parent=11 // pred_check_branch
        %120 = sbr.rel (%p118) target = $region16
      $region15: #{forward.5} parent=11 // pred_region
        _
      $region16: #{forward.5} parent=11 // pred_fallthru
        _
      // Predicated region
      $region17: #{forward.5} parent=11 // pred_check
        %p121 = pneg %p77
      $region18: #{forward.5} parent=11 // pred_check_branch
        %123 = sbr.rel (%p121) target = $region20
      $region19: #{forward.5} parent=11 // pred_region
        _
      $region20: #{forward.5} parent=11 // pred_fallthru
        _
    $region12: #{forward.5} parent=5 // pred_fallthru
      _
    %p124 = scmp.lt.s32.totalorder %s9, 2
    // Predicated region
    $region21: #{forward.5} parent=5 // pred_check
      %p125 = pneg %p124
    $region22: #{forward.5} parent=5 // pred_check_branch
      %127 = sbr.rel (%p125) target = $region24
    $region23: #{forward.5} parent=5 // pred_region
      // Predicated region
      $region25: #{forward.5} parent=23 // pred_check
        %p128 = pneg %p29
      $region26: #{forward.5} parent=23 // pred_check_branch
        %130 = sbr.rel (%p128) target = $region28
      $region27: #{forward.5} parent=23 // pred_region
        %s131 = smul.u32 32, %s9
        %p132 = scmp.lt.s32.totalorder %s131, 63
        %s133 = scalar_select %p132, %s131, 63
        %s134 = smul.addr %s133, 4
        %s135 = scalar_lea.vmem %s0, %s134
        %s136 = smul.u32 32, %s9
      $region28: #{forward.5} parent=23 // pred_fallthru
        _
    $region24: #{forward.5} parent=5 // pred_fallthru
      _
    %p137 = scmp.le.s32.totalorder 1, %s9
    %p138 = scmp.lt.s32.totalorder %s9, 3
    %p139 = pnand %p137, %p138
    %p140 = pneg %p139
    // Predicated region
    $region29: #{forward.5} parent=5 // pred_check
      _
    $region30: #{forward.5} parent=5 // pred_check_branch
      %142 = sbr.rel (%p139) target = $region32
    $region31: #{forward.5} parent=5 // pred_region
      %s143 = ssub.s32 %s9, 1
      %s144 = smul.u32 32, %s14
      %p145 = scmp.lt.s32.totalorder %s144, 63
      %s146 = scalar_select %p145, %s144, 63
      %s147 = smul.addr %s146, 4
      %s148 = scalar_lea.vmem %s0, %s147
      %p149 = pneg %p35
      %p150 = pneg %p32
      %p151 = pneg %p56
      %p152 = pneg %p53
      %p153 = pneg %p77
      %p154 = pneg %p74
      %p155 = pneg %p103
      %p156 = pneg %p100
      %s157 = smul.u32 32, %s14
      %p158 = scmp.lt.s32.totalorder %s157, 63
      %s159 = scalar_select %p158, %s157, 63
      %s160 = smul.addr %s159, 4
      %s161 = scalar_lea.vmem %s3, %s160
      %s162 = smul.u32 32, %s14
      %p163 = scmp.lt.s32.totalorder %s162, 63
      %s164 = scalar_select %p163, %s162, 63
      %s165 = smul.addr %s164, 4
      %s166 = scalar_lea.vmem %s0, %s165
      %s167 = smul.u32 32, %s14
      %s168 = smul.u32 32, %s14
      %p169 = scmp.lt.s32.totalorder %s168, 63
      %s170 = scalar_select %p169, %s168, 63
      %s171 = smul.addr %s170, 4
      %s172 = scalar_lea.vmem %s3, %s171
      %s173 = smul.u32 32, %s14
      %v175 = vld [vmem:[%s166] sm:$0xf]
      %v176 = vld [vmem:[%s166 + $0x4] sm:$0xf]
      %v177 = vld [vmem:[%s166 + $0x8] sm:$0xf]
      %v178 = vld [vmem:[%s166 + $0xc] sm:$0xf]
      %v179 = vld [vmem:[%s166 + $0x10] sm:$0xf]
      %v180 = vld [vmem:[%s166 + $0x14] sm:$0xf]
      %v181 = vld [vmem:[%s166 + $0x18] sm:$0xf]
      %v182 = vld [vmem:[%s166 + $0x1c] sm:$0xf]
      %v183 = vld [vmem:[%s166 + $0x20] sm:$0xf]
      %v184 = vld [vmem:[%s166 + $0x24] sm:$0xf]
      %v185 = vld [vmem:[%s166 + $0x28] sm:$0xf]
      %v186 = vld [vmem:[%s166 + $0x2c] sm:$0xf]
      %v187 = vld [vmem:[%s166 + $0x30] sm:$0xf]
      %v188 = vld [vmem:[%s166 + $0x34] sm:$0xf]
      %v189 = vld [vmem:[%s166 + $0x38] sm:$0xf]
      %v190 = vld [vmem:[%s166 + $0x3c] sm:$0xf]
      %v191 = vld [vmem:[%s166 + $0x40] sm:$0xf]
      %v192 = vld [vmem:[%s166 + $0x44] sm:$0xf]
      %v193 = vld [vmem:[%s166 + $0x48] sm:$0xf]
      %v194 = vld [vmem:[%s166 + $0x4c] sm:$0xf]
      %v195 = vld [vmem:[%s166 + $0x50] sm:$0xf]
      %v196 = vld [vmem:[%s166 + $0x54] sm:$0xf]
      %v197 = vld [vmem:[%s166 + $0x58] sm:$0xf]
      %v198 = vld [vmem:[%s166 + $0x5c] sm:$0xf]
      %v199 = vld [vmem:[%s166 + $0x60] sm:$0xf]
      %v200 = vld [vmem:[%s166 + $0x64] sm:$0xf]
      %v201 = vld [vmem:[%s166 + $0x68] sm:$0xf]
      %v202 = vld [vmem:[%s166 + $0x6c] sm:$0xf]
      %v203 = vld [vmem:[%s166 + $0x70] sm:$0xf]
      %v204 = vld [vmem:[%s166 + $0x74] sm:$0xf]
      %v205 = vld [vmem:[%s166 + $0x78] sm:$0xf]
      %v206 = vld [vmem:[%s166 + $0x7c] sm:$0xf]
      %v207 = vld [vmem:[%s1] sm:$0xf]
      %v208 = vld [vmem:[%s1 + $0x4] sm:$0xf]
      %v209 = vld [vmem:[%s1 + $0x8] sm:$0xf]
      %v210 = vld [vmem:[%s1 + $0xc] sm:$0x3]
      %v211 = vld [vmem:[%s2] sm:$0x1]
      %v213 = vperm.slane %v211, 0
      %v247 = vunpack.c.l.b16 %v175
      %v248 = vunpack.c.l.b16 %v176
      %v249 = vunpack.c.l.b16 %v177
      %v250 = vunpack.c.l.b16 %v178
      %v251 = vunpack.c.l.b16 %v179
      %v252 = vunpack.c.l.b16 %v180
      %v253 = vunpack.c.l.b16 %v181
      %v254 = vunpack.c.l.b16 %v182
      %v255 = vunpack.c.l.b16 %v183
      %v256 = vunpack.c.l.b16 %v184
      %v257 = vunpack.c.l.b16 %v185
      %v258 = vunpack.c.l.b16 %v186
      %v259 = vunpack.c.l.b16 %v187
      %v260 = vunpack.c.l.b16 %v188
      %v261 = vunpack.c.l.b16 %v189
      %v262 = vunpack.c.l.b16 %v190
      %v263 = vunpack.c.l.b16 %v191
      %v264 = vunpack.c.l.b16 %v192
      %v265 = vunpack.c.l.b16 %v193
      %v266 = vunpack.c.l.b16 %v194
      %v267 = vunpack.c.l.b16 %v195
      %v268 = vunpack.c.l.b16 %v196
      %v269 = vunpack.c.l.b16 %v197
      %v270 = vunpack.c.l.b16 %v198
      %v271 = vunpack.c.l.b16 %v199
      %v272 = vunpack.c.l.b16 %v200
      %v273 = vunpack.c.l.b16 %v201
      %v274 = vunpack.c.l.b16 %v202
      %v275 = vunpack.c.l.b16 %v203
      %v276 = vunpack.c.l.b16 %v204
      %v277 = vunpack.c.l.b16 %v205
      %v278 = vunpack.c.l.b16 %v206
      %v279 = vpack.c.b16 %v248, %v247
      %v280 = vpack.c.b16 %v250, %v249
      %v281 = vpack.c.b16 %v252, %v251
      %v282 = vpack.c.b16 %v254, %v253
      %v283 = vpack.c.b16 %v256, %v255
      %v284 = vpack.c.b16 %v258, %v257
      %v285 = vpack.c.b16 %v260, %v259
      %v286 = vpack.c.b16 %v262, %v261
      %v287 = vpack.c.b16 %v264, %v263
      %v288 = vpack.c.b16 %v266, %v265
      %v289 = vpack.c.b16 %v268, %v267
      %v290 = vpack.c.b16 %v270, %v269
      %v291 = vpack.c.b16 %v272, %v271
      %v292 = vpack.c.b16 %v274, %v273
      %v293 = vpack.c.b16 %v276, %v275
      %v294 = vpack.c.b16 %v278, %v277
      %v299 = vunpack.c.l.b16 %v207
      %v300 = vunpack.c.l.b16 %v208
      %v301 = vunpack.c.l.b16 %v209
      %v302 = vunpack.c.l.b16 %v210
      %v303 = vpack.c.b16 %v300, %v299
      %v304 = vpack.c.b16 %v302, %v301
      %vm306 = vcmask 220160
      %v308 = vsel %vm306, %v279, 0
      %v311 = vsel %vm306, %v280, 0
      %v314 = vsel %vm306, %v281, 0
      %v317 = vsel %vm306, %v282, 0
      %v320 = vsel %vm306, %v283, 0
      %v323 = vsel %vm306, %v284, 0
      %v326 = vsel %vm306, %v285, 0
      %v329 = vsel %vm306, %v286, 0
      %v332 = vsel %vm306, %v287, 0
      %v335 = vsel %vm306, %v288, 0
      %v338 = vsel %vm306, %v289, 0
      %v341 = vsel %vm306, %v290, 0
      %v344 = vsel %vm306, %v291, 0
      %v347 = vsel %vm306, %v292, 0
      %v350 = vsel %vm306, %v293, 0
      %v353 = vsel %vm306, %v294, 0
      %vm355 = vcmask 1044480
      %vm356 = vcmask 1045504
      %v357 = vsel %vm355, 4294967295, 65535
      %v358 = vsel %vm356, %v357, 0
      %v360 = vand.u32 %v304, %v358
      %362 = vmatpush.bf16.msra.mxu0 0
      %363 = vmatpush.bf16.msra.mxu0 0
      %364 = vmatpush.bf16.msra.mxu0 0
      %365 = vmatpush.bf16.msra.mxu0 0
      %366 = vmatpush.bf16.msra.mxu0 0
      %367 = vmatpush.bf16.msra.mxu0 0
      %368 = vmatpush.bf16.msra.mxu0 %v360
      %369 = vmatpush.bf16.msra.mxu0 %v303
      %370 = vmatmul.bf16.gmra.mxu0 %v308
      %v371 = vpop.f32.mrf.mxu0
      %v372 = vadd.f32 %v213, %v371
      %v373 = vpop.f32.mrf.mxu0
      %v374 = vadd.f32 %v213, %v373
      %375 = vmatmul.bf16.gmra.mxu0 %v311
      %v376 = vpop.f32.mrf.mxu0
      %v377 = vadd.f32 %v213, %v376
      %v378 = vpop.f32.mrf.mxu0
      %v379 = vadd.f32 %v213, %v378
      %380 = vmatmul.bf16.gmra.mxu0 %v314
      %v381 = vpop.f32.mrf.mxu0
      %v382 = vadd.f32 %v213, %v381
      %v383 = vpop.f32.mrf.mxu0
      %v384 = vadd.f32 %v213, %v383
      %385 = vmatmul.bf16.gmra.mxu0 %v317
      %v386 = vpop.f32.mrf.mxu0
      %v387 = vadd.f32 %v213, %v386
      %v388 = vpop.f32.mrf.mxu0
      %v389 = vadd.f32 %v213, %v388
      %390 = vmatmul.bf16.gmra.mxu0 %v320
      %v391 = vpop.f32.mrf.mxu0
      %v392 = vadd.f32 %v213, %v391
      %v393 = vpop.f32.mrf.mxu0
      %v394 = vadd.f32 %v213, %v393
      %395 = vmatmul.bf16.gmra.mxu0 %v323
      %v396 = vpop.f32.mrf.mxu0
      %v397 = vadd.f32 %v213, %v396
      %v398 = vpop.f32.mrf.mxu0
      %v399 = vadd.f32 %v213, %v398
      %400 = vmatmul.bf16.gmra.mxu0 %v326
      %v401 = vpop.f32.mrf.mxu0
      %v402 = vadd.f32 %v213, %v401
      %v403 = vpop.f32.mrf.mxu0
      %v404 = vadd.f32 %v213, %v403
      %405 = vmatmul.bf16.gmra.mxu0 %v329
      %v406 = vpop.f32.mrf.mxu0
      %v407 = vadd.f32 %v213, %v406
      %v408 = vpop.f32.mrf.mxu0
      %v409 = vadd.f32 %v213, %v408
      %410 = vmatmul.bf16.gmra.mxu0 %v332
      %v411 = vpop.f32.mrf.mxu0
      %v412 = vadd.f32 %v213, %v411
      %v413 = vpop.f32.mrf.mxu0
      %v414 = vadd.f32 %v213, %v413
      %415 = vmatmul.bf16.gmra.mxu0 %v335
      %v416 = vpop.f32.mrf.mxu0
      %v417 = vadd.f32 %v213, %v416
      %v418 = vpop.f32.mrf.mxu0
      %v419 = vadd.f32 %v213, %v418
      %420 = vmatmul.bf16.gmra.mxu0 %v338
      %v421 = vpop.f32.mrf.mxu0
      %v422 = vadd.f32 %v213, %v421
      %v423 = vpop.f32.mrf.mxu0
      %v424 = vadd.f32 %v213, %v423
      %425 = vmatmul.bf16.gmra.mxu0 %v341
      %v426 = vpop.f32.mrf.mxu0
      %v427 = vadd.f32 %v213, %v426
      %v428 = vpop.f32.mrf.mxu0
      %v429 = vadd.f32 %v213, %v428
      %430 = vmatmul.bf16.gmra.mxu0 %v344
      %v431 = vpop.f32.mrf.mxu0
      %v432 = vadd.f32 %v213, %v431
      %v433 = vpop.f32.mrf.mxu0
      %v434 = vadd.f32 %v213, %v433
      %435 = vmatmul.bf16.gmra.mxu0 %v347
      %v436 = vpop.f32.mrf.mxu0
      %v437 = vadd.f32 %v213, %v436
      %v438 = vpop.f32.mrf.mxu0
      %v439 = vadd.f32 %v213, %v438
      %440 = vmatmul.bf16.gmra.mxu0 %v350
      %v441 = vpop.f32.mrf.mxu0
      %v442 = vadd.f32 %v213, %v441
      %v443 = vpop.f32.mrf.mxu0
      %v444 = vadd.f32 %v213, %v443
      %445 = vmatmul.bf16.gmra.mxu0 %v353
      %v446 = vpop.f32.mrf.mxu0
      %v447 = vadd.f32 %v213, %v446
      %v448 = vpop.f32.mrf.mxu0
      %v449 = vadd.f32 %v213, %v448
      %450 = vdwg.mxu0
      %v451 = vadd.f32 %v372, 3.0
      %v452 = vadd.f32 %v374, 3.0
      %v453 = vadd.f32 %v377, 3.0
      %v454 = vadd.f32 %v379, 3.0
      %v455 = vadd.f32 %v382, 3.0
      %v456 = vadd.f32 %v384, 3.0
      %v457 = vadd.f32 %v387, 3.0
      %v458 = vadd.f32 %v389, 3.0
      %v459 = vadd.f32 %v392, 3.0
      %v460 = vadd.f32 %v394, 3.0
      %v461 = vadd.f32 %v397, 3.0
      %v462 = vadd.f32 %v399, 3.0
      %v463 = vadd.f32 %v402, 3.0
      %v464 = vadd.f32 %v404, 3.0
      %v465 = vadd.f32 %v407, 3.0
      %v466 = vadd.f32 %v409, 3.0
      %v467 = vadd.f32 %v412, 3.0
      %v468 = vadd.f32 %v414, 3.0
      %v469 = vadd.f32 %v417, 3.0
      %v470 = vadd.f32 %v419, 3.0
      %v471 = vadd.f32 %v422, 3.0
      %v472 = vadd.f32 %v424, 3.0
      %v473 = vadd.f32 %v427, 3.0
      %v474 = vadd.f32 %v429, 3.0
      %v475 = vadd.f32 %v432, 3.0
      %v476 = vadd.f32 %v434, 3.0
      %v477 = vadd.f32 %v437, 3.0
      %v478 = vadd.f32 %v439, 3.0
      %v479 = vadd.f32 %v442, 3.0
      %v480 = vadd.f32 %v444, 3.0
      %v481 = vadd.f32 %v447, 3.0
      %v482 = vadd.f32 %v449, 3.0
      %v483 = vmax.f32 %v451, 0.0
      %v484 = vmax.f32 %v452, 0.0
      %v485 = vmax.f32 %v453, 0.0
      %v486 = vmax.f32 %v454, 0.0
      %v487 = vmax.f32 %v455, 0.0
      %v488 = vmax.f32 %v456, 0.0
      %v489 = vmax.f32 %v457, 0.0
      %v490 = vmax.f32 %v458, 0.0
      %v491 = vmax.f32 %v459, 0.0
      %v492 = vmax.f32 %v460, 0.0
      %v493 = vmax.f32 %v461, 0.0
      %v494 = vmax.f32 %v462, 0.0
      %v495 = vmax.f32 %v463, 0.0
      %v496 = vmax.f32 %v464, 0.0
      %v497 = vmax.f32 %v465, 0.0
      %v498 = vmax.f32 %v466, 0.0
      %v499 = vmax.f32 %v467, 0.0
      %v500 = vmax.f32 %v468, 0.0
      %v501 = vmax.f32 %v469, 0.0
      %v502 = vmax.f32 %v470, 0.0
      %v503 = vmax.f32 %v471, 0.0
      %v504 = vmax.f32 %v472, 0.0
      %v505 = vmax.f32 %v473, 0.0
      %v506 = vmax.f32 %v474, 0.0
      %v507 = vmax.f32 %v475, 0.0
      %v508 = vmax.f32 %v476, 0.0
      %v509 = vmax.f32 %v477, 0.0
      %v510 = vmax.f32 %v478, 0.0
      %v511 = vmax.f32 %v479, 0.0
      %v512 = vmax.f32 %v480, 0.0
      %v513 = vmax.f32 %v481, 0.0
      %v514 = vmax.f32 %v482, 0.0
      %v515 = vmin.f32 %v483, 6.0
      %v516 = vmin.f32 %v484, 6.0
      %v517 = vmin.f32 %v485, 6.0
      %v518 = vmin.f32 %v486, 6.0
      %v519 = vmin.f32 %v487, 6.0
      %v520 = vmin.f32 %v488, 6.0
      %v521 = vmin.f32 %v489, 6.0
      %v522 = vmin.f32 %v490, 6.0
      %v523 = vmin.f32 %v491, 6.0
      %v524 = vmin.f32 %v492, 6.0
      %v525 = vmin.f32 %v493, 6.0
      %v526 = vmin.f32 %v494, 6.0
      %v527 = vmin.f32 %v495, 6.0
      %v528 = vmin.f32 %v496, 6.0
      %v529 = vmin.f32 %v497, 6.0
      %v530 = vmin.f32 %v498, 6.0
      %v531 = vmin.f32 %v499, 6.0
      %v532 = vmin.f32 %v500, 6.0
      %v533 = vmin.f32 %v501, 6.0
      %v534 = vmin.f32 %v502, 6.0
      %v535 = vmin.f32 %v503, 6.0
      %v536 = vmin.f32 %v504, 6.0
      %v537 = vmin.f32 %v505, 6.0
      %v538 = vmin.f32 %v506, 6.0
      %v539 = vmin.f32 %v507, 6.0
      %v540 = vmin.f32 %v508, 6.0
      %v541 = vmin.f32 %v509, 6.0
      %v542 = vmin.f32 %v510, 6.0
      %v543 = vmin.f32 %v511, 6.0
      %v544 = vmin.f32 %v512, 6.0
      %v545 = vmin.f32 %v513, 6.0
      %v546 = vmin.f32 %v514, 6.0
      %v547 = vmul.f32 %v372, %v515
      %v548 = vmul.f32 %v374, %v516
      %v549 = vmul.f32 %v377, %v517
      %v550 = vmul.f32 %v379, %v518
      %v551 = vmul.f32 %v382, %v519
      %v552 = vmul.f32 %v384, %v520
      %v553 = vmul.f32 %v387, %v521
      %v554 = vmul.f32 %v389, %v522
      %v555 = vmul.f32 %v392, %v523
      %v556 = vmul.f32 %v394, %v524
      %v557 = vmul.f32 %v397, %v525
      %v558 = vmul.f32 %v399, %v526
      %v559 = vmul.f32 %v402, %v527
      %v560 = vmul.f32 %v404, %v528
      %v561 = vmul.f32 %v407, %v529
      %v562 = vmul.f32 %v409, %v530
      %v563 = vmul.f32 %v412, %v531
      %v564 = vmul.f32 %v414, %v532
      %v565 = vmul.f32 %v417, %v533
      %v566 = vmul.f32 %v419, %v534
      %v567 = vmul.f32 %v422, %v535
      %v568 = vmul.f32 %v424, %v536
      %v569 = vmul.f32 %v427, %v537
      %v570 = vmul.f32 %v429, %v538
      %v571 = vmul.f32 %v432, %v539
      %v572 = vmul.f32 %v434, %v540
      %v573 = vmul.f32 %v437, %v541
      %v574 = vmul.f32 %v439, %v542
      %v575 = vmul.f32 %v442, %v543
      %v576 = vmul.f32 %v444, %v544
      %v577 = vmul.f32 %v447, %v545
      %v578 = vmul.f32 %v449, %v546
      %v579 = vrcp.pop 6.0
      %v580 = vmul.f32 6.0, %v579
      %v581 = vsub.f32 1.0, %v580
      %v582 = vmul.f32 %v579, %v581
      %v583 = vadd.f32 %v579, %v582
      %vm584 = vweird.f32 %v579
      %v585 = vsel %vm584, %v579, %v583
      %v586 = vmul.f32 %v547, %v585
      %v587 = vmul.f32 %v548, %v585
      %v588 = vmul.f32 %v549, %v585
      %v589 = vmul.f32 %v550, %v585
      %v590 = vmul.f32 %v551, %v585
      %v591 = vmul.f32 %v552, %v585
      %v592 = vmul.f32 %v553, %v585
      %v593 = vmul.f32 %v554, %v585
      %v594 = vmul.f32 %v555, %v585
      %v595 = vmul.f32 %v556, %v585
      %v596 = vmul.f32 %v557, %v585
      %v597 = vmul.f32 %v558, %v585
      %v598 = vmul.f32 %v559, %v585
      %v599 = vmul.f32 %v560, %v585
      %v600 = vmul.f32 %v561, %v585
      %v601 = vmul.f32 %v562, %v585
      %v602 = vmul.f32 %v563, %v585
      %v603 = vmul.f32 %v564, %v585
      %v604 = vmul.f32 %v565, %v585
      %v605 = vmul.f32 %v566, %v585
      %v606 = vmul.f32 %v567, %v585
      %v607 = vmul.f32 %v568, %v585
      %v608 = vmul.f32 %v569, %v585
      %v609 = vmul.f32 %v570, %v585
      %v610 = vmul.f32 %v571, %v585
      %v611 = vmul.f32 %v572, %v585
      %v612 = vmul.f32 %v573, %v585
      %v613 = vmul.f32 %v574, %v585
      %v614 = vmul.f32 %v575, %v585
      %v615 = vmul.f32 %v576, %v585
      %v616 = vmul.f32 %v577, %v585
      %v617 = vmul.f32 %v578, %v585
      %v618 = vpack.c.bf16 %v586, %v586
      %v619 = vpack.c.bf16 %v587, %v587
      %v620 = vpack.c.bf16 %v588, %v588
      %v621 = vpack.c.bf16 %v589, %v589
      %v622 = vpack.c.bf16 %v590, %v590
      %v623 = vpack.c.bf16 %v591, %v591
      %v624 = vpack.c.bf16 %v592, %v592
      %v625 = vpack.c.bf16 %v593, %v593
      %v626 = vpack.c.bf16 %v594, %v594
      %v627 = vpack.c.bf16 %v595, %v595
      %v628 = vpack.c.bf16 %v596, %v596
      %v629 = vpack.c.bf16 %v597, %v597
      %v630 = vpack.c.bf16 %v598, %v598
      %v631 = vpack.c.bf16 %v599, %v599
      %v632 = vpack.c.bf16 %v600, %v600
      %v633 = vpack.c.bf16 %v601, %v601
      %v634 = vpack.c.bf16 %v602, %v602
      %v635 = vpack.c.bf16 %v603, %v603
      %v636 = vpack.c.bf16 %v604, %v604
      %v637 = vpack.c.bf16 %v605, %v605
      %v638 = vpack.c.bf16 %v606, %v606
      %v639 = vpack.c.bf16 %v607, %v607
      %v640 = vpack.c.bf16 %v608, %v608
      %v641 = vpack.c.bf16 %v609, %v609
      %v642 = vpack.c.bf16 %v610, %v610
      %v643 = vpack.c.bf16 %v611, %v611
      %v644 = vpack.c.bf16 %v612, %v612
      %v645 = vpack.c.bf16 %v613, %v613
      %v646 = vpack.c.bf16 %v614, %v614
      %v647 = vpack.c.bf16 %v615, %v615
      %v648 = vpack.c.bf16 %v616, %v616
      %v649 = vpack.c.bf16 %v617, %v617
      %650 = vst [vmem:[%s172] sm:$0xf] %v618
      %651 = vst [vmem:[%s172 + $0x4] sm:$0xf] %v619
      %652 = vst [vmem:[%s172 + $0x8] sm:$0xf] %v620
      %653 = vst [vmem:[%s172 + $0xc] sm:$0xf] %v621
      %654 = vst [vmem:[%s172 + $0x10] sm:$0xf] %v622
      %655 = vst [vmem:[%s172 + $0x14] sm:$0xf] %v623
      %656 = vst [vmem:[%s172 + $0x18] sm:$0xf] %v624
      %657 = vst [vmem:[%s172 + $0x1c] sm:$0xf] %v625
      %658 = vst [vmem:[%s172 + $0x20] sm:$0xf] %v626
      %659 = vst [vmem:[%s172 + $0x24] sm:$0xf] %v627
      %660 = vst [vmem:[%s172 + $0x28] sm:$0xf] %v628
      %661 = vst [vmem:[%s172 + $0x2c] sm:$0xf] %v629
      %662 = vst [vmem:[%s172 + $0x30] sm:$0xf] %v630
      %663 = vst [vmem:[%s172 + $0x34] sm:$0xf] %v631
      %664 = vst [vmem:[%s172 + $0x38] sm:$0xf] %v632
      %665 = vst [vmem:[%s172 + $0x3c] sm:$0xf] %v633
      %666 = vst [vmem:[%s172 + $0x40] sm:$0xf] %v634
      %667 = vst [vmem:[%s172 + $0x44] sm:$0xf] %v635
      %668 = vst [vmem:[%s172 + $0x48] sm:$0xf] %v636
      %669 = vst [vmem:[%s172 + $0x4c] sm:$0xf] %v637
      %670 = vst [vmem:[%s172 + $0x50] sm:$0xf] %v638
      %671 = vst [vmem:[%s172 + $0x54] sm:$0xf] %v639
      %672 = vst [vmem:[%s172 + $0x58] sm:$0xf] %v640
      %673 = vst [vmem:[%s172 + $0x5c] sm:$0xf] %v641
      %674 = vst [vmem:[%s172 + $0x60] sm:$0xf] %v642
      %675 = vst [vmem:[%s172 + $0x64] sm:$0xf] %v643
      %676 = vst [vmem:[%s172 + $0x68] sm:$0xf] %v644
      %677 = vst [vmem:[%s172 + $0x6c] sm:$0xf] %v645
      %678 = vst [vmem:[%s172 + $0x70] sm:$0xf] %v646
      %679 = vst [vmem:[%s172 + $0x74] sm:$0xf] %v647
      %680 = vst [vmem:[%s172 + $0x78] sm:$0xf] %v648
      %681 = vst [vmem:[%s172 + $0x7c] sm:$0xf] %v649
      %s682 = smul.u32 32, %s14
      %p683 = scmp.lt.s32.totalorder %s682, 63
      %s684 = scalar_select %p683, %s682, 63
      %s685 = smul.addr %s684, 4
      %s686 = scalar_lea.vmem %s3, %s685
      // Predicated region
      $region33: #{forward.5} parent=31 // pred_check
        %p687 = pneg %p100
      $region34: #{forward.5} parent=31 // pred_check_branch
        %689 = sbr.rel (%p687) target = $region36
      $region35: #{forward.5} parent=31 // pred_region
        %s690 = smul.u32 32, %s14
      $region36: #{forward.5} parent=31 // pred_fallthru
        _
    $region32: #{forward.5} parent=5 // pred_fallthru
      _
    %p691 = scmp.le.s32.totalorder 2, %s9
    // Predicated region
    $region37: #{forward.5} parent=5 // pred_check
      %p692 = pneg %p691
    $region38: #{forward.5} parent=5 // pred_check_branch
      %694 = sbr.rel (%p692) target = $region40
    $region39: #{forward.5} parent=5 // pred_region
      %s695 = ssub.s32 %s9, 2
      // Predicated region
      $region41: #{forward.5} parent=39 // pred_check
        %p696 = pneg %p106
      $region42: #{forward.5} parent=39 // pred_check_branch
        %698 = sbr.rel (%p696) target = $region44
      $region43: #{forward.5} parent=39 // pred_region
        %s699 = smul.u32 32, %s15
        %p700 = scmp.lt.s32.totalorder %s699, 63
        %s701 = scalar_select %p700, %s699, 63
        %s702 = smul.addr %s701, 4
        %s703 = scalar_lea.vmem %s3, %s702
      $region44: #{forward.5} parent=39 // pred_fallthru
        _
    $region40: #{forward.5} parent=5 // pred_fallthru
      _
  $region6: #{forward.5} parent=0 // loop_footer
    %s13 = sadd.s32 1, %s9
  $region7: #{forward.5} parent=0 // loop_footer_branch
    %8 = sbr.rel target = $region3
  $region8: #{forward.5} parent=0 // loop_exit
    _

// kernel: forward.6
$region0: #{forward.6}
  #allocation0 [shape = 'u32[]', space=smem, size = 0x4, offset = 0x4, fixed_abs, tag = 'smem constant byte address 0x4 - core index']
  #allocation1 [shape = 'u32[72,128]{1,0:T(1,128)}', space=vmem, size = 0x9000, scoped, tag = 'internal scratch']
  %s0 = inlined_call_operand.vmem [shape: bf16[2,9,64,128], index: 0, kind: input, shape index: {}]
  %s1 = inlined_call_operand.vmem [shape: f32[9,1,128], index: 1, kind: input, shape index: {}]
  %s2 = inlined_call_operand.vmem [shape: f32[1,128], index: 2, kind: input, shape index: {}]
  %s3 = inlined_call_operand.vmem [shape: bf16[128,128], index: 3, kind: input, shape index: {}]
  %s4 = inlined_call_operand.vmem [shape: f32[1,128], index: 4, kind: input, shape index: {}]
  %s5 = inlined_call_operand.vmem [shape: bf16[128,128], index: 5, kind: input, shape index: {}]
  %s6 = inlined_call_operand.vmem [shape: f32[1,128], index: 6, kind: input, shape index: {}]
  %s7 = inlined_call_operand.vmem [shape: bf16[128,128], index: 7, kind: input, shape index: {}]
  %s8 = inlined_call_operand.vmem [shape: f32[1,128], index: 8, kind: input, shape index: {}]
  %s9 = inlined_call_operand.vmem [shape: bf16[2,64,128], index: 9, kind: output, shape index: {}]
  %s10 = sld [smem:[#allocation0]]
  $region69: #{forward.6} parent=0
    _
  %s12 = ssub.s32 1, %s10
  %s13 = scalar_select 0, %s12, %s10
  loop: start=0, step=1, limit=4
  $region2: #{forward.6} parent=0 // loop_pre_header
    _
  $region3: #{forward.6} parent=0 // loop_header
    %s15 = sphi 0, %s19
    %p16 = scmp.ge.s32.totalorder %s15, 4
    %s25 = sphi 0, %s27
    %s28 = sphi 0, %s25
    %s29 = sphi 0, %s28
    %s45 = sphi 0, %s29
    %s49 = sphi 0, %s49
    %s51 = sphi 0, %s49
    %s52 = sphi 0, %s51
    %s66 = sphi 0, %s52
    %s70 = sphi 0, %s70
    %s72 = sphi 0, %s70
    %s73 = sphi 0, %s72
    %s87 = sphi 0, %s73
    %s91 = sphi 0, %s91
    %s93 = sphi 0, %s91
    %s94 = sphi 0, %s93
    %s108 = sphi 0, %s94
    %s112 = sphi 0, %s112
    %s114 = sphi 0, %s112
    %s115 = sphi 0, %s114
    %s129 = sphi 0, %s115
    %s133 = sphi 0, %s133
    %s135 = sphi 0, %s133
    %s136 = sphi 0, %s135
    %s150 = sphi 0, %s136
    %s154 = sphi 0, %s154
    %s156 = sphi 0, %s154
    %s157 = sphi 0, %s156
    %s171 = sphi 0, %s157
    %s175 = sphi 0, %s175
    %s177 = sphi 0, %s175
    %s178 = sphi 0, %s177
    %s192 = sphi 0, %s178
    %s196 = sphi 0, %s196
    %s198 = sphi 0, %s196
    %s199 = sphi 0, %s198
    %s213 = sphi 0, %s199
    %s219 = sphi 0, %s221
    %s222 = sphi 0, %s219
    %s223 = sphi 0, %s222
    %s239 = sphi 0, %s223
  $region4: #{forward.6} parent=0 // loop_header_branch
    %18 = sbr.rel (%p16) target = $region8
  $region5: #{forward.6} parent=0 // loop_body
    %s20 = ssub.s32 %s15, 1
    %s21 = ssub.s32 %s15, 2
    %s22 = sadd.s32 %s15, 1
    %s23 = ssub.s32 %s15, %s22
    %p24 = scmp.eq.s32.totalorder %s23, 0
    %s26 = sadd.s32 %s25, 1
    %s27 = scalar_select %p24, %s25, %s26
    %p30 = pneg %p24
    %p31 = scmp.eq.s32.totalorder %s15, 1
    %p32 = por %p30, %p31
    %p33 = scmp.ne.s32.totalorder %s25, %s28
    %p34 = scmp.eq.s32.totalorder %s15, 0
    %p35 = por %p33, %p34
    %p36 = scmp.ne.s32.totalorder %s25, %s28
    %p37 = scmp.eq.s32.totalorder %s20, 1
    %p38 = por %p36, %p37
    %p39 = scmp.ne.s32.totalorder %s28, %s29
    %p40 = scmp.eq.s32.totalorder %s20, 0
    %p41 = por %p39, %p40
    %p42 = scmp.ne.s32.totalorder %s28, %s29
    %p43 = scmp.eq.s32.totalorder %s21, 1
    %p44 = por %p42, %p43
    %p46 = scmp.ne.s32.totalorder %s29, %s45
    %p47 = scmp.eq.s32.totalorder %s21, 0
    %p48 = por %p46, %p47
    %s50 = sadd.s32 %s49, 1
    %p53 = scmp.eq.s32.totalorder %s15, 1
    %p54 = scmp.ne.s32.totalorder %s49, %s51
    %p55 = scmp.eq.s32.totalorder %s15, 0
    %p56 = por %p54, %p55
    %p57 = scmp.ne.s32.totalorder %s49, %s51
    %p58 = scmp.eq.s32.totalorder %s20, 1
    %p59 = por %p57, %p58
    %p60 = scmp.ne.s32.totalorder %s51, %s52
    %p61 = scmp.eq.s32.totalorder %s20, 0
    %p62 = por %p60, %p61
    %p63 = scmp.ne.s32.totalorder %s51, %s52
    %p64 = scmp.eq.s32.totalorder %s21, 1
    %p65 = por %p63, %p64
    %p67 = scmp.ne.s32.totalorder %s52, %s66
    %p68 = scmp.eq.s32.totalorder %s21, 0
    %p69 = por %p67, %p68
    %s71 = sadd.s32 %s70, 1
    %p74 = scmp.eq.s32.totalorder %s15, 1
    %p75 = scmp.ne.s32.totalorder %s70, %s72
    %p76 = scmp.eq.s32.totalorder %s15, 0
    %p77 = por %p75, %p76
    %p78 = scmp.ne.s32.totalorder %s70, %s72
    %p79 = scmp.eq.s32.totalorder %s20, 1
    %p80 = por %p78, %p79
    %p81 = scmp.ne.s32.totalorder %s72, %s73
    %p82 = scmp.eq.s32.totalorder %s20, 0
    %p83 = por %p81, %p82
    %p84 = scmp.ne.s32.totalorder %s72, %s73
    %p85 = scmp.eq.s32.totalorder %s21, 1
    %p86 = por %p84, %p85
    %p88 = scmp.ne.s32.totalorder %s73, %s87
    %p89 = scmp.eq.s32.totalorder %s21, 0
    %p90 = por %p88, %p89
    %s92 = sadd.s32 %s91, 1
    %p95 = scmp.eq.s32.totalorder %s15, 1
    %p96 = scmp.ne.s32.totalorder %s91, %s93
    %p97 = scmp.eq.s32.totalorder %s15, 0
    %p98 = por %p96, %p97
    %p99 = scmp.ne.s32.totalorder %s91, %s93
    %p100 = scmp.eq.s32.totalorder %s20, 1
    %p101 = por %p99, %p100
    %p102 = scmp.ne.s32.totalorder %s93, %s94
    %p103 = scmp.eq.s32.totalorder %s20, 0
    %p104 = por %p102, %p103
    %p105 = scmp.ne.s32.totalorder %s93, %s94
    %p106 = scmp.eq.s32.totalorder %s21, 1
    %p107 = por %p105, %p106
    %p109 = scmp.ne.s32.totalorder %s94, %s108
    %p110 = scmp.eq.s32.totalorder %s21, 0
    %p111 = por %p109, %p110
    %s113 = sadd.s32 %s112, 1
    %p116 = scmp.eq.s32.totalorder %s15, 1
    %p117 = scmp.ne.s32.totalorder %s112, %s114
    %p118 = scmp.eq.s32.totalorder %s15, 0
    %p119 = por %p117, %p118
    %p120 = scmp.ne.s32.totalorder %s112, %s114
    %p121 = scmp.eq.s32.totalorder %s20, 1
    %p122 = por %p120, %p121
    %p123 = scmp.ne.s32.totalorder %s114, %s115
    %p124 = scmp.eq.s32.totalorder %s20, 0
    %p125 = por %p123, %p124
    %p126 = scmp.ne.s32.totalorder %s114, %s115
    %p127 = scmp.eq.s32.totalorder %s21, 1
    %p128 = por %p126, %p127
    %p130 = scmp.ne.s32.totalorder %s115, %s129
    %p131 = scmp.eq.s32.totalorder %s21, 0
    %p132 = por %p130, %p131
    %s134 = sadd.s32 %s133, 1
    %p137 = scmp.eq.s32.totalorder %s15, 1
    %p138 = scmp.ne.s32.totalorder %s133, %s135
    %p139 = scmp.eq.s32.totalorder %s15, 0
    %p140 = por %p138, %p139
    %p141 = scmp.ne.s32.totalorder %s133, %s135
    %p142 = scmp.eq.s32.totalorder %s20, 1
    %p143 = por %p141, %p142
    %p144 = scmp.ne.s32.totalorder %s135, %s136
    %p145 = scmp.eq.s32.totalorder %s20, 0
    %p146 = por %p144, %p145
    %p147 = scmp.ne.s32.totalorder %s135, %s136
    %p148 = scmp.eq.s32.totalorder %s21, 1
    %p149 = por %p147, %p148
    %p151 = scmp.ne.s32.totalorder %s136, %s150
    %p152 = scmp.eq.s32.totalorder %s21, 0
    %p153 = por %p151, %p152
    %s155 = sadd.s32 %s154, 1
    %p158 = scmp.eq.s32.totalorder %s15, 1
    %p159 = scmp.ne.s32.totalorder %s154, %s156
    %p160 = scmp.eq.s32.totalorder %s15, 0
    %p161 = por %p159, %p160
    %p162 = scmp.ne.s32.totalorder %s154, %s156
    %p163 = scmp.eq.s32.totalorder %s20, 1
    %p164 = por %p162, %p163
    %p165 = scmp.ne.s32.totalorder %s156, %s157
    %p166 = scmp.eq.s32.totalorder %s20, 0
    %p167 = por %p165, %p166
    %p168 = scmp.ne.s32.totalorder %s156, %s157
    %p169 = scmp.eq.s32.totalorder %s21, 1
    %p170 = por %p168, %p169
    %p172 = scmp.ne.s32.totalorder %s157, %s171
    %p173 = scmp.eq.s32.totalorder %s21, 0
    %p174 = por %p172, %p173
    %s176 = sadd.s32 %s175, 1
    %p179 = scmp.eq.s32.totalorder %s15, 1
    %p180 = scmp.ne.s32.totalorder %s175, %s177
    %p181 = scmp.eq.s32.totalorder %s15, 0
    %p182 = por %p180, %p181
    %p183 = scmp.ne.s32.totalorder %s175, %s177
    %p184 = scmp.eq.s32.totalorder %s20, 1
    %p185 = por %p183, %p184
    %p186 = scmp.ne.s32.totalorder %s177, %s178
    %p187 = scmp.eq.s32.totalorder %s20, 0
    %p188 = por %p186, %p187
    %p189 = scmp.ne.s32.totalorder %s177, %s178
    %p190 = scmp.eq.s32.totalorder %s21, 1
    %p191 = por %p189, %p190
    %p193 = scmp.ne.s32.totalorder %s178, %s192
    %p194 = scmp.eq.s32.totalorder %s21, 0
    %p195 = por %p193, %p194
    %s197 = sadd.s32 %s196, 1
    %p200 = scmp.eq.s32.totalorder %s15, 1
    %p201 = scmp.ne.s32.totalorder %s196, %s198
    %p202 = scmp.eq.s32.totalorder %s15, 0
    %p203 = por %p201, %p202
    %p204 = scmp.ne.s32.totalorder %s196, %s198
    %p205 = scmp.eq.s32.totalorder %s20, 1
    %p206 = por %p204, %p205
    %p207 = scmp.ne.s32.totalorder %s198, %s199
    %p208 = scmp.eq.s32.totalorder %s20, 0
    %p209 = por %p207, %p208
    %p210 = scmp.ne.s32.totalorder %s198, %s199
    %p211 = scmp.eq.s32.totalorder %s21, 1
    %p212 = por %p210, %p211
    %p214 = scmp.ne.s32.totalorder %s199, %s213
    %p215 = scmp.eq.s32.totalorder %s21, 0
    %p216 = por %p214, %p215
    %s217 = ssub.s32 %s15, %s22
    %p218 = scmp.eq.s32.totalorder %s217, 0
    %s220 = sadd.s32 %s219, 1
    %s221 = scalar_select %p218, %s219, %s220
    %p224 = pneg %p218
    %p225 = scmp.eq.s32.totalorder %s15, 1
    %p226 = por %p224, %p225
    %p227 = scmp.ne.s32.totalorder %s219, %s222
    %p228 = scmp.eq.s32.totalorder %s15, 0
    %p229 = por %p227, %p228
    %p230 = scmp.ne.s32.totalorder %s219, %s222
    %p231 = scmp.eq.s32.totalorder %s20, 1
    %p232 = por %p230, %p231
    %p233 = scmp.ne.s32.totalorder %s222, %s223
    %p234 = scmp.eq.s32.totalorder %s20, 0
    %p235 = por %p233, %p234
    %p236 = scmp.ne.s32.totalorder %s222, %s223
    %p237 = scmp.eq.s32.totalorder %s21, 1
    %p238 = por %p236, %p237
    %p240 = scmp.ne.s32.totalorder %s223, %s239
    %p241 = scmp.eq.s32.totalorder %s21, 0
    %p242 = por %p240, %p241
    %p243 = scmp.le.s32.totalorder 1, %s15
    %p244 = scmp.lt.s32.totalorder %s15, 3
    %p245 = pnand %p243, %p244
    %p246 = pneg %p245
    // Predicated region
    $region9: #{forward.6} parent=5 // pred_check
      _
    $region10: #{forward.6} parent=5 // pred_check_branch
      %248 = sbr.rel (%p245) target = $region12
    $region11: #{forward.6} parent=5 // pred_region
      %s249 = ssub.s32 %s15, 1
      // Predicated region
      $region13: #{forward.6} parent=11 // pred_check
        %p250 = pneg %p62
      $region14: #{forward.6} parent=11 // pred_check_branch
        %252 = sbr.rel (%p250) target = $region16
      $region15: #{forward.6} parent=11 // pred_region
        _
      $region16: #{forward.6} parent=11 // pred_fallthru
        _
      // Predicated region
      $region17: #{forward.6} parent=11 // pred_check
        %p253 = pneg %p83
      $region18: #{forward.6} parent=11 // pred_check_branch
        %255 = sbr.rel (%p253) target = $region20
      $region19: #{forward.6} parent=11 // pred_region
        _
      $region20: #{forward.6} parent=11 // pred_fallthru
        _
      // Predicated region
      $region21: #{forward.6} parent=11 // pred_check
        %p256 = pneg %p104
      $region22: #{forward.6} parent=11 // pred_check_branch
        %258 = sbr.rel (%p256) target = $region24
      $region23: #{forward.6} parent=11 // pred_region
        _
      $region24: #{forward.6} parent=11 // pred_fallthru
        _
      // Predicated region
      $region25: #{forward.6} parent=11 // pred_check
        %p259 = pneg %p125
      $region26: #{forward.6} parent=11 // pred_check_branch
        %261 = sbr.rel (%p259) target = $region28
      $region27: #{forward.6} parent=11 // pred_region
        _
      $region28: #{forward.6} parent=11 // pred_fallthru
        _
      // Predicated region
      $region29: #{forward.6} parent=11 // pred_check
        %p262 = pneg %p146
      $region30: #{forward.6} parent=11 // pred_check_branch
        %264 = sbr.rel (%p262) target = $region32
      $region31: #{forward.6} parent=11 // pred_region
        _
      $region32: #{forward.6} parent=11 // pred_fallthru
        _
      // Predicated region
      $region33: #{forward.6} parent=11 // pred_check
        %p265 = pneg %p167
      $region34: #{forward.6} parent=11 // pred_check_branch
        %267 = sbr.rel (%p265) target = $region36
      $region35: #{forward.6} parent=11 // pred_region
        _
      $region36: #{forward.6} parent=11 // pred_fallthru
        _
      // Predicated region
      $region37: #{forward.6} parent=11 // pred_check
        %p268 = pneg %p188
      $region38: #{forward.6} parent=11 // pred_check_branch
        %270 = sbr.rel (%p268) target = $region40
      $region39: #{forward.6} parent=11 // pred_region
        _
      $region40: #{forward.6} parent=11 // pred_fallthru
        _
      // Predicated region
      $region41: #{forward.6} parent=11 // pred_check
        %p271 = pneg %p209
      $region42: #{forward.6} parent=11 // pred_check_branch
        %273 = sbr.rel (%p271) target = $region44
      $region43: #{forward.6} parent=11 // pred_region
        _
      $region44: #{forward.6} parent=11 // pred_fallthru
        _
    $region12: #{forward.6} parent=5 // pred_fallthru
      _
    %p274 = scmp.lt.s32.totalorder %s15, 2
    // Predicated region
    $region45: #{forward.6} parent=5 // pred_check
      %p275 = pneg %p274
    $region46: #{forward.6} parent=5 // pred_check_branch
      %277 = sbr.rel (%p275) target = $region48
    $region47: #{forward.6} parent=5 // pred_region
      // Predicated region
      $region49: #{forward.6} parent=47 // pred_check
        %p278 = pneg %p35
      $region50: #{forward.6} parent=47 // pred_check_branch
        %280 = sbr.rel (%p278) target = $region52
      $region51: #{forward.6} parent=47 // pred_region
        %p281 = scmp.lt.s32.totalorder %s15, 1
        %s282 = scalar_select %p281, %s15, 1
        %s283 = smul.addr %s282, 72
        %s284 = smul.addr %s283, 4
        %s285 = scalar_lea.vmem %s0, %s284
      $region52: #{forward.6} parent=47 // pred_fallthru
        _
    $region48: #{forward.6} parent=5 // pred_fallthru
      _
    %p286 = scmp.le.s32.totalorder 1, %s15
    %p287 = scmp.lt.s32.totalorder %s15, 3
    %p288 = pnand %p286, %p287
    %p289 = pneg %p288
    // Predicated region
    $region53: #{forward.6} parent=5 // pred_check
      _
    $region54: #{forward.6} parent=5 // pred_check_branch
      %291 = sbr.rel (%p288) target = $region56
    $region55: #{forward.6} parent=5 // pred_region
      %s292 = ssub.s32 %s15, 1
      %p293 = scmp.lt.s32.totalorder %s20, 1
      %s294 = scalar_select %p293, %s20, 1
      %s295 = smul.addr %s294, 72
      %s296 = smul.addr %s295, 4
      %s297 = scalar_lea.vmem %s0, %s296
      %p298 = pneg %p41
      %p299 = pneg %p38
      %p300 = pneg %p62
      %p301 = pneg %p59
      %p302 = pneg %p83
      %p303 = pneg %p80
      %p304 = pneg %p104
      %p305 = pneg %p101
      %p306 = pneg %p125
      %p307 = pneg %p122
      %p308 = pneg %p146
      %p309 = pneg %p143
      %p310 = pneg %p167
      %p311 = pneg %p164
      %p312 = pneg %p188
      %p313 = pneg %p185
      %p314 = pneg %p209
      %p315 = pneg %p206
      %p316 = pneg %p235
      %p317 = pneg %p232
      %p318 = scmp.lt.s32.totalorder %s20, 1
      %s319 = scalar_select %p318, %s20, 1
      %s320 = smul.addr %s319, 8
      %s321 = smul.addr %s320, 4
      %s322 = scalar_lea.vmem %s9, %s321
      %p323 = scmp.lt.s32.totalorder %s20, 1
      %s324 = scalar_select %p323, %s20, 1
      %s325 = smul.addr %s324, 72
      %s326 = smul.addr %s325, 4
      %s327 = scalar_lea.vmem %s0, %s326
      %p328 = scmp.lt.s32.totalorder %s20, 1
      %s329 = scalar_select %p328, %s20, 1
      %s330 = smul.addr %s329, 8
      %s331 = smul.addr %s330, 4
      %s332 = scalar_lea.vmem %s9, %s331
      %v333 = vld [vmem:[%s1] sm:$0x1]
      %v334 = vld [vmem:[%s1 + $0x1] sm:$0x1]
      %v335 = vld [vmem:[%s1 + $0x2] sm:$0x1]
      %v336 = vld [vmem:[%s1 + $0x3] sm:$0x1]
      %v337 = vld [vmem:[%s1 + $0x4] sm:$0x1]
      %v338 = vld [vmem:[%s1 + $0x5] sm:$0x1]
      %v339 = vld [vmem:[%s1 + $0x6] sm:$0x1]
      %v340 = vld [vmem:[%s1 + $0x7] sm:$0x1]
      %v341 = vld [vmem:[%s1 + $0x8] sm:$0x1]
      %v342 = vld [vmem:[%s327] sm:$0xf]
      %v343 = vld [vmem:[%s327 + $0x4] sm:$0xf]
      %v344 = vld [vmem:[%s327 + $0x8] sm:$0xf]
      %v345 = vld [vmem:[%s327 + $0xc] sm:$0xf]
      %v346 = vld [vmem:[%s327 + $0x10] sm:$0xf]
      %v347 = vld [vmem:[%s327 + $0x14] sm:$0xf]
      %v348 = vld [vmem:[%s327 + $0x18] sm:$0xf]
      %v349 = vld [vmem:[%s327 + $0x1c] sm:$0xf]
      %v350 = vunpack.c.l.bf16 %v342
      %v351 = vunpack.c.l.bf16 %v343
      %v352 = vunpack.c.l.bf16 %v344
      %v353 = vunpack.c.l.bf16 %v345
      %v354 = vunpack.c.l.bf16 %v346
      %v355 = vunpack.c.l.bf16 %v347
      %v356 = vunpack.c.l.bf16 %v348
      %v357 = vunpack.c.l.bf16 %v349
      %v359 = vperm.slane %v333, 0
      %v361 = vmul.f32 %v350, %v359
      %v362 = vmul.f32 %v351, %v359
      %v363 = vmul.f32 %v352, %v359
      %v364 = vmul.f32 %v353, %v359
      %v365 = vmul.f32 %v354, %v359
      %v366 = vmul.f32 %v355, %v359
      %v367 = vmul.f32 %v356, %v359
      %v368 = vmul.f32 %v357, %v359
      %v369 = vadd.f32 %v361, 0.0
      %v370 = vadd.f32 %v362, 0.0
      %v371 = vadd.f32 %v363, 0.0
      %v372 = vadd.f32 %v364, 0.0
      %v373 = vadd.f32 %v365, 0.0
      %v374 = vadd.f32 %v366, 0.0
      %v375 = vadd.f32 %v367, 0.0
      %v376 = vadd.f32 %v368, 0.0
      %s377 = scalar_lea.vmem %s327, 32
      %v378 = vld [vmem:[%s377] sm:$0xf]
      %v379 = vld [vmem:[%s377 + $0x4] sm:$0xf]
      %v380 = vld [vmem:[%s377 + $0x8] sm:$0xf]
      %v381 = vld [vmem:[%s377 + $0xc] sm:$0xf]
      %v382 = vld [vmem:[%s377 + $0x10] sm:$0xf]
      %v383 = vld [vmem:[%s377 + $0x14] sm:$0xf]
      %v384 = vld [vmem:[%s377 + $0x18] sm:$0xf]
      %v385 = vld [vmem:[%s377 + $0x1c] sm:$0xf]
      %v386 = vunpack.c.l.bf16 %v378
      %v387 = vunpack.c.l.bf16 %v379
      %v388 = vunpack.c.l.bf16 %v380
      %v389 = vunpack.c.l.bf16 %v381
      %v390 = vunpack.c.l.bf16 %v382
      %v391 = vunpack.c.l.bf16 %v383
      %v392 = vunpack.c.l.bf16 %v384
      %v393 = vunpack.c.l.bf16 %v385
      %v395 = vperm.slane %v334, 0
      %v397 = vmul.f32 %v386, %v395
      %v398 = vmul.f32 %v387, %v395
      %v399 = vmul.f32 %v388, %v395
      %v400 = vmul.f32 %v389, %v395
      %v401 = vmul.f32 %v390, %v395
      %v402 = vmul.f32 %v391, %v395
      %v403 = vmul.f32 %v392, %v395
      %v404 = vmul.f32 %v393, %v395
      %v405 = vadd.f32 %v369, %v397
      %v406 = vadd.f32 %v370, %v398
      %v407 = vadd.f32 %v371, %v399
      %v408 = vadd.f32 %v372, %v400
      %v409 = vadd.f32 %v373, %v401
      %v410 = vadd.f32 %v374, %v402
      %v411 = vadd.f32 %v375, %v403
      %v412 = vadd.f32 %v376, %v404
      %s413 = scalar_lea.vmem %s327, 64
      %v414 = vld [vmem:[%s413] sm:$0xf]
      %v415 = vld [vmem:[%s413 + $0x4] sm:$0xf]
      %v416 = vld [vmem:[%s413 + $0x8] sm:$0xf]
      %v417 = vld [vmem:[%s413 + $0xc] sm:$0xf]
      %v418 = vld [vmem:[%s413 + $0x10] sm:$0xf]
      %v419 = vld [vmem:[%s413 + $0x14] sm:$0xf]
      %v420 = vld [vmem:[%s413 + $0x18] sm:$0xf]
      %v421 = vld [vmem:[%s413 + $0x1c] sm:$0xf]
      %v422 = vunpack.c.l.bf16 %v414
      %v423 = vunpack.c.l.bf16 %v415
      %v424 = vunpack.c.l.bf16 %v416
      %v425 = vunpack.c.l.bf16 %v417
      %v426 = vunpack.c.l.bf16 %v418
      %v427 = vunpack.c.l.bf16 %v419
      %v428 = vunpack.c.l.bf16 %v420
      %v429 = vunpack.c.l.bf16 %v421
      %v431 = vperm.slane %v335, 0
      %v433 = vmul.f32 %v422, %v431
      %v434 = vmul.f32 %v423, %v431
      %v435 = vmul.f32 %v424, %v431
      %v436 = vmul.f32 %v425, %v431
      %v437 = vmul.f32 %v426, %v431
      %v438 = vmul.f32 %v427, %v431
      %v439 = vmul.f32 %v428, %v431
      %v440 = vmul.f32 %v429, %v431
      %v441 = vadd.f32 %v405, %v433
      %v442 = vadd.f32 %v406, %v434
      %v443 = vadd.f32 %v407, %v435
      %v444 = vadd.f32 %v408, %v436
      %v445 = vadd.f32 %v409, %v437
      %v446 = vadd.f32 %v410, %v438
      %v447 = vadd.f32 %v411, %v439
      %v448 = vadd.f32 %v412, %v440
      %s449 = scalar_lea.vmem %s327, 96
      %v450 = vld [vmem:[%s449] sm:$0xf]
      %v451 = vld [vmem:[%s449 + $0x4] sm:$0xf]
      %v452 = vld [vmem:[%s449 + $0x8] sm:$0xf]
      %v453 = vld [vmem:[%s449 + $0xc] sm:$0xf]
      %v454 = vld [vmem:[%s449 + $0x10] sm:$0xf]
      %v455 = vld [vmem:[%s449 + $0x14] sm:$0xf]
      %v456 = vld [vmem:[%s449 + $0x18] sm:$0xf]
      %v457 = vld [vmem:[%s449 + $0x1c] sm:$0xf]
      %v458 = vunpack.c.l.bf16 %v450
      %v459 = vunpack.c.l.bf16 %v451
      %v460 = vunpack.c.l.bf16 %v452
      %v461 = vunpack.c.l.bf16 %v453
      %v462 = vunpack.c.l.bf16 %v454
      %v463 = vunpack.c.l.bf16 %v455
      %v464 = vunpack.c.l.bf16 %v456
      %v465 = vunpack.c.l.bf16 %v457
      %v467 = vperm.slane %v336, 0
      %v469 = vmul.f32 %v458, %v467
      %v470 = vmul.f32 %v459, %v467
      %v471 = vmul.f32 %v460, %v467
      %v472 = vmul.f32 %v461, %v467
      %v473 = vmul.f32 %v462, %v467
      %v474 = vmul.f32 %v463, %v467
      %v475 = vmul.f32 %v464, %v467
      %v476 = vmul.f32 %v465, %v467
      %v477 = vadd.f32 %v441, %v469
      %v478 = vadd.f32 %v442, %v470
      %v479 = vadd.f32 %v443, %v471
      %v480 = vadd.f32 %v444, %v472
      %v481 = vadd.f32 %v445, %v473
      %v482 = vadd.f32 %v446, %v474
      %v483 = vadd.f32 %v447, %v475
      %v484 = vadd.f32 %v448, %v476
      %s485 = scalar_lea.vmem %s327, 128
      %v486 = vld [vmem:[%s485] sm:$0xf]
      %v487 = vld [vmem:[%s485 + $0x4] sm:$0xf]
      %v488 = vld [vmem:[%s485 + $0x8] sm:$0xf]
      %v489 = vld [vmem:[%s485 + $0xc] sm:$0xf]
      %v490 = vld [vmem:[%s485 + $0x10] sm:$0xf]
      %v491 = vld [vmem:[%s485 + $0x14] sm:$0xf]
      %v492 = vld [vmem:[%s485 + $0x18] sm:$0xf]
      %v493 = vld [vmem:[%s485 + $0x1c] sm:$0xf]
      %v494 = vunpack.c.l.bf16 %v486
      %v495 = vunpack.c.l.bf16 %v487
      %v496 = vunpack.c.l.bf16 %v488
      %v497 = vunpack.c.l.bf16 %v489
      %v498 = vunpack.c.l.bf16 %v490
      %v499 = vunpack.c.l.bf16 %v491
      %v500 = vunpack.c.l.bf16 %v492
      %v501 = vunpack.c.l.bf16 %v493
      %v503 = vperm.slane %v337, 0
      %v505 = vmul.f32 %v494, %v503
      %v506 = vmul.f32 %v495, %v503
      %v507 = vmul.f32 %v496, %v503
      %v508 = vmul.f32 %v497, %v503
      %v509 = vmul.f32 %v498, %v503
      %v510 = vmul.f32 %v499, %v503
      %v511 = vmul.f32 %v500, %v503
      %v512 = vmul.f32 %v501, %v503
      %v513 = vadd.f32 %v477, %v505
      %v514 = vadd.f32 %v478, %v506
      %v515 = vadd.f32 %v479, %v507
      %v516 = vadd.f32 %v480, %v508
      %v517 = vadd.f32 %v481, %v509
      %v518 = vadd.f32 %v482, %v510
      %v519 = vadd.f32 %v483, %v511
      %v520 = vadd.f32 %v484, %v512
      %s521 = scalar_lea.vmem %s327, 160
      %v522 = vld [vmem:[%s521] sm:$0xf]
      %v523 = vld [vmem:[%s521 + $0x4] sm:$0xf]
      %v524 = vld [vmem:[%s521 + $0x8] sm:$0xf]
      %v525 = vld [vmem:[%s521 + $0xc] sm:$0xf]
      %v526 = vld [vmem:[%s521 + $0x10] sm:$0xf]
      %v527 = vld [vmem:[%s521 + $0x14] sm:$0xf]
      %v528 = vld [vmem:[%s521 + $0x18] sm:$0xf]
      %v529 = vld [vmem:[%s521 + $0x1c] sm:$0xf]
      %v530 = vunpack.c.l.bf16 %v522
      %v531 = vunpack.c.l.bf16 %v523
      %v532 = vunpack.c.l.bf16 %v524
      %v533 = vunpack.c.l.bf16 %v525
      %v534 = vunpack.c.l.bf16 %v526
      %v535 = vunpack.c.l.bf16 %v527
      %v536 = vunpack.c.l.bf16 %v528
      %v537 = vunpack.c.l.bf16 %v529
      %v539 = vperm.slane %v338, 0
      %v541 = vmul.f32 %v530, %v539
      %v542 = vmul.f32 %v531, %v539
      %v543 = vmul.f32 %v532, %v539
      %v544 = vmul.f32 %v533, %v539
      %v545 = vmul.f32 %v534, %v539
      %v546 = vmul.f32 %v535, %v539
      %v547 = vmul.f32 %v536, %v539
      %v548 = vmul.f32 %v537, %v539
      %v549 = vadd.f32 %v513, %v541
      %v550 = vadd.f32 %v514, %v542
      %v551 = vadd.f32 %v515, %v543
      %v552 = vadd.f32 %v516, %v544
      %v553 = vadd.f32 %v517, %v545
      %v554 = vadd.f32 %v518, %v546
      %v555 = vadd.f32 %v519, %v547
      %v556 = vadd.f32 %v520, %v548
      %s557 = scalar_lea.vmem %s327, 192
      %v558 = vld [vmem:[%s557] sm:$0xf]
      %v559 = vld [vmem:[%s557 + $0x4] sm:$0xf]
      %v560 = vld [vmem:[%s557 + $0x8] sm:$0xf]
      %v561 = vld [vmem:[%s557 + $0xc] sm:$0xf]
      %v562 = vld [vmem:[%s557 + $0x10] sm:$0xf]
      %v563 = vld [vmem:[%s557 + $0x14] sm:$0xf]
      %v564 = vld [vmem:[%s557 + $0x18] sm:$0xf]
      %v565 = vld [vmem:[%s557 + $0x1c] sm:$0xf]
      %v566 = vunpack.c.l.bf16 %v558
      %v567 = vunpack.c.l.bf16 %v559
      %v568 = vunpack.c.l.bf16 %v560
      %v569 = vunpack.c.l.bf16 %v561
      %v570 = vunpack.c.l.bf16 %v562
      %v571 = vunpack.c.l.bf16 %v563
      %v572 = vunpack.c.l.bf16 %v564
      %v573 = vunpack.c.l.bf16 %v565
      %v575 = vperm.slane %v339, 0
      %v577 = vmul.f32 %v566, %v575
      %v578 = vmul.f32 %v567, %v575
      %v579 = vmul.f32 %v568, %v575
      %v580 = vmul.f32 %v569, %v575
      %v581 = vmul.f32 %v570, %v575
      %v582 = vmul.f32 %v571, %v575
      %v583 = vmul.f32 %v572, %v575
      %v584 = vmul.f32 %v573, %v575
      %v585 = vadd.f32 %v549, %v577
      %v586 = vadd.f32 %v550, %v578
      %v587 = vadd.f32 %v551, %v579
      %v588 = vadd.f32 %v552, %v580
      %v589 = vadd.f32 %v553, %v581
      %v590 = vadd.f32 %v554, %v582
      %v591 = vadd.f32 %v555, %v583
      %v592 = vadd.f32 %v556, %v584
      %s593 = scalar_lea.vmem %s327, 224
      %v594 = vld [vmem:[%s593] sm:$0xf]
      %v595 = vld [vmem:[%s593 + $0x4] sm:$0xf]
      %v596 = vld [vmem:[%s593 + $0x8] sm:$0xf]
      %v597 = vld [vmem:[%s593 + $0xc] sm:$0xf]
      %v598 = vld [vmem:[%s593 + $0x10] sm:$0xf]
      %v599 = vld [vmem:[%s593 + $0x14] sm:$0xf]
      %v600 = vld [vmem:[%s593 + $0x18] sm:$0xf]
      %v601 = vld [vmem:[%s593 + $0x1c] sm:$0xf]
      %v602 = vunpack.c.l.bf16 %v594
      %v603 = vunpack.c.l.bf16 %v595
      %v604 = vunpack.c.l.bf16 %v596
      %v605 = vunpack.c.l.bf16 %v597
      %v606 = vunpack.c.l.bf16 %v598
      %v607 = vunpack.c.l.bf16 %v599
      %v608 = vunpack.c.l.bf16 %v600
      %v609 = vunpack.c.l.bf16 %v601
      %v611 = vperm.slane %v340, 0
      %v613 = vmul.f32 %v602, %v611
      %v614 = vmul.f32 %v603, %v611
      %v615 = vmul.f32 %v604, %v611
      %v616 = vmul.f32 %v605, %v611
      %v617 = vmul.f32 %v606, %v611
      %v618 = vmul.f32 %v607, %v611
      %v619 = vmul.f32 %v608, %v611
      %v620 = vmul.f32 %v609, %v611
      %v621 = vadd.f32 %v585, %v613
      %v622 = vadd.f32 %v586, %v614
      %v623 = vadd.f32 %v587, %v615
      %v624 = vadd.f32 %v588, %v616
      %v625 = vadd.f32 %v589, %v617
      %v626 = vadd.f32 %v590, %v618
      %v627 = vadd.f32 %v591, %v619
      %v628 = vadd.f32 %v592, %v620
      %s629 = scalar_lea.vmem %s327, 256
      %v630 = vld [vmem:[%s629] sm:$0xf]
      %v631 = vld [vmem:[%s629 + $0x4] sm:$0xf]
      %v632 = vld [vmem:[%s629 + $0x8] sm:$0xf]
      %v633 = vld [vmem:[%s629 + $0xc] sm:$0xf]
      %v634 = vld [vmem:[%s629 + $0x10] sm:$0xf]
      %v635 = vld [vmem:[%s629 + $0x14] sm:$0xf]
      %v636 = vld [vmem:[%s629 + $0x18] sm:$0xf]
      %v637 = vld [vmem:[%s629 + $0x1c] sm:$0xf]
      %v638 = vunpack.c.l.bf16 %v630
      %v639 = vunpack.c.l.bf16 %v631
      %v640 = vunpack.c.l.bf16 %v632
      %v641 = vunpack.c.l.bf16 %v633
      %v642 = vunpack.c.l.bf16 %v634
      %v643 = vunpack.c.l.bf16 %v635
      %v644 = vunpack.c.l.bf16 %v636
      %v645 = vunpack.c.l.bf16 %v637
      %v647 = vperm.slane %v341, 0
      %v649 = vmul.f32 %v638, %v647
      %v650 = vmul.f32 %v639, %v647
      %v651 = vmul.f32 %v640, %v647
      %v652 = vmul.f32 %v641, %v647
      %v653 = vmul.f32 %v642, %v647
      %v654 = vmul.f32 %v643, %v647
      %v655 = vmul.f32 %v644, %v647
      %v656 = vmul.f32 %v645, %v647
      %v657 = vadd.f32 %v621, %v649
      %v658 = vadd.f32 %v622, %v650
      %v659 = vadd.f32 %v623, %v651
      %v660 = vadd.f32 %v624, %v652
      %v661 = vadd.f32 %v625, %v653
      %v662 = vadd.f32 %v626, %v654
      %v663 = vadd.f32 %v627, %v655
      %v664 = vadd.f32 %v628, %v656
      %v665 = vld [vmem:[%s2] sm:$0x1]
      %v667 = vperm.slane %v665, 0
      %v669 = vadd.f32 %v657, %v667
      %v670 = vadd.f32 %v658, %v667
      %v671 = vadd.f32 %v659, %v667
      %v672 = vadd.f32 %v660, %v667
      %v673 = vadd.f32 %v661, %v667
      %v674 = vadd.f32 %v662, %v667
      %v675 = vadd.f32 %v663, %v667
      %v676 = vadd.f32 %v664, %v667
      %v677 = vmax.f32 %v669, 0.0
      %v678 = vmax.f32 %v670, 0.0
      %v679 = vmax.f32 %v671, 0.0
      %v680 = vmax.f32 %v672, 0.0
      %v681 = vmax.f32 %v673, 0.0
      %v682 = vmax.f32 %v674, 0.0
      %v683 = vmax.f32 %v675, 0.0
      %v684 = vmax.f32 %v676, 0.0
      %v685 = vadd.f32 %v677, %v678
      %v686 = vadd.f32 %v685, %v679
      %v687 = vadd.f32 %v686, %v680
      %v688 = vadd.f32 %v687, %v681
      %v689 = vadd.f32 %v688, %v682
      %v690 = vadd.f32 %v689, %v683
      %v691 = vadd.f32 %v690, %v684
      %v692 = vrot.slane %v691, 4
      %v693 = vadd.f32 %v691, %v692
      %v694 = vrot.slane %v693, 2
      %v695 = vadd.f32 %v693, %v694
      %v696 = vrot.slane %v695, 1
      %v697 = vadd.f32 %v695, %v696
      %v698 = vrcp.pop 64.0
      %v699 = vmul.f32 64.0, %v698
      %v700 = vsub.f32 1.0, %v699
      %v701 = vmul.f32 %v698, %v700
      %v702 = vadd.f32 %v698, %v701
      %vm703 = vweird.f32 %v698
      %v704 = vsel %vm703, %v698, %v702
      %v705 = vmul.f32 %v697, %v704
      %v706 = vpack.c.bf16 %v705, %v705
      %v707 = vld [vmem:[%s3] sm:$0xf]
      %v708 = vld [vmem:[%s3 + $0x4] sm:$0xf]
      %v709 = vld [vmem:[%s3 + $0x8] sm:$0xf]
      %v710 = vld [vmem:[%s3 + $0xc] sm:$0xf]
      %v711 = vld [vmem:[%s3 + $0x10] sm:$0xf]
      %v712 = vld [vmem:[%s3 + $0x14] sm:$0xf]
      %v713 = vld [vmem:[%s3 + $0x18] sm:$0xf]
      %v714 = vld [vmem:[%s3 + $0x1c] sm:$0xf]
      %v715 = vld [vmem:[%s3 + $0x20] sm:$0xf]
      %v716 = vld [vmem:[%s3 + $0x24] sm:$0xf]
      %v717 = vld [vmem:[%s3 + $0x28] sm:$0xf]
      %v718 = vld [vmem:[%s3 + $0x2c] sm:$0xf]
      %v719 = vld [vmem:[%s3 + $0x30] sm:$0xf]
      %v720 = vld [vmem:[%s3 + $0x34] sm:$0xf]
      %v721 = vld [vmem:[%s3 + $0x38] sm:$0xf]
      %v722 = vld [vmem:[%s3 + $0x3c] sm:$0xf]
      %v723 = vld [vmem:[%s4] sm:$0x1]
      %v740 = vunpack.c.l.b16 %v707
      %v741 = vunpack.c.l.b16 %v708
      %v742 = vunpack.c.l.b16 %v709
      %v743 = vunpack.c.l.b16 %v710
      %v744 = vunpack.c.l.b16 %v711
      %v745 = vunpack.c.l.b16 %v712
      %v746 = vunpack.c.l.b16 %v713
      %v747 = vunpack.c.l.b16 %v714
      %v748 = vunpack.c.l.b16 %v715
      %v749 = vunpack.c.l.b16 %v716
      %v750 = vunpack.c.l.b16 %v717
      %v751 = vunpack.c.l.b16 %v718
      %v752 = vunpack.c.l.b16 %v719
      %v753 = vunpack.c.l.b16 %v720
      %v754 = vunpack.c.l.b16 %v721
      %v755 = vunpack.c.l.b16 %v722
      %v756 = vpack.c.b16 %v741, %v740
      %v757 = vpack.c.b16 %v743, %v742
      %v758 = vpack.c.b16 %v745, %v744
      %v759 = vpack.c.b16 %v747, %v746
      %v760 = vpack.c.b16 %v749, %v748
      %v761 = vpack.c.b16 %v751, %v750
      %v762 = vpack.c.b16 %v753, %v752
      %v763 = vpack.c.b16 %v755, %v754
      %772 = vmatpush.bf16.msra.mxu0 %v763
      %773 = vmatpush.bf16.msra.mxu0 %v762
      %774 = vmatpush.bf16.msra.mxu0 %v761
      %775 = vmatpush.bf16.msra.mxu0 %v760
      %776 = vmatpush.bf16.msra.mxu0 %v759
      %777 = vmatpush.bf16.msra.mxu0 %v758
      %778 = vmatpush.bf16.msra.mxu0 %v757
      %779 = vmatpush.bf16.msra.mxu0 %v756
      %780 = vmatmul.bf16.gmra.mxu0 %v706
      %v781 = vpop.f32.mrf.mxu0
      %v782 = vadd.f32 %v723, %v781
      %v783 = vpop.f32.mrf.mxu0
      %784 = vdwg.mxu0
      %v785 = vmax.f32 %v782, 0.0
      %v786 = vpack.c.bf16 %v785, %v785
      %v787 = vld [vmem:[%s5] sm:$0xf]
      %v788 = vld [vmem:[%s5 + $0x4] sm:$0xf]
      %v789 = vld [vmem:[%s5 + $0x8] sm:$0xf]
      %v790 = vld [vmem:[%s5 + $0xc] sm:$0xf]
      %v791 = vld [vmem:[%s5 + $0x10] sm:$0xf]
      %v792 = vld [vmem:[%s5 + $0x14] sm:$0xf]
      %v793 = vld [vmem:[%s5 + $0x18] sm:$0xf]
      %v794 = vld [vmem:[%s5 + $0x1c] sm:$0xf]
      %v795 = vld [vmem:[%s5 + $0x20] sm:$0xf]
      %v796 = vld [vmem:[%s5 + $0x24] sm:$0xf]
      %v797 = vld [vmem:[%s5 + $0x28] sm:$0xf]
      %v798 = vld [vmem:[%s5 + $0x2c] sm:$0xf]
      %v799 = vld [vmem:[%s5 + $0x30] sm:$0xf]
      %v800 = vld [vmem:[%s5 + $0x34] sm:$0xf]
      %v801 = vld [vmem:[%s5 + $0x38] sm:$0xf]
      %v802 = vld [vmem:[%s5 + $0x3c] sm:$0xf]
      %v803 = vld [vmem:[%s6] sm:$0x1]
      %v820 = vunpack.c.l.b16 %v787
      %v821 = vunpack.c.l.b16 %v788
      %v822 = vunpack.c.l.b16 %v789
      %v823 = vunpack.c.l.b16 %v790
      %v824 = vunpack.c.l.b16 %v791
      %v825 = vunpack.c.l.b16 %v792
      %v826 = vunpack.c.l.b16 %v793
      %v827 = vunpack.c.l.b16 %v794
      %v828 = vunpack.c.l.b16 %v795
      %v829 = vunpack.c.l.b16 %v796
      %v830 = vunpack.c.l.b16 %v797
      %v831 = vunpack.c.l.b16 %v798
      %v832 = vunpack.c.l.b16 %v799
      %v833 = vunpack.c.l.b16 %v800
      %v834 = vunpack.c.l.b16 %v801
      %v835 = vunpack.c.l.b16 %v802
      %v836 = vpack.c.b16 %v821, %v820
      %v837 = vpack.c.b16 %v823, %v822
      %v838 = vpack.c.b16 %v825, %v824
      %v839 = vpack.c.b16 %v827, %v826
      %v840 = vpack.c.b16 %v829, %v828
      %v841 = vpack.c.b16 %v831, %v830
      %v842 = vpack.c.b16 %v833, %v832
      %v843 = vpack.c.b16 %v835, %v834
      %852 = vmatpush.bf16.msra.mxu0 %v843
      %853 = vmatpush.bf16.msra.mxu0 %v842
      %854 = vmatpush.bf16.msra.mxu0 %v841
      %855 = vmatpush.bf16.msra.mxu0 %v840
      %856 = vmatpush.bf16.msra.mxu0 %v839
      %857 = vmatpush.bf16.msra.mxu0 %v838
      %858 = vmatpush.bf16.msra.mxu0 %v837
      %859 = vmatpush.bf16.msra.mxu0 %v836
      %860 = vmatmul.bf16.gmra.mxu0 %v786
      %v861 = vpop.f32.mrf.mxu0
      %v862 = vadd.f32 %v803, %v861
      %v863 = vpop.f32.mrf.mxu0
      %864 = vdwg.mxu0
      %v865 = vadd.f32 %v862, 3.0
      %v866 = vmax.f32 %v865, 0.0
      %v867 = vmin.f32 %v866, 6.0
      %v868 = vrcp.pop 6.0
      %v869 = vmul.f32 6.0, %v868
      %v870 = vsub.f32 1.0, %v869
      %v871 = vmul.f32 %v868, %v870
      %v872 = vadd.f32 %v868, %v871
      %vm873 = vweird.f32 %v868
      %v874 = vsel %vm873, %v868, %v872
      %v875 = vmul.f32 %v867, %v874
      %v876 = vperm.slane %v875, 0
      %v877 = vmul.f32 %v677, %v876
      %v878 = vmul.f32 %v678, %v876
      %v879 = vmul.f32 %v679, %v876
      %v880 = vmul.f32 %v680, %v876
      %v881 = vmul.f32 %v681, %v876
      %v882 = vmul.f32 %v682, %v876
      %v883 = vmul.f32 %v683, %v876
      %v884 = vmul.f32 %v684, %v876
      %v885 = vpack.c.bf16 %v878, %v877
      %v886 = vpack.c.bf16 %v880, %v879
      %v887 = vpack.c.bf16 %v882, %v881
      %v888 = vpack.c.bf16 %v884, %v883
      %v889 = vld [vmem:[%s7] sm:$0xf]
      %v890 = vld [vmem:[%s7 + $0x4] sm:$0xf]
      %v891 = vld [vmem:[%s7 + $0x8] sm:$0xf]
      %v892 = vld [vmem:[%s7 + $0xc] sm:$0xf]
      %v893 = vld [vmem:[%s7 + $0x10] sm:$0xf]
      %v894 = vld [vmem:[%s7 + $0x14] sm:$0xf]
      %v895 = vld [vmem:[%s7 + $0x18] sm:$0xf]
      %v896 = vld [vmem:[%s7 + $0x1c] sm:$0xf]
      %v897 = vld [vmem:[%s7 + $0x20] sm:$0xf]
      %v898 = vld [vmem:[%s7 + $0x24] sm:$0xf]
      %v899 = vld [vmem:[%s7 + $0x28] sm:$0xf]
      %v900 = vld [vmem:[%s7 + $0x2c] sm:$0xf]
      %v901 = vld [vmem:[%s7 + $0x30] sm:$0xf]
      %v902 = vld [vmem:[%s7 + $0x34] sm:$0xf]
      %v903 = vld [vmem:[%s7 + $0x38] sm:$0xf]
      %v904 = vld [vmem:[%s7 + $0x3c] sm:$0xf]
      %v905 = vld [vmem:[%s8] sm:$0x1]
      %v907 = vperm.slane %v905, 0
      %v925 = vunpack.c.l.b16 %v889
      %v926 = vunpack.c.l.b16 %v890
      %v927 = vunpack.c.l.b16 %v891
      %v928 = vunpack.c.l.b16 %v892
      %v929 = vunpack.c.l.b16 %v893
      %v930 = vunpack.c.l.b16 %v894
      %v931 = vunpack.c.l.b16 %v895
      %v932 = vunpack.c.l.b16 %v896
      %v933 = vunpack.c.l.b16 %v897
      %v934 = vunpack.c.l.b16 %v898
      %v935 = vunpack.c.l.b16 %v899
      %v936 = vunpack.c.l.b16 %v900
      %v937 = vunpack.c.l.b16 %v901
      %v938 = vunpack.c.l.b16 %v902
      %v939 = vunpack.c.l.b16 %v903
      %v940 = vunpack.c.l.b16 %v904
      %v941 = vpack.c.b16 %v926, %v925
      %v942 = vpack.c.b16 %v928, %v927
      %v943 = vpack.c.b16 %v930, %v929
      %v944 = vpack.c.b16 %v932, %v931
      %v945 = vpack.c.b16 %v934, %v933
      %v946 = vpack.c.b16 %v936, %v935
      %v947 = vpack.c.b16 %v938, %v937
      %v948 = vpack.c.b16 %v940, %v939
      %957 = vmatpush.bf16.msra.mxu0 %v948
      %958 = vmatpush.bf16.msra.mxu0 %v947
      %959 = vmatpush.bf16.msra.mxu0 %v946
      %960 = vmatpush.bf16.msra.mxu0 %v945
      %961 = vmatpush.bf16.msra.mxu0 %v944
      %962 = vmatpush.bf16.msra.mxu0 %v943
      %963 = vmatpush.bf16.msra.mxu0 %v942
      %964 = vmatpush.bf16.msra.mxu0 %v941
      %965 = vmatmul.bf16.gmra.mxu0 %v885
      %v966 = vpop.f32.mrf.mxu0
      %v967 = vadd.f32 %v907, %v966
      %v968 = vpop.f32.mrf.mxu0
      %v969 = vadd.f32 %v907, %v968
      %970 = vmatmul.bf16.gmra.mxu0 %v886
      %v971 = vpop.f32.mrf.mxu0
      %v972 = vadd.f32 %v907, %v971
      %v973 = vpop.f32.mrf.mxu0
      %v974 = vadd.f32 %v907, %v973
      %975 = vmatmul.bf16.gmra.mxu0 %v887
      %v976 = vpop.f32.mrf.mxu0
      %v977 = vadd.f32 %v907, %v976
      %v978 = vpop.f32.mrf.mxu0
      %v979 = vadd.f32 %v907, %v978
      %980 = vmatmul.bf16.gmra.mxu0 %v888
      %v981 = vpop.f32.mrf.mxu0
      %v982 = vadd.f32 %v907, %v981
      %v983 = vpop.f32.mrf.mxu0
      %v984 = vadd.f32 %v907, %v983
      %985 = vdwg.mxu0
      %v986 = vpack.c.bf16 %v967, %v967
      %v987 = vpack.c.bf16 %v969, %v969
      %v988 = vpack.c.bf16 %v972, %v972
      %v989 = vpack.c.bf16 %v974, %v974
      %v990 = vpack.c.bf16 %v977, %v977
      %v991 = vpack.c.bf16 %v979, %v979
      %v992 = vpack.c.bf16 %v982, %v982
      %v993 = vpack.c.bf16 %v984, %v984
      %994 = vst [vmem:[%s332] sm:$0xf] %v986
      %995 = vst [vmem:[%s332 + $0x4] sm:$0xf] %v987
      %996 = vst [vmem:[%s332 + $0x8] sm:$0xf] %v988
      %997 = vst [vmem:[%s332 + $0xc] sm:$0xf] %v989
      %998 = vst [vmem:[%s332 + $0x10] sm:$0xf] %v990
      %999 = vst [vmem:[%s332 + $0x14] sm:$0xf] %v991
      %1000 = vst [vmem:[%s332 + $0x18] sm:$0xf] %v992
      %1001 = vst [vmem:[%s332 + $0x1c] sm:$0xf] %v993
      %p1002 = scmp.lt.s32.totalorder %s20, 1
      %s1003 = scalar_select %p1002, %s20, 1
      %s1004 = smul.addr %s1003, 8
      %s1005 = smul.addr %s1004, 4
      %s1006 = scalar_lea.vmem %s9, %s1005
      // Predicated region
      $region57: #{forward.6} parent=55 // pred_check
        %p1007 = pneg %p232
      $region58: #{forward.6} parent=55 // pred_check_branch
        %1009 = sbr.rel (%p1007) target = $region60
      $region59: #{forward.6} parent=55 // pred_region
        _
      $region60: #{forward.6} parent=55 // pred_fallthru
        _
    $region56: #{forward.6} parent=5 // pred_fallthru
      _
    %p1010 = scmp.le.s32.totalorder 2, %s15
    // Predicated region
    $region61: #{forward.6} parent=5 // pred_check
      %p1011 = pneg %p1010
    $region62: #{forward.6} parent=5 // pred_check_branch
      %1013 = sbr.rel (%p1011) target = $region64
    $region63: #{forward.6} parent=5 // pred_region
      %s1014 = ssub.s32 %s15, 2
      // Predicated region
      $region65: #{forward.6} parent=63 // pred_check
        %p1015 = pneg %p238
      $region66: #{forward.6} parent=63 // pred_check_branch
        %1017 = sbr.rel (%p1015) target = $region68
      $region67: #{forward.6} parent=63 // pred_region
        %p1018 = scmp.lt.s32.totalorder %s21, 1
        %s1019 = scalar_select %p1018, %s21, 1
        %s1020 = smul.addr %s1019, 8
        %s1021 = smul.addr %s1020, 4
        %s1022 = scalar_lea.vmem %s9, %s1021
      $region68: #{forward.6} parent=63 // pred_fallthru
        _
    $region64: #{forward.6} parent=5 // pred_fallthru
      _
  $region6: #{forward.6} parent=0 // loop_footer
    %s19 = sadd.s32 1, %s15
  $region7: #{forward.6} parent=0 // loop_footer_branch
    %14 = sbr.rel target = $region3
  $region8: #{forward.6} parent=0 // loop_exit
    _

// kernel: forward.7
$region0: #{forward.7}
  #allocation0 [shape = 'u32[]', space=smem, size = 0x4, offset = 0x4, fixed_abs, tag = 'smem constant byte address 0x4 - core index']
  #allocation1 [shape = 'u32[72,128]{1,0:T(1,128)}', space=vmem, size = 0x9000, scoped, tag = 'internal scratch']
  %s0 = inlined_call_operand.vmem [shape: bf16[2,9,16,128], index: 0, kind: input, shape index: {}]
  %s1 = inlined_call_operand.vmem [shape: f32[9,16,1], index: 1, kind: input, shape index: {}]
  %s2 = inlined_call_operand.vmem [shape: bf16[128,128], index: 2, kind: input, shape index: {}]
  %s3 = inlined_call_operand.vmem [shape: f32[1,128], index: 3, kind: input, shape index: {}]
  %s4 = inlined_call_operand.vmem [shape: f32[9,1,128], index: 4, kind: input, shape index: {}]
  %s5 = inlined_call_operand.vmem [shape: f32[1,128], index: 5, kind: input, shape index: {}]
  %s6 = inlined_call_operand.vmem [shape: bf16[128,128], index: 6, kind: input, shape index: {}]
  %s7 = inlined_call_operand.vmem [shape: f32[1,128], index: 7, kind: input, shape index: {}]
  %s8 = inlined_call_operand.vmem [shape: bf16[2,16,128], index: 8, kind: output, shape index: {}]
  %s9 = sld [smem:[#allocation0]]
  $region65: #{forward.7} parent=0
    _
  %s11 = ssub.s32 1, %s9
  %s12 = scalar_select 0, %s11, %s9
  loop: start=0, step=1, limit=4
  $region2: #{forward.7} parent=0 // loop_pre_header
    _
  $region3: #{forward.7} parent=0 // loop_header
    %s14 = sphi 0, %s18
    %p15 = scmp.ge.s32.totalorder %s14, 4
    %s24 = sphi 0, %s26
    %s27 = sphi 0, %s24
    %s28 = sphi 0, %s27
    %s44 = sphi 0, %s28
    %s48 = sphi 0, %s48
    %s50 = sphi 0, %s48
    %s51 = sphi 0, %s50
    %s65 = sphi 0, %s51
    %s69 = sphi 0, %s69
    %s71 = sphi 0, %s69
    %s72 = sphi 0, %s71
    %s86 = sphi 0, %s72
    %s90 = sphi 0, %s90
    %s92 = sphi 0, %s90
    %s93 = sphi 0, %s92
    %s107 = sphi 0, %s93
    %s111 = sphi 0, %s111
    %s113 = sphi 0, %s111
    %s114 = sphi 0, %s113
    %s128 = sphi 0, %s114
    %s132 = sphi 0, %s132
    %s134 = sphi 0, %s132
    %s135 = sphi 0, %s134
    %s149 = sphi 0, %s135
    %s153 = sphi 0, %s153
    %s155 = sphi 0, %s153
    %s156 = sphi 0, %s155
    %s170 = sphi 0, %s156
    %s174 = sphi 0, %s174
    %s176 = sphi 0, %s174
    %s177 = sphi 0, %s176
    %s191 = sphi 0, %s177
    %s197 = sphi 0, %s199
    %s200 = sphi 0, %s197
    %s201 = sphi 0, %s200
    %s217 = sphi 0, %s201
  $region4: #{forward.7} parent=0 // loop_header_branch
    %17 = sbr.rel (%p15) target = $region8
  $region5: #{forward.7} parent=0 // loop_body
    %s19 = ssub.s32 %s14, 1
    %s20 = ssub.s32 %s14, 2
    %s21 = sadd.s32 %s14, 1
    %s22 = ssub.s32 %s14, %s21
    %p23 = scmp.eq.s32.totalorder %s22, 0
    %s25 = sadd.s32 %s24, 1
    %s26 = scalar_select %p23, %s24, %s25
    %p29 = pneg %p23
    %p30 = scmp.eq.s32.totalorder %s14, 1
    %p31 = por %p29, %p30
    %p32 = scmp.ne.s32.totalorder %s24, %s27
    %p33 = scmp.eq.s32.totalorder %s14, 0
    %p34 = por %p32, %p33
    %p35 = scmp.ne.s32.totalorder %s24, %s27
    %p36 = scmp.eq.s32.totalorder %s19, 1
    %p37 = por %p35, %p36
    %p38 = scmp.ne.s32.totalorder %s27, %s28
    %p39 = scmp.eq.s32.totalorder %s19, 0
    %p40 = por %p38, %p39
    %p41 = scmp.ne.s32.totalorder %s27, %s28
    %p42 = scmp.eq.s32.totalorder %s20, 1
    %p43 = por %p41, %p42
    %p45 = scmp.ne.s32.totalorder %s28, %s44
    %p46 = scmp.eq.s32.totalorder %s20, 0
    %p47 = por %p45, %p46
    %s49 = sadd.s32 %s48, 1
    %p52 = scmp.eq.s32.totalorder %s14, 1
    %p53 = scmp.ne.s32.totalorder %s48, %s50
    %p54 = scmp.eq.s32.totalorder %s14, 0
    %p55 = por %p53, %p54
    %p56 = scmp.ne.s32.totalorder %s48, %s50
    %p57 = scmp.eq.s32.totalorder %s19, 1
    %p58 = por %p56, %p57
    %p59 = scmp.ne.s32.totalorder %s50, %s51
    %p60 = scmp.eq.s32.totalorder %s19, 0
    %p61 = por %p59, %p60
    %p62 = scmp.ne.s32.totalorder %s50, %s51
    %p63 = scmp.eq.s32.totalorder %s20, 1
    %p64 = por %p62, %p63
    %p66 = scmp.ne.s32.totalorder %s51, %s65
    %p67 = scmp.eq.s32.totalorder %s20, 0
    %p68 = por %p66, %p67
    %s70 = sadd.s32 %s69, 1
    %p73 = scmp.eq.s32.totalorder %s14, 1
    %p74 = scmp.ne.s32.totalorder %s69, %s71
    %p75 = scmp.eq.s32.totalorder %s14, 0
    %p76 = por %p74, %p75
    %p77 = scmp.ne.s32.totalorder %s69, %s71
    %p78 = scmp.eq.s32.totalorder %s19, 1
    %p79 = por %p77, %p78
    %p80 = scmp.ne.s32.totalorder %s71, %s72
    %p81 = scmp.eq.s32.totalorder %s19, 0
    %p82 = por %p80, %p81
    %p83 = scmp.ne.s32.totalorder %s71, %s72
    %p84 = scmp.eq.s32.totalorder %s20, 1
    %p85 = por %p83, %p84
    %p87 = scmp.ne.s32.totalorder %s72, %s86
    %p88 = scmp.eq.s32.totalorder %s20, 0
    %p89 = por %p87, %p88
    %s91 = sadd.s32 %s90, 1
    %p94 = scmp.eq.s32.totalorder %s14, 1
    %p95 = scmp.ne.s32.totalorder %s90, %s92
    %p96 = scmp.eq.s32.totalorder %s14, 0
    %p97 = por %p95, %p96
    %p98 = scmp.ne.s32.totalorder %s90, %s92
    %p99 = scmp.eq.s32.totalorder %s19, 1
    %p100 = por %p98, %p99
    %p101 = scmp.ne.s32.totalorder %s92, %s93
    %p102 = scmp.eq.s32.totalorder %s19, 0
    %p103 = por %p101, %p102
    %p104 = scmp.ne.s32.totalorder %s92, %s93
    %p105 = scmp.eq.s32.totalorder %s20, 1
    %p106 = por %p104, %p105
    %p108 = scmp.ne.s32.totalorder %s93, %s107
    %p109 = scmp.eq.s32.totalorder %s20, 0
    %p110 = por %p108, %p109
    %s112 = sadd.s32 %s111, 1
    %p115 = scmp.eq.s32.totalorder %s14, 1
    %p116 = scmp.ne.s32.totalorder %s111, %s113
    %p117 = scmp.eq.s32.totalorder %s14, 0
    %p118 = por %p116, %p117
    %p119 = scmp.ne.s32.totalorder %s111, %s113
    %p120 = scmp.eq.s32.totalorder %s19, 1
    %p121 = por %p119, %p120
    %p122 = scmp.ne.s32.totalorder %s113, %s114
    %p123 = scmp.eq.s32.totalorder %s19, 0
    %p124 = por %p122, %p123
    %p125 = scmp.ne.s32.totalorder %s113, %s114
    %p126 = scmp.eq.s32.totalorder %s20, 1
    %p127 = por %p125, %p126
    %p129 = scmp.ne.s32.totalorder %s114, %s128
    %p130 = scmp.eq.s32.totalorder %s20, 0
    %p131 = por %p129, %p130
    %s133 = sadd.s32 %s132, 1
    %p136 = scmp.eq.s32.totalorder %s14, 1
    %p137 = scmp.ne.s32.totalorder %s132, %s134
    %p138 = scmp.eq.s32.totalorder %s14, 0
    %p139 = por %p137, %p138
    %p140 = scmp.ne.s32.totalorder %s132, %s134
    %p141 = scmp.eq.s32.totalorder %s19, 1
    %p142 = por %p140, %p141
    %p143 = scmp.ne.s32.totalorder %s134, %s135
    %p144 = scmp.eq.s32.totalorder %s19, 0
    %p145 = por %p143, %p144
    %p146 = scmp.ne.s32.totalorder %s134, %s135
    %p147 = scmp.eq.s32.totalorder %s20, 1
    %p148 = por %p146, %p147
    %p150 = scmp.ne.s32.totalorder %s135, %s149
    %p151 = scmp.eq.s32.totalorder %s20, 0
    %p152 = por %p150, %p151
    %s154 = sadd.s32 %s153, 1
    %p157 = scmp.eq.s32.totalorder %s14, 1
    %p158 = scmp.ne.s32.totalorder %s153, %s155
    %p159 = scmp.eq.s32.totalorder %s14, 0
    %p160 = por %p158, %p159
    %p161 = scmp.ne.s32.totalorder %s153, %s155
    %p162 = scmp.eq.s32.totalorder %s19, 1
    %p163 = por %p161, %p162
    %p164 = scmp.ne.s32.totalorder %s155, %s156
    %p165 = scmp.eq.s32.totalorder %s19, 0
    %p166 = por %p164, %p165
    %p167 = scmp.ne.s32.totalorder %s155, %s156
    %p168 = scmp.eq.s32.totalorder %s20, 1
    %p169 = por %p167, %p168
    %p171 = scmp.ne.s32.totalorder %s156, %s170
    %p172 = scmp.eq.s32.totalorder %s20, 0
    %p173 = por %p171, %p172
    %s175 = sadd.s32 %s174, 1
    %p178 = scmp.eq.s32.totalorder %s14, 1
    %p179 = scmp.ne.s32.totalorder %s174, %s176
    %p180 = scmp.eq.s32.totalorder %s14, 0
    %p181 = por %p179, %p180
    %p182 = scmp.ne.s32.totalorder %s174, %s176
    %p183 = scmp.eq.s32.totalorder %s19, 1
    %p184 = por %p182, %p183
    %p185 = scmp.ne.s32.totalorder %s176, %s177
    %p186 = scmp.eq.s32.totalorder %s19, 0
    %p187 = por %p185, %p186
    %p188 = scmp.ne.s32.totalorder %s176, %s177
    %p189 = scmp.eq.s32.totalorder %s20, 1
    %p190 = por %p188, %p189
    %p192 = scmp.ne.s32.totalorder %s177, %s191
    %p193 = scmp.eq.s32.totalorder %s20, 0
    %p194 = por %p192, %p193
    %s195 = ssub.s32 %s14, %s21
    %p196 = scmp.eq.s32.totalorder %s195, 0
    %s198 = sadd.s32 %s197, 1
    %s199 = scalar_select %p196, %s197, %s198
    %p202 = pneg %p196
    %p203 = scmp.eq.s32.totalorder %s14, 1
    %p204 = por %p202, %p203
    %p205 = scmp.ne.s32.totalorder %s197, %s200
    %p206 = scmp.eq.s32.totalorder %s14, 0
    %p207 = por %p205, %p206
    %p208 = scmp.ne.s32.totalorder %s197, %s200
    %p209 = scmp.eq.s32.totalorder %s19, 1
    %p210 = por %p208, %p209
    %p211 = scmp.ne.s32.totalorder %s200, %s201
    %p212 = scmp.eq.s32.totalorder %s19, 0
    %p213 = por %p211, %p212
    %p214 = scmp.ne.s32.totalorder %s200, %s201
    %p215 = scmp.eq.s32.totalorder %s20, 1
    %p216 = por %p214, %p215
    %p218 = scmp.ne.s32.totalorder %s201, %s217
    %p219 = scmp.eq.s32.totalorder %s20, 0
    %p220 = por %p218, %p219
    %p221 = scmp.le.s32.totalorder 1, %s14
    %p222 = scmp.lt.s32.totalorder %s14, 3
    %p223 = pnand %p221, %p222
    %p224 = pneg %p223
    // Predicated region
    $region9: #{forward.7} parent=5 // pred_check
      _
    $region10: #{forward.7} parent=5 // pred_check_branch
      %226 = sbr.rel (%p223) target = $region12
    $region11: #{forward.7} parent=5 // pred_region
      %s227 = ssub.s32 %s14, 1
      // Predicated region
      $region13: #{forward.7} parent=11 // pred_check
        %p228 = pneg %p61
      $region14: #{forward.7} parent=11 // pred_check_branch
        %230 = sbr.rel (%p228) target = $region16
      $region15: #{forward.7} parent=11 // pred_region
        _
      $region16: #{forward.7} parent=11 // pred_fallthru
        _
      // Predicated region
      $region17: #{forward.7} parent=11 // pred_check
        %p231 = pneg %p82
      $region18: #{forward.7} parent=11 // pred_check_branch
        %233 = sbr.rel (%p231) target = $region20
      $region19: #{forward.7} parent=11 // pred_region
        _
      $region20: #{forward.7} parent=11 // pred_fallthru
        _
      // Predicated region
      $region21: #{forward.7} parent=11 // pred_check
        %p234 = pneg %p103
      $region22: #{forward.7} parent=11 // pred_check_branch
        %236 = sbr.rel (%p234) target = $region24
      $region23: #{forward.7} parent=11 // pred_region
        _
      $region24: #{forward.7} parent=11 // pred_fallthru
        _
      // Predicated region
      $region25: #{forward.7} parent=11 // pred_check
        %p237 = pneg %p124
      $region26: #{forward.7} parent=11 // pred_check_branch
        %239 = sbr.rel (%p237) target = $region28
      $region27: #{forward.7} parent=11 // pred_region
        _
      $region28: #{forward.7} parent=11 // pred_fallthru
        _
      // Predicated region
      $region29: #{forward.7} parent=11 // pred_check
        %p240 = pneg %p145
      $region30: #{forward.7} parent=11 // pred_check_branch
        %242 = sbr.rel (%p240) target = $region32
      $region31: #{forward.7} parent=11 // pred_region
        _
      $region32: #{forward.7} parent=11 // pred_fallthru
        _
      // Predicated region
      $region33: #{forward.7} parent=11 // pred_check
        %p243 = pneg %p166
      $region34: #{forward.7} parent=11 // pred_check_branch
        %245 = sbr.rel (%p243) target = $region36
      $region35: #{forward.7} parent=11 // pred_region
        _
      $region36: #{forward.7} parent=11 // pred_fallthru
        _
      // Predicated region
      $region37: #{forward.7} parent=11 // pred_check
        %p246 = pneg %p187
      $region38: #{forward.7} parent=11 // pred_check_branch
        %248 = sbr.rel (%p246) target = $region40
      $region39: #{forward.7} parent=11 // pred_region
        _
      $region40: #{forward.7} parent=11 // pred_fallthru
        _
    $region12: #{forward.7} parent=5 // pred_fallthru
      _
    %p249 = scmp.lt.s32.totalorder %s14, 2
    // Predicated region
    $region41: #{forward.7} parent=5 // pred_check
      %p250 = pneg %p249
    $region42: #{forward.7} parent=5 // pred_check_branch
      %252 = sbr.rel (%p250) target = $region44
    $region43: #{forward.7} parent=5 // pred_region
      // Predicated region
      $region45: #{forward.7} parent=43 // pred_check
        %p253 = pneg %p34
      $region46: #{forward.7} parent=43 // pred_check_branch
        %255 = sbr.rel (%p253) target = $region48
      $region47: #{forward.7} parent=43 // pred_region
        %p256 = scmp.lt.s32.totalorder %s14, 1
        %s257 = scalar_select %p256, %s14, 1
        %s258 = smul.addr %s257, 18
        %s259 = smul.addr %s258, 4
        %s260 = scalar_lea.vmem %s0, %s259
      $region48: #{forward.7} parent=43 // pred_fallthru
        _
    $region44: #{forward.7} parent=5 // pred_fallthru
      _
    %p261 = scmp.le.s32.totalorder 1, %s14
    %p262 = scmp.lt.s32.totalorder %s14, 3
    %p263 = pnand %p261, %p262
    %p264 = pneg %p263
    // Predicated region
    $region49: #{forward.7} parent=5 // pred_check
      _
    $region50: #{forward.7} parent=5 // pred_check_branch
      %266 = sbr.rel (%p263) target = $region52
    $region51: #{forward.7} parent=5 // pred_region
      %s267 = ssub.s32 %s14, 1
      %p268 = scmp.lt.s32.totalorder %s19, 1
      %s269 = scalar_select %p268, %s19, 1
      %s270 = smul.addr %s269, 18
      %s271 = smul.addr %s270, 4
      %s272 = scalar_lea.vmem %s0, %s271
      %p273 = pneg %p40
      %p274 = pneg %p37
      %p275 = pneg %p61
      %p276 = pneg %p58
      %p277 = pneg %p82
      %p278 = pneg %p79
      %p279 = pneg %p103
      %p280 = pneg %p100
      %p281 = pneg %p124
      %p282 = pneg %p121
      %p283 = pneg %p145
      %p284 = pneg %p142
      %p285 = pneg %p166
      %p286 = pneg %p163
      %p287 = pneg %p187
      %p288 = pneg %p184
      %p289 = pneg %p213
      %p290 = pneg %p210
      %p291 = scmp.lt.s32.totalorder %s19, 1
      %s292 = scalar_select %p291, %s19, 1
      %s293 = smul.addr %s292, 2
      %s294 = smul.addr %s293, 4
      %s295 = scalar_lea.vmem %s8, %s294
      %p296 = scmp.lt.s32.totalorder %s19, 1
      %s297 = scalar_select %p296, %s19, 1
      %s298 = smul.addr %s297, 18
      %s299 = smul.addr %s298, 4
      %s300 = scalar_lea.vmem %s0, %s299
      %p301 = scmp.lt.s32.totalorder %s19, 1
      %s302 = scalar_select %p301, %s19, 1
      %s303 = smul.addr %s302, 2
      %s304 = smul.addr %s303, 4
      %s305 = scalar_lea.vmem %s8, %s304
      %v306 = vld [vmem:[%s4] sm:$0x1]
      %v307 = vld [vmem:[%s4 + $0x1] sm:$0x1]
      %v308 = vld [vmem:[%s4 + $0x2] sm:$0x1]
      %v309 = vld [vmem:[%s4 + $0x3] sm:$0x1]
      %v310 = vld [vmem:[%s4 + $0x4] sm:$0x1]
      %v311 = vld [vmem:[%s4 + $0x5] sm:$0x1]
      %v312 = vld [vmem:[%s4 + $0x6] sm:$0x1]
      %v313 = vld [vmem:[%s4 + $0x7] sm:$0x1]
      %v314 = vld [vmem:[%s4 + $0x8] sm:$0x1]
      %v315 = vld [vmem:[%s2] sm:$0xf]
      %v316 = vld [vmem:[%s2 + $0x4] sm:$0xf]
      %v317 = vld [vmem:[%s2 + $0x8] sm:$0xf]
      %v318 = vld [vmem:[%s2 + $0xc] sm:$0xf]
      %v319 = vld [vmem:[%s2 + $0x10] sm:$0xf]
      %v320 = vld [vmem:[%s2 + $0x14] sm:$0xf]
      %v321 = vld [vmem:[%s2 + $0x18] sm:$0xf]
      %v322 = vld [vmem:[%s2 + $0x1c] sm:$0xf]
      %v323 = vld [vmem:[%s2 + $0x20] sm:$0xf]
      %v324 = vld [vmem:[%s2 + $0x24] sm:$0xf]
      %v325 = vld [vmem:[%s2 + $0x28] sm:$0xf]
      %v326 = vld [vmem:[%s2 + $0x2c] sm:$0xf]
      %v327 = vld [vmem:[%s2 + $0x30] sm:$0xf]
      %v328 = vld [vmem:[%s2 + $0x34] sm:$0xf]
      %v329 = vld [vmem:[%s2 + $0x38] sm:$0xf]
      %v330 = vld [vmem:[%s2 + $0x3c] sm:$0xf]
      %v331 = vld [vmem:[%s3] sm:$0x1]
      %v332 = vld [vmem:[%s1] sm:$0xff]
      %v333 = vld [vmem:[%s1 + $0x8] sm:$0xff]
      %v334 = vld [vmem:[%s1 + $0x10] sm:$0xff]
      %v335 = vld [vmem:[%s1 + $0x18] sm:$0xff]
      %v336 = vld [vmem:[%s1 + $0x20] sm:$0xff]
      %v337 = vld [vmem:[%s1 + $0x28] sm:$0xff]
      %v338 = vld [vmem:[%s1 + $0x30] sm:$0xff]
      %v339 = vld [vmem:[%s1 + $0x38] sm:$0xff]
      %v340 = vld [vmem:[%s1 + $0x40] sm:$0xff]
      %v341 = vld [vmem:[%s1 + $0x48] sm:$0xff]
      %v342 = vld [vmem:[%s1 + $0x50] sm:$0xff]
      %v343 = vld [vmem:[%s1 + $0x58] sm:$0xff]
      %v344 = vld [vmem:[%s1 + $0x60] sm:$0xff]
      %v345 = vld [vmem:[%s1 + $0x68] sm:$0xff]
      %v346 = vld [vmem:[%s1 + $0x70] sm:$0xff]
      %v347 = vld [vmem:[%s1 + $0x78] sm:$0xff]
      %v348 = vld [vmem:[%s1 + $0x80] sm:$0xff]
      %v349 = vld [vmem:[%s1 + $0x88] sm:$0xff]
      %v350 = vld [vmem:[%s300] sm:$0xf]
      %v351 = vld [vmem:[%s300 + $0x4] sm:$0xf]
      %v353 = vperm.slane %v331, 0
      %v357 = vunpack.c.l.b16 %v350
      %v358 = vunpack.c.l.b16 %v351
      %v359 = vpack.c.b16 %v358, %v357
      %v377 = vunpack.c.l.b16 %v315
      %v378 = vunpack.c.l.b16 %v316
      %v379 = vunpack.c.l.b16 %v317
      %v380 = vunpack.c.l.b16 %v318
      %v381 = vunpack.c.l.b16 %v319
      %v382 = vunpack.c.l.b16 %v320
      %v383 = vunpack.c.l.b16 %v321
      %v384 = vunpack.c.l.b16 %v322
      %v385 = vunpack.c.l.b16 %v323
      %v386 = vunpack.c.l.b16 %v324
      %v387 = vunpack.c.l.b16 %v325
      %v388 = vunpack.c.l.b16 %v326
      %v389 = vunpack.c.l.b16 %v327
      %v390 = vunpack.c.l.b16 %v328
      %v391 = vunpack.c.l.b16 %v329
      %v392 = vunpack.c.l.b16 %v330
      %v393 = vpack.c.b16 %v378, %v377
      %v394 = vpack.c.b16 %v380, %v379
      %v395 = vpack.c.b16 %v382, %v381
      %v396 = vpack.c.b16 %v384, %v383
      %v397 = vpack.c.b16 %v386, %v385
      %v398 = vpack.c.b16 %v388, %v387
      %v399 = vpack.c.b16 %v390, %v389
      %v400 = vpack.c.b16 %v392, %v391
      %409 = vmatpush.bf16.msra.mxu0 %v400
      %410 = vmatpush.bf16.msra.mxu0 %v399
      %411 = vmatpush.bf16.msra.mxu0 %v398
      %412 = vmatpush.bf16.msra.mxu0 %v397
      %413 = vmatpush.bf16.msra.mxu0 %v396
      %414 = vmatpush.bf16.msra.mxu0 %v395
      %415 = vmatpush.bf16.msra.mxu0 %v394
      %416 = vmatpush.bf16.msra.mxu0 %v393
      %417 = vmatmul.bf16.gmra.mxu0 %v359
      %v418 = vpop.f32.mrf.mxu0
      %v419 = vadd.f32 %v353, %v418
      %v420 = vpop.f32.mrf.mxu0
      %v421 = vadd.f32 %v353, %v420
      %422 = vdwg.mxu0
      %v423 = vmax.f32 %v419, 0.0
      %v424 = vmax.f32 %v421, 0.0
      %426 = vset.pattern.permute.xlu0 0
      %427 = vperm.xlu0 %426, %v332
      %v428 = vpop.permute.xlu0 %427
      %431 = vset.pattern.permute.xlu0 0
      %432 = vperm.xlu0 %431, %v333
      %v433 = vpop.permute.xlu0 %432
      %v435 = vmul.f32 %v423, %v428
      %v436 = vmul.f32 %v424, %v433
      %v438 = vperm.slane %v306, 0
      %v440 = vmul.f32 %v435, %v438
      %v441 = vmul.f32 %v436, %v438
      %v442 = vadd.f32 %v440, 0.0
      %v443 = vadd.f32 %v441, 0.0
      %s444 = scalar_lea.vmem %s300, 8
      %v445 = vld [vmem:[%s444] sm:$0xf]
      %v446 = vld [vmem:[%s444 + $0x4] sm:$0xf]
      %v449 = vunpack.c.l.b16 %v445
      %v450 = vunpack.c.l.b16 %v446
      %v451 = vpack.c.b16 %v450, %v449
      %453 = vmatpush.bf16.msra.mxu0 %v400
      %454 = vmatpush.bf16.msra.mxu0 %v399
      %455 = vmatpush.bf16.msra.mxu0 %v398
      %456 = vmatpush.bf16.msra.mxu0 %v397
      %457 = vmatpush.bf16.msra.mxu0 %v396
      %458 = vmatpush.bf16.msra.mxu0 %v395
      %459 = vmatpush.bf16.msra.mxu0 %v394
      %460 = vmatpush.bf16.msra.mxu0 %v393
      %461 = vmatmul.bf16.gmra.mxu0 %v451
      %v462 = vpop.f32.mrf.mxu0
      %v463 = vadd.f32 %v353, %v462
      %v464 = vpop.f32.mrf.mxu0
      %v465 = vadd.f32 %v353, %v464
      %466 = vdwg.mxu0
      %v467 = vmax.f32 %v463, 0.0
      %v468 = vmax.f32 %v465, 0.0
      %470 = vset.pattern.permute.xlu0 0
      %471 = vperm.xlu0 %470, %v334
      %v472 = vpop.permute.xlu0 %471
      %475 = vset.pattern.permute.xlu0 0
      %476 = vperm.xlu0 %475, %v335
      %v477 = vpop.permute.xlu0 %476
      %v479 = vmul.f32 %v467, %v472
      %v480 = vmul.f32 %v468, %v477
      %v482 = vperm.slane %v307, 0
      %v484 = vmul.f32 %v479, %v482
      %v485 = vmul.f32 %v480, %v482
      %v486 = vadd.f32 %v442, %v484
      %v487 = vadd.f32 %v443, %v485
      %s488 = scalar_lea.vmem %s300, 16
      %v489 = vld [vmem:[%s488] sm:$0xf]
      %v490 = vld [vmem:[%s488 + $0x4] sm:$0xf]
      %v493 = vunpack.c.l.b16 %v489
      %v494 = vunpack.c.l.b16 %v490
      %v495 = vpack.c.b16 %v494, %v493
      %497 = vmatpush.bf16.msra.mxu0 %v400
      %498 = vmatpush.bf16.msra.mxu0 %v399
      %499 = vmatpush.bf16.msra.mxu0 %v398
      %500 = vmatpush.bf16.msra.mxu0 %v397
      %501 = vmatpush.bf16.msra.mxu0 %v396
      %502 = vmatpush.bf16.msra.mxu0 %v395
      %503 = vmatpush.bf16.msra.mxu0 %v394
      %504 = vmatpush.bf16.msra.mxu0 %v393
      %505 = vmatmul.bf16.gmra.mxu0 %v495
      %v506 = vpop.f32.mrf.mxu0
      %v507 = vadd.f32 %v353, %v506
      %v508 = vpop.f32.mrf.mxu0
      %v509 = vadd.f32 %v353, %v508
      %510 = vdwg.mxu0
      %v511 = vmax.f32 %v507, 0.0
      %v512 = vmax.f32 %v509, 0.0
      %514 = vset.pattern.permute.xlu0 0
      %515 = vperm.xlu0 %514, %v336
      %v516 = vpop.permute.xlu0 %515
      %519 = vset.pattern.permute.xlu0 0
      %520 = vperm.xlu0 %519, %v337
      %v521 = vpop.permute.xlu0 %520
      %v523 = vmul.f32 %v511, %v516
      %v524 = vmul.f32 %v512, %v521
      %v526 = vperm.slane %v308, 0
      %v528 = vmul.f32 %v523, %v526
      %v529 = vmul.f32 %v524, %v526
      %v530 = vadd.f32 %v486, %v528
      %v531 = vadd.f32 %v487, %v529
      %s532 = scalar_lea.vmem %s300, 24
      %v533 = vld [vmem:[%s532] sm:$0xf]
      %v534 = vld [vmem:[%s532 + $0x4] sm:$0xf]
      %v537 = vunpack.c.l.b16 %v533
      %v538 = vunpack.c.l.b16 %v534
      %v539 = vpack.c.b16 %v538, %v537
      %541 = vmatpush.bf16.msra.mxu0 %v400
      %542 = vmatpush.bf16.msra.mxu0 %v399
      %543 = vmatpush.bf16.msra.mxu0 %v398
      %544 = vmatpush.bf16.msra.mxu0 %v397
      %545 = vmatpush.bf16.msra.mxu0 %v396
      %546 = vmatpush.bf16.msra.mxu0 %v395
      %547 = vmatpush.bf16.msra.mxu0 %v394
      %548 = vmatpush.bf16.msra.mxu0 %v393
      %549 = vmatmul.bf16.gmra.mxu0 %v539
      %v550 = vpop.f32.mrf.mxu0
      %v551 = vadd.f32 %v353, %v550
      %v552 = vpop.f32.mrf.mxu0
      %v553 = vadd.f32 %v353, %v552
      %554 = vdwg.mxu0
      %v555 = vmax.f32 %v551, 0.0
      %v556 = vmax.f32 %v553, 0.0
      %558 = vset.pattern.permute.xlu0 0
      %559 = vperm.xlu0 %558, %v338
      %v560 = vpop.permute.xlu0 %559
      %563 = vset.pattern.permute.xlu0 0
      %564 = vperm.xlu0 %563, %v339
      %v565 = vpop.permute.xlu0 %564
      %v567 = vmul.f32 %v555, %v560
      %v568 = vmul.f32 %v556, %v565
      %v570 = vperm.slane %v309, 0
      %v572 = vmul.f32 %v567, %v570
      %v573 = vmul.f32 %v568, %v570
      %v574 = vadd.f32 %v530, %v572
      %v575 = vadd.f32 %v531, %v573
      %s576 = scalar_lea.vmem %s300, 32
      %v577 = vld [vmem:[%s576] sm:$0xf]
      %v578 = vld [vmem:[%s576 + $0x4] sm:$0xf]
      %v581 = vunpack.c.l.b16 %v577
      %v582 = vunpack.c.l.b16 %v578
      %v583 = vpack.c.b16 %v582, %v581
      %585 = vmatpush.bf16.msra.mxu0 %v400
      %586 = vmatpush.bf16.msra.mxu0 %v399
      %587 = vmatpush.bf16.msra.mxu0 %v398
      %588 = vmatpush.bf16.msra.mxu0 %v397
      %589 = vmatpush.bf16.msra.mxu0 %v396
      %590 = vmatpush.bf16.msra.mxu0 %v395
      %591 = vmatpush.bf16.msra.mxu0 %v394
      %592 = vmatpush.bf16.msra.mxu0 %v393
      %593 = vmatmul.bf16.gmra.mxu0 %v583
      %v594 = vpop.f32.mrf.mxu0
      %v595 = vadd.f32 %v353, %v594
      %v596 = vpop.f32.mrf.mxu0
      %v597 = vadd.f32 %v353, %v596
      %598 = vdwg.mxu0
      %v599 = vmax.f32 %v595, 0.0
      %v600 = vmax.f32 %v597, 0.0
      %602 = vset.pattern.permute.xlu0 0
      %603 = vperm.xlu0 %602, %v340
      %v604 = vpop.permute.xlu0 %603
      %607 = vset.pattern.permute.xlu0 0
      %608 = vperm.xlu0 %607, %v341
      %v609 = vpop.permute.xlu0 %608
      %v611 = vmul.f32 %v599, %v604
      %v612 = vmul.f32 %v600, %v609
      %v614 = vperm.slane %v310, 0
      %v616 = vmul.f32 %v611, %v614
      %v617 = vmul.f32 %v612, %v614
      %v618 = vadd.f32 %v574, %v616
      %v619 = vadd.f32 %v575, %v617
      %s620 = scalar_lea.vmem %s300, 40
      %v621 = vld [vmem:[%s620] sm:$0xf]
      %v622 = vld [vmem:[%s620 + $0x4] sm:$0xf]
      %v625 = vunpack.c.l.b16 %v621
      %v626 = vunpack.c.l.b16 %v622
      %v627 = vpack.c.b16 %v626, %v625
      %629 = vmatpush.bf16.msra.mxu0 %v400
      %630 = vmatpush.bf16.msra.mxu0 %v399
      %631 = vmatpush.bf16.msra.mxu0 %v398
      %632 = vmatpush.bf16.msra.mxu0 %v397
      %633 = vmatpush.bf16.msra.mxu0 %v396
      %634 = vmatpush.bf16.msra.mxu0 %v395
      %635 = vmatpush.bf16.msra.mxu0 %v394
      %636 = vmatpush.bf16.msra.mxu0 %v393
      %637 = vmatmul.bf16.gmra.mxu0 %v627
      %v638 = vpop.f32.mrf.mxu0
      %v639 = vadd.f32 %v353, %v638
      %v640 = vpop.f32.mrf.mxu0
      %v641 = vadd.f32 %v353, %v640
      %642 = vdwg.mxu0
      %v643 = vmax.f32 %v639, 0.0
      %v644 = vmax.f32 %v641, 0.0
      %646 = vset.pattern.permute.xlu0 0
      %647 = vperm.xlu0 %646, %v342
      %v648 = vpop.permute.xlu0 %647
      %651 = vset.pattern.permute.xlu0 0
      %652 = vperm.xlu0 %651, %v343
      %v653 = vpop.permute.xlu0 %652
      %v655 = vmul.f32 %v643, %v648
      %v656 = vmul.f32 %v644, %v653
      %v658 = vperm.slane %v311, 0
      %v660 = vmul.f32 %v655, %v658
      %v661 = vmul.f32 %v656, %v658
      %v662 = vadd.f32 %v618, %v660
      %v663 = vadd.f32 %v619, %v661
      %s664 = scalar_lea.vmem %s300, 48
      %v665 = vld [vmem:[%s664] sm:$0xf]
      %v666 = vld [vmem:[%s664 + $0x4] sm:$0xf]
      %v669 = vunpack.c.l.b16 %v665
      %v670 = vunpack.c.l.b16 %v666
      %v671 = vpack.c.b16 %v670, %v669
      %673 = vmatpush.bf16.msra.mxu0 %v400
      %674 = vmatpush.bf16.msra.mxu0 %v399
      %675 = vmatpush.bf16.msra.mxu0 %v398
      %676 = vmatpush.bf16.msra.mxu0 %v397
      %677 = vmatpush.bf16.msra.mxu0 %v396
      %678 = vmatpush.bf16.msra.mxu0 %v395
      %679 = vmatpush.bf16.msra.mxu0 %v394
      %680 = vmatpush.bf16.msra.mxu0 %v393
      %681 = vmatmul.bf16.gmra.mxu0 %v671
      %v682 = vpop.f32.mrf.mxu0
      %v683 = vadd.f32 %v353, %v682
      %v684 = vpop.f32.mrf.mxu0
      %v685 = vadd.f32 %v353, %v684
      %686 = vdwg.mxu0
      %v687 = vmax.f32 %v683, 0.0
      %v688 = vmax.f32 %v685, 0.0
      %690 = vset.pattern.permute.xlu0 0
      %691 = vperm.xlu0 %690, %v344
      %v692 = vpop.permute.xlu0 %691
      %695 = vset.pattern.permute.xlu0 0
      %696 = vperm.xlu0 %695, %v345
      %v697 = vpop.permute.xlu0 %696
      %v699 = vmul.f32 %v687, %v692
      %v700 = vmul.f32 %v688, %v697
      %v702 = vperm.slane %v312, 0
      %v704 = vmul.f32 %v699, %v702
      %v705 = vmul.f32 %v700, %v702
      %v706 = vadd.f32 %v662, %v704
      %v707 = vadd.f32 %v663, %v705
      %s708 = scalar_lea.vmem %s300, 56
      %v709 = vld [vmem:[%s708] sm:$0xf]
      %v710 = vld [vmem:[%s708 + $0x4] sm:$0xf]
      %v713 = vunpack.c.l.b16 %v709
      %v714 = vunpack.c.l.b16 %v710
      %v715 = vpack.c.b16 %v714, %v713
      %717 = vmatpush.bf16.msra.mxu0 %v400
      %718 = vmatpush.bf16.msra.mxu0 %v399
      %719 = vmatpush.bf16.msra.mxu0 %v398
      %720 = vmatpush.bf16.msra.mxu0 %v397
      %721 = vmatpush.bf16.msra.mxu0 %v396
      %722 = vmatpush.bf16.msra.mxu0 %v395
      %723 = vmatpush.bf16.msra.mxu0 %v394
      %724 = vmatpush.bf16.msra.mxu0 %v393
      %725 = vmatmul.bf16.gmra.mxu0 %v715
      %v726 = vpop.f32.mrf.mxu0
      %v727 = vadd.f32 %v353, %v726
      %v728 = vpop.f32.mrf.mxu0
      %v729 = vadd.f32 %v353, %v728
      %730 = vdwg.mxu0
      %v731 = vmax.f32 %v727, 0.0
      %v732 = vmax.f32 %v729, 0.0
      %734 = vset.pattern.permute.xlu0 0
      %735 = vperm.xlu0 %734, %v346
      %v736 = vpop.permute.xlu0 %735
      %739 = vset.pattern.permute.xlu0 0
      %740 = vperm.xlu0 %739, %v347
      %v741 = vpop.permute.xlu0 %740
      %v743 = vmul.f32 %v731, %v736
      %v744 = vmul.f32 %v732, %v741
      %v746 = vperm.slane %v313, 0
      %v748 = vmul.f32 %v743, %v746
      %v749 = vmul.f32 %v744, %v746
      %v750 = vadd.f32 %v706, %v748
      %v751 = vadd.f32 %v707, %v749
      %s752 = scalar_lea.vmem %s300, 64
      %v753 = vld [vmem:[%s752] sm:$0xf]
      %v754 = vld [vmem:[%s752 + $0x4] sm:$0xf]
      %v757 = vunpack.c.l.b16 %v753
      %v758 = vunpack.c.l.b16 %v754
      %v759 = vpack.c.b16 %v758, %v757
      %761 = vmatpush.bf16.msra.mxu0 %v400
      %762 = vmatpush.bf16.msra.mxu0 %v399
      %763 = vmatpush.bf16.msra.mxu0 %v398
      %764 = vmatpush.bf16.msra.mxu0 %v397
      %765 = vmatpush.bf16.msra.mxu0 %v396
      %766 = vmatpush.bf16.msra.mxu0 %v395
      %767 = vmatpush.bf16.msra.mxu0 %v394
      %768 = vmatpush.bf16.msra.mxu0 %v393
      %769 = vmatmul.bf16.gmra.mxu0 %v759
      %v770 = vpop.f32.mrf.mxu0
      %v771 = vadd.f32 %v353, %v770
      %v772 = vpop.f32.mrf.mxu0
      %v773 = vadd.f32 %v353, %v772
      %774 = vdwg.mxu0
      %v775 = vmax.f32 %v771, 0.0
      %v776 = vmax.f32 %v773, 0.0
      %778 = vset.pattern.permute.xlu0 0
      %779 = vperm.xlu0 %778, %v348
      %v780 = vpop.permute.xlu0 %779
      %783 = vset.pattern.permute.xlu0 0
      %784 = vperm.xlu0 %783, %v349
      %v785 = vpop.permute.xlu0 %784
      %v787 = vmul.f32 %v775, %v780
      %v788 = vmul.f32 %v776, %v785
      %v790 = vperm.slane %v314, 0
      %v792 = vmul.f32 %v787, %v790
      %v793 = vmul.f32 %v788, %v790
      %v794 = vadd.f32 %v750, %v792
      %v795 = vadd.f32 %v751, %v793
      %v796 = vld [vmem:[%s5] sm:$0x1]
      %v798 = vperm.slane %v796, 0
      %v800 = vadd.f32 %v794, %v798
      %v801 = vadd.f32 %v795, %v798
      %v802 = vmax.f32 %v800, 0.0
      %v803 = vmax.f32 %v801, 0.0
      %v804 = vpack.c.bf16 %v803, %v802
      %v805 = vld [vmem:[%s6] sm:$0xf]
      %v806 = vld [vmem:[%s6 + $0x4] sm:$0xf]
      %v807 = vld [vmem:[%s6 + $0x8] sm:$0xf]
      %v808 = vld [vmem:[%s6 + $0xc] sm:$0xf]
      %v809 = vld [vmem:[%s6 + $0x10] sm:$0xf]
      %v810 = vld [vmem:[%s6 + $0x14] sm:$0xf]
      %v811 = vld [vmem:[%s6 + $0x18] sm:$0xf]
      %v812 = vld [vmem:[%s6 + $0x1c] sm:$0xf]
      %v813 = vld [vmem:[%s6 + $0x20] sm:$0xf]
      %v814 = vld [vmem:[%s6 + $0x24] sm:$0xf]
      %v815 = vld [vmem:[%s6 + $0x28] sm:$0xf]
      %v816 = vld [vmem:[%s6 + $0x2c] sm:$0xf]
      %v817 = vld [vmem:[%s6 + $0x30] sm:$0xf]
      %v818 = vld [vmem:[%s6 + $0x34] sm:$0xf]
      %v819 = vld [vmem:[%s6 + $0x38] sm:$0xf]
      %v820 = vld [vmem:[%s6 + $0x3c] sm:$0xf]
      %v821 = vld [vmem:[%s7] sm:$0x1]
      %v823 = vperm.slane %v821, 0
      %v841 = vunpack.c.l.b16 %v805
      %v842 = vunpack.c.l.b16 %v806
      %v843 = vunpack.c.l.b16 %v807
      %v844 = vunpack.c.l.b16 %v808
      %v845 = vunpack.c.l.b16 %v809
      %v846 = vunpack.c.l.b16 %v810
      %v847 = vunpack.c.l.b16 %v811
      %v848 = vunpack.c.l.b16 %v812
      %v849 = vunpack.c.l.b16 %v813
      %v850 = vunpack.c.l.b16 %v814
      %v851 = vunpack.c.l.b16 %v815
      %v852 = vunpack.c.l.b16 %v816
      %v853 = vunpack.c.l.b16 %v817
      %v854 = vunpack.c.l.b16 %v818
      %v855 = vunpack.c.l.b16 %v819
      %v856 = vunpack.c.l.b16 %v820
      %v857 = vpack.c.b16 %v842, %v841
      %v858 = vpack.c.b16 %v844, %v843
      %v859 = vpack.c.b16 %v846, %v845
      %v860 = vpack.c.b16 %v848, %v847
      %v861 = vpack.c.b16 %v850, %v849
      %v862 = vpack.c.b16 %v852, %v851
      %v863 = vpack.c.b16 %v854, %v853
      %v864 = vpack.c.b16 %v856, %v855
      %873 = vmatpush.bf16.msra.mxu0 %v864
      %874 = vmatpush.bf16.msra.mxu0 %v863
      %875 = vmatpush.bf16.msra.mxu0 %v862
      %876 = vmatpush.bf16.msra.mxu0 %v861
      %877 = vmatpush.bf16.msra.mxu0 %v860
      %878 = vmatpush.bf16.msra.mxu0 %v859
      %879 = vmatpush.bf16.msra.mxu0 %v858
      %880 = vmatpush.bf16.msra.mxu0 %v857
      %881 = vmatmul.bf16.gmra.mxu0 %v804
      %v882 = vpop.f32.mrf.mxu0
      %v883 = vadd.f32 %v823, %v882
      %v884 = vpop.f32.mrf.mxu0
      %v885 = vadd.f32 %v823, %v884
      %886 = vdwg.mxu0
      %v887 = vpack.c.bf16 %v883, %v883
      %v888 = vpack.c.bf16 %v885, %v885
      %889 = vst [vmem:[%s305] sm:$0xf] %v887
      %890 = vst [vmem:[%s305 + $0x4] sm:$0xf] %v888
      %p891 = scmp.lt.s32.totalorder %s19, 1
      %s892 = scalar_select %p891, %s19, 1
      %s893 = smul.addr %s892, 2
      %s894 = smul.addr %s893, 4
      %s895 = scalar_lea.vmem %s8, %s894
      // Predicated region
      $region53: #{forward.7} parent=51 // pred_check
        %p896 = pneg %p210
      $region54: #{forward.7} parent=51 // pred_check_branch
        %898 = sbr.rel (%p896) target = $region56
      $region55: #{forward.7} parent=51 // pred_region
        _
      $region56: #{forward.7} parent=51 // pred_fallthru
        _
    $region52: #{forward.7} parent=5 // pred_fallthru
      _
    %p899 = scmp.le.s32.totalorder 2, %s14
    // Predicated region
    $region57: #{forward.7} parent=5 // pred_check
      %p900 = pneg %p899
    $region58: #{forward.7} parent=5 // pred_check_branch
      %902 = sbr.rel (%p900) target = $region60
    $region59: #{forward.7} parent=5 // pred_region
      %s903 = ssub.s32 %s14, 2
      // Predicated region
      $region61: #{forward.7} parent=59 // pred_check
        %p904 = pneg %p216
      $region62: #{forward.7} parent=59 // pred_check_branch
        %906 = sbr.rel (%p904) target = $region64
      $region63: #{forward.7} parent=59 // pred_region
        %p907 = scmp.lt.s32.totalorder %s20, 1
        %s908 = scalar_select %p907, %s20, 1
        %s909 = smul.addr %s908, 2
        %s910 = smul.addr %s909, 4
        %s911 = scalar_lea.vmem %s8, %s910
      $region64: #{forward.7} parent=59 // pred_fallthru
        _
    $region60: #{forward.7} parent=5 // pred_fallthru
      _
  $region6: #{forward.7} parent=0 // loop_footer
    %s18 = sadd.s32 1, %s14
  $region7: #{forward.7} parent=0 // loop_footer_branch
    %13 = sbr.rel target = $region3
  $region8: #{forward.7} parent=0 // loop_exit
    _

// kernel: forward.9
$region0: #{forward.9}
  #allocation0 [shape = 'u32[]', space=smem, size = 0x4, offset = 0x4, fixed_abs, tag = 'smem constant byte address 0x4 - core index']
  #allocation1 [shape = 'u32[72,128]{1,0:T(1,128)}', space=vmem, size = 0x9000, scoped, tag = 'internal scratch']
  %s0 = inlined_call_operand.vmem [shape: bf16[2,16,128], index: 0, kind: input, shape index: {}]
  %s1 = inlined_call_operand.vmem [shape: bf16[128,256], index: 1, kind: input, shape index: {}]
  %s2 = inlined_call_operand.vmem [shape: f32[1,256], index: 2, kind: input, shape index: {}]
  %s3 = inlined_call_operand.vmem [shape: bf16[256,896], index: 3, kind: input, shape index: {}]
  %s4 = inlined_call_operand.vmem [shape: f32[1,896], index: 4, kind: input, shape index: {}]
  %s5 = inlined_call_operand.vmem [shape: bf16[896,256], index: 5, kind: input, shape index: {}]
  %s6 = inlined_call_operand.vmem [shape: f32[1,256], index: 6, kind: input, shape index: {}]
  %s7 = inlined_call_operand.vmem [shape: f32[2,1,256], index: 7, kind: output, shape index: {}]
  %s8 = sld [smem:[#allocation0]]
  $region61: #{forward.9} parent=0
    _
  %s10 = ssub.s32 1, %s8
  %s11 = scalar_select 0, %s10, %s8
  loop: start=0, step=1, limit=4
  $region2: #{forward.9} parent=0 // loop_pre_header
    _
  $region3: #{forward.9} parent=0 // loop_header
    %s13 = sphi 0, %s17
    %p14 = scmp.ge.s32.totalorder %s13, 4
    %s23 = sphi 0, %s25
    %s26 = sphi 0, %s23
    %s27 = sphi 0, %s26
    %s43 = sphi 0, %s27
    %s47 = sphi 0, %s47
    %s49 = sphi 0, %s47
    %s50 = sphi 0, %s49
    %s64 = sphi 0, %s50
    %s68 = sphi 0, %s68
    %s70 = sphi 0, %s68
    %s71 = sphi 0, %s70
    %s85 = sphi 0, %s71
    %s89 = sphi 0, %s89
    %s91 = sphi 0, %s89
    %s92 = sphi 0, %s91
    %s106 = sphi 0, %s92
    %s110 = sphi 0, %s110
    %s112 = sphi 0, %s110
    %s113 = sphi 0, %s112
    %s127 = sphi 0, %s113
    %s131 = sphi 0, %s131
    %s133 = sphi 0, %s131
    %s134 = sphi 0, %s133
    %s148 = sphi 0, %s134
    %s152 = sphi 0, %s152
    %s154 = sphi 0, %s152
    %s155 = sphi 0, %s154
    %s169 = sphi 0, %s155
    %s175 = sphi 0, %s177
    %s178 = sphi 0, %s175
    %s179 = sphi 0, %s178
    %s195 = sphi 0, %s179
  $region4: #{forward.9} parent=0 // loop_header_branch
    %16 = sbr.rel (%p14) target = $region8
  $region5: #{forward.9} parent=0 // loop_body
    %s18 = ssub.s32 %s13, 1
    %s19 = ssub.s32 %s13, 2
    %s20 = sadd.s32 %s13, 1
    %s21 = ssub.s32 %s13, %s20
    %p22 = scmp.eq.s32.totalorder %s21, 0
    %s24 = sadd.s32 %s23, 1
    %s25 = scalar_select %p22, %s23, %s24
    %p28 = pneg %p22
    %p29 = scmp.eq.s32.totalorder %s13, 1
    %p30 = por %p28, %p29
    %p31 = scmp.ne.s32.totalorder %s23, %s26
    %p32 = scmp.eq.s32.totalorder %s13, 0
    %p33 = por %p31, %p32
    %p34 = scmp.ne.s32.totalorder %s23, %s26
    %p35 = scmp.eq.s32.totalorder %s18, 1
    %p36 = por %p34, %p35
    %p37 = scmp.ne.s32.totalorder %s26, %s27
    %p38 = scmp.eq.s32.totalorder %s18, 0
    %p39 = por %p37, %p38
    %p40 = scmp.ne.s32.totalorder %s26, %s27
    %p41 = scmp.eq.s32.totalorder %s19, 1
    %p42 = por %p40, %p41
    %p44 = scmp.ne.s32.totalorder %s27, %s43
    %p45 = scmp.eq.s32.totalorder %s19, 0
    %p46 = por %p44, %p45
    %s48 = sadd.s32 %s47, 1
    %p51 = scmp.eq.s32.totalorder %s13, 1
    %p52 = scmp.ne.s32.totalorder %s47, %s49
    %p53 = scmp.eq.s32.totalorder %s13, 0
    %p54 = por %p52, %p53
    %p55 = scmp.ne.s32.totalorder %s47, %s49
    %p56 = scmp.eq.s32.totalorder %s18, 1
    %p57 = por %p55, %p56
    %p58 = scmp.ne.s32.totalorder %s49, %s50
    %p59 = scmp.eq.s32.totalorder %s18, 0
    %p60 = por %p58, %p59
    %p61 = scmp.ne.s32.totalorder %s49, %s50
    %p62 = scmp.eq.s32.totalorder %s19, 1
    %p63 = por %p61, %p62
    %p65 = scmp.ne.s32.totalorder %s50, %s64
    %p66 = scmp.eq.s32.totalorder %s19, 0
    %p67 = por %p65, %p66
    %s69 = sadd.s32 %s68, 1
    %p72 = scmp.eq.s32.totalorder %s13, 1
    %p73 = scmp.ne.s32.totalorder %s68, %s70
    %p74 = scmp.eq.s32.totalorder %s13, 0
    %p75 = por %p73, %p74
    %p76 = scmp.ne.s32.totalorder %s68, %s70
    %p77 = scmp.eq.s32.totalorder %s18, 1
    %p78 = por %p76, %p77
    %p79 = scmp.ne.s32.totalorder %s70, %s71
    %p80 = scmp.eq.s32.totalorder %s18, 0
    %p81 = por %p79, %p80
    %p82 = scmp.ne.s32.totalorder %s70, %s71
    %p83 = scmp.eq.s32.totalorder %s19, 1
    %p84 = por %p82, %p83
    %p86 = scmp.ne.s32.totalorder %s71, %s85
    %p87 = scmp.eq.s32.totalorder %s19, 0
    %p88 = por %p86, %p87
    %s90 = sadd.s32 %s89, 1
    %p93 = scmp.eq.s32.totalorder %s13, 1
    %p94 = scmp.ne.s32.totalorder %s89, %s91
    %p95 = scmp.eq.s32.totalorder %s13, 0
    %p96 = por %p94, %p95
    %p97 = scmp.ne.s32.totalorder %s89, %s91
    %p98 = scmp.eq.s32.totalorder %s18, 1
    %p99 = por %p97, %p98
    %p100 = scmp.ne.s32.totalorder %s91, %s92
    %p101 = scmp.eq.s32.totalorder %s18, 0
    %p102 = por %p100, %p101
    %p103 = scmp.ne.s32.totalorder %s91, %s92
    %p104 = scmp.eq.s32.totalorder %s19, 1
    %p105 = por %p103, %p104
    %p107 = scmp.ne.s32.totalorder %s92, %s106
    %p108 = scmp.eq.s32.totalorder %s19, 0
    %p109 = por %p107, %p108
    %s111 = sadd.s32 %s110, 1
    %p114 = scmp.eq.s32.totalorder %s13, 1
    %p115 = scmp.ne.s32.totalorder %s110, %s112
    %p116 = scmp.eq.s32.totalorder %s13, 0
    %p117 = por %p115, %p116
    %p118 = scmp.ne.s32.totalorder %s110, %s112
    %p119 = scmp.eq.s32.totalorder %s18, 1
    %p120 = por %p118, %p119
    %p121 = scmp.ne.s32.totalorder %s112, %s113
    %p122 = scmp.eq.s32.totalorder %s18, 0
    %p123 = por %p121, %p122
    %p124 = scmp.ne.s32.totalorder %s112, %s113
    %p125 = scmp.eq.s32.totalorder %s19, 1
    %p126 = por %p124, %p125
    %p128 = scmp.ne.s32.totalorder %s113, %s127
    %p129 = scmp.eq.s32.totalorder %s19, 0
    %p130 = por %p128, %p129
    %s132 = sadd.s32 %s131, 1
    %p135 = scmp.eq.s32.totalorder %s13, 1
    %p136 = scmp.ne.s32.totalorder %s131, %s133
    %p137 = scmp.eq.s32.totalorder %s13, 0
    %p138 = por %p136, %p137
    %p139 = scmp.ne.s32.totalorder %s131, %s133
    %p140 = scmp.eq.s32.totalorder %s18, 1
    %p141 = por %p139, %p140
    %p142 = scmp.ne.s32.totalorder %s133, %s134
    %p143 = scmp.eq.s32.totalorder %s18, 0
    %p144 = por %p142, %p143
    %p145 = scmp.ne.s32.totalorder %s133, %s134
    %p146 = scmp.eq.s32.totalorder %s19, 1
    %p147 = por %p145, %p146
    %p149 = scmp.ne.s32.totalorder %s134, %s148
    %p150 = scmp.eq.s32.totalorder %s19, 0
    %p151 = por %p149, %p150
    %s153 = sadd.s32 %s152, 1
    %p156 = scmp.eq.s32.totalorder %s13, 1
    %p157 = scmp.ne.s32.totalorder %s152, %s154
    %p158 = scmp.eq.s32.totalorder %s13, 0
    %p159 = por %p157, %p158
    %p160 = scmp.ne.s32.totalorder %s152, %s154
    %p161 = scmp.eq.s32.totalorder %s18, 1
    %p162 = por %p160, %p161
    %p163 = scmp.ne.s32.totalorder %s154, %s155
    %p164 = scmp.eq.s32.totalorder %s18, 0
    %p165 = por %p163, %p164
    %p166 = scmp.ne.s32.totalorder %s154, %s155
    %p167 = scmp.eq.s32.totalorder %s19, 1
    %p168 = por %p166, %p167
    %p170 = scmp.ne.s32.totalorder %s155, %s169
    %p171 = scmp.eq.s32.totalorder %s19, 0
    %p172 = por %p170, %p171
    %s173 = ssub.s32 %s13, %s20
    %p174 = scmp.eq.s32.totalorder %s173, 0
    %s176 = sadd.s32 %s175, 1
    %s177 = scalar_select %p174, %s175, %s176
    %p180 = pneg %p174
    %p181 = scmp.eq.s32.totalorder %s13, 1
    %p182 = por %p180, %p181
    %p183 = scmp.ne.s32.totalorder %s175, %s178
    %p184 = scmp.eq.s32.totalorder %s13, 0
    %p185 = por %p183, %p184
    %p186 = scmp.ne.s32.totalorder %s175, %s178
    %p187 = scmp.eq.s32.totalorder %s18, 1
    %p188 = por %p186, %p187
    %p189 = scmp.ne.s32.totalorder %s178, %s179
    %p190 = scmp.eq.s32.totalorder %s18, 0
    %p191 = por %p189, %p190
    %p192 = scmp.ne.s32.totalorder %s178, %s179
    %p193 = scmp.eq.s32.totalorder %s19, 1
    %p194 = por %p192, %p193
    %p196 = scmp.ne.s32.totalorder %s179, %s195
    %p197 = scmp.eq.s32.totalorder %s19, 0
    %p198 = por %p196, %p197
    %p199 = scmp.le.s32.totalorder 1, %s13
    %p200 = scmp.lt.s32.totalorder %s13, 3
    %p201 = pnand %p199, %p200
    %p202 = pneg %p201
    // Predicated region
    $region9: #{forward.9} parent=5 // pred_check
      _
    $region10: #{forward.9} parent=5 // pred_check_branch
      %204 = sbr.rel (%p201) target = $region12
    $region11: #{forward.9} parent=5 // pred_region
      %s205 = ssub.s32 %s13, 1
      // Predicated region
      $region13: #{forward.9} parent=11 // pred_check
        %p206 = pneg %p60
      $region14: #{forward.9} parent=11 // pred_check_branch
        %208 = sbr.rel (%p206) target = $region16
      $region15: #{forward.9} parent=11 // pred_region
        _
      $region16: #{forward.9} parent=11 // pred_fallthru
        _
      // Predicated region
      $region17: #{forward.9} parent=11 // pred_check
        %p209 = pneg %p81
      $region18: #{forward.9} parent=11 // pred_check_branch
        %211 = sbr.rel (%p209) target = $region20
      $region19: #{forward.9} parent=11 // pred_region
        _
      $region20: #{forward.9} parent=11 // pred_fallthru
        _
      // Predicated region
      $region21: #{forward.9} parent=11 // pred_check
        %p212 = pneg %p102
      $region22: #{forward.9} parent=11 // pred_check_branch
        %214 = sbr.rel (%p212) target = $region24
      $region23: #{forward.9} parent=11 // pred_region
        _
      $region24: #{forward.9} parent=11 // pred_fallthru
        _
      // Predicated region
      $region25: #{forward.9} parent=11 // pred_check
        %p215 = pneg %p123
      $region26: #{forward.9} parent=11 // pred_check_branch
        %217 = sbr.rel (%p215) target = $region28
      $region27: #{forward.9} parent=11 // pred_region
        _
      $region28: #{forward.9} parent=11 // pred_fallthru
        _
      // Predicated region
      $region29: #{forward.9} parent=11 // pred_check
        %p218 = pneg %p144
      $region30: #{forward.9} parent=11 // pred_check_branch
        %220 = sbr.rel (%p218) target = $region32
      $region31: #{forward.9} parent=11 // pred_region
        _
      $region32: #{forward.9} parent=11 // pred_fallthru
        _
      // Predicated region
      $region33: #{forward.9} parent=11 // pred_check
        %p221 = pneg %p165
      $region34: #{forward.9} parent=11 // pred_check_branch
        %223 = sbr.rel (%p221) target = $region36
      $region35: #{forward.9} parent=11 // pred_region
        _
      $region36: #{forward.9} parent=11 // pred_fallthru
        _
    $region12: #{forward.9} parent=5 // pred_fallthru
      _
    %p224 = scmp.lt.s32.totalorder %s13, 2
    // Predicated region
    $region37: #{forward.9} parent=5 // pred_check
      %p225 = pneg %p224
    $region38: #{forward.9} parent=5 // pred_check_branch
      %227 = sbr.rel (%p225) target = $region40
    $region39: #{forward.9} parent=5 // pred_region
      // Predicated region
      $region41: #{forward.9} parent=39 // pred_check
        %p228 = pneg %p33
      $region42: #{forward.9} parent=39 // pred_check_branch
        %230 = sbr.rel (%p228) target = $region44
      $region43: #{forward.9} parent=39 // pred_region
        %p231 = scmp.lt.s32.totalorder %s13, 1
        %s232 = scalar_select %p231, %s13, 1
        %s233 = smul.addr %s232, 2
        %s234 = smul.addr %s233, 4
        %s235 = scalar_lea.vmem %s0, %s234
      $region44: #{forward.9} parent=39 // pred_fallthru
        _
    $region40: #{forward.9} parent=5 // pred_fallthru
      _
    %p236 = scmp.le.s32.totalorder 1, %s13
    %p237 = scmp.lt.s32.totalorder %s13, 3
    %p238 = pnand %p236, %p237
    %p239 = pneg %p238
    // Predicated region
    $region45: #{forward.9} parent=5 // pred_check
      _
    $region46: #{forward.9} parent=5 // pred_check_branch
      %241 = sbr.rel (%p238) target = $region48
    $region47: #{forward.9} parent=5 // pred_region
      %s242 = ssub.s32 %s13, 1
      %p243 = scmp.lt.s32.totalorder %s18, 1
      %s244 = scalar_select %p243, %s18, 1
      %s245 = smul.addr %s244, 2
      %s246 = smul.addr %s245, 4
      %s247 = scalar_lea.vmem %s0, %s246
      %p248 = pneg %p39
      %p249 = pneg %p36
      %p250 = pneg %p60
      %p251 = pneg %p57
      %p252 = pneg %p81
      %p253 = pneg %p78
      %p254 = pneg %p102
      %p255 = pneg %p99
      %p256 = pneg %p123
      %p257 = pneg %p120
      %p258 = pneg %p144
      %p259 = pneg %p141
      %p260 = pneg %p165
      %p261 = pneg %p162
      %p262 = pneg %p191
      %p263 = pneg %p188
      %p264 = scmp.lt.s32.totalorder %s18, 1
      %s265 = scalar_select %p264, %s18, 1
      %s266 = smul.addr %s265, 2
      %s267 = scalar_lea.vmem %s7, %s266
      %p268 = scmp.lt.s32.totalorder %s18, 1
      %s269 = scalar_select %p268, %s18, 1
      %s270 = smul.addr %s269, 2
      %s271 = smul.addr %s270, 4
      %s272 = scalar_lea.vmem %s0, %s271
      %p273 = scmp.lt.s32.totalorder %s18, 1
      %s274 = scalar_select %p273, %s18, 1
      %s275 = smul.addr %s274, 2
      %s276 = scalar_lea.vmem %s7, %s275
      %v277 = vld [vmem:[%s272] sm:$0xf]
      %v278 = vld [vmem:[%s272 + $0x4] sm:$0xf]
      %v279 = vld [vmem:[%s1] sm:$0xff]
      %v280 = vld [vmem:[%s1 + $0x8] sm:$0xff]
      %v281 = vld [vmem:[%s1 + $0x10] sm:$0xff]
      %v282 = vld [vmem:[%s1 + $0x18] sm:$0xff]
      %v283 = vld [vmem:[%s1 + $0x20] sm:$0xff]
      %v284 = vld [vmem:[%s1 + $0x28] sm:$0xff]
      %v285 = vld [vmem:[%s1 + $0x30] sm:$0xff]
      %v286 = vld [vmem:[%s1 + $0x38] sm:$0xff]
      %v287 = vld [vmem:[%s1 + $0x40] sm:$0xff]
      %v288 = vld [vmem:[%s1 + $0x48] sm:$0xff]
      %v289 = vld [vmem:[%s1 + $0x50] sm:$0xff]
      %v290 = vld [vmem:[%s1 + $0x58] sm:$0xff]
      %v291 = vld [vmem:[%s1 + $0x60] sm:$0xff]
      %v292 = vld [vmem:[%s1 + $0x68] sm:$0xff]
      %v293 = vld [vmem:[%s1 + $0x70] sm:$0xff]
      %v294 = vld [vmem:[%s1 + $0x78] sm:$0xff]
      %v295 = vld [vmem:[%s2] sm:$0x3]
      %v297 = vperm.slane %v295, 0
      %v298 = vperm.slane %v295, 1
      %v303 = vunpack.c.l.b16 %v277
      %v304 = vunpack.c.l.b16 %v278
      %v305 = vpack.c.b16 %v304, %v303
      %v323 = vunpack.c.l.b16 %v279
      %v324 = vunpack.c.h.b16 %v279
      %v325 = vunpack.c.l.b16 %v280
      %v326 = vunpack.c.h.b16 %v280
      %v327 = vunpack.c.l.b16 %v281
      %v328 = vunpack.c.h.b16 %v281
      %v329 = vunpack.c.l.b16 %v282
      %v330 = vunpack.c.h.b16 %v282
      %v331 = vunpack.c.l.b16 %v283
      %v332 = vunpack.c.h.b16 %v283
      %v333 = vunpack.c.l.b16 %v284
      %v334 = vunpack.c.h.b16 %v284
      %v335 = vunpack.c.l.b16 %v285
      %v336 = vunpack.c.h.b16 %v285
      %v337 = vunpack.c.l.b16 %v286
      %v338 = vunpack.c.h.b16 %v286
      %v339 = vunpack.c.l.b16 %v287
      %v340 = vunpack.c.h.b16 %v287
      %v341 = vunpack.c.l.b16 %v288
      %v342 = vunpack.c.h.b16 %v288
      %v343 = vunpack.c.l.b16 %v289
      %v344 = vunpack.c.h.b16 %v289
      %v345 = vunpack.c.l.b16 %v290
      %v346 = vunpack.c.h.b16 %v290
      %v347 = vunpack.c.l.b16 %v291
      %v348 = vunpack.c.h.b16 %v291
      %v349 = vunpack.c.l.b16 %v292
      %v350 = vunpack.c.h.b16 %v292
      %v351 = vunpack.c.l.b16 %v293
      %v352 = vunpack.c.h.b16 %v293
      %v353 = vunpack.c.l.b16 %v294
      %v354 = vunpack.c.h.b16 %v294
      %v355 = vpack.c.b16 %v325, %v323
      %v356 = vpack.c.b16 %v326, %v324
      %v357 = vpack.c.b16 %v329, %v327
      %v358 = vpack.c.b16 %v330, %v328
      %v359 = vpack.c.b16 %v333, %v331
      %v360 = vpack.c.b16 %v334, %v332
      %v361 = vpack.c.b16 %v337, %v335
      %v362 = vpack.c.b16 %v338, %v336
      %v363 = vpack.c.b16 %v341, %v339
      %v364 = vpack.c.b16 %v342, %v340
      %v365 = vpack.c.b16 %v345, %v343
      %v366 = vpack.c.b16 %v346, %v344
      %v367 = vpack.c.b16 %v349, %v347
      %v368 = vpack.c.b16 %v350, %v348
      %v369 = vpack.c.b16 %v353, %v351
      %v370 = vpack.c.b16 %v354, %v352
      %387 = vmatpush.bf16.msra.mxu0 %v369
      %388 = vmatpush.bf16.msra.mxu0 %v367
      %389 = vmatpush.bf16.msra.mxu0 %v365
      %390 = vmatpush.bf16.msra.mxu0 %v363
      %391 = vmatpush.bf16.msra.mxu0 %v361
      %392 = vmatpush.bf16.msra.mxu0 %v359
      %393 = vmatpush.bf16.msra.mxu0 %v357
      %394 = vmatpush.bf16.msra.mxu0 %v355
      %395 = vmatmul.bf16.gmra.mxu0 %v305
      %v396 = vpop.f32.mrf.mxu0
      %v397 = vadd.f32 %v297, %v396
      %v398 = vpop.f32.mrf.mxu0
      %v399 = vadd.f32 %v297, %v398
      %400 = vdwg.mxu0
      %401 = vmatpush.bf16.msra.mxu0 %v370
      %402 = vmatpush.bf16.msra.mxu0 %v368
      %403 = vmatpush.bf16.msra.mxu0 %v366
      %404 = vmatpush.bf16.msra.mxu0 %v364
      %405 = vmatpush.bf16.msra.mxu0 %v362
      %406 = vmatpush.bf16.msra.mxu0 %v360
      %407 = vmatpush.bf16.msra.mxu0 %v358
      %408 = vmatpush.bf16.msra.mxu0 %v356
      %409 = vmatmul.bf16.gmra.mxu0 %v305
      %v410 = vpop.f32.mrf.mxu0
      %v411 = vadd.f32 %v298, %v410
      %v412 = vpop.f32.mrf.mxu0
      %v413 = vadd.f32 %v298, %v412
      %414 = vdwg.mxu0
      %v415 = vadd.f32 %v397, 3.0
      %v416 = vadd.f32 %v411, 3.0
      %v417 = vadd.f32 %v399, 3.0
      %v418 = vadd.f32 %v413, 3.0
      %v419 = vmax.f32 %v415, 0.0
      %v420 = vmax.f32 %v416, 0.0
      %v421 = vmax.f32 %v417, 0.0
      %v422 = vmax.f32 %v418, 0.0
      %v423 = vmin.f32 %v419, 6.0
      %v424 = vmin.f32 %v420, 6.0
      %v425 = vmin.f32 %v421, 6.0
      %v426 = vmin.f32 %v422, 6.0
      %v427 = vmul.f32 %v397, %v423
      %v428 = vmul.f32 %v411, %v424
      %v429 = vmul.f32 %v399, %v425
      %v430 = vmul.f32 %v413, %v426
      %v431 = vrcp.pop 6.0
      %v432 = vmul.f32 6.0, %v431
      %v433 = vsub.f32 1.0, %v432
      %v434 = vmul.f32 %v431, %v433
      %v435 = vadd.f32 %v431, %v434
      %vm436 = vweird.f32 %v431
      %v437 = vsel %vm436, %v431, %v435
      %v438 = vmul.f32 %v427, %v437
      %v439 = vmul.f32 %v428, %v437
      %v440 = vmul.f32 %v429, %v437
      %v441 = vmul.f32 %v430, %v437
      %v442 = vadd.f32 %v438, %v440
      %v443 = vrot.slane %v442, 4
      %v444 = vadd.f32 %v442, %v443
      %v445 = vrot.slane %v444, 2
      %v446 = vadd.f32 %v444, %v445
      %v447 = vrot.slane %v446, 1
      %v448 = vadd.f32 %v446, %v447
      %v449 = vadd.f32 %v439, %v441
      %v450 = vrot.slane %v449, 4
      %v451 = vadd.f32 %v449, %v450
      %v452 = vrot.slane %v451, 2
      %v453 = vadd.f32 %v451, %v452
      %v454 = vrot.slane %v453, 1
      %v455 = vadd.f32 %v453, %v454
      %v456 = vrcp.pop 16.0
      %v457 = vmul.f32 16.0, %v456
      %v458 = vsub.f32 1.0, %v457
      %v459 = vmul.f32 %v456, %v458
      %v460 = vadd.f32 %v456, %v459
      %vm461 = vweird.f32 %v456
      %v462 = vsel %vm461, %v456, %v460
      %v463 = vmul.f32 %v448, %v462
      %v464 = vmul.f32 %v455, %v462
      %v465 = vpack.c.bf16 %v463, %v463
      %v466 = vpack.c.bf16 %v464, %v464
      %v467 = vld [vmem:[%s3] sm:$0xff]
      %v468 = vld [vmem:[%s3 + $0x8] sm:$0xff]
      %v469 = vld [vmem:[%s3 + $0x10] sm:$0xff]
      %v470 = vld [vmem:[%s3 + $0x18] sm:$0xf]
      %v471 = vld [vmem:[%s3 + $0x1c] sm:$0xff]
      %v472 = vld [vmem:[%s3 + $0x24] sm:$0xff]
      %v473 = vld [vmem:[%s3 + $0x2c] sm:$0xff]
      %v474 = vld [vmem:[%s3 + $0x34] sm:$0xf]
      %v475 = vld [vmem:[%s3 + $0x38] sm:$0xff]
      %v476 = vld [vmem:[%s3 + $0x40] sm:$0xff]
      %v477 = vld [vmem:[%s3 + $0x48] sm:$0xff]
      %v478 = vld [vmem:[%s3 + $0x50] sm:$0xf]
      %v479 = vld [vmem:[%s3 + $0x54] sm:$0xff]
      %v480 = vld [vmem:[%s3 + $0x5c] sm:$0xff]
      %v481 = vld [vmem:[%s3 + $0x64] sm:$0xff]
      %v482 = vld [vmem:[%s3 + $0x6c] sm:$0xf]
      %v483 = vld [vmem:[%s3 + $0x70] sm:$0xff]
      %v484 = vld [vmem:[%s3 + $0x78] sm:$0xff]
      %v485 = vld [vmem:[%s3 + $0x80] sm:$0xff]
      %v486 = vld [vmem:[%s3 + $0x88] sm:$0xf]
      %v487 = vld [vmem:[%s3 + $0x8c] sm:$0xff]
      %v488 = vld [vmem:[%s3 + $0x94] sm:$0xff]
      %v489 = vld [vmem:[%s3 + $0x9c] sm:$0xff]
      %v490 = vld [vmem:[%s3 + $0xa4] sm:$0xf]
      %v491 = vld [vmem:[%s3 + $0xa8] sm:$0xff]
      %v492 = vld [vmem:[%s3 + $0xb0] sm:$0xff]
      %v493 = vld [vmem:[%s3 + $0xb8] sm:$0xff]
      %v494 = vld [vmem:[%s3 + $0xc0] sm:$0xf]
      %v495 = vld [vmem:[%s3 + $0xc4] sm:$0xff]
      %v496 = vld [vmem:[%s3 + $0xcc] sm:$0xff]
      %v497 = vld [vmem:[%s3 + $0xd4] sm:$0xff]
      %v498 = vld [vmem:[%s3 + $0xdc] sm:$0xf]
      %v499 = vld [vmem:[%s3 + $0xe0] sm:$0xff]
      %v500 = vld [vmem:[%s3 + $0xe8] sm:$0xff]
      %v501 = vld [vmem:[%s3 + $0xf0] sm:$0xff]
      %v502 = vld [vmem:[%s3 + $0xf8] sm:$0xf]
      %v503 = vld [vmem:[%s3 + $0xfc] sm:$0xff]
      %v504 = vld [vmem:[%s3 + $0x104] sm:$0xff]
      %v505 = vld [vmem:[%s3 + $0x10c] sm:$0xff]
      %v506 = vld [vmem:[%s3 + $0x114] sm:$0xf]
      %v507 = vld [vmem:[%s3 + $0x118] sm:$0xff]
      %v508 = vld [vmem:[%s3 + $0x120] sm:$0xff]
      %v509 = vld [vmem:[%s3 + $0x128] sm:$0xff]
      %v510 = vld [vmem:[%s3 + $0x130] sm:$0xf]
      %v511 = vld [vmem:[%s3 + $0x134] sm:$0xff]
      %v512 = vld [vmem:[%s3 + $0x13c] sm:$0xff]
      %v513 = vld [vmem:[%s3 + $0x144] sm:$0xff]
      %v514 = vld [vmem:[%s3 + $0x14c] sm:$0xf]
      %v515 = vld [vmem:[%s3 + $0x150] sm:$0xff]
      %v516 = vld [vmem:[%s3 + $0x158] sm:$0xff]
      %v517 = vld [vmem:[%s3 + $0x160] sm:$0xff]
      %v518 = vld [vmem:[%s3 + $0x168] sm:$0xf]
      %v519 = vld [vmem:[%s3 + $0x16c] sm:$0xff]
      %v520 = vld [vmem:[%s3 + $0x174] sm:$0xff]
      %v521 = vld [vmem:[%s3 + $0x17c] sm:$0xff]
      %v522 = vld [vmem:[%s3 + $0x184] sm:$0xf]
      %v523 = vld [vmem:[%s3 + $0x188] sm:$0xff]
      %v524 = vld [vmem:[%s3 + $0x190] sm:$0xff]
      %v525 = vld [vmem:[%s3 + $0x198] sm:$0xff]
      %v526 = vld [vmem:[%s3 + $0x1a0] sm:$0xf]
      %v527 = vld [vmem:[%s3 + $0x1a4] sm:$0xff]
      %v528 = vld [vmem:[%s3 + $0x1ac] sm:$0xff]
      %v529 = vld [vmem:[%s3 + $0x1b4] sm:$0xff]
      %v530 = vld [vmem:[%s3 + $0x1bc] sm:$0xf]
      %v531 = vld [vmem:[%s3 + $0x1c0] sm:$0xff]
      %v532 = vld [vmem:[%s3 + $0x1c8] sm:$0xff]
      %v533 = vld [vmem:[%s3 + $0x1d0] sm:$0xff]
      %v534 = vld [vmem:[%s3 + $0x1d8] sm:$0xf]
      %v535 = vld [vmem:[%s3 + $0x1dc] sm:$0xff]
      %v536 = vld [vmem:[%s3 + $0x1e4] sm:$0xff]
      %v537 = vld [vmem:[%s3 + $0x1ec] sm:$0xff]
      %v538 = vld [vmem:[%s3 + $0x1f4] sm:$0xf]
      %v539 = vld [vmem:[%s3 + $0x1f8] sm:$0xff]
      %v540 = vld [vmem:[%s3 + $0x200] sm:$0xff]
      %v541 = vld [vmem:[%s3 + $0x208] sm:$0xff]
      %v542 = vld [vmem:[%s3 + $0x210] sm:$0xf]
      %v543 = vld [vmem:[%s3 + $0x214] sm:$0xff]
      %v544 = vld [vmem:[%s3 + $0x21c] sm:$0xff]
      %v545 = vld [vmem:[%s3 + $0x224] sm:$0xff]
      %v546 = vld [vmem:[%s3 + $0x22c] sm:$0xf]
      %v547 = vld [vmem:[%s3 + $0x230] sm:$0xff]
      %v548 = vld [vmem:[%s3 + $0x238] sm:$0xff]
      %v549 = vld [vmem:[%s3 + $0x240] sm:$0xff]
      %v550 = vld [vmem:[%s3 + $0x248] sm:$0xf]
      %v551 = vld [vmem:[%s3 + $0x24c] sm:$0xff]
      %v552 = vld [vmem:[%s3 + $0x254] sm:$0xff]
      %v553 = vld [vmem:[%s3 + $0x25c] sm:$0xff]
      %v554 = vld [vmem:[%s3 + $0x264] sm:$0xf]
      %v555 = vld [vmem:[%s3 + $0x268] sm:$0xff]
      %v556 = vld [vmem:[%s3 + $0x270] sm:$0xff]
      %v557 = vld [vmem:[%s3 + $0x278] sm:$0xff]
      %v558 = vld [vmem:[%s3 + $0x280] sm:$0xf]
      %v559 = vld [vmem:[%s3 + $0x284] sm:$0xff]
      %v560 = vld [vmem:[%s3 + $0x28c] sm:$0xff]
      %v561 = vld [vmem:[%s3 + $0x294] sm:$0xff]
      %v562 = vld [vmem:[%s3 + $0x29c] sm:$0xf]
      %v563 = vld [vmem:[%s3 + $0x2a0] sm:$0xff]
      %v564 = vld [vmem:[%s3 + $0x2a8] sm:$0xff]
      %v565 = vld [vmem:[%s3 + $0x2b0] sm:$0xff]
      %v566 = vld [vmem:[%s3 + $0x2b8] sm:$0xf]
      %v567 = vld [vmem:[%s3 + $0x2bc] sm:$0xff]
      %v568 = vld [vmem:[%s3 + $0x2c4] sm:$0xff]
      %v569 = vld [vmem:[%s3 + $0x2cc] sm:$0xff]
      %v570 = vld [vmem:[%s3 + $0x2d4] sm:$0xf]
      %v571 = vld [vmem:[%s3 + $0x2d8] sm:$0xff]
      %v572 = vld [vmem:[%s3 + $0x2e0] sm:$0xff]
      %v573 = vld [vmem:[%s3 + $0x2e8] sm:$0xff]
      %v574 = vld [vmem:[%s3 + $0x2f0] sm:$0xf]
      %v575 = vld [vmem:[%s3 + $0x2f4] sm:$0xff]
      %v576 = vld [vmem:[%s3 + $0x2fc] sm:$0xff]
      %v577 = vld [vmem:[%s3 + $0x304] sm:$0xff]
      %v578 = vld [vmem:[%s3 + $0x30c] sm:$0xf]
      %v579 = vld [vmem:[%s3 + $0x310] sm:$0xff]
      %v580 = vld [vmem:[%s3 + $0x318] sm:$0xff]
      %v581 = vld [vmem:[%s3 + $0x320] sm:$0xff]
      %v582 = vld [vmem:[%s3 + $0x328] sm:$0xf]
      %v583 = vld [vmem:[%s3 + $0x32c] sm:$0xff]
      %v584 = vld [vmem:[%s3 + $0x334] sm:$0xff]
      %v585 = vld [vmem:[%s3 + $0x33c] sm:$0xff]
      %v586 = vld [vmem:[%s3 + $0x344] sm:$0xf]
      %v587 = vld [vmem:[%s3 + $0x348] sm:$0xff]
      %v588 = vld [vmem:[%s3 + $0x350] sm:$0xff]
      %v589 = vld [vmem:[%s3 + $0x358] sm:$0xff]
      %v590 = vld [vmem:[%s3 + $0x360] sm:$0xf]
      %v591 = vld [vmem:[%s3 + $0x364] sm:$0xff]
      %v592 = vld [vmem:[%s3 + $0x36c] sm:$0xff]
      %v593 = vld [vmem:[%s3 + $0x374] sm:$0xff]
      %v594 = vld [vmem:[%s3 + $0x37c] sm:$0xf]
      %v595 = vld [vmem:[%s4] sm:$0xff]
      %v724 = vunpack.c.l.b16 %v467
      %v725 = vunpack.c.h.b16 %v467
      %v726 = vunpack.c.l.b16 %v468
      %v727 = vunpack.c.h.b16 %v468
      %v728 = vunpack.c.l.b16 %v469
      %v729 = vunpack.c.h.b16 %v469
      %v730 = vunpack.c.l.b16 %v470
      %v731 = vunpack.c.l.b16 %v471
      %v732 = vunpack.c.h.b16 %v471
      %v733 = vunpack.c.l.b16 %v472
      %v734 = vunpack.c.h.b16 %v472
      %v735 = vunpack.c.l.b16 %v473
      %v736 = vunpack.c.h.b16 %v473
      %v737 = vunpack.c.l.b16 %v474
      %v738 = vunpack.c.l.b16 %v475
      %v739 = vunpack.c.h.b16 %v475
      %v740 = vunpack.c.l.b16 %v476
      %v741 = vunpack.c.h.b16 %v476
      %v742 = vunpack.c.l.b16 %v477
      %v743 = vunpack.c.h.b16 %v477
      %v744 = vunpack.c.l.b16 %v478
      %v745 = vunpack.c.l.b16 %v479
      %v746 = vunpack.c.h.b16 %v479
      %v747 = vunpack.c.l.b16 %v480
      %v748 = vunpack.c.h.b16 %v480
      %v749 = vunpack.c.l.b16 %v481
      %v750 = vunpack.c.h.b16 %v481
      %v751 = vunpack.c.l.b16 %v482
      %v752 = vunpack.c.l.b16 %v483
      %v753 = vunpack.c.h.b16 %v483
      %v754 = vunpack.c.l.b16 %v484
      %v755 = vunpack.c.h.b16 %v484
      %v756 = vunpack.c.l.b16 %v485
      %v757 = vunpack.c.h.b16 %v485
      %v758 = vunpack.c.l.b16 %v486
      %v759 = vunpack.c.l.b16 %v487
      %v760 = vunpack.c.h.b16 %v487
      %v761 = vunpack.c.l.b16 %v488
      %v762 = vunpack.c.h.b16 %v488
      %v763 = vunpack.c.l.b16 %v489
      %v764 = vunpack.c.h.b16 %v489
      %v765 = vunpack.c.l.b16 %v490
      %v766 = vunpack.c.l.b16 %v491
      %v767 = vunpack.c.h.b16 %v491
      %v768 = vunpack.c.l.b16 %v492
      %v769 = vunpack.c.h.b16 %v492
      %v770 = vunpack.c.l.b16 %v493
      %v771 = vunpack.c.h.b16 %v493
      %v772 = vunpack.c.l.b16 %v494
      %v773 = vunpack.c.l.b16 %v495
      %v774 = vunpack.c.h.b16 %v495
      %v775 = vunpack.c.l.b16 %v496
      %v776 = vunpack.c.h.b16 %v496
      %v777 = vunpack.c.l.b16 %v497
      %v778 = vunpack.c.h.b16 %v497
      %v779 = vunpack.c.l.b16 %v498
      %v780 = vunpack.c.l.b16 %v499
      %v781 = vunpack.c.h.b16 %v499
      %v782 = vunpack.c.l.b16 %v500
      %v783 = vunpack.c.h.b16 %v500
      %v784 = vunpack.c.l.b16 %v501
      %v785 = vunpack.c.h.b16 %v501
      %v786 = vunpack.c.l.b16 %v502
      %v787 = vunpack.c.l.b16 %v503
      %v788 = vunpack.c.h.b16 %v503
      %v789 = vunpack.c.l.b16 %v504
      %v790 = vunpack.c.h.b16 %v504
      %v791 = vunpack.c.l.b16 %v505
      %v792 = vunpack.c.h.b16 %v505
      %v793 = vunpack.c.l.b16 %v506
      %v794 = vunpack.c.l.b16 %v507
      %v795 = vunpack.c.h.b16 %v507
      %v796 = vunpack.c.l.b16 %v508
      %v797 = vunpack.c.h.b16 %v508
      %v798 = vunpack.c.l.b16 %v509
      %v799 = vunpack.c.h.b16 %v509
      %v800 = vunpack.c.l.b16 %v510
      %v801 = vunpack.c.l.b16 %v511
      %v802 = vunpack.c.h.b16 %v511
      %v803 = vunpack.c.l.b16 %v512
      %v804 = vunpack.c.h.b16 %v512
      %v805 = vunpack.c.l.b16 %v513
      %v806 = vunpack.c.h.b16 %v513
      %v807 = vunpack.c.l.b16 %v514
      %v808 = vunpack.c.l.b16 %v515
      %v809 = vunpack.c.h.b16 %v515
      %v810 = vunpack.c.l.b16 %v516
      %v811 = vunpack.c.h.b16 %v516
      %v812 = vunpack.c.l.b16 %v517
      %v813 = vunpack.c.h.b16 %v517
      %v814 = vunpack.c.l.b16 %v518
      %v815 = vunpack.c.l.b16 %v519
      %v816 = vunpack.c.h.b16 %v519
      %v817 = vunpack.c.l.b16 %v520
      %v818 = vunpack.c.h.b16 %v520
      %v819 = vunpack.c.l.b16 %v521
      %v820 = vunpack.c.h.b16 %v521
      %v821 = vunpack.c.l.b16 %v522
      %v822 = vunpack.c.l.b16 %v523
      %v823 = vunpack.c.h.b16 %v523
      %v824 = vunpack.c.l.b16 %v524
      %v825 = vunpack.c.h.b16 %v524
      %v826 = vunpack.c.l.b16 %v525
      %v827 = vunpack.c.h.b16 %v525
      %v828 = vunpack.c.l.b16 %v526
      %v829 = vunpack.c.l.b16 %v527
      %v830 = vunpack.c.h.b16 %v527
      %v831 = vunpack.c.l.b16 %v528
      %v832 = vunpack.c.h.b16 %v528
      %v833 = vunpack.c.l.b16 %v529
      %v834 = vunpack.c.h.b16 %v529
      %v835 = vunpack.c.l.b16 %v530
      %v836 = vunpack.c.l.b16 %v531
      %v837 = vunpack.c.h.b16 %v531
      %v838 = vunpack.c.l.b16 %v532
      %v839 = vunpack.c.h.b16 %v532
      %v840 = vunpack.c.l.b16 %v533
      %v841 = vunpack.c.h.b16 %v533
      %v842 = vunpack.c.l.b16 %v534
      %v843 = vunpack.c.l.b16 %v535
      %v844 = vunpack.c.h.b16 %v535
      %v845 = vunpack.c.l.b16 %v536
      %v846 = vunpack.c.h.b16 %v536
      %v847 = vunpack.c.l.b16 %v537
      %v848 = vunpack.c.h.b16 %v537
      %v849 = vunpack.c.l.b16 %v538
      %v850 = vunpack.c.l.b16 %v539
      %v851 = vunpack.c.h.b16 %v539
      %v852 = vunpack.c.l.b16 %v540
      %v853 = vunpack.c.h.b16 %v540
      %v854 = vunpack.c.l.b16 %v541
      %v855 = vunpack.c.h.b16 %v541
      %v856 = vunpack.c.l.b16 %v542
      %v857 = vunpack.c.l.b16 %v543
      %v858 = vunpack.c.h.b16 %v543
      %v859 = vunpack.c.l.b16 %v544
      %v860 = vunpack.c.h.b16 %v544
      %v861 = vunpack.c.l.b16 %v545
      %v862 = vunpack.c.h.b16 %v545
      %v863 = vunpack.c.l.b16 %v546
      %v864 = vunpack.c.l.b16 %v547
      %v865 = vunpack.c.h.b16 %v547
      %v866 = vunpack.c.l.b16 %v548
      %v867 = vunpack.c.h.b16 %v548
      %v868 = vunpack.c.l.b16 %v549
      %v869 = vunpack.c.h.b16 %v549
      %v870 = vunpack.c.l.b16 %v550
      %v871 = vunpack.c.l.b16 %v551
      %v872 = vunpack.c.h.b16 %v551
      %v873 = vunpack.c.l.b16 %v552
      %v874 = vunpack.c.h.b16 %v552
      %v875 = vunpack.c.l.b16 %v553
      %v876 = vunpack.c.h.b16 %v553
      %v877 = vunpack.c.l.b16 %v554
      %v878 = vunpack.c.l.b16 %v555
      %v879 = vunpack.c.h.b16 %v555
      %v880 = vunpack.c.l.b16 %v556
      %v881 = vunpack.c.h.b16 %v556
      %v882 = vunpack.c.l.b16 %v557
      %v883 = vunpack.c.h.b16 %v557
      %v884 = vunpack.c.l.b16 %v558
      %v885 = vunpack.c.l.b16 %v559
      %v886 = vunpack.c.h.b16 %v559
      %v887 = vunpack.c.l.b16 %v560
      %v888 = vunpack.c.h.b16 %v560
      %v889 = vunpack.c.l.b16 %v561
      %v890 = vunpack.c.h.b16 %v561
      %v891 = vunpack.c.l.b16 %v562
      %v892 = vunpack.c.l.b16 %v563
      %v893 = vunpack.c.h.b16 %v563
      %v894 = vunpack.c.l.b16 %v564
      %v895 = vunpack.c.h.b16 %v564
      %v896 = vunpack.c.l.b16 %v565
      %v897 = vunpack.c.h.b16 %v565
      %v898 = vunpack.c.l.b16 %v566
      %v899 = vunpack.c.l.b16 %v567
      %v900 = vunpack.c.h.b16 %v567
      %v901 = vunpack.c.l.b16 %v568
      %v902 = vunpack.c.h.b16 %v568
      %v903 = vunpack.c.l.b16 %v569
      %v904 = vunpack.c.h.b16 %v569
      %v905 = vunpack.c.l.b16 %v570
      %v906 = vunpack.c.l.b16 %v571
      %v907 = vunpack.c.h.b16 %v571
      %v908 = vunpack.c.l.b16 %v572
      %v909 = vunpack.c.h.b16 %v572
      %v910 = vunpack.c.l.b16 %v573
      %v911 = vunpack.c.h.b16 %v573
      %v912 = vunpack.c.l.b16 %v574
      %v913 = vunpack.c.l.b16 %v575
      %v914 = vunpack.c.h.b16 %v575
      %v915 = vunpack.c.l.b16 %v576
      %v916 = vunpack.c.h.b16 %v576
      %v917 = vunpack.c.l.b16 %v577
      %v918 = vunpack.c.h.b16 %v577
      %v919 = vunpack.c.l.b16 %v578
      %v920 = vunpack.c.l.b16 %v579
      %v921 = vunpack.c.h.b16 %v579
      %v922 = vunpack.c.l.b16 %v580
      %v923 = vunpack.c.h.b16 %v580
      %v924 = vunpack.c.l.b16 %v581
      %v925 = vunpack.c.h.b16 %v581
      %v926 = vunpack.c.l.b16 %v582
      %v927 = vunpack.c.l.b16 %v583
      %v928 = vunpack.c.h.b16 %v583
      %v929 = vunpack.c.l.b16 %v584
      %v930 = vunpack.c.h.b16 %v584
      %v931 = vunpack.c.l.b16 %v585
      %v932 = vunpack.c.h.b16 %v585
      %v933 = vunpack.c.l.b16 %v586
      %v934 = vunpack.c.l.b16 %v587
      %v935 = vunpack.c.h.b16 %v587
      %v936 = vunpack.c.l.b16 %v588
      %v937 = vunpack.c.h.b16 %v588
      %v938 = vunpack.c.l.b16 %v589
      %v939 = vunpack.c.h.b16 %v589
      %v940 = vunpack.c.l.b16 %v590
      %v941 = vunpack.c.l.b16 %v591
      %v942 = vunpack.c.h.b16 %v591
      %v943 = vunpack.c.l.b16 %v592
      %v944 = vunpack.c.h.b16 %v592
      %v945 = vunpack.c.l.b16 %v593
      %v946 = vunpack.c.h.b16 %v593
      %v947 = vunpack.c.l.b16 %v594
      %v948 = vpack.c.b16 %v731, %v724
      %v949 = vpack.c.b16 %v732, %v725
      %v950 = vpack.c.b16 %v733, %v726
      %v951 = vpack.c.b16 %v734, %v727
      %v952 = vpack.c.b16 %v735, %v728
      %v953 = vpack.c.b16 %v736, %v729
      %v954 = vpack.c.b16 %v737, %v730
      %v955 = vpack.c.b16 %v745, %v738
      %v956 = vpack.c.b16 %v746, %v739
      %v957 = vpack.c.b16 %v747, %v740
      %v958 = vpack.c.b16 %v748, %v741
      %v959 = vpack.c.b16 %v749, %v742
      %v960 = vpack.c.b16 %v750, %v743
      %v961 = vpack.c.b16 %v751, %v744
      %v962 = vpack.c.b16 %v759, %v752
      %v963 = vpack.c.b16 %v760, %v753
      %v964 = vpack.c.b16 %v761, %v754
      %v965 = vpack.c.b16 %v762, %v755
      %v966 = vpack.c.b16 %v763, %v756
      %v967 = vpack.c.b16 %v764, %v757
      %v968 = vpack.c.b16 %v765, %v758
      %v969 = vpack.c.b16 %v773, %v766
      %v970 = vpack.c.b16 %v774, %v767
      %v971 = vpack.c.b16 %v775, %v768
      %v972 = vpack.c.b16 %v776, %v769
      %v973 = vpack.c.b16 %v777, %v770
      %v974 = vpack.c.b16 %v778, %v771
      %v975 = vpack.c.b16 %v779, %v772
      %v976 = vpack.c.b16 %v787, %v780
      %v977 = vpack.c.b16 %v788, %v781
      %v978 = vpack.c.b16 %v789, %v782
      %v979 = vpack.c.b16 %v790, %v783
      %v980 = vpack.c.b16 %v791, %v784
      %v981 = vpack.c.b16 %v792, %v785
      %v982 = vpack.c.b16 %v793, %v786
      %v983 = vpack.c.b16 %v801, %v794
      %v984 = vpack.c.b16 %v802, %v795
      %v985 = vpack.c.b16 %v803, %v796
      %v986 = vpack.c.b16 %v804, %v797
      %v987 = vpack.c.b16 %v805, %v798
      %v988 = vpack.c.b16 %v806, %v799
      %v989 = vpack.c.b16 %v807, %v800
      %v990 = vpack.c.b16 %v815, %v808
      %v991 = vpack.c.b16 %v816, %v809
      %v992 = vpack.c.b16 %v817, %v810
      %v993 = vpack.c.b16 %v818, %v811
      %v994 = vpack.c.b16 %v819, %v812
      %v995 = vpack.c.b16 %v820, %v813
      %v996 = vpack.c.b16 %v821, %v814
      %v997 = vpack.c.b16 %v829, %v822
      %v998 = vpack.c.b16 %v830, %v823
      %v999 = vpack.c.b16 %v831, %v824
      %v1000 = vpack.c.b16 %v832, %v825
      %v1001 = vpack.c.b16 %v833, %v826
      %v1002 = vpack.c.b16 %v834, %v827
      %v1003 = vpack.c.b16 %v835, %v828
      %v1004 = vpack.c.b16 %v843, %v836
      %v1005 = vpack.c.b16 %v844, %v837
      %v1006 = vpack.c.b16 %v845, %v838
      %v1007 = vpack.c.b16 %v846, %v839
      %v1008 = vpack.c.b16 %v847, %v840
      %v1009 = vpack.c.b16 %v848, %v841
      %v1010 = vpack.c.b16 %v849, %v842
      %v1011 = vpack.c.b16 %v857, %v850
      %v1012 = vpack.c.b16 %v858, %v851
      %v1013 = vpack.c.b16 %v859, %v852
      %v1014 = vpack.c.b16 %v860, %v853
      %v1015 = vpack.c.b16 %v861, %v854
      %v1016 = vpack.c.b16 %v862, %v855
      %v1017 = vpack.c.b16 %v863, %v856
      %v1018 = vpack.c.b16 %v871, %v864
      %v1019 = vpack.c.b16 %v872, %v865
      %v1020 = vpack.c.b16 %v873, %v866
      %v1021 = vpack.c.b16 %v874, %v867
      %v1022 = vpack.c.b16 %v875, %v868
      %v1023 = vpack.c.b16 %v876, %v869
      %v1024 = vpack.c.b16 %v877, %v870
      %v1025 = vpack.c.b16 %v885, %v878
      %v1026 = vpack.c.b16 %v886, %v879
      %v1027 = vpack.c.b16 %v887, %v880
      %v1028 = vpack.c.b16 %v888, %v881
      %v1029 = vpack.c.b16 %v889, %v882
      %v1030 = vpack.c.b16 %v890, %v883
      %v1031 = vpack.c.b16 %v891, %v884
      %v1032 = vpack.c.b16 %v899, %v892
      %v1033 = vpack.c.b16 %v900, %v893
      %v1034 = vpack.c.b16 %v901, %v894
      %v1035 = vpack.c.b16 %v902, %v895
      %v1036 = vpack.c.b16 %v903, %v896
      %v1037 = vpack.c.b16 %v904, %v897
      %v1038 = vpack.c.b16 %v905, %v898
      %v1039 = vpack.c.b16 %v913, %v906
      %v1040 = vpack.c.b16 %v914, %v907
      %v1041 = vpack.c.b16 %v915, %v908
      %v1042 = vpack.c.b16 %v916, %v909
      %v1043 = vpack.c.b16 %v917, %v910
      %v1044 = vpack.c.b16 %v918, %v911
      %v1045 = vpack.c.b16 %v919, %v912
      %v1046 = vpack.c.b16 %v927, %v920
      %v1047 = vpack.c.b16 %v928, %v921
      %v1048 = vpack.c.b16 %v929, %v922
      %v1049 = vpack.c.b16 %v930, %v923
      %v1050 = vpack.c.b16 %v931, %v924
      %v1051 = vpack.c.b16 %v932, %v925
      %v1052 = vpack.c.b16 %v933, %v926
      %v1053 = vpack.c.b16 %v941, %v934
      %v1054 = vpack.c.b16 %v942, %v935
      %v1055 = vpack.c.b16 %v943, %v936
      %v1056 = vpack.c.b16 %v944, %v937
      %v1057 = vpack.c.b16 %v945, %v938
      %v1058 = vpack.c.b16 %v946, %v939
      %v1059 = vpack.c.b16 %v947, %v940
      %v1173 = vperm.slane %v595, 0
      %v1174 = vperm.slane %v595, 1
      %v1175 = vperm.slane %v595, 2
      %v1176 = vperm.slane %v595, 3
      %v1177 = vperm.slane %v595, 4
      %v1178 = vperm.slane %v595, 5
      %v1179 = vperm.slane %v595, 6
      %1187 = vmatpush.bf16.msra.mxu0 %v997
      %1188 = vmatpush.bf16.msra.mxu0 %v990
      %1189 = vmatpush.bf16.msra.mxu0 %v983
      %1190 = vmatpush.bf16.msra.mxu0 %v976
      %1191 = vmatpush.bf16.msra.mxu0 %v969
      %1192 = vmatpush.bf16.msra.mxu0 %v962
      %1193 = vmatpush.bf16.msra.mxu0 %v955
      %1194 = vmatpush.bf16.msra.mxu0 %v948
      %1195 = vmatmul.bf16.gmra.mxu0 %v465
      %v1196 = vpop.f32.mrf.mxu0
      %v1197 = vadd.f32 %v1173, %v1196
      %v1198 = vpop.f32.mrf.mxu0
      %1199 = vdwg.mxu0
      %1200 = vmatpush.bf16.msra.mxu0 %v1053
      %1201 = vmatpush.bf16.msra.mxu0 %v1046
      %1202 = vmatpush.bf16.msra.mxu0 %v1039
      %1203 = vmatpush.bf16.msra.mxu0 %v1032
      %1204 = vmatpush.bf16.msra.mxu0 %v1025
      %1205 = vmatpush.bf16.msra.mxu0 %v1018
      %1206 = vmatpush.bf16.msra.mxu0 %v1011
      %1207 = vmatpush.bf16.msra.mxu0 %v1004
      %1208 = vmatmul.bf16.gmra.mxu0 %v466
      %v1209 = vpop.f32.mrf.mxu0
      %v1210 = vadd.f32 %v1197, %v1209
      %v1211 = vpop.f32.mrf.mxu0
      %1212 = vdwg.mxu0
      %1213 = vmatpush.bf16.msra.mxu0 %v998
      %1214 = vmatpush.bf16.msra.mxu0 %v991
      %1215 = vmatpush.bf16.msra.mxu0 %v984
      %1216 = vmatpush.bf16.msra.mxu0 %v977
      %1217 = vmatpush.bf16.msra.mxu0 %v970
      %1218 = vmatpush.bf16.msra.mxu0 %v963
      %1219 = vmatpush.bf16.msra.mxu0 %v956
      %1220 = vmatpush.bf16.msra.mxu0 %v949
      %1221 = vmatmul.bf16.gmra.mxu0 %v465
      %v1222 = vpop.f32.mrf.mxu0
      %v1223 = vadd.f32 %v1174, %v1222
      %v1224 = vpop.f32.mrf.mxu0
      %1225 = vdwg.mxu0
      %1226 = vmatpush.bf16.msra.mxu0 %v1054
      %1227 = vmatpush.bf16.msra.mxu0 %v1047
      %1228 = vmatpush.bf16.msra.mxu0 %v1040
      %1229 = vmatpush.bf16.msra.mxu0 %v1033
      %1230 = vmatpush.bf16.msra.mxu0 %v1026
      %1231 = vmatpush.bf16.msra.mxu0 %v1019
      %1232 = vmatpush.bf16.msra.mxu0 %v1012
      %1233 = vmatpush.bf16.msra.mxu0 %v1005
      %1234 = vmatmul.bf16.gmra.mxu0 %v466
      %v1235 = vpop.f32.mrf.mxu0
      %v1236 = vadd.f32 %v1223, %v1235
      %v1237 = vpop.f32.mrf.mxu0
      %1238 = vdwg.mxu0
      %1239 = vmatpush.bf16.msra.mxu0 %v999
      %1240 = vmatpush.bf16.msra.mxu0 %v992
      %1241 = vmatpush.bf16.msra.mxu0 %v985
      %1242 = vmatpush.bf16.msra.mxu0 %v978
      %1243 = vmatpush.bf16.msra.mxu0 %v971
      %1244 = vmatpush.bf16.msra.mxu0 %v964
      %1245 = vmatpush.bf16.msra.mxu0 %v957
      %1246 = vmatpush.bf16.msra.mxu0 %v950
      %1247 = vmatmul.bf16.gmra.mxu0 %v465
      %v1248 = vpop.f32.mrf.mxu0
      %v1249 = vadd.f32 %v1175, %v1248
      %v1250 = vpop.f32.mrf.mxu0
      %1251 = vdwg.mxu0
      %1252 = vmatpush.bf16.msra.mxu0 %v1055
      %1253 = vmatpush.bf16.msra.mxu0 %v1048
      %1254 = vmatpush.bf16.msra.mxu0 %v1041
      %1255 = vmatpush.bf16.msra.mxu0 %v1034
      %1256 = vmatpush.bf16.msra.mxu0 %v1027
      %1257 = vmatpush.bf16.msra.mxu0 %v1020
      %1258 = vmatpush.bf16.msra.mxu0 %v1013
      %1259 = vmatpush.bf16.msra.mxu0 %v1006
      %1260 = vmatmul.bf16.gmra.mxu0 %v466
      %v1261 = vpop.f32.mrf.mxu0
      %v1262 = vadd.f32 %v1249, %v1261
      %v1263 = vpop.f32.mrf.mxu0
      %1264 = vdwg.mxu0
      %1265 = vmatpush.bf16.msra.mxu0 %v1000
      %1266 = vmatpush.bf16.msra.mxu0 %v993
      %1267 = vmatpush.bf16.msra.mxu0 %v986
      %1268 = vmatpush.bf16.msra.mxu0 %v979
      %1269 = vmatpush.bf16.msra.mxu0 %v972
      %1270 = vmatpush.bf16.msra.mxu0 %v965
      %1271 = vmatpush.bf16.msra.mxu0 %v958
      %1272 = vmatpush.bf16.msra.mxu0 %v951
      %1273 = vmatmul.bf16.gmra.mxu0 %v465
      %v1274 = vpop.f32.mrf.mxu0
      %v1275 = vadd.f32 %v1176, %v1274
      %v1276 = vpop.f32.mrf.mxu0
      %1277 = vdwg.mxu0
      %1278 = vmatpush.bf16.msra.mxu0 %v1056
      %1279 = vmatpush.bf16.msra.mxu0 %v1049
      %1280 = vmatpush.bf16.msra.mxu0 %v1042
      %1281 = vmatpush.bf16.msra.mxu0 %v1035
      %1282 = vmatpush.bf16.msra.mxu0 %v1028
      %1283 = vmatpush.bf16.msra.mxu0 %v1021
      %1284 = vmatpush.bf16.msra.mxu0 %v1014
      %1285 = vmatpush.bf16.msra.mxu0 %v1007
      %1286 = vmatmul.bf16.gmra.mxu0 %v466
      %v1287 = vpop.f32.mrf.mxu0
      %v1288 = vadd.f32 %v1275, %v1287
      %v1289 = vpop.f32.mrf.mxu0
      %1290 = vdwg.mxu0
      %1291 = vmatpush.bf16.msra.mxu0 %v1001
      %1292 = vmatpush.bf16.msra.mxu0 %v994
      %1293 = vmatpush.bf16.msra.mxu0 %v987
      %1294 = vmatpush.bf16.msra.mxu0 %v980
      %1295 = vmatpush.bf16.msra.mxu0 %v973
      %1296 = vmatpush.bf16.msra.mxu0 %v966
      %1297 = vmatpush.bf16.msra.mxu0 %v959
      %1298 = vmatpush.bf16.msra.mxu0 %v952
      %1299 = vmatmul.bf16.gmra.mxu0 %v465
      %v1300 = vpop.f32.mrf.mxu0
      %v1301 = vadd.f32 %v1177, %v1300
      %v1302 = vpop.f32.mrf.mxu0
      %1303 = vdwg.mxu0
      %1304 = vmatpush.bf16.msra.mxu0 %v1057
      %1305 = vmatpush.bf16.msra.mxu0 %v1050
      %1306 = vmatpush.bf16.msra.mxu0 %v1043
      %1307 = vmatpush.bf16.msra.mxu0 %v1036
      %1308 = vmatpush.bf16.msra.mxu0 %v1029
      %1309 = vmatpush.bf16.msra.mxu0 %v1022
      %1310 = vmatpush.bf16.msra.mxu0 %v1015
      %1311 = vmatpush.bf16.msra.mxu0 %v1008
      %1312 = vmatmul.bf16.gmra.mxu0 %v466
      %v1313 = vpop.f32.mrf.mxu0
      %v1314 = vadd.f32 %v1301, %v1313
      %v1315 = vpop.f32.mrf.mxu0
      %1316 = vdwg.mxu0
      %1317 = vmatpush.bf16.msra.mxu0 %v1002
      %1318 = vmatpush.bf16.msra.mxu0 %v995
      %1319 = vmatpush.bf16.msra.mxu0 %v988
      %1320 = vmatpush.bf16.msra.mxu0 %v981
      %1321 = vmatpush.bf16.msra.mxu0 %v974
      %1322 = vmatpush.bf16.msra.mxu0 %v967
      %1323 = vmatpush.bf16.msra.mxu0 %v960
      %1324 = vmatpush.bf16.msra.mxu0 %v953
      %1325 = vmatmul.bf16.gmra.mxu0 %v465
      %v1326 = vpop.f32.mrf.mxu0
      %v1327 = vadd.f32 %v1178, %v1326
      %v1328 = vpop.f32.mrf.mxu0
      %1329 = vdwg.mxu0
      %1330 = vmatpush.bf16.msra.mxu0 %v1058
      %1331 = vmatpush.bf16.msra.mxu0 %v1051
      %1332 = vmatpush.bf16.msra.mxu0 %v1044
      %1333 = vmatpush.bf16.msra.mxu0 %v1037
      %1334 = vmatpush.bf16.msra.mxu0 %v1030
      %1335 = vmatpush.bf16.msra.mxu0 %v1023
      %1336 = vmatpush.bf16.msra.mxu0 %v1016
      %1337 = vmatpush.bf16.msra.mxu0 %v1009
      %1338 = vmatmul.bf16.gmra.mxu0 %v466
      %v1339 = vpop.f32.mrf.mxu0
      %v1340 = vadd.f32 %v1327, %v1339
      %v1341 = vpop.f32.mrf.mxu0
      %1342 = vdwg.mxu0
      %1343 = vmatpush.bf16.msra.mxu0 %v1003
      %1344 = vmatpush.bf16.msra.mxu0 %v996
      %1345 = vmatpush.bf16.msra.mxu0 %v989
      %1346 = vmatpush.bf16.msra.mxu0 %v982
      %1347 = vmatpush.bf16.msra.mxu0 %v975
      %1348 = vmatpush.bf16.msra.mxu0 %v968
      %1349 = vmatpush.bf16.msra.mxu0 %v961
      %1350 = vmatpush.bf16.msra.mxu0 %v954
      %1351 = vmatmul.bf16.gmra.mxu0 %v465
      %v1352 = vpop.f32.mrf.mxu0
      %v1353 = vadd.f32 %v1179, %v1352
      %v1354 = vpop.f32.mrf.mxu0
      %1355 = vdwg.mxu0
      %1356 = vmatpush.bf16.msra.mxu0 %v1059
      %1357 = vmatpush.bf16.msra.mxu0 %v1052
      %1358 = vmatpush.bf16.msra.mxu0 %v1045
      %1359 = vmatpush.bf16.msra.mxu0 %v1038
      %1360 = vmatpush.bf16.msra.mxu0 %v1031
      %1361 = vmatpush.bf16.msra.mxu0 %v1024
      %1362 = vmatpush.bf16.msra.mxu0 %v1017
      %1363 = vmatpush.bf16.msra.mxu0 %v1010
      %1364 = vmatmul.bf16.gmra.mxu0 %v466
      %v1365 = vpop.f32.mrf.mxu0
      %v1366 = vadd.f32 %v1353, %v1365
      %v1367 = vpop.f32.mrf.mxu0
      %1368 = vdwg.mxu0
      %v1369 = vadd.f32 %v1210, 3.0
      %v1370 = vadd.f32 %v1236, 3.0
      %v1371 = vadd.f32 %v1262, 3.0
      %v1372 = vadd.f32 %v1288, 3.0
      %v1373 = vadd.f32 %v1314, 3.0
      %v1374 = vadd.f32 %v1340, 3.0
      %v1375 = vadd.f32 %v1366, 3.0
      %v1376 = vmax.f32 %v1369, 0.0
      %v1377 = vmax.f32 %v1370, 0.0
      %v1378 = vmax.f32 %v1371, 0.0
      %v1379 = vmax.f32 %v1372, 0.0
      %v1380 = vmax.f32 %v1373, 0.0
      %v1381 = vmax.f32 %v1374, 0.0
      %v1382 = vmax.f32 %v1375, 0.0
      %v1383 = vmin.f32 %v1376, 6.0
      %v1384 = vmin.f32 %v1377, 6.0
      %v1385 = vmin.f32 %v1378, 6.0
      %v1386 = vmin.f32 %v1379, 6.0
      %v1387 = vmin.f32 %v1380, 6.0
      %v1388 = vmin.f32 %v1381, 6.0
      %v1389 = vmin.f32 %v1382, 6.0
      %v1390 = vmul.f32 %v1210, %v1383
      %v1391 = vmul.f32 %v1236, %v1384
      %v1392 = vmul.f32 %v1262, %v1385
      %v1393 = vmul.f32 %v1288, %v1386
      %v1394 = vmul.f32 %v1314, %v1387
      %v1395 = vmul.f32 %v1340, %v1388
      %v1396 = vmul.f32 %v1366, %v1389
      %v1397 = vmul.f32 %v1390, %v437
      %v1398 = vmul.f32 %v1391, %v437
      %v1399 = vmul.f32 %v1392, %v437
      %v1400 = vmul.f32 %v1393, %v437
      %v1401 = vmul.f32 %v1394, %v437
      %v1402 = vmul.f32 %v1395, %v437
      %v1403 = vmul.f32 %v1396, %v437
      %v1404 = vpack.c.bf16 %v1397, %v1397
      %v1405 = vpack.c.bf16 %v1398, %v1398
      %v1406 = vpack.c.bf16 %v1399, %v1399
      %v1407 = vpack.c.bf16 %v1400, %v1400
      %v1408 = vpack.c.bf16 %v1401, %v1401
      %v1409 = vpack.c.bf16 %v1402, %v1402
      %v1410 = vpack.c.bf16 %v1403, %v1403
      %v1411 = vld [vmem:[%s5] sm:$0xff]
      %v1412 = vld [vmem:[%s5 + $0x8] sm:$0xff]
      %v1413 = vld [vmem:[%s5 + $0x10] sm:$0xff]
      %v1414 = vld [vmem:[%s5 + $0x18] sm:$0xff]
      %v1415 = vld [vmem:[%s5 + $0x20] sm:$0xff]
      %v1416 = vld [vmem:[%s5 + $0x28] sm:$0xff]
      %v1417 = vld [vmem:[%s5 + $0x30] sm:$0xff]
      %v1418 = vld [vmem:[%s5 + $0x38] sm:$0xff]
      %v1419 = vld [vmem:[%s5 + $0x40] sm:$0xff]
      %v1420 = vld [vmem:[%s5 + $0x48] sm:$0xff]
      %v1421 = vld [vmem:[%s5 + $0x50] sm:$0xff]
      %v1422 = vld [vmem:[%s5 + $0x58] sm:$0xff]
      %v1423 = vld [vmem:[%s5 + $0x60] sm:$0xff]
      %v1424 = vld [vmem:[%s5 + $0x68] sm:$0xff]
      %v1425 = vld [vmem:[%s5 + $0x70] sm:$0xff]
      %v1426 = vld [vmem:[%s5 + $0x78] sm:$0xff]
      %v1427 = vld [vmem:[%s5 + $0x80] sm:$0xff]
      %v1428 = vld [vmem:[%s5 + $0x88] sm:$0xff]
      %v1429 = vld [vmem:[%s5 + $0x90] sm:$0xff]
      %v1430 = vld [vmem:[%s5 + $0x98] sm:$0xff]
      %v1431 = vld [vmem:[%s5 + $0xa0] sm:$0xff]
      %v1432 = vld [vmem:[%s5 + $0xa8] sm:$0xff]
      %v1433 = vld [vmem:[%s5 + $0xb0] sm:$0xff]
      %v1434 = vld [vmem:[%s5 + $0xb8] sm:$0xff]
      %v1435 = vld [vmem:[%s5 + $0xc0] sm:$0xff]
      %v1436 = vld [vmem:[%s5 + $0xc8] sm:$0xff]
      %v1437 = vld [vmem:[%s5 + $0xd0] sm:$0xff]
      %v1438 = vld [vmem:[%s5 + $0xd8] sm:$0xff]
      %v1439 = vld [vmem:[%s5 + $0xe0] sm:$0xff]
      %v1440 = vld [vmem:[%s5 + $0xe8] sm:$0xff]
      %v1441 = vld [vmem:[%s5 + $0xf0] sm:$0xff]
      %v1442 = vld [vmem:[%s5 + $0xf8] sm:$0xff]
      %v1443 = vld [vmem:[%s5 + $0x100] sm:$0xff]
      %v1444 = vld [vmem:[%s5 + $0x108] sm:$0xff]
      %v1445 = vld [vmem:[%s5 + $0x110] sm:$0xff]
      %v1446 = vld [vmem:[%s5 + $0x118] sm:$0xff]
      %v1447 = vld [vmem:[%s5 + $0x120] sm:$0xff]
      %v1448 = vld [vmem:[%s5 + $0x128] sm:$0xff]
      %v1449 = vld [vmem:[%s5 + $0x130] sm:$0xff]
      %v1450 = vld [vmem:[%s5 + $0x138] sm:$0xff]
      %v1451 = vld [vmem:[%s5 + $0x140] sm:$0xff]
      %v1452 = vld [vmem:[%s5 + $0x148] sm:$0xff]
      %v1453 = vld [vmem:[%s5 + $0x150] sm:$0xff]
      %v1454 = vld [vmem:[%s5 + $0x158] sm:$0xff]
      %v1455 = vld [vmem:[%s5 + $0x160] sm:$0xff]
      %v1456 = vld [vmem:[%s5 + $0x168] sm:$0xff]
      %v1457 = vld [vmem:[%s5 + $0x170] sm:$0xff]
      %v1458 = vld [vmem:[%s5 + $0x178] sm:$0xff]
      %v1459 = vld [vmem:[%s5 + $0x180] sm:$0xff]
      %v1460 = vld [vmem:[%s5 + $0x188] sm:$0xff]
      %v1461 = vld [vmem:[%s5 + $0x190] sm:$0xff]
      %v1462 = vld [vmem:[%s5 + $0x198] sm:$0xff]
      %v1463 = vld [vmem:[%s5 + $0x1a0] sm:$0xff]
      %v1464 = vld [vmem:[%s5 + $0x1a8] sm:$0xff]
      %v1465 = vld [vmem:[%s5 + $0x1b0] sm:$0xff]
      %v1466 = vld [vmem:[%s5 + $0x1b8] sm:$0xff]
      %v1467 = vld [vmem:[%s5 + $0x1c0] sm:$0xff]
      %v1468 = vld [vmem:[%s5 + $0x1c8] sm:$0xff]
      %v1469 = vld [vmem:[%s5 + $0x1d0] sm:$0xff]
      %v1470 = vld [vmem:[%s5 + $0x1d8] sm:$0xff]
      %v1471 = vld [vmem:[%s5 + $0x1e0] sm:$0xff]
      %v1472 = vld [vmem:[%s5 + $0x1e8] sm:$0xff]
      %v1473 = vld [vmem:[%s5 + $0x1f0] sm:$0xff]
      %v1474 = vld [vmem:[%s5 + $0x1f8] sm:$0xff]
      %v1475 = vld [vmem:[%s5 + $0x200] sm:$0xff]
      %v1476 = vld [vmem:[%s5 + $0x208] sm:$0xff]
      %v1477 = vld [vmem:[%s5 + $0x210] sm:$0xff]
      %v1478 = vld [vmem:[%s5 + $0x218] sm:$0xff]
      %v1479 = vld [vmem:[%s5 + $0x220] sm:$0xff]
      %v1480 = vld [vmem:[%s5 + $0x228] sm:$0xff]
      %v1481 = vld [vmem:[%s5 + $0x230] sm:$0xff]
      %v1482 = vld [vmem:[%s5 + $0x238] sm:$0xff]
      %v1483 = vld [vmem:[%s5 + $0x240] sm:$0xff]
      %v1484 = vld [vmem:[%s5 + $0x248] sm:$0xff]
      %v1485 = vld [vmem:[%s5 + $0x250] sm:$0xff]
      %v1486 = vld [vmem:[%s5 + $0x258] sm:$0xff]
      %v1487 = vld [vmem:[%s5 + $0x260] sm:$0xff]
      %v1488 = vld [vmem:[%s5 + $0x268] sm:$0xff]
      %v1489 = vld [vmem:[%s5 + $0x270] sm:$0xff]
      %v1490 = vld [vmem:[%s5 + $0x278] sm:$0xff]
      %v1491 = vld [vmem:[%s5 + $0x280] sm:$0xff]
      %v1492 = vld [vmem:[%s5 + $0x288] sm:$0xff]
      %v1493 = vld [vmem:[%s5 + $0x290] sm:$0xff]
      %v1494 = vld [vmem:[%s5 + $0x298] sm:$0xff]
      %v1495 = vld [vmem:[%s5 + $0x2a0] sm:$0xff]
      %v1496 = vld [vmem:[%s5 + $0x2a8] sm:$0xff]
      %v1497 = vld [vmem:[%s5 + $0x2b0] sm:$0xff]
      %v1498 = vld [vmem:[%s5 + $0x2b8] sm:$0xff]
      %v1499 = vld [vmem:[%s5 + $0x2c0] sm:$0xff]
      %v1500 = vld [vmem:[%s5 + $0x2c8] sm:$0xff]
      %v1501 = vld [vmem:[%s5 + $0x2d0] sm:$0xff]
      %v1502 = vld [vmem:[%s5 + $0x2d8] sm:$0xff]
      %v1503 = vld [vmem:[%s5 + $0x2e0] sm:$0xff]
      %v1504 = vld [vmem:[%s5 + $0x2e8] sm:$0xff]
      %v1505 = vld [vmem:[%s5 + $0x2f0] sm:$0xff]
      %v1506 = vld [vmem:[%s5 + $0x2f8] sm:$0xff]
      %v1507 = vld [vmem:[%s5 + $0x300] sm:$0xff]
      %v1508 = vld [vmem:[%s5 + $0x308] sm:$0xff]
      %v1509 = vld [vmem:[%s5 + $0x310] sm:$0xff]
      %v1510 = vld [vmem:[%s5 + $0x318] sm:$0xff]
      %v1511 = vld [vmem:[%s5 + $0x320] sm:$0xff]
      %v1512 = vld [vmem:[%s5 + $0x328] sm:$0xff]
      %v1513 = vld [vmem:[%s5 + $0x330] sm:$0xff]
      %v1514 = vld [vmem:[%s5 + $0x338] sm:$0xff]
      %v1515 = vld [vmem:[%s5 + $0x340] sm:$0xff]
      %v1516 = vld [vmem:[%s5 + $0x348] sm:$0xff]
      %v1517 = vld [vmem:[%s5 + $0x350] sm:$0xff]
      %v1518 = vld [vmem:[%s5 + $0x358] sm:$0xff]
      %v1519 = vld [vmem:[%s5 + $0x360] sm:$0xff]
      %v1520 = vld [vmem:[%s5 + $0x368] sm:$0xff]
      %v1521 = vld [vmem:[%s5 + $0x370] sm:$0xff]
      %v1522 = vld [vmem:[%s5 + $0x378] sm:$0xff]
      %v1523 = vld [vmem:[%s6] sm:$0x3]
      %v1636 = vunpack.c.l.b16 %v1411
      %v1637 = vunpack.c.h.b16 %v1411
      %v1638 = vunpack.c.l.b16 %v1412
      %v1639 = vunpack.c.h.b16 %v1412
      %v1640 = vunpack.c.l.b16 %v1413
      %v1641 = vunpack.c.h.b16 %v1413
      %v1642 = vunpack.c.l.b16 %v1414
      %v1643 = vunpack.c.h.b16 %v1414
      %v1644 = vunpack.c.l.b16 %v1415
      %v1645 = vunpack.c.h.b16 %v1415
      %v1646 = vunpack.c.l.b16 %v1416
      %v1647 = vunpack.c.h.b16 %v1416
      %v1648 = vunpack.c.l.b16 %v1417
      %v1649 = vunpack.c.h.b16 %v1417
      %v1650 = vunpack.c.l.b16 %v1418
      %v1651 = vunpack.c.h.b16 %v1418
      %v1652 = vunpack.c.l.b16 %v1419
      %v1653 = vunpack.c.h.b16 %v1419
      %v1654 = vunpack.c.l.b16 %v1420
      %v1655 = vunpack.c.h.b16 %v1420
      %v1656 = vunpack.c.l.b16 %v1421
      %v1657 = vunpack.c.h.b16 %v1421
      %v1658 = vunpack.c.l.b16 %v1422
      %v1659 = vunpack.c.h.b16 %v1422
      %v1660 = vunpack.c.l.b16 %v1423
      %v1661 = vunpack.c.h.b16 %v1423
      %v1662 = vunpack.c.l.b16 %v1424
      %v1663 = vunpack.c.h.b16 %v1424
      %v1664 = vunpack.c.l.b16 %v1425
      %v1665 = vunpack.c.h.b16 %v1425
      %v1666 = vunpack.c.l.b16 %v1426
      %v1667 = vunpack.c.h.b16 %v1426
      %v1668 = vunpack.c.l.b16 %v1427
      %v1669 = vunpack.c.h.b16 %v1427
      %v1670 = vunpack.c.l.b16 %v1428
      %v1671 = vunpack.c.h.b16 %v1428
      %v1672 = vunpack.c.l.b16 %v1429
      %v1673 = vunpack.c.h.b16 %v1429
      %v1674 = vunpack.c.l.b16 %v1430
      %v1675 = vunpack.c.h.b16 %v1430
      %v1676 = vunpack.c.l.b16 %v1431
      %v1677 = vunpack.c.h.b16 %v1431
      %v1678 = vunpack.c.l.b16 %v1432
      %v1679 = vunpack.c.h.b16 %v1432
      %v1680 = vunpack.c.l.b16 %v1433
      %v1681 = vunpack.c.h.b16 %v1433
      %v1682 = vunpack.c.l.b16 %v1434
      %v1683 = vunpack.c.h.b16 %v1434
      %v1684 = vunpack.c.l.b16 %v1435
      %v1685 = vunpack.c.h.b16 %v1435
      %v1686 = vunpack.c.l.b16 %v1436
      %v1687 = vunpack.c.h.b16 %v1436
      %v1688 = vunpack.c.l.b16 %v1437
      %v1689 = vunpack.c.h.b16 %v1437
      %v1690 = vunpack.c.l.b16 %v1438
      %v1691 = vunpack.c.h.b16 %v1438
      %v1692 = vunpack.c.l.b16 %v1439
      %v1693 = vunpack.c.h.b16 %v1439
      %v1694 = vunpack.c.l.b16 %v1440
      %v1695 = vunpack.c.h.b16 %v1440
      %v1696 = vunpack.c.l.b16 %v1441
      %v1697 = vunpack.c.h.b16 %v1441
      %v1698 = vunpack.c.l.b16 %v1442
      %v1699 = vunpack.c.h.b16 %v1442
      %v1700 = vunpack.c.l.b16 %v1443
      %v1701 = vunpack.c.h.b16 %v1443
      %v1702 = vunpack.c.l.b16 %v1444
      %v1703 = vunpack.c.h.b16 %v1444
      %v1704 = vunpack.c.l.b16 %v1445
      %v1705 = vunpack.c.h.b16 %v1445
      %v1706 = vunpack.c.l.b16 %v1446
      %v1707 = vunpack.c.h.b16 %v1446
      %v1708 = vunpack.c.l.b16 %v1447
      %v1709 = vunpack.c.h.b16 %v1447
      %v1710 = vunpack.c.l.b16 %v1448
      %v1711 = vunpack.c.h.b16 %v1448
      %v1712 = vunpack.c.l.b16 %v1449
      %v1713 = vunpack.c.h.b16 %v1449
      %v1714 = vunpack.c.l.b16 %v1450
      %v1715 = vunpack.c.h.b16 %v1450
      %v1716 = vunpack.c.l.b16 %v1451
      %v1717 = vunpack.c.h.b16 %v1451
      %v1718 = vunpack.c.l.b16 %v1452
      %v1719 = vunpack.c.h.b16 %v1452
      %v1720 = vunpack.c.l.b16 %v1453
      %v1721 = vunpack.c.h.b16 %v1453
      %v1722 = vunpack.c.l.b16 %v1454
      %v1723 = vunpack.c.h.b16 %v1454
      %v1724 = vunpack.c.l.b16 %v1455
      %v1725 = vunpack.c.h.b16 %v1455
      %v1726 = vunpack.c.l.b16 %v1456
      %v1727 = vunpack.c.h.b16 %v1456
      %v1728 = vunpack.c.l.b16 %v1457
      %v1729 = vunpack.c.h.b16 %v1457
      %v1730 = vunpack.c.l.b16 %v1458
      %v1731 = vunpack.c.h.b16 %v1458
      %v1732 = vunpack.c.l.b16 %v1459
      %v1733 = vunpack.c.h.b16 %v1459
      %v1734 = vunpack.c.l.b16 %v1460
      %v1735 = vunpack.c.h.b16 %v1460
      %v1736 = vunpack.c.l.b16 %v1461
      %v1737 = vunpack.c.h.b16 %v1461
      %v1738 = vunpack.c.l.b16 %v1462
      %v1739 = vunpack.c.h.b16 %v1462
      %v1740 = vunpack.c.l.b16 %v1463
      %v1741 = vunpack.c.h.b16 %v1463
      %v1742 = vunpack.c.l.b16 %v1464
      %v1743 = vunpack.c.h.b16 %v1464
      %v1744 = vunpack.c.l.b16 %v1465
      %v1745 = vunpack.c.h.b16 %v1465
      %v1746 = vunpack.c.l.b16 %v1466
      %v1747 = vunpack.c.h.b16 %v1466
      %v1748 = vunpack.c.l.b16 %v1467
      %v1749 = vunpack.c.h.b16 %v1467
      %v1750 = vunpack.c.l.b16 %v1468
      %v1751 = vunpack.c.h.b16 %v1468
      %v1752 = vunpack.c.l.b16 %v1469
      %v1753 = vunpack.c.h.b16 %v1469
      %v1754 = vunpack.c.l.b16 %v1470
      %v1755 = vunpack.c.h.b16 %v1470
      %v1756 = vunpack.c.l.b16 %v1471
      %v1757 = vunpack.c.h.b16 %v1471
      %v1758 = vunpack.c.l.b16 %v1472
      %v1759 = vunpack.c.h.b16 %v1472
      %v1760 = vunpack.c.l.b16 %v1473
      %v1761 = vunpack.c.h.b16 %v1473
      %v1762 = vunpack.c.l.b16 %v1474
      %v1763 = vunpack.c.h.b16 %v1474
      %v1764 = vunpack.c.l.b16 %v1475
      %v1765 = vunpack.c.h.b16 %v1475
      %v1766 = vunpack.c.l.b16 %v1476
      %v1767 = vunpack.c.h.b16 %v1476
      %v1768 = vunpack.c.l.b16 %v1477
      %v1769 = vunpack.c.h.b16 %v1477
      %v1770 = vunpack.c.l.b16 %v1478
      %v1771 = vunpack.c.h.b16 %v1478
      %v1772 = vunpack.c.l.b16 %v1479
      %v1773 = vunpack.c.h.b16 %v1479
      %v1774 = vunpack.c.l.b16 %v1480
      %v1775 = vunpack.c.h.b16 %v1480
      %v1776 = vunpack.c.l.b16 %v1481
      %v1777 = vunpack.c.h.b16 %v1481
      %v1778 = vunpack.c.l.b16 %v1482
      %v1779 = vunpack.c.h.b16 %v1482
      %v1780 = vunpack.c.l.b16 %v1483
      %v1781 = vunpack.c.h.b16 %v1483
      %v1782 = vunpack.c.l.b16 %v1484
      %v1783 = vunpack.c.h.b16 %v1484
      %v1784 = vunpack.c.l.b16 %v1485
      %v1785 = vunpack.c.h.b16 %v1485
      %v1786 = vunpack.c.l.b16 %v1486
      %v1787 = vunpack.c.h.b16 %v1486
      %v1788 = vunpack.c.l.b16 %v1487
      %v1789 = vunpack.c.h.b16 %v1487
      %v1790 = vunpack.c.l.b16 %v1488
      %v1791 = vunpack.c.h.b16 %v1488
      %v1792 = vunpack.c.l.b16 %v1489
      %v1793 = vunpack.c.h.b16 %v1489
      %v1794 = vunpack.c.l.b16 %v1490
      %v1795 = vunpack.c.h.b16 %v1490
      %v1796 = vunpack.c.l.b16 %v1491
      %v1797 = vunpack.c.h.b16 %v1491
      %v1798 = vunpack.c.l.b16 %v1492
      %v1799 = vunpack.c.h.b16 %v1492
      %v1800 = vunpack.c.l.b16 %v1493
      %v1801 = vunpack.c.h.b16 %v1493
      %v1802 = vunpack.c.l.b16 %v1494
      %v1803 = vunpack.c.h.b16 %v1494
      %v1804 = vunpack.c.l.b16 %v1495
      %v1805 = vunpack.c.h.b16 %v1495
      %v1806 = vunpack.c.l.b16 %v1496
      %v1807 = vunpack.c.h.b16 %v1496
      %v1808 = vunpack.c.l.b16 %v1497
      %v1809 = vunpack.c.h.b16 %v1497
      %v1810 = vunpack.c.l.b16 %v1498
      %v1811 = vunpack.c.h.b16 %v1498
      %v1812 = vunpack.c.l.b16 %v1499
      %v1813 = vunpack.c.h.b16 %v1499
      %v1814 = vunpack.c.l.b16 %v1500
      %v1815 = vunpack.c.h.b16 %v1500
      %v1816 = vunpack.c.l.b16 %v1501
      %v1817 = vunpack.c.h.b16 %v1501
      %v1818 = vunpack.c.l.b16 %v1502
      %v1819 = vunpack.c.h.b16 %v1502
      %v1820 = vunpack.c.l.b16 %v1503
      %v1821 = vunpack.c.h.b16 %v1503
      %v1822 = vunpack.c.l.b16 %v1504
      %v1823 = vunpack.c.h.b16 %v1504
      %v1824 = vunpack.c.l.b16 %v1505
      %v1825 = vunpack.c.h.b16 %v1505
      %v1826 = vunpack.c.l.b16 %v1506
      %v1827 = vunpack.c.h.b16 %v1506
      %v1828 = vunpack.c.l.b16 %v1507
      %v1829 = vunpack.c.h.b16 %v1507
      %v1830 = vunpack.c.l.b16 %v1508
      %v1831 = vunpack.c.h.b16 %v1508
      %v1832 = vunpack.c.l.b16 %v1509
      %v1833 = vunpack.c.h.b16 %v1509
      %v1834 = vunpack.c.l.b16 %v1510
      %v1835 = vunpack.c.h.b16 %v1510
      %v1836 = vunpack.c.l.b16 %v1511
      %v1837 = vunpack.c.h.b16 %v1511
      %v1838 = vunpack.c.l.b16 %v1512
      %v1839 = vunpack.c.h.b16 %v1512
      %v1840 = vunpack.c.l.b16 %v1513
      %v1841 = vunpack.c.h.b16 %v1513
      %v1842 = vunpack.c.l.b16 %v1514
      %v1843 = vunpack.c.h.b16 %v1514
      %v1844 = vunpack.c.l.b16 %v1515
      %v1845 = vunpack.c.h.b16 %v1515
      %v1846 = vunpack.c.l.b16 %v1516
      %v1847 = vunpack.c.h.b16 %v1516
      %v1848 = vunpack.c.l.b16 %v1517
      %v1849 = vunpack.c.h.b16 %v1517
      %v1850 = vunpack.c.l.b16 %v1518
      %v1851 = vunpack.c.h.b16 %v1518
      %v1852 = vunpack.c.l.b16 %v1519
      %v1853 = vunpack.c.h.b16 %v1519
      %v1854 = vunpack.c.l.b16 %v1520
      %v1855 = vunpack.c.h.b16 %v1520
      %v1856 = vunpack.c.l.b16 %v1521
      %v1857 = vunpack.c.h.b16 %v1521
      %v1858 = vunpack.c.l.b16 %v1522
      %v1859 = vunpack.c.h.b16 %v1522
      %v1860 = vpack.c.b16 %v1638, %v1636
      %v1861 = vpack.c.b16 %v1639, %v1637
      %v1862 = vpack.c.b16 %v1642, %v1640
      %v1863 = vpack.c.b16 %v1643, %v1641
      %v1864 = vpack.c.b16 %v1646, %v1644
      %v1865 = vpack.c.b16 %v1647, %v1645
      %v1866 = vpack.c.b16 %v1650, %v1648
      %v1867 = vpack.c.b16 %v1651, %v1649
      %v1868 = vpack.c.b16 %v1654, %v1652
      %v1869 = vpack.c.b16 %v1655, %v1653
      %v1870 = vpack.c.b16 %v1658, %v1656
      %v1871 = vpack.c.b16 %v1659, %v1657
      %v1872 = vpack.c.b16 %v1662, %v1660
      %v1873 = vpack.c.b16 %v1663, %v1661
      %v1874 = vpack.c.b16 %v1666, %v1664
      %v1875 = vpack.c.b16 %v1667, %v1665
      %v1876 = vpack.c.b16 %v1670, %v1668
      %v1877 = vpack.c.b16 %v1671, %v1669
      %v1878 = vpack.c.b16 %v1674, %v1672
      %v1879 = vpack.c.b16 %v1675, %v1673
      %v1880 = vpack.c.b16 %v1678, %v1676
      %v1881 = vpack.c.b16 %v1679, %v1677
      %v1882 = vpack.c.b16 %v1682, %v1680
      %v1883 = vpack.c.b16 %v1683, %v1681
      %v1884 = vpack.c.b16 %v1686, %v1684
      %v1885 = vpack.c.b16 %v1687, %v1685
      %v1886 = vpack.c.b16 %v1690, %v1688
      %v1887 = vpack.c.b16 %v1691, %v1689
      %v1888 = vpack.c.b16 %v1694, %v1692
      %v1889 = vpack.c.b16 %v1695, %v1693
      %v1890 = vpack.c.b16 %v1698, %v1696
      %v1891 = vpack.c.b16 %v1699, %v1697
      %v1892 = vpack.c.b16 %v1702, %v1700
      %v1893 = vpack.c.b16 %v1703, %v1701
      %v1894 = vpack.c.b16 %v1706, %v1704
      %v1895 = vpack.c.b16 %v1707, %v1705
      %v1896 = vpack.c.b16 %v1710, %v1708
      %v1897 = vpack.c.b16 %v1711, %v1709
      %v1898 = vpack.c.b16 %v1714, %v1712
      %v1899 = vpack.c.b16 %v1715, %v1713
      %v1900 = vpack.c.b16 %v1718, %v1716
      %v1901 = vpack.c.b16 %v1719, %v1717
      %v1902 = vpack.c.b16 %v1722, %v1720
      %v1903 = vpack.c.b16 %v1723, %v1721
      %v1904 = vpack.c.b16 %v1726, %v1724
      %v1905 = vpack.c.b16 %v1727, %v1725
      %v1906 = vpack.c.b16 %v1730, %v1728
      %v1907 = vpack.c.b16 %v1731, %v1729
      %v1908 = vpack.c.b16 %v1734, %v1732
      %v1909 = vpack.c.b16 %v1735, %v1733
      %v1910 = vpack.c.b16 %v1738, %v1736
      %v1911 = vpack.c.b16 %v1739, %v1737
      %v1912 = vpack.c.b16 %v1742, %v1740
      %v1913 = vpack.c.b16 %v1743, %v1741
      %v1914 = vpack.c.b16 %v1746, %v1744
      %v1915 = vpack.c.b16 %v1747, %v1745
      %v1916 = vpack.c.b16 %v1750, %v1748
      %v1917 = vpack.c.b16 %v1751, %v1749
      %v1918 = vpack.c.b16 %v1754, %v1752
      %v1919 = vpack.c.b16 %v1755, %v1753
      %v1920 = vpack.c.b16 %v1758, %v1756
      %v1921 = vpack.c.b16 %v1759, %v1757
      %v1922 = vpack.c.b16 %v1762, %v1760
      %v1923 = vpack.c.b16 %v1763, %v1761
      %v1924 = vpack.c.b16 %v1766, %v1764
      %v1925 = vpack.c.b16 %v1767, %v1765
      %v1926 = vpack.c.b16 %v1770, %v1768
      %v1927 = vpack.c.b16 %v1771, %v1769
      %v1928 = vpack.c.b16 %v1774, %v1772
      %v1929 = vpack.c.b16 %v1775, %v1773
      %v1930 = vpack.c.b16 %v1778, %v1776
      %v1931 = vpack.c.b16 %v1779, %v1777
      %v1932 = vpack.c.b16 %v1782, %v1780
      %v1933 = vpack.c.b16 %v1783, %v1781
      %v1934 = vpack.c.b16 %v1786, %v1784
      %v1935 = vpack.c.b16 %v1787, %v1785
      %v1936 = vpack.c.b16 %v1790, %v1788
      %v1937 = vpack.c.b16 %v1791, %v1789
      %v1938 = vpack.c.b16 %v1794, %v1792
      %v1939 = vpack.c.b16 %v1795, %v1793
      %v1940 = vpack.c.b16 %v1798, %v1796
      %v1941 = vpack.c.b16 %v1799, %v1797
      %v1942 = vpack.c.b16 %v1802, %v1800
      %v1943 = vpack.c.b16 %v1803, %v1801
      %v1944 = vpack.c.b16 %v1806, %v1804
      %v1945 = vpack.c.b16 %v1807, %v1805
      %v1946 = vpack.c.b16 %v1810, %v1808
      %v1947 = vpack.c.b16 %v1811, %v1809
      %v1948 = vpack.c.b16 %v1814, %v1812
      %v1949 = vpack.c.b16 %v1815, %v1813
      %v1950 = vpack.c.b16 %v1818, %v1816
      %v1951 = vpack.c.b16 %v1819, %v1817
      %v1952 = vpack.c.b16 %v1822, %v1820
      %v1953 = vpack.c.b16 %v1823, %v1821
      %v1954 = vpack.c.b16 %v1826, %v1824
      %v1955 = vpack.c.b16 %v1827, %v1825
      %v1956 = vpack.c.b16 %v1830, %v1828
      %v1957 = vpack.c.b16 %v1831, %v1829
      %v1958 = vpack.c.b16 %v1834, %v1832
      %v1959 = vpack.c.b16 %v1835, %v1833
      %v1960 = vpack.c.b16 %v1838, %v1836
      %v1961 = vpack.c.b16 %v1839, %v1837
      %v1962 = vpack.c.b16 %v1842, %v1840
      %v1963 = vpack.c.b16 %v1843, %v1841
      %v1964 = vpack.c.b16 %v1846, %v1844
      %v1965 = vpack.c.b16 %v1847, %v1845
      %v1966 = vpack.c.b16 %v1850, %v1848
      %v1967 = vpack.c.b16 %v1851, %v1849
      %v1968 = vpack.c.b16 %v1854, %v1852
      %v1969 = vpack.c.b16 %v1855, %v1853
      %v1970 = vpack.c.b16 %v1858, %v1856
      %v1971 = vpack.c.b16 %v1859, %v1857
      %v2085 = vperm.slane %v1523, 0
      %v2086 = vperm.slane %v1523, 1
      %2089 = vmatpush.bf16.msra.mxu0 %v1874
      %2090 = vmatpush.bf16.msra.mxu0 %v1872
      %2091 = vmatpush.bf16.msra.mxu0 %v1870
      %2092 = vmatpush.bf16.msra.mxu0 %v1868
      %2093 = vmatpush.bf16.msra.mxu0 %v1866
      %2094 = vmatpush.bf16.msra.mxu0 %v1864
      %2095 = vmatpush.bf16.msra.mxu0 %v1862
      %2096 = vmatpush.bf16.msra.mxu0 %v1860
      %2097 = vmatmul.bf16.gmra.mxu0 %v1404
      %v2098 = vpop.f32.mrf.mxu0
      %v2099 = vadd.f32 %v2085, %v2098
      %v2100 = vpop.f32.mrf.mxu0
      %2101 = vdwg.mxu0
      %2102 = vmatpush.bf16.msra.mxu0 %v1890
      %2103 = vmatpush.bf16.msra.mxu0 %v1888
      %2104 = vmatpush.bf16.msra.mxu0 %v1886
      %2105 = vmatpush.bf16.msra.mxu0 %v1884
      %2106 = vmatpush.bf16.msra.mxu0 %v1882
      %2107 = vmatpush.bf16.msra.mxu0 %v1880
      %2108 = vmatpush.bf16.msra.mxu0 %v1878
      %2109 = vmatpush.bf16.msra.mxu0 %v1876
      %2110 = vmatmul.bf16.gmra.mxu0 %v1405
      %v2111 = vpop.f32.mrf.mxu0
      %v2112 = vadd.f32 %v2099, %v2111
      %v2113 = vpop.f32.mrf.mxu0
      %2114 = vdwg.mxu0
      %2115 = vmatpush.bf16.msra.mxu0 %v1906
      %2116 = vmatpush.bf16.msra.mxu0 %v1904
      %2117 = vmatpush.bf16.msra.mxu0 %v1902
      %2118 = vmatpush.bf16.msra.mxu0 %v1900
      %2119 = vmatpush.bf16.msra.mxu0 %v1898
      %2120 = vmatpush.bf16.msra.mxu0 %v1896
      %2121 = vmatpush.bf16.msra.mxu0 %v1894
      %2122 = vmatpush.bf16.msra.mxu0 %v1892
      %2123 = vmatmul.bf16.gmra.mxu0 %v1406
      %v2124 = vpop.f32.mrf.mxu0
      %v2125 = vadd.f32 %v2112, %v2124
      %v2126 = vpop.f32.mrf.mxu0
      %2127 = vdwg.mxu0
      %2128 = vmatpush.bf16.msra.mxu0 %v1922
      %2129 = vmatpush.bf16.msra.mxu0 %v1920
      %2130 = vmatpush.bf16.msra.mxu0 %v1918
      %2131 = vmatpush.bf16.msra.mxu0 %v1916
      %2132 = vmatpush.bf16.msra.mxu0 %v1914
      %2133 = vmatpush.bf16.msra.mxu0 %v1912
      %2134 = vmatpush.bf16.msra.mxu0 %v1910
      %2135 = vmatpush.bf16.msra.mxu0 %v1908
      %2136 = vmatmul.bf16.gmra.mxu0 %v1407
      %v2137 = vpop.f32.mrf.mxu0
      %v2138 = vadd.f32 %v2125, %v2137
      %v2139 = vpop.f32.mrf.mxu0
      %2140 = vdwg.mxu0
      %2141 = vmatpush.bf16.msra.mxu0 %v1938
      %2142 = vmatpush.bf16.msra.mxu0 %v1936
      %2143 = vmatpush.bf16.msra.mxu0 %v1934
      %2144 = vmatpush.bf16.msra.mxu0 %v1932
      %2145 = vmatpush.bf16.msra.mxu0 %v1930
      %2146 = vmatpush.bf16.msra.mxu0 %v1928
      %2147 = vmatpush.bf16.msra.mxu0 %v1926
      %2148 = vmatpush.bf16.msra.mxu0 %v1924
      %2149 = vmatmul.bf16.gmra.mxu0 %v1408
      %v2150 = vpop.f32.mrf.mxu0
      %v2151 = vadd.f32 %v2138, %v2150
      %v2152 = vpop.f32.mrf.mxu0
      %2153 = vdwg.mxu0
      %2154 = vmatpush.bf16.msra.mxu0 %v1954
      %2155 = vmatpush.bf16.msra.mxu0 %v1952
      %2156 = vmatpush.bf16.msra.mxu0 %v1950
      %2157 = vmatpush.bf16.msra.mxu0 %v1948
      %2158 = vmatpush.bf16.msra.mxu0 %v1946
      %2159 = vmatpush.bf16.msra.mxu0 %v1944
      %2160 = vmatpush.bf16.msra.mxu0 %v1942
      %2161 = vmatpush.bf16.msra.mxu0 %v1940
      %2162 = vmatmul.bf16.gmra.mxu0 %v1409
      %v2163 = vpop.f32.mrf.mxu0
      %v2164 = vadd.f32 %v2151, %v2163
      %v2165 = vpop.f32.mrf.mxu0
      %2166 = vdwg.mxu0
      %2167 = vmatpush.bf16.msra.mxu0 %v1970
      %2168 = vmatpush.bf16.msra.mxu0 %v1968
      %2169 = vmatpush.bf16.msra.mxu0 %v1966
      %2170 = vmatpush.bf16.msra.mxu0 %v1964
      %2171 = vmatpush.bf16.msra.mxu0 %v1962
      %2172 = vmatpush.bf16.msra.mxu0 %v1960
      %2173 = vmatpush.bf16.msra.mxu0 %v1958
      %2174 = vmatpush.bf16.msra.mxu0 %v1956
      %2175 = vmatmul.bf16.gmra.mxu0 %v1410
      %v2176 = vpop.f32.mrf.mxu0
      %v2177 = vadd.f32 %v2164, %v2176
      %v2178 = vpop.f32.mrf.mxu0
      %2179 = vdwg.mxu0
      %2180 = vmatpush.bf16.msra.mxu0 %v1875
      %2181 = vmatpush.bf16.msra.mxu0 %v1873
      %2182 = vmatpush.bf16.msra.mxu0 %v1871
      %2183 = vmatpush.bf16.msra.mxu0 %v1869
      %2184 = vmatpush.bf16.msra.mxu0 %v1867
      %2185 = vmatpush.bf16.msra.mxu0 %v1865
      %2186 = vmatpush.bf16.msra.mxu0 %v1863
      %2187 = vmatpush.bf16.msra.mxu0 %v1861
      %2188 = vmatmul.bf16.gmra.mxu0 %v1404
      %v2189 = vpop.f32.mrf.mxu0
      %v2190 = vadd.f32 %v2086, %v2189
      %v2191 = vpop.f32.mrf.mxu0
      %2192 = vdwg.mxu0
      %2193 = vmatpush.bf16.msra.mxu0 %v1891
      %2194 = vmatpush.bf16.msra.mxu0 %v1889
      %2195 = vmatpush.bf16.msra.mxu0 %v1887
      %2196 = vmatpush.bf16.msra.mxu0 %v1885
      %2197 = vmatpush.bf16.msra.mxu0 %v1883
      %2198 = vmatpush.bf16.msra.mxu0 %v1881
      %2199 = vmatpush.bf16.msra.mxu0 %v1879
      %2200 = vmatpush.bf16.msra.mxu0 %v1877
      %2201 = vmatmul.bf16.gmra.mxu0 %v1405
      %v2202 = vpop.f32.mrf.mxu0
      %v2203 = vadd.f32 %v2190, %v2202
      %v2204 = vpop.f32.mrf.mxu0
      %2205 = vdwg.mxu0
      %2206 = vmatpush.bf16.msra.mxu0 %v1907
      %2207 = vmatpush.bf16.msra.mxu0 %v1905
      %2208 = vmatpush.bf16.msra.mxu0 %v1903
      %2209 = vmatpush.bf16.msra.mxu0 %v1901
      %2210 = vmatpush.bf16.msra.mxu0 %v1899
      %2211 = vmatpush.bf16.msra.mxu0 %v1897
      %2212 = vmatpush.bf16.msra.mxu0 %v1895
      %2213 = vmatpush.bf16.msra.mxu0 %v1893
      %2214 = vmatmul.bf16.gmra.mxu0 %v1406
      %v2215 = vpop.f32.mrf.mxu0
      %v2216 = vadd.f32 %v2203, %v2215
      %v2217 = vpop.f32.mrf.mxu0
      %2218 = vdwg.mxu0
      %2219 = vmatpush.bf16.msra.mxu0 %v1923
      %2220 = vmatpush.bf16.msra.mxu0 %v1921
      %2221 = vmatpush.bf16.msra.mxu0 %v1919
      %2222 = vmatpush.bf16.msra.mxu0 %v1917
      %2223 = vmatpush.bf16.msra.mxu0 %v1915
      %2224 = vmatpush.bf16.msra.mxu0 %v1913
      %2225 = vmatpush.bf16.msra.mxu0 %v1911
      %2226 = vmatpush.bf16.msra.mxu0 %v1909
      %2227 = vmatmul.bf16.gmra.mxu0 %v1407
      %v2228 = vpop.f32.mrf.mxu0
      %v2229 = vadd.f32 %v2216, %v2228
      %v2230 = vpop.f32.mrf.mxu0
      %2231 = vdwg.mxu0
      %2232 = vmatpush.bf16.msra.mxu0 %v1939
      %2233 = vmatpush.bf16.msra.mxu0 %v1937
      %2234 = vmatpush.bf16.msra.mxu0 %v1935
      %2235 = vmatpush.bf16.msra.mxu0 %v1933
      %2236 = vmatpush.bf16.msra.mxu0 %v1931
      %2237 = vmatpush.bf16.msra.mxu0 %v1929
      %2238 = vmatpush.bf16.msra.mxu0 %v1927
      %2239 = vmatpush.bf16.msra.mxu0 %v1925
      %2240 = vmatmul.bf16.gmra.mxu0 %v1408
      %v2241 = vpop.f32.mrf.mxu0
      %v2242 = vadd.f32 %v2229, %v2241
      %v2243 = vpop.f32.mrf.mxu0
      %2244 = vdwg.mxu0
      %2245 = vmatpush.bf16.msra.mxu0 %v1955
      %2246 = vmatpush.bf16.msra.mxu0 %v1953
      %2247 = vmatpush.bf16.msra.mxu0 %v1951
      %2248 = vmatpush.bf16.msra.mxu0 %v1949
      %2249 = vmatpush.bf16.msra.mxu0 %v1947
      %2250 = vmatpush.bf16.msra.mxu0 %v1945
      %2251 = vmatpush.bf16.msra.mxu0 %v1943
      %2252 = vmatpush.bf16.msra.mxu0 %v1941
      %2253 = vmatmul.bf16.gmra.mxu0 %v1409
      %v2254 = vpop.f32.mrf.mxu0
      %v2255 = vadd.f32 %v2242, %v2254
      %v2256 = vpop.f32.mrf.mxu0
      %2257 = vdwg.mxu0
      %2258 = vmatpush.bf16.msra.mxu0 %v1971
      %2259 = vmatpush.bf16.msra.mxu0 %v1969
      %2260 = vmatpush.bf16.msra.mxu0 %v1967
      %2261 = vmatpush.bf16.msra.mxu0 %v1965
      %2262 = vmatpush.bf16.msra.mxu0 %v1963
      %2263 = vmatpush.bf16.msra.mxu0 %v1961
      %2264 = vmatpush.bf16.msra.mxu0 %v1959
      %2265 = vmatpush.bf16.msra.mxu0 %v1957
      %2266 = vmatmul.bf16.gmra.mxu0 %v1410
      %v2267 = vpop.f32.mrf.mxu0
      %v2268 = vadd.f32 %v2255, %v2267
      %v2269 = vpop.f32.mrf.mxu0
      %2270 = vdwg.mxu0
      %v2273 = vrot.slane %v2268, 7
      %vm2274 = vcmask 1040384
      %v2275 = vsel %vm2274, %v2177, %v2273
      %v2277 = vlaneseq
      %vm2278 = vcmp.ge.s32.totalorder %v2277, 0
      %vm2279 = vcmp.lt.s32.totalorder %v2277, 256
      %vm2280 = vmand %vm2278, %vm2279
      %2281 = vst.msk [vmem:[%s276] sm:$0x3] %vm2280, %v2275
      %p2282 = scmp.lt.s32.totalorder %s18, 1
      %s2283 = scalar_select %p2282, %s18, 1
      %s2284 = smul.addr %s2283, 2
      %s2285 = scalar_lea.vmem %s7, %s2284
      // Predicated region
      $region49: #{forward.9} parent=47 // pred_check
        %p2286 = pneg %p188
      $region50: #{forward.9} parent=47 // pred_check_branch
        %2288 = sbr.rel (%p2286) target = $region52
      $region51: #{forward.9} parent=47 // pred_region
        _
      $region52: #{forward.9} parent=47 // pred_fallthru
        _
    $region48: #{forward.9} parent=5 // pred_fallthru
      _
    %p2289 = scmp.le.s32.totalorder 2, %s13
    // Predicated region
    $region53: #{forward.9} parent=5 // pred_check
      %p2290 = pneg %p2289
    $region54: #{forward.9} parent=5 // pred_check_branch
      %2292 = sbr.rel (%p2290) target = $region56
    $region55: #{forward.9} parent=5 // pred_region
      %s2293 = ssub.s32 %s13, 2
      // Predicated region
      $region57: #{forward.9} parent=55 // pred_check
        %p2294 = pneg %p194
      $region58: #{forward.9} parent=55 // pred_check_branch
        %2296 = sbr.rel (%p2294) target = $region60
      $region59: #{forward.9} parent=55 // pred_region
        %p2297 = scmp.lt.s32.totalorder %s19, 1
        %s2298 = scalar_select %p2297, %s19, 1
        %s2299 = smul.addr %s2298, 2
        %s2300 = scalar_lea.vmem %s7, %s2299
      $region60: #{forward.9} parent=55 // pred_fallthru
        _
    $region56: #{forward.9} parent=5 // pred_fallthru
      _
  $region6: #{forward.9} parent=0 // loop_footer
    %s17 = sadd.s32 1, %s13
  $region7: #{forward.9} parent=0 // loop_footer_branch
    %12 = sbr.rel target = $region3
  $region8: #{forward.9} parent=0 // loop_exit
    _

// kernel: forward.8
$region0: #{forward.8}
  #allocation0 [shape = 'u32[]', space=smem, size = 0x4, offset = 0x4, fixed_abs, tag = 'smem constant byte address 0x4 - core index']
  #allocation1 [shape = 'u32[72,128]{1,0:T(1,128)}', space=vmem, size = 0x9000, scoped, tag = 'internal scratch']
  %s0 = inlined_call_operand.vmem [shape: bf16[2,25,16,128], index: 0, kind: input, shape index: {}]
  %s1 = inlined_call_operand.vmem [shape: f32[25,16,1], index: 1, kind: input, shape index: {}]
  %s2 = inlined_call_operand.vmem [shape: bf16[128,128], index: 2, kind: input, shape index: {}]
  %s3 = inlined_call_operand.vmem [shape: f32[1,128], index: 3, kind: input, shape index: {}]
  %s4 = inlined_call_operand.vmem [shape: f32[25,1,128], index: 4, kind: input, shape index: {}]
  %s5 = inlined_call_operand.vmem [shape: f32[1,128], index: 5, kind: input, shape index: {}]
  %s6 = inlined_call_operand.vmem [shape: bf16[128,128], index: 6, kind: input, shape index: {}]
  %s7 = inlined_call_operand.vmem [shape: f32[1,128], index: 7, kind: input, shape index: {}]
  %s8 = inlined_call_operand.vmem [shape: bf16[128,128], index: 8, kind: input, shape index: {}]
  %s9 = inlined_call_operand.vmem [shape: f32[1,128], index: 9, kind: input, shape index: {}]
  %s10 = inlined_call_operand.vmem [shape: bf16[128,128], index: 10, kind: input, shape index: {}]
  %s11 = inlined_call_operand.vmem [shape: f32[1,128], index: 11, kind: input, shape index: {}]
  %s12 = inlined_call_operand.vmem [shape: bf16[2,16,128], index: 12, kind: output, shape index: {}]
  %s13 = sld [smem:[#allocation0]]
  $region81: #{forward.8} parent=0
    _
  %s15 = ssub.s32 1, %s13
  %s16 = scalar_select 0, %s15, %s13
  loop: start=0, step=1, limit=4
  $region2: #{forward.8} parent=0 // loop_pre_header
    _
  $region3: #{forward.8} parent=0 // loop_header
    %s18 = sphi 0, %s22
    %p19 = scmp.ge.s32.totalorder %s18, 4
    %s28 = sphi 0, %s30
    %s31 = sphi 0, %s28
    %s32 = sphi 0, %s31
    %s48 = sphi 0, %s32
    %s52 = sphi 0, %s52
    %s54 = sphi 0, %s52
    %s55 = sphi 0, %s54
    %s69 = sphi 0, %s55
    %s73 = sphi 0, %s73
    %s75 = sphi 0, %s73
    %s76 = sphi 0, %s75
    %s90 = sphi 0, %s76
    %s94 = sphi 0, %s94
    %s96 = sphi 0, %s94
    %s97 = sphi 0, %s96
    %s111 = sphi 0, %s97
    %s115 = sphi 0, %s115
    %s117 = sphi 0, %s115
    %s118 = sphi 0, %s117
    %s132 = sphi 0, %s118
    %s136 = sphi 0, %s136
    %s138 = sphi 0, %s136
    %s139 = sphi 0, %s138
    %s153 = sphi 0, %s139
    %s157 = sphi 0, %s157
    %s159 = sphi 0, %s157
    %s160 = sphi 0, %s159
    %s174 = sphi 0, %s160
    %s178 = sphi 0, %s178
    %s180 = sphi 0, %s178
    %s181 = sphi 0, %s180
    %s195 = sphi 0, %s181
    %s199 = sphi 0, %s199
    %s201 = sphi 0, %s199
    %s202 = sphi 0, %s201
    %s216 = sphi 0, %s202
    %s220 = sphi 0, %s220
    %s222 = sphi 0, %s220
    %s223 = sphi 0, %s222
    %s237 = sphi 0, %s223
    %s241 = sphi 0, %s241
    %s243 = sphi 0, %s241
    %s244 = sphi 0, %s243
    %s258 = sphi 0, %s244
    %s262 = sphi 0, %s262
    %s264 = sphi 0, %s262
    %s265 = sphi 0, %s264
    %s279 = sphi 0, %s265
    %s285 = sphi 0, %s287
    %s288 = sphi 0, %s285
    %s289 = sphi 0, %s288
    %s305 = sphi 0, %s289
  $region4: #{forward.8} parent=0 // loop_header_branch
    %21 = sbr.rel (%p19) target = $region8
  $region5: #{forward.8} parent=0 // loop_body
    %s23 = ssub.s32 %s18, 1
    %s24 = ssub.s32 %s18, 2
    %s25 = sadd.s32 %s18, 1
    %s26 = ssub.s32 %s18, %s25
    %p27 = scmp.eq.s32.totalorder %s26, 0
    %s29 = sadd.s32 %s28, 1
    %s30 = scalar_select %p27, %s28, %s29
    %p33 = pneg %p27
    %p34 = scmp.eq.s32.totalorder %s18, 1
    %p35 = por %p33, %p34
    %p36 = scmp.ne.s32.totalorder %s28, %s31
    %p37 = scmp.eq.s32.totalorder %s18, 0
    %p38 = por %p36, %p37
    %p39 = scmp.ne.s32.totalorder %s28, %s31
    %p40 = scmp.eq.s32.totalorder %s23, 1
    %p41 = por %p39, %p40
    %p42 = scmp.ne.s32.totalorder %s31, %s32
    %p43 = scmp.eq.s32.totalorder %s23, 0
    %p44 = por %p42, %p43
    %p45 = scmp.ne.s32.totalorder %s31, %s32
    %p46 = scmp.eq.s32.totalorder %s24, 1
    %p47 = por %p45, %p46
    %p49 = scmp.ne.s32.totalorder %s32, %s48
    %p50 = scmp.eq.s32.totalorder %s24, 0
    %p51 = por %p49, %p50
    %s53 = sadd.s32 %s52, 1
    %p56 = scmp.eq.s32.totalorder %s18, 1
    %p57 = scmp.ne.s32.totalorder %s52, %s54
    %p58 = scmp.eq.s32.totalorder %s18, 0
    %p59 = por %p57, %p58
    %p60 = scmp.ne.s32.totalorder %s52, %s54
    %p61 = scmp.eq.s32.totalorder %s23, 1
    %p62 = por %p60, %p61
    %p63 = scmp.ne.s32.totalorder %s54, %s55
    %p64 = scmp.eq.s32.totalorder %s23, 0
    %p65 = por %p63, %p64
    %p66 = scmp.ne.s32.totalorder %s54, %s55
    %p67 = scmp.eq.s32.totalorder %s24, 1
    %p68 = por %p66, %p67
    %p70 = scmp.ne.s32.totalorder %s55, %s69
    %p71 = scmp.eq.s32.totalorder %s24, 0
    %p72 = por %p70, %p71
    %s74 = sadd.s32 %s73, 1
    %p77 = scmp.eq.s32.totalorder %s18, 1
    %p78 = scmp.ne.s32.totalorder %s73, %s75
    %p79 = scmp.eq.s32.totalorder %s18, 0
    %p80 = por %p78, %p79
    %p81 = scmp.ne.s32.totalorder %s73, %s75
    %p82 = scmp.eq.s32.totalorder %s23, 1
    %p83 = por %p81, %p82
    %p84 = scmp.ne.s32.totalorder %s75, %s76
    %p85 = scmp.eq.s32.totalorder %s23, 0
    %p86 = por %p84, %p85
    %p87 = scmp.ne.s32.totalorder %s75, %s76
    %p88 = scmp.eq.s32.totalorder %s24, 1
    %p89 = por %p87, %p88
    %p91 = scmp.ne.s32.totalorder %s76, %s90
    %p92 = scmp.eq.s32.totalorder %s24, 0
    %p93 = por %p91, %p92
    %s95 = sadd.s32 %s94, 1
    %p98 = scmp.eq.s32.totalorder %s18, 1
    %p99 = scmp.ne.s32.totalorder %s94, %s96
    %p100 = scmp.eq.s32.totalorder %s18, 0
    %p101 = por %p99, %p100
    %p102 = scmp.ne.s32.totalorder %s94, %s96
    %p103 = scmp.eq.s32.totalorder %s23, 1
    %p104 = por %p102, %p103
    %p105 = scmp.ne.s32.totalorder %s96, %s97
    %p106 = scmp.eq.s32.totalorder %s23, 0
    %p107 = por %p105, %p106
    %p108 = scmp.ne.s32.totalorder %s96, %s97
    %p109 = scmp.eq.s32.totalorder %s24, 1
    %p110 = por %p108, %p109
    %p112 = scmp.ne.s32.totalorder %s97, %s111
    %p113 = scmp.eq.s32.totalorder %s24, 0
    %p114 = por %p112, %p113
    %s116 = sadd.s32 %s115, 1
    %p119 = scmp.eq.s32.totalorder %s18, 1
    %p120 = scmp.ne.s32.totalorder %s115, %s117
    %p121 = scmp.eq.s32.totalorder %s18, 0
    %p122 = por %p120, %p121
    %p123 = scmp.ne.s32.totalorder %s115, %s117
    %p124 = scmp.eq.s32.totalorder %s23, 1
    %p125 = por %p123, %p124
    %p126 = scmp.ne.s32.totalorder %s117, %s118
    %p127 = scmp.eq.s32.totalorder %s23, 0
    %p128 = por %p126, %p127
    %p129 = scmp.ne.s32.totalorder %s117, %s118
    %p130 = scmp.eq.s32.totalorder %s24, 1
    %p131 = por %p129, %p130
    %p133 = scmp.ne.s32.totalorder %s118, %s132
    %p134 = scmp.eq.s32.totalorder %s24, 0
    %p135 = por %p133, %p134
    %s137 = sadd.s32 %s136, 1
    %p140 = scmp.eq.s32.totalorder %s18, 1
    %p141 = scmp.ne.s32.totalorder %s136, %s138
    %p142 = scmp.eq.s32.totalorder %s18, 0
    %p143 = por %p141, %p142
    %p144 = scmp.ne.s32.totalorder %s136, %s138
    %p145 = scmp.eq.s32.totalorder %s23, 1
    %p146 = por %p144, %p145
    %p147 = scmp.ne.s32.totalorder %s138, %s139
    %p148 = scmp.eq.s32.totalorder %s23, 0
    %p149 = por %p147, %p148
    %p150 = scmp.ne.s32.totalorder %s138, %s139
    %p151 = scmp.eq.s32.totalorder %s24, 1
    %p152 = por %p150, %p151
    %p154 = scmp.ne.s32.totalorder %s139, %s153
    %p155 = scmp.eq.s32.totalorder %s24, 0
    %p156 = por %p154, %p155
    %s158 = sadd.s32 %s157, 1
    %p161 = scmp.eq.s32.totalorder %s18, 1
    %p162 = scmp.ne.s32.totalorder %s157, %s159
    %p163 = scmp.eq.s32.totalorder %s18, 0
    %p164 = por %p162, %p163
    %p165 = scmp.ne.s32.totalorder %s157, %s159
    %p166 = scmp.eq.s32.totalorder %s23, 1
    %p167 = por %p165, %p166
    %p168 = scmp.ne.s32.totalorder %s159, %s160
    %p169 = scmp.eq.s32.totalorder %s23, 0
    %p170 = por %p168, %p169
    %p171 = scmp.ne.s32.totalorder %s159, %s160
    %p172 = scmp.eq.s32.totalorder %s24, 1
    %p173 = por %p171, %p172
    %p175 = scmp.ne.s32.totalorder %s160, %s174
    %p176 = scmp.eq.s32.totalorder %s24, 0
    %p177 = por %p175, %p176
    %s179 = sadd.s32 %s178, 1
    %p182 = scmp.eq.s32.totalorder %s18, 1
    %p183 = scmp.ne.s32.totalorder %s178, %s180
    %p184 = scmp.eq.s32.totalorder %s18, 0
    %p185 = por %p183, %p184
    %p186 = scmp.ne.s32.totalorder %s178, %s180
    %p187 = scmp.eq.s32.totalorder %s23, 1
    %p188 = por %p186, %p187
    %p189 = scmp.ne.s32.totalorder %s180, %s181
    %p190 = scmp.eq.s32.totalorder %s23, 0
    %p191 = por %p189, %p190
    %p192 = scmp.ne.s32.totalorder %s180, %s181
    %p193 = scmp.eq.s32.totalorder %s24, 1
    %p194 = por %p192, %p193
    %p196 = scmp.ne.s32.totalorder %s181, %s195
    %p197 = scmp.eq.s32.totalorder %s24, 0
    %p198 = por %p196, %p197
    %s200 = sadd.s32 %s199, 1
    %p203 = scmp.eq.s32.totalorder %s18, 1
    %p204 = scmp.ne.s32.totalorder %s199, %s201
    %p205 = scmp.eq.s32.totalorder %s18, 0
    %p206 = por %p204, %p205
    %p207 = scmp.ne.s32.totalorder %s199, %s201
    %p208 = scmp.eq.s32.totalorder %s23, 1
    %p209 = por %p207, %p208
    %p210 = scmp.ne.s32.totalorder %s201, %s202
    %p211 = scmp.eq.s32.totalorder %s23, 0
    %p212 = por %p210, %p211
    %p213 = scmp.ne.s32.totalorder %s201, %s202
    %p214 = scmp.eq.s32.totalorder %s24, 1
    %p215 = por %p213, %p214
    %p217 = scmp.ne.s32.totalorder %s202, %s216
    %p218 = scmp.eq.s32.totalorder %s24, 0
    %p219 = por %p217, %p218
    %s221 = sadd.s32 %s220, 1
    %p224 = scmp.eq.s32.totalorder %s18, 1
    %p225 = scmp.ne.s32.totalorder %s220, %s222
    %p226 = scmp.eq.s32.totalorder %s18, 0
    %p227 = por %p225, %p226
    %p228 = scmp.ne.s32.totalorder %s220, %s222
    %p229 = scmp.eq.s32.totalorder %s23, 1
    %p230 = por %p228, %p229
    %p231 = scmp.ne.s32.totalorder %s222, %s223
    %p232 = scmp.eq.s32.totalorder %s23, 0
    %p233 = por %p231, %p232
    %p234 = scmp.ne.s32.totalorder %s222, %s223
    %p235 = scmp.eq.s32.totalorder %s24, 1
    %p236 = por %p234, %p235
    %p238 = scmp.ne.s32.totalorder %s223, %s237
    %p239 = scmp.eq.s32.totalorder %s24, 0
    %p240 = por %p238, %p239
    %s242 = sadd.s32 %s241, 1
    %p245 = scmp.eq.s32.totalorder %s18, 1
    %p246 = scmp.ne.s32.totalorder %s241, %s243
    %p247 = scmp.eq.s32.totalorder %s18, 0
    %p248 = por %p246, %p247
    %p249 = scmp.ne.s32.totalorder %s241, %s243
    %p250 = scmp.eq.s32.totalorder %s23, 1
    %p251 = por %p249, %p250
    %p252 = scmp.ne.s32.totalorder %s243, %s244
    %p253 = scmp.eq.s32.totalorder %s23, 0
    %p254 = por %p252, %p253
    %p255 = scmp.ne.s32.totalorder %s243, %s244
    %p256 = scmp.eq.s32.totalorder %s24, 1
    %p257 = por %p255, %p256
    %p259 = scmp.ne.s32.totalorder %s244, %s258
    %p260 = scmp.eq.s32.totalorder %s24, 0
    %p261 = por %p259, %p260
    %s263 = sadd.s32 %s262, 1
    %p266 = scmp.eq.s32.totalorder %s18, 1
    %p267 = scmp.ne.s32.totalorder %s262, %s264
    %p268 = scmp.eq.s32.totalorder %s18, 0
    %p269 = por %p267, %p268
    %p270 = scmp.ne.s32.totalorder %s262, %s264
    %p271 = scmp.eq.s32.totalorder %s23, 1
    %p272 = por %p270, %p271
    %p273 = scmp.ne.s32.totalorder %s264, %s265
    %p274 = scmp.eq.s32.totalorder %s23, 0
    %p275 = por %p273, %p274
    %p276 = scmp.ne.s32.totalorder %s264, %s265
    %p277 = scmp.eq.s32.totalorder %s24, 1
    %p278 = por %p276, %p277
    %p280 = scmp.ne.s32.totalorder %s265, %s279
    %p281 = scmp.eq.s32.totalorder %s24, 0
    %p282 = por %p280, %p281
    %s283 = ssub.s32 %s18, %s25
    %p284 = scmp.eq.s32.totalorder %s283, 0
    %s286 = sadd.s32 %s285, 1
    %s287 = scalar_select %p284, %s285, %s286
    %p290 = pneg %p284
    %p291 = scmp.eq.s32.totalorder %s18, 1
    %p292 = por %p290, %p291
    %p293 = scmp.ne.s32.totalorder %s285, %s288
    %p294 = scmp.eq.s32.totalorder %s18, 0
    %p295 = por %p293, %p294
    %p296 = scmp.ne.s32.totalorder %s285, %s288
    %p297 = scmp.eq.s32.totalorder %s23, 1
    %p298 = por %p296, %p297
    %p299 = scmp.ne.s32.totalorder %s288, %s289
    %p300 = scmp.eq.s32.totalorder %s23, 0
    %p301 = por %p299, %p300
    %p302 = scmp.ne.s32.totalorder %s288, %s289
    %p303 = scmp.eq.s32.totalorder %s24, 1
    %p304 = por %p302, %p303
    %p306 = scmp.ne.s32.totalorder %s289, %s305
    %p307 = scmp.eq.s32.totalorder %s24, 0
    %p308 = por %p306, %p307
    %p309 = scmp.le.s32.totalorder 1, %s18
    %p310 = scmp.lt.s32.totalorder %s18, 3
    %p311 = pnand %p309, %p310
    %p312 = pneg %p311
    // Predicated region
    $region9: #{forward.8} parent=5 // pred_check
      _
    $region10: #{forward.8} parent=5 // pred_check_branch
      %314 = sbr.rel (%p311) target = $region12
    $region11: #{forward.8} parent=5 // pred_region
      %s315 = ssub.s32 %s18, 1
      // Predicated region
      $region13: #{forward.8} parent=11 // pred_check
        %p316 = pneg %p65
      $region14: #{forward.8} parent=11 // pred_check_branch
        %318 = sbr.rel (%p316) target = $region16
      $region15: #{forward.8} parent=11 // pred_region
        _
      $region16: #{forward.8} parent=11 // pred_fallthru
        _
      // Predicated region
      $region17: #{forward.8} parent=11 // pred_check
        %p319 = pneg %p86
      $region18: #{forward.8} parent=11 // pred_check_branch
        %321 = sbr.rel (%p319) target = $region20
      $region19: #{forward.8} parent=11 // pred_region
        _
      $region20: #{forward.8} parent=11 // pred_fallthru
        _
      // Predicated region
      $region21: #{forward.8} parent=11 // pred_check
        %p322 = pneg %p107
      $region22: #{forward.8} parent=11 // pred_check_branch
        %324 = sbr.rel (%p322) target = $region24
      $region23: #{forward.8} parent=11 // pred_region
        _
      $region24: #{forward.8} parent=11 // pred_fallthru
        _
      // Predicated region
      $region25: #{forward.8} parent=11 // pred_check
        %p325 = pneg %p128
      $region26: #{forward.8} parent=11 // pred_check_branch
        %327 = sbr.rel (%p325) target = $region28
      $region27: #{forward.8} parent=11 // pred_region
        _
      $region28: #{forward.8} parent=11 // pred_fallthru
        _
      // Predicated region
      $region29: #{forward.8} parent=11 // pred_check
        %p328 = pneg %p149
      $region30: #{forward.8} parent=11 // pred_check_branch
        %330 = sbr.rel (%p328) target = $region32
      $region31: #{forward.8} parent=11 // pred_region
        _
      $region32: #{forward.8} parent=11 // pred_fallthru
        _
      // Predicated region
      $region33: #{forward.8} parent=11 // pred_check
        %p331 = pneg %p170
      $region34: #{forward.8} parent=11 // pred_check_branch
        %333 = sbr.rel (%p331) target = $region36
      $region35: #{forward.8} parent=11 // pred_region
        _
      $region36: #{forward.8} parent=11 // pred_fallthru
        _
      // Predicated region
      $region37: #{forward.8} parent=11 // pred_check
        %p334 = pneg %p191
      $region38: #{forward.8} parent=11 // pred_check_branch
        %336 = sbr.rel (%p334) target = $region40
      $region39: #{forward.8} parent=11 // pred_region
        _
      $region40: #{forward.8} parent=11 // pred_fallthru
        _
      // Predicated region
      $region41: #{forward.8} parent=11 // pred_check
        %p337 = pneg %p212
      $region42: #{forward.8} parent=11 // pred_check_branch
        %339 = sbr.rel (%p337) target = $region44
      $region43: #{forward.8} parent=11 // pred_region
        _
      $region44: #{forward.8} parent=11 // pred_fallthru
        _
      // Predicated region
      $region45: #{forward.8} parent=11 // pred_check
        %p340 = pneg %p233
      $region46: #{forward.8} parent=11 // pred_check_branch
        %342 = sbr.rel (%p340) target = $region48
      $region47: #{forward.8} parent=11 // pred_region
        _
      $region48: #{forward.8} parent=11 // pred_fallthru
        _
      // Predicated region
      $region49: #{forward.8} parent=11 // pred_check
        %p343 = pneg %p254
      $region50: #{forward.8} parent=11 // pred_check_branch
        %345 = sbr.rel (%p343) target = $region52
      $region51: #{forward.8} parent=11 // pred_region
        _
      $region52: #{forward.8} parent=11 // pred_fallthru
        _
      // Predicated region
      $region53: #{forward.8} parent=11 // pred_check
        %p346 = pneg %p275
      $region54: #{forward.8} parent=11 // pred_check_branch
        %348 = sbr.rel (%p346) target = $region56
      $region55: #{forward.8} parent=11 // pred_region
        _
      $region56: #{forward.8} parent=11 // pred_fallthru
        _
    $region12: #{forward.8} parent=5 // pred_fallthru
      _
    %p349 = scmp.lt.s32.totalorder %s18, 2
    // Predicated region
    $region57: #{forward.8} parent=5 // pred_check
      %p350 = pneg %p349
    $region58: #{forward.8} parent=5 // pred_check_branch
      %352 = sbr.rel (%p350) target = $region60
    $region59: #{forward.8} parent=5 // pred_region
      // Predicated region
      $region61: #{forward.8} parent=59 // pred_check
        %p353 = pneg %p38
      $region62: #{forward.8} parent=59 // pred_check_branch
        %355 = sbr.rel (%p353) target = $region64
      $region63: #{forward.8} parent=59 // pred_region
        %p356 = scmp.lt.s32.totalorder %s18, 1
        %s357 = scalar_select %p356, %s18, 1
        %s358 = smul.addr %s357, 50
        %s359 = smul.addr %s358, 4
        %s360 = scalar_lea.vmem %s0, %s359
      $region64: #{forward.8} parent=59 // pred_fallthru
        _
    $region60: #{forward.8} parent=5 // pred_fallthru
      _
    %p361 = scmp.le.s32.totalorder 1, %s18
    %p362 = scmp.lt.s32.totalorder %s18, 3
    %p363 = pnand %p361, %p362
    %p364 = pneg %p363
    // Predicated region
    $region65: #{forward.8} parent=5 // pred_check
      _
    $region66: #{forward.8} parent=5 // pred_check_branch
      %366 = sbr.rel (%p363) target = $region68
    $region67: #{forward.8} parent=5 // pred_region
      %s367 = ssub.s32 %s18, 1
      %p368 = scmp.lt.s32.totalorder %s23, 1
      %s369 = scalar_select %p368, %s23, 1
      %s370 = smul.addr %s369, 50
      %s371 = smul.addr %s370, 4
      %s372 = scalar_lea.vmem %s0, %s371
      %p373 = pneg %p44
      %p374 = pneg %p41
      %p375 = pneg %p65
      %p376 = pneg %p62
      %p377 = pneg %p86
      %p378 = pneg %p83
      %p379 = pneg %p107
      %p380 = pneg %p104
      %p381 = pneg %p128
      %p382 = pneg %p125
      %p383 = pneg %p149
      %p384 = pneg %p146
      %p385 = pneg %p170
      %p386 = pneg %p167
      %p387 = pneg %p191
      %p388 = pneg %p188
      %p389 = pneg %p212
      %p390 = pneg %p209
      %p391 = pneg %p233
      %p392 = pneg %p230
      %p393 = pneg %p254
      %p394 = pneg %p251
      %p395 = pneg %p275
      %p396 = pneg %p272
      %p397 = pneg %p301
      %p398 = pneg %p298
      %p399 = scmp.lt.s32.totalorder %s23, 1
      %s400 = scalar_select %p399, %s23, 1
      %s401 = smul.addr %s400, 2
      %s402 = smul.addr %s401, 4
      %s403 = scalar_lea.vmem %s12, %s402
      %p404 = scmp.lt.s32.totalorder %s23, 1
      %s405 = scalar_select %p404, %s23, 1
      %s406 = smul.addr %s405, 50
      %s407 = smul.addr %s406, 4
      %s408 = scalar_lea.vmem %s0, %s407
      %p409 = scmp.lt.s32.totalorder %s23, 1
      %s410 = scalar_select %p409, %s23, 1
      %s411 = smul.addr %s410, 2
      %s412 = smul.addr %s411, 4
      %s413 = scalar_lea.vmem %s12, %s412
      %v414 = vld [vmem:[%s4] sm:$0x1]
      %v415 = vld [vmem:[%s4 + $0x1] sm:$0x1]
      %v416 = vld [vmem:[%s4 + $0x2] sm:$0x1]
      %v417 = vld [vmem:[%s4 + $0x3] sm:$0x1]
      %v418 = vld [vmem:[%s4 + $0x4] sm:$0x1]
      %v419 = vld [vmem:[%s4 + $0x5] sm:$0x1]
      %v420 = vld [vmem:[%s4 + $0x6] sm:$0x1]
      %v421 = vld [vmem:[%s4 + $0x7] sm:$0x1]
      %v422 = vld [vmem:[%s4 + $0x8] sm:$0x1]
      %v423 = vld [vmem:[%s4 + $0x9] sm:$0x1]
      %v424 = vld [vmem:[%s4 + $0xa] sm:$0x1]
      %v425 = vld [vmem:[%s4 + $0xb] sm:$0x1]
      %v426 = vld [vmem:[%s4 + $0xc] sm:$0x1]
      %v427 = vld [vmem:[%s4 + $0xd] sm:$0x1]
      %v428 = vld [vmem:[%s4 + $0xe] sm:$0x1]
      %v429 = vld [vmem:[%s4 + $0xf] sm:$0x1]
      %v430 = vld [vmem:[%s4 + $0x10] sm:$0x1]
      %v431 = vld [vmem:[%s4 + $0x11] sm:$0x1]
      %v432 = vld [vmem:[%s4 + $0x12] sm:$0x1]
      %v433 = vld [vmem:[%s4 + $0x13] sm:$0x1]
      %v434 = vld [vmem:[%s4 + $0x14] sm:$0x1]
      %v435 = vld [vmem:[%s4 + $0x15] sm:$0x1]
      %v436 = vld [vmem:[%s4 + $0x16] sm:$0x1]
      %v437 = vld [vmem:[%s4 + $0x17] sm:$0x1]
      %v438 = vld [vmem:[%s4 + $0x18] sm:$0x1]
      %v439 = vld [vmem:[%s2] sm:$0xf]
      %v440 = vld [vmem:[%s2 + $0x4] sm:$0xf]
      %v441 = vld [vmem:[%s2 + $0x8] sm:$0xf]
      %v442 = vld [vmem:[%s2 + $0xc] sm:$0xf]
      %v443 = vld [vmem:[%s2 + $0x10] sm:$0xf]
      %v444 = vld [vmem:[%s2 + $0x14] sm:$0xf]
      %v445 = vld [vmem:[%s2 + $0x18] sm:$0xf]
      %v446 = vld [vmem:[%s2 + $0x1c] sm:$0xf]
      %v447 = vld [vmem:[%s2 + $0x20] sm:$0xf]
      %v448 = vld [vmem:[%s2 + $0x24] sm:$0xf]
      %v449 = vld [vmem:[%s2 + $0x28] sm:$0xf]
      %v450 = vld [vmem:[%s2 + $0x2c] sm:$0xf]
      %v451 = vld [vmem:[%s2 + $0x30] sm:$0xf]
      %v452 = vld [vmem:[%s2 + $0x34] sm:$0xf]
      %v453 = vld [vmem:[%s2 + $0x38] sm:$0xf]
      %v454 = vld [vmem:[%s2 + $0x3c] sm:$0xf]
      %v455 = vld [vmem:[%s3] sm:$0x1]
      %v456 = vld [vmem:[%s1] sm:$0xff]
      %v457 = vld [vmem:[%s1 + $0x8] sm:$0xff]
      %v458 = vld [vmem:[%s1 + $0x10] sm:$0xff]
      %v459 = vld [vmem:[%s1 + $0x18] sm:$0xff]
      %v460 = vld [vmem:[%s1 + $0x20] sm:$0xff]
      %v461 = vld [vmem:[%s1 + $0x28] sm:$0xff]
      %v462 = vld [vmem:[%s1 + $0x30] sm:$0xff]
      %v463 = vld [vmem:[%s1 + $0x38] sm:$0xff]
      %v464 = vld [vmem:[%s1 + $0x40] sm:$0xff]
      %v465 = vld [vmem:[%s1 + $0x48] sm:$0xff]
      %v466 = vld [vmem:[%s1 + $0x50] sm:$0xff]
      %v467 = vld [vmem:[%s1 + $0x58] sm:$0xff]
      %v468 = vld [vmem:[%s1 + $0x60] sm:$0xff]
      %v469 = vld [vmem:[%s1 + $0x68] sm:$0xff]
      %v470 = vld [vmem:[%s1 + $0x70] sm:$0xff]
      %v471 = vld [vmem:[%s1 + $0x78] sm:$0xff]
      %v472 = vld [vmem:[%s1 + $0x80] sm:$0xff]
      %v473 = vld [vmem:[%s1 + $0x88] sm:$0xff]
      %v474 = vld [vmem:[%s1 + $0x90] sm:$0xff]
      %v475 = vld [vmem:[%s1 + $0x98] sm:$0xff]
      %v476 = vld [vmem:[%s1 + $0xa0] sm:$0xff]
      %v477 = vld [vmem:[%s1 + $0xa8] sm:$0xff]
      %v478 = vld [vmem:[%s1 + $0xb0] sm:$0xff]
      %v479 = vld [vmem:[%s1 + $0xb8] sm:$0xff]
      %v480 = vld [vmem:[%s1 + $0xc0] sm:$0xff]
      %v481 = vld [vmem:[%s1 + $0xc8] sm:$0xff]
      %v482 = vld [vmem:[%s1 + $0xd0] sm:$0xff]
      %v483 = vld [vmem:[%s1 + $0xd8] sm:$0xff]
      %v484 = vld [vmem:[%s1 + $0xe0] sm:$0xff]
      %v485 = vld [vmem:[%s1 + $0xe8] sm:$0xff]
      %v486 = vld [vmem:[%s1 + $0xf0] sm:$0xff]
      %v487 = vld [vmem:[%s1 + $0xf8] sm:$0xff]
      %v488 = vld [vmem:[%s1 + $0x100] sm:$0xff]
      %v489 = vld [vmem:[%s1 + $0x108] sm:$0xff]
      %v490 = vld [vmem:[%s1 + $0x110] sm:$0xff]
      %v491 = vld [vmem:[%s1 + $0x118] sm:$0xff]
      %v492 = vld [vmem:[%s1 + $0x120] sm:$0xff]
      %v493 = vld [vmem:[%s1 + $0x128] sm:$0xff]
      %v494 = vld [vmem:[%s1 + $0x130] sm:$0xff]
      %v495 = vld [vmem:[%s1 + $0x138] sm:$0xff]
      %v496 = vld [vmem:[%s1 + $0x140] sm:$0xff]
      %v497 = vld [vmem:[%s1 + $0x148] sm:$0xff]
      %v498 = vld [vmem:[%s1 + $0x150] sm:$0xff]
      %v499 = vld [vmem:[%s1 + $0x158] sm:$0xff]
      %v500 = vld [vmem:[%s1 + $0x160] sm:$0xff]
      %v501 = vld [vmem:[%s1 + $0x168] sm:$0xff]
      %v502 = vld [vmem:[%s1 + $0x170] sm:$0xff]
      %v503 = vld [vmem:[%s1 + $0x178] sm:$0xff]
      %v504 = vld [vmem:[%s1 + $0x180] sm:$0xff]
      %v505 = vld [vmem:[%s1 + $0x188] sm:$0xff]
      %v506 = vld [vmem:[%s408] sm:$0xf]
      %v507 = vld [vmem:[%s408 + $0x4] sm:$0xf]
      %v509 = vperm.slane %v455, 0
      %v513 = vunpack.c.l.b16 %v506
      %v514 = vunpack.c.l.b16 %v507
      %v515 = vpack.c.b16 %v514, %v513
      %v533 = vunpack.c.l.b16 %v439
      %v534 = vunpack.c.l.b16 %v440
      %v535 = vunpack.c.l.b16 %v441
      %v536 = vunpack.c.l.b16 %v442
      %v537 = vunpack.c.l.b16 %v443
      %v538 = vunpack.c.l.b16 %v444
      %v539 = vunpack.c.l.b16 %v445
      %v540 = vunpack.c.l.b16 %v446
      %v541 = vunpack.c.l.b16 %v447
      %v542 = vunpack.c.l.b16 %v448
      %v543 = vunpack.c.l.b16 %v449
      %v544 = vunpack.c.l.b16 %v450
      %v545 = vunpack.c.l.b16 %v451
      %v546 = vunpack.c.l.b16 %v452
      %v547 = vunpack.c.l.b16 %v453
      %v548 = vunpack.c.l.b16 %v454
      %v549 = vpack.c.b16 %v534, %v533
      %v550 = vpack.c.b16 %v536, %v535
      %v551 = vpack.c.b16 %v538, %v537
      %v552 = vpack.c.b16 %v540, %v539
      %v553 = vpack.c.b16 %v542, %v541
      %v554 = vpack.c.b16 %v544, %v543
      %v555 = vpack.c.b16 %v546, %v545
      %v556 = vpack.c.b16 %v548, %v547
      %565 = vmatpush.bf16.msra.mxu0 %v556
      %566 = vmatpush.bf16.msra.mxu0 %v555
      %567 = vmatpush.bf16.msra.mxu0 %v554
      %568 = vmatpush.bf16.msra.mxu0 %v553
      %569 = vmatpush.bf16.msra.mxu0 %v552
      %570 = vmatpush.bf16.msra.mxu0 %v551
      %571 = vmatpush.bf16.msra.mxu0 %v550
      %572 = vmatpush.bf16.msra.mxu0 %v549
      %573 = vmatmul.bf16.gmra.mxu0 %v515
      %v574 = vpop.f32.mrf.mxu0
      %v575 = vadd.f32 %v509, %v574
      %v576 = vpop.f32.mrf.mxu0
      %v577 = vadd.f32 %v509, %v576
      %578 = vdwg.mxu0
      %v579 = vadd.f32 %v575, 3.0
      %v580 = vadd.f32 %v577, 3.0
      %v581 = vmax.f32 %v579, 0.0
      %v582 = vmax.f32 %v580, 0.0
      %v583 = vmin.f32 %v581, 6.0
      %v584 = vmin.f32 %v582, 6.0
      %v585 = vmul.f32 %v575, %v583
      %v586 = vmul.f32 %v577, %v584
      %v587 = vrcp.pop 6.0
      %v588 = vmul.f32 6.0, %v587
      %v589 = vsub.f32 1.0, %v588
      %v590 = vmul.f32 %v587, %v589
      %v591 = vadd.f32 %v587, %v590
      %vm592 = vweird.f32 %v587
      %v593 = vsel %vm592, %v587, %v591
      %v594 = vmul.f32 %v585, %v593
      %v595 = vmul.f32 %v586, %v593
      %597 = vset.pattern.permute.xlu0 0
      %598 = vperm.xlu0 %597, %v456
      %v599 = vpop.permute.xlu0 %598
      %602 = vset.pattern.permute.xlu0 0
      %603 = vperm.xlu0 %602, %v457
      %v604 = vpop.permute.xlu0 %603
      %v606 = vmul.f32 %v594, %v599
      %v607 = vmul.f32 %v595, %v604
      %v609 = vperm.slane %v414, 0
      %v611 = vmul.f32 %v606, %v609
      %v612 = vmul.f32 %v607, %v609
      %v613 = vadd.f32 %v611, 0.0
      %v614 = vadd.f32 %v612, 0.0
      %s615 = scalar_lea.vmem %s408, 8
      %v616 = vld [vmem:[%s615] sm:$0xf]
      %v617 = vld [vmem:[%s615 + $0x4] sm:$0xf]
      %v620 = vunpack.c.l.b16 %v616
      %v621 = vunpack.c.l.b16 %v617
      %v622 = vpack.c.b16 %v621, %v620
      %624 = vmatpush.bf16.msra.mxu0 %v556
      %625 = vmatpush.bf16.msra.mxu0 %v555
      %626 = vmatpush.bf16.msra.mxu0 %v554
      %627 = vmatpush.bf16.msra.mxu0 %v553
      %628 = vmatpush.bf16.msra.mxu0 %v552
      %629 = vmatpush.bf16.msra.mxu0 %v551
      %630 = vmatpush.bf16.msra.mxu0 %v550
      %631 = vmatpush.bf16.msra.mxu0 %v549
      %632 = vmatmul.bf16.gmra.mxu0 %v622
      %v633 = vpop.f32.mrf.mxu0
      %v634 = vadd.f32 %v509, %v633
      %v635 = vpop.f32.mrf.mxu0
      %v636 = vadd.f32 %v509, %v635
      %637 = vdwg.mxu0
      %v638 = vadd.f32 %v634, 3.0
      %v639 = vadd.f32 %v636, 3.0
      %v640 = vmax.f32 %v638, 0.0
      %v641 = vmax.f32 %v639, 0.0
      %v642 = vmin.f32 %v640, 6.0
      %v643 = vmin.f32 %v641, 6.0
      %v644 = vmul.f32 %v634, %v642
      %v645 = vmul.f32 %v636, %v643
      %v646 = vmul.f32 %v644, %v593
      %v647 = vmul.f32 %v645, %v593
      %649 = vset.pattern.permute.xlu0 0
      %650 = vperm.xlu0 %649, %v458
      %v651 = vpop.permute.xlu0 %650
      %654 = vset.pattern.permute.xlu0 0
      %655 = vperm.xlu0 %654, %v459
      %v656 = vpop.permute.xlu0 %655
      %v658 = vmul.f32 %v646, %v651
      %v659 = vmul.f32 %v647, %v656
      %v661 = vperm.slane %v415, 0
      %v663 = vmul.f32 %v658, %v661
      %v664 = vmul.f32 %v659, %v661
      %v665 = vadd.f32 %v613, %v663
      %v666 = vadd.f32 %v614, %v664
      %s667 = scalar_lea.vmem %s408, 16
      %v668 = vld [vmem:[%s667] sm:$0xf]
      %v669 = vld [vmem:[%s667 + $0x4] sm:$0xf]
      %v672 = vunpack.c.l.b16 %v668
      %v673 = vunpack.c.l.b16 %v669
      %v674 = vpack.c.b16 %v673, %v672
      %676 = vmatpush.bf16.msra.mxu0 %v556
      %677 = vmatpush.bf16.msra.mxu0 %v555
      %678 = vmatpush.bf16.msra.mxu0 %v554
      %679 = vmatpush.bf16.msra.mxu0 %v553
      %680 = vmatpush.bf16.msra.mxu0 %v552
      %681 = vmatpush.bf16.msra.mxu0 %v551
      %682 = vmatpush.bf16.msra.mxu0 %v550
      %683 = vmatpush.bf16.msra.mxu0 %v549
      %684 = vmatmul.bf16.gmra.mxu0 %v674
      %v685 = vpop.f32.mrf.mxu0
      %v686 = vadd.f32 %v509, %v685
      %v687 = vpop.f32.mrf.mxu0
      %v688 = vadd.f32 %v509, %v687
      %689 = vdwg.mxu0
      %v690 = vadd.f32 %v686, 3.0
      %v691 = vadd.f32 %v688, 3.0
      %v692 = vmax.f32 %v690, 0.0
      %v693 = vmax.f32 %v691, 0.0
      %v694 = vmin.f32 %v692, 6.0
      %v695 = vmin.f32 %v693, 6.0
      %v696 = vmul.f32 %v686, %v694
      %v697 = vmul.f32 %v688, %v695
      %v698 = vmul.f32 %v696, %v593
      %v699 = vmul.f32 %v697, %v593
      %701 = vset.pattern.permute.xlu0 0
      %702 = vperm.xlu0 %701, %v460
      %v703 = vpop.permute.xlu0 %702
      %706 = vset.pattern.permute.xlu0 0
      %707 = vperm.xlu0 %706, %v461
      %v708 = vpop.permute.xlu0 %707
      %v710 = vmul.f32 %v698, %v703
      %v711 = vmul.f32 %v699, %v708
      %v713 = vperm.slane %v416, 0
      %v715 = vmul.f32 %v710, %v713
      %v716 = vmul.f32 %v711, %v713
      %v717 = vadd.f32 %v665, %v715
      %v718 = vadd.f32 %v666, %v716
      %s719 = scalar_lea.vmem %s408, 24
      %v720 = vld [vmem:[%s719] sm:$0xf]
      %v721 = vld [vmem:[%s719 + $0x4] sm:$0xf]
      %v724 = vunpack.c.l.b16 %v720
      %v725 = vunpack.c.l.b16 %v721
      %v726 = vpack.c.b16 %v725, %v724
      %728 = vmatpush.bf16.msra.mxu0 %v556
      %729 = vmatpush.bf16.msra.mxu0 %v555
      %730 = vmatpush.bf16.msra.mxu0 %v554
      %731 = vmatpush.bf16.msra.mxu0 %v553
      %732 = vmatpush.bf16.msra.mxu0 %v552
      %733 = vmatpush.bf16.msra.mxu0 %v551
      %734 = vmatpush.bf16.msra.mxu0 %v550
      %735 = vmatpush.bf16.msra.mxu0 %v549
      %736 = vmatmul.bf16.gmra.mxu0 %v726
      %v737 = vpop.f32.mrf.mxu0
      %v738 = vadd.f32 %v509, %v737
      %v739 = vpop.f32.mrf.mxu0
      %v740 = vadd.f32 %v509, %v739
      %741 = vdwg.mxu0
      %v742 = vadd.f32 %v738, 3.0
      %v743 = vadd.f32 %v740, 3.0
      %v744 = vmax.f32 %v742, 0.0
      %v745 = vmax.f32 %v743, 0.0
      %v746 = vmin.f32 %v744, 6.0
      %v747 = vmin.f32 %v745, 6.0
      %v748 = vmul.f32 %v738, %v746
      %v749 = vmul.f32 %v740, %v747
      %v750 = vmul.f32 %v748, %v593
      %v751 = vmul.f32 %v749, %v593
      %753 = vset.pattern.permute.xlu0 0
      %754 = vperm.xlu0 %753, %v462
      %v755 = vpop.permute.xlu0 %754
      %758 = vset.pattern.permute.xlu0 0
      %759 = vperm.xlu0 %758, %v463
      %v760 = vpop.permute.xlu0 %759
      %v762 = vmul.f32 %v750, %v755
      %v763 = vmul.f32 %v751, %v760
      %v765 = vperm.slane %v417, 0
      %v767 = vmul.f32 %v762, %v765
      %v768 = vmul.f32 %v763, %v765
      %v769 = vadd.f32 %v717, %v767
      %v770 = vadd.f32 %v718, %v768
      %s771 = scalar_lea.vmem %s408, 32
      %v772 = vld [vmem:[%s771] sm:$0xf]
      %v773 = vld [vmem:[%s771 + $0x4] sm:$0xf]
      %v776 = vunpack.c.l.b16 %v772
      %v777 = vunpack.c.l.b16 %v773
      %v778 = vpack.c.b16 %v777, %v776
      %780 = vmatpush.bf16.msra.mxu0 %v556
      %781 = vmatpush.bf16.msra.mxu0 %v555
      %782 = vmatpush.bf16.msra.mxu0 %v554
      %783 = vmatpush.bf16.msra.mxu0 %v553
      %784 = vmatpush.bf16.msra.mxu0 %v552
      %785 = vmatpush.bf16.msra.mxu0 %v551
      %786 = vmatpush.bf16.msra.mxu0 %v550
      %787 = vmatpush.bf16.msra.mxu0 %v549
      %788 = vmatmul.bf16.gmra.mxu0 %v778
      %v789 = vpop.f32.mrf.mxu0
      %v790 = vadd.f32 %v509, %v789
      %v791 = vpop.f32.mrf.mxu0
      %v792 = vadd.f32 %v509, %v791
      %793 = vdwg.mxu0
      %v794 = vadd.f32 %v790, 3.0
      %v795 = vadd.f32 %v792, 3.0
      %v796 = vmax.f32 %v794, 0.0
      %v797 = vmax.f32 %v795, 0.0
      %v798 = vmin.f32 %v796, 6.0
      %v799 = vmin.f32 %v797, 6.0
      %v800 = vmul.f32 %v790, %v798
      %v801 = vmul.f32 %v792, %v799
      %v802 = vmul.f32 %v800, %v593
      %v803 = vmul.f32 %v801, %v593
      %805 = vset.pattern.permute.xlu0 0
      %806 = vperm.xlu0 %805, %v464
      %v807 = vpop.permute.xlu0 %806
      %810 = vset.pattern.permute.xlu0 0
      %811 = vperm.xlu0 %810, %v465
      %v812 = vpop.permute.xlu0 %811
      %v814 = vmul.f32 %v802, %v807
      %v815 = vmul.f32 %v803, %v812
      %v817 = vperm.slane %v418, 0
      %v819 = vmul.f32 %v814, %v817
      %v820 = vmul.f32 %v815, %v817
      %v821 = vadd.f32 %v769, %v819
      %v822 = vadd.f32 %v770, %v820
      %s823 = scalar_lea.vmem %s408, 40
      %v824 = vld [vmem:[%s823] sm:$0xf]
      %v825 = vld [vmem:[%s823 + $0x4] sm:$0xf]
      %v828 = vunpack.c.l.b16 %v824
      %v829 = vunpack.c.l.b16 %v825
      %v830 = vpack.c.b16 %v829, %v828
      %832 = vmatpush.bf16.msra.mxu0 %v556
      %833 = vmatpush.bf16.msra.mxu0 %v555
      %834 = vmatpush.bf16.msra.mxu0 %v554
      %835 = vmatpush.bf16.msra.mxu0 %v553
      %836 = vmatpush.bf16.msra.mxu0 %v552
      %837 = vmatpush.bf16.msra.mxu0 %v551
      %838 = vmatpush.bf16.msra.mxu0 %v550
      %839 = vmatpush.bf16.msra.mxu0 %v549
      %840 = vmatmul.bf16.gmra.mxu0 %v830
      %v841 = vpop.f32.mrf.mxu0
      %v842 = vadd.f32 %v509, %v841
      %v843 = vpop.f32.mrf.mxu0
      %v844 = vadd.f32 %v509, %v843
      %845 = vdwg.mxu0
      %v846 = vadd.f32 %v842, 3.0
      %v847 = vadd.f32 %v844, 3.0
      %v848 = vmax.f32 %v846, 0.0
      %v849 = vmax.f32 %v847, 0.0
      %v850 = vmin.f32 %v848, 6.0
      %v851 = vmin.f32 %v849, 6.0
      %v852 = vmul.f32 %v842, %v850
      %v853 = vmul.f32 %v844, %v851
      %v854 = vmul.f32 %v852, %v593
      %v855 = vmul.f32 %v853, %v593
      %857 = vset.pattern.permute.xlu0 0
      %858 = vperm.xlu0 %857, %v466
      %v859 = vpop.permute.xlu0 %858
      %862 = vset.pattern.permute.xlu0 0
      %863 = vperm.xlu0 %862, %v467
      %v864 = vpop.permute.xlu0 %863
      %v866 = vmul.f32 %v854, %v859
      %v867 = vmul.f32 %v855, %v864
      %v869 = vperm.slane %v419, 0
      %v871 = vmul.f32 %v866, %v869
      %v872 = vmul.f32 %v867, %v869
      %v873 = vadd.f32 %v821, %v871
      %v874 = vadd.f32 %v822, %v872
      %s875 = scalar_lea.vmem %s408, 48
      %v876 = vld [vmem:[%s875] sm:$0xf]
      %v877 = vld [vmem:[%s875 + $0x4] sm:$0xf]
      %v880 = vunpack.c.l.b16 %v876
      %v881 = vunpack.c.l.b16 %v877
      %v882 = vpack.c.b16 %v881, %v880
      %884 = vmatpush.bf16.msra.mxu0 %v556
      %885 = vmatpush.bf16.msra.mxu0 %v555
      %886 = vmatpush.bf16.msra.mxu0 %v554
      %887 = vmatpush.bf16.msra.mxu0 %v553
      %888 = vmatpush.bf16.msra.mxu0 %v552
      %889 = vmatpush.bf16.msra.mxu0 %v551
      %890 = vmatpush.bf16.msra.mxu0 %v550
      %891 = vmatpush.bf16.msra.mxu0 %v549
      %892 = vmatmul.bf16.gmra.mxu0 %v882
      %v893 = vpop.f32.mrf.mxu0
      %v894 = vadd.f32 %v509, %v893
      %v895 = vpop.f32.mrf.mxu0
      %v896 = vadd.f32 %v509, %v895
      %897 = vdwg.mxu0
      %v898 = vadd.f32 %v894, 3.0
      %v899 = vadd.f32 %v896, 3.0
      %v900 = vmax.f32 %v898, 0.0
      %v901 = vmax.f32 %v899, 0.0
      %v902 = vmin.f32 %v900, 6.0
      %v903 = vmin.f32 %v901, 6.0
      %v904 = vmul.f32 %v894, %v902
      %v905 = vmul.f32 %v896, %v903
      %v906 = vmul.f32 %v904, %v593
      %v907 = vmul.f32 %v905, %v593
      %909 = vset.pattern.permute.xlu0 0
      %910 = vperm.xlu0 %909, %v468
      %v911 = vpop.permute.xlu0 %910
      %914 = vset.pattern.permute.xlu0 0
      %915 = vperm.xlu0 %914, %v469
      %v916 = vpop.permute.xlu0 %915
      %v918 = vmul.f32 %v906, %v911
      %v919 = vmul.f32 %v907, %v916
      %v921 = vperm.slane %v420, 0
      %v923 = vmul.f32 %v918, %v921
      %v924 = vmul.f32 %v919, %v921
      %v925 = vadd.f32 %v873, %v923
      %v926 = vadd.f32 %v874, %v924
      %s927 = scalar_lea.vmem %s408, 56
      %v928 = vld [vmem:[%s927] sm:$0xf]
      %v929 = vld [vmem:[%s927 + $0x4] sm:$0xf]
      %v932 = vunpack.c.l.b16 %v928
      %v933 = vunpack.c.l.b16 %v929
      %v934 = vpack.c.b16 %v933, %v932
      %936 = vmatpush.bf16.msra.mxu0 %v556
      %937 = vmatpush.bf16.msra.mxu0 %v555
      %938 = vmatpush.bf16.msra.mxu0 %v554
      %939 = vmatpush.bf16.msra.mxu0 %v553
      %940 = vmatpush.bf16.msra.mxu0 %v552
      %941 = vmatpush.bf16.msra.mxu0 %v551
      %942 = vmatpush.bf16.msra.mxu0 %v550
      %943 = vmatpush.bf16.msra.mxu0 %v549
      %944 = vmatmul.bf16.gmra.mxu0 %v934
      %v945 = vpop.f32.mrf.mxu0
      %v946 = vadd.f32 %v509, %v945
      %v947 = vpop.f32.mrf.mxu0
      %v948 = vadd.f32 %v509, %v947
      %949 = vdwg.mxu0
      %v950 = vadd.f32 %v946, 3.0
      %v951 = vadd.f32 %v948, 3.0
      %v952 = vmax.f32 %v950, 0.0
      %v953 = vmax.f32 %v951, 0.0
      %v954 = vmin.f32 %v952, 6.0
      %v955 = vmin.f32 %v953, 6.0
      %v956 = vmul.f32 %v946, %v954
      %v957 = vmul.f32 %v948, %v955
      %v958 = vmul.f32 %v956, %v593
      %v959 = vmul.f32 %v957, %v593
      %961 = vset.pattern.permute.xlu0 0
      %962 = vperm.xlu0 %961, %v470
      %v963 = vpop.permute.xlu0 %962
      %966 = vset.pattern.permute.xlu0 0
      %967 = vperm.xlu0 %966, %v471
      %v968 = vpop.permute.xlu0 %967
      %v970 = vmul.f32 %v958, %v963
      %v971 = vmul.f32 %v959, %v968
      %v973 = vperm.slane %v421, 0
      %v975 = vmul.f32 %v970, %v973
      %v976 = vmul.f32 %v971, %v973
      %v977 = vadd.f32 %v925, %v975
      %v978 = vadd.f32 %v926, %v976
      %s979 = scalar_lea.vmem %s408, 64
      %v980 = vld [vmem:[%s979] sm:$0xf]
      %v981 = vld [vmem:[%s979 + $0x4] sm:$0xf]
      %v984 = vunpack.c.l.b16 %v980
      %v985 = vunpack.c.l.b16 %v981
      %v986 = vpack.c.b16 %v985, %v984
      %988 = vmatpush.bf16.msra.mxu0 %v556
      %989 = vmatpush.bf16.msra.mxu0 %v555
      %990 = vmatpush.bf16.msra.mxu0 %v554
      %991 = vmatpush.bf16.msra.mxu0 %v553
      %992 = vmatpush.bf16.msra.mxu0 %v552
      %993 = vmatpush.bf16.msra.mxu0 %v551
      %994 = vmatpush.bf16.msra.mxu0 %v550
      %995 = vmatpush.bf16.msra.mxu0 %v549
      %996 = vmatmul.bf16.gmra.mxu0 %v986
      %v997 = vpop.f32.mrf.mxu0
      %v998 = vadd.f32 %v509, %v997
      %v999 = vpop.f32.mrf.mxu0
      %v1000 = vadd.f32 %v509, %v999
      %1001 = vdwg.mxu0
      %v1002 = vadd.f32 %v998, 3.0
      %v1003 = vadd.f32 %v1000, 3.0
      %v1004 = vmax.f32 %v1002, 0.0
      %v1005 = vmax.f32 %v1003, 0.0
      %v1006 = vmin.f32 %v1004, 6.0
      %v1007 = vmin.f32 %v1005, 6.0
      %v1008 = vmul.f32 %v998, %v1006
      %v1009 = vmul.f32 %v1000, %v1007
      %v1010 = vmul.f32 %v1008, %v593
      %v1011 = vmul.f32 %v1009, %v593
      %1013 = vset.pattern.permute.xlu0 0
      %1014 = vperm.xlu0 %1013, %v472
      %v1015 = vpop.permute.xlu0 %1014
      %1018 = vset.pattern.permute.xlu0 0
      %1019 = vperm.xlu0 %1018, %v473
      %v1020 = vpop.permute.xlu0 %1019
      %v1022 = vmul.f32 %v1010, %v1015
      %v1023 = vmul.f32 %v1011, %v1020
      %v1025 = vperm.slane %v422, 0
      %v1027 = vmul.f32 %v1022, %v1025
      %v1028 = vmul.f32 %v1023, %v1025
      %v1029 = vadd.f32 %v977, %v1027
      %v1030 = vadd.f32 %v978, %v1028
      %s1031 = scalar_lea.vmem %s408, 72
      %v1032 = vld [vmem:[%s1031] sm:$0xf]
      %v1033 = vld [vmem:[%s1031 + $0x4] sm:$0xf]
      %v1036 = vunpack.c.l.b16 %v1032
      %v1037 = vunpack.c.l.b16 %v1033
      %v1038 = vpack.c.b16 %v1037, %v1036
      %1040 = vmatpush.bf16.msra.mxu0 %v556
      %1041 = vmatpush.bf16.msra.mxu0 %v555
      %1042 = vmatpush.bf16.msra.mxu0 %v554
      %1043 = vmatpush.bf16.msra.mxu0 %v553
      %1044 = vmatpush.bf16.msra.mxu0 %v552
      %1045 = vmatpush.bf16.msra.mxu0 %v551
      %1046 = vmatpush.bf16.msra.mxu0 %v550
      %1047 = vmatpush.bf16.msra.mxu0 %v549
      %1048 = vmatmul.bf16.gmra.mxu0 %v1038
      %v1049 = vpop.f32.mrf.mxu0
      %v1050 = vadd.f32 %v509, %v1049
      %v1051 = vpop.f32.mrf.mxu0
      %v1052 = vadd.f32 %v509, %v1051
      %1053 = vdwg.mxu0
      %v1054 = vadd.f32 %v1050, 3.0
      %v1055 = vadd.f32 %v1052, 3.0
      %v1056 = vmax.f32 %v1054, 0.0
      %v1057 = vmax.f32 %v1055, 0.0
      %v1058 = vmin.f32 %v1056, 6.0
      %v1059 = vmin.f32 %v1057, 6.0
      %v1060 = vmul.f32 %v1050, %v1058
      %v1061 = vmul.f32 %v1052, %v1059
      %v1062 = vmul.f32 %v1060, %v593
      %v1063 = vmul.f32 %v1061, %v593
      %1065 = vset.pattern.permute.xlu0 0
      %1066 = vperm.xlu0 %1065, %v474
      %v1067 = vpop.permute.xlu0 %1066
      %1070 = vset.pattern.permute.xlu0 0
      %1071 = vperm.xlu0 %1070, %v475
      %v1072 = vpop.permute.xlu0 %1071
      %v1074 = vmul.f32 %v1062, %v1067
      %v1075 = vmul.f32 %v1063, %v1072
      %v1077 = vperm.slane %v423, 0
      %v1079 = vmul.f32 %v1074, %v1077
      %v1080 = vmul.f32 %v1075, %v1077
      %v1081 = vadd.f32 %v1029, %v1079
      %v1082 = vadd.f32 %v1030, %v1080
      %s1083 = scalar_lea.vmem %s408, 80
      %v1084 = vld [vmem:[%s1083] sm:$0xf]
      %v1085 = vld [vmem:[%s1083 + $0x4] sm:$0xf]
      %v1088 = vunpack.c.l.b16 %v1084
      %v1089 = vunpack.c.l.b16 %v1085
      %v1090 = vpack.c.b16 %v1089, %v1088
      %1092 = vmatpush.bf16.msra.mxu0 %v556
      %1093 = vmatpush.bf16.msra.mxu0 %v555
      %1094 = vmatpush.bf16.msra.mxu0 %v554
      %1095 = vmatpush.bf16.msra.mxu0 %v553
      %1096 = vmatpush.bf16.msra.mxu0 %v552
      %1097 = vmatpush.bf16.msra.mxu0 %v551
      %1098 = vmatpush.bf16.msra.mxu0 %v550
      %1099 = vmatpush.bf16.msra.mxu0 %v549
      %1100 = vmatmul.bf16.gmra.mxu0 %v1090
      %v1101 = vpop.f32.mrf.mxu0
      %v1102 = vadd.f32 %v509, %v1101
      %v1103 = vpop.f32.mrf.mxu0
      %v1104 = vadd.f32 %v509, %v1103
      %1105 = vdwg.mxu0
      %v1106 = vadd.f32 %v1102, 3.0
      %v1107 = vadd.f32 %v1104, 3.0
      %v1108 = vmax.f32 %v1106, 0.0
      %v1109 = vmax.f32 %v1107, 0.0
      %v1110 = vmin.f32 %v1108, 6.0
      %v1111 = vmin.f32 %v1109, 6.0
      %v1112 = vmul.f32 %v1102, %v1110
      %v1113 = vmul.f32 %v1104, %v1111
      %v1114 = vmul.f32 %v1112, %v593
      %v1115 = vmul.f32 %v1113, %v593
      %1117 = vset.pattern.permute.xlu0 0
      %1118 = vperm.xlu0 %1117, %v476
      %v1119 = vpop.permute.xlu0 %1118
      %1122 = vset.pattern.permute.xlu0 0
      %1123 = vperm.xlu0 %1122, %v477
      %v1124 = vpop.permute.xlu0 %1123
      %v1126 = vmul.f32 %v1114, %v1119
      %v1127 = vmul.f32 %v1115, %v1124
      %v1129 = vperm.slane %v424, 0
      %v1131 = vmul.f32 %v1126, %v1129
      %v1132 = vmul.f32 %v1127, %v1129
      %v1133 = vadd.f32 %v1081, %v1131
      %v1134 = vadd.f32 %v1082, %v1132
      %s1135 = scalar_lea.vmem %s408, 88
      %v1136 = vld [vmem:[%s1135] sm:$0xf]
      %v1137 = vld [vmem:[%s1135 + $0x4] sm:$0xf]
      %v1140 = vunpack.c.l.b16 %v1136
      %v1141 = vunpack.c.l.b16 %v1137
      %v1142 = vpack.c.b16 %v1141, %v1140
      %1144 = vmatpush.bf16.msra.mxu0 %v556
      %1145 = vmatpush.bf16.msra.mxu0 %v555
      %1146 = vmatpush.bf16.msra.mxu0 %v554
      %1147 = vmatpush.bf16.msra.mxu0 %v553
      %1148 = vmatpush.bf16.msra.mxu0 %v552
      %1149 = vmatpush.bf16.msra.mxu0 %v551
      %1150 = vmatpush.bf16.msra.mxu0 %v550
      %1151 = vmatpush.bf16.msra.mxu0 %v549
      %1152 = vmatmul.bf16.gmra.mxu0 %v1142
      %v1153 = vpop.f32.mrf.mxu0
      %v1154 = vadd.f32 %v509, %v1153
      %v1155 = vpop.f32.mrf.mxu0
      %v1156 = vadd.f32 %v509, %v1155
      %1157 = vdwg.mxu0
      %v1158 = vadd.f32 %v1154, 3.0
      %v1159 = vadd.f32 %v1156, 3.0
      %v1160 = vmax.f32 %v1158, 0.0
      %v1161 = vmax.f32 %v1159, 0.0
      %v1162 = vmin.f32 %v1160, 6.0
      %v1163 = vmin.f32 %v1161, 6.0
      %v1164 = vmul.f32 %v1154, %v1162
      %v1165 = vmul.f32 %v1156, %v1163
      %v1166 = vmul.f32 %v1164, %v593
      %v1167 = vmul.f32 %v1165, %v593
      %1169 = vset.pattern.permute.xlu0 0
      %1170 = vperm.xlu0 %1169, %v478
      %v1171 = vpop.permute.xlu0 %1170
      %1174 = vset.pattern.permute.xlu0 0
      %1175 = vperm.xlu0 %1174, %v479
      %v1176 = vpop.permute.xlu0 %1175
      %v1178 = vmul.f32 %v1166, %v1171
      %v1179 = vmul.f32 %v1167, %v1176
      %v1181 = vperm.slane %v425, 0
      %v1183 = vmul.f32 %v1178, %v1181
      %v1184 = vmul.f32 %v1179, %v1181
      %v1185 = vadd.f32 %v1133, %v1183
      %v1186 = vadd.f32 %v1134, %v1184
      %s1187 = scalar_lea.vmem %s408, 96
      %v1188 = vld [vmem:[%s1187] sm:$0xf]
      %v1189 = vld [vmem:[%s1187 + $0x4] sm:$0xf]
      %v1192 = vunpack.c.l.b16 %v1188
      %v1193 = vunpack.c.l.b16 %v1189
      %v1194 = vpack.c.b16 %v1193, %v1192
      %1196 = vmatpush.bf16.msra.mxu0 %v556
      %1197 = vmatpush.bf16.msra.mxu0 %v555
      %1198 = vmatpush.bf16.msra.mxu0 %v554
      %1199 = vmatpush.bf16.msra.mxu0 %v553
      %1200 = vmatpush.bf16.msra.mxu0 %v552
      %1201 = vmatpush.bf16.msra.mxu0 %v551
      %1202 = vmatpush.bf16.msra.mxu0 %v550
      %1203 = vmatpush.bf16.msra.mxu0 %v549
      %1204 = vmatmul.bf16.gmra.mxu0 %v1194
      %v1205 = vpop.f32.mrf.mxu0
      %v1206 = vadd.f32 %v509, %v1205
      %v1207 = vpop.f32.mrf.mxu0
      %v1208 = vadd.f32 %v509, %v1207
      %1209 = vdwg.mxu0
      %v1210 = vadd.f32 %v1206, 3.0
      %v1211 = vadd.f32 %v1208, 3.0
      %v1212 = vmax.f32 %v1210, 0.0
      %v1213 = vmax.f32 %v1211, 0.0
      %v1214 = vmin.f32 %v1212, 6.0
      %v1215 = vmin.f32 %v1213, 6.0
      %v1216 = vmul.f32 %v1206, %v1214
      %v1217 = vmul.f32 %v1208, %v1215
      %v1218 = vmul.f32 %v1216, %v593
      %v1219 = vmul.f32 %v1217, %v593
      %1221 = vset.pattern.permute.xlu0 0
      %1222 = vperm.xlu0 %1221, %v480
      %v1223 = vpop.permute.xlu0 %1222
      %1226 = vset.pattern.permute.xlu0 0
      %1227 = vperm.xlu0 %1226, %v481
      %v1228 = vpop.permute.xlu0 %1227
      %v1230 = vmul.f32 %v1218, %v1223
      %v1231 = vmul.f32 %v1219, %v1228
      %v1233 = vperm.slane %v426, 0
      %v1235 = vmul.f32 %v1230, %v1233
      %v1236 = vmul.f32 %v1231, %v1233
      %v1237 = vadd.f32 %v1185, %v1235
      %v1238 = vadd.f32 %v1186, %v1236
      %s1239 = scalar_lea.vmem %s408, 104
      %v1240 = vld [vmem:[%s1239] sm:$0xf]
      %v1241 = vld [vmem:[%s1239 + $0x4] sm:$0xf]
      %v1244 = vunpack.c.l.b16 %v1240
      %v1245 = vunpack.c.l.b16 %v1241
      %v1246 = vpack.c.b16 %v1245, %v1244
      %1248 = vmatpush.bf16.msra.mxu0 %v556
      %1249 = vmatpush.bf16.msra.mxu0 %v555
      %1250 = vmatpush.bf16.msra.mxu0 %v554
      %1251 = vmatpush.bf16.msra.mxu0 %v553
      %1252 = vmatpush.bf16.msra.mxu0 %v552
      %1253 = vmatpush.bf16.msra.mxu0 %v551
      %1254 = vmatpush.bf16.msra.mxu0 %v550
      %1255 = vmatpush.bf16.msra.mxu0 %v549
      %1256 = vmatmul.bf16.gmra.mxu0 %v1246
      %v1257 = vpop.f32.mrf.mxu0
      %v1258 = vadd.f32 %v509, %v1257
      %v1259 = vpop.f32.mrf.mxu0
      %v1260 = vadd.f32 %v509, %v1259
      %1261 = vdwg.mxu0
      %v1262 = vadd.f32 %v1258, 3.0
      %v1263 = vadd.f32 %v1260, 3.0
      %v1264 = vmax.f32 %v1262, 0.0
      %v1265 = vmax.f32 %v1263, 0.0
      %v1266 = vmin.f32 %v1264, 6.0
      %v1267 = vmin.f32 %v1265, 6.0
      %v1268 = vmul.f32 %v1258, %v1266
      %v1269 = vmul.f32 %v1260, %v1267
      %v1270 = vmul.f32 %v1268, %v593
      %v1271 = vmul.f32 %v1269, %v593
      %1273 = vset.pattern.permute.xlu0 0
      %1274 = vperm.xlu0 %1273, %v482
      %v1275 = vpop.permute.xlu0 %1274
      %1278 = vset.pattern.permute.xlu0 0
      %1279 = vperm.xlu0 %1278, %v483
      %v1280 = vpop.permute.xlu0 %1279
      %v1282 = vmul.f32 %v1270, %v1275
      %v1283 = vmul.f32 %v1271, %v1280
      %v1285 = vperm.slane %v427, 0
      %v1287 = vmul.f32 %v1282, %v1285
      %v1288 = vmul.f32 %v1283, %v1285
      %v1289 = vadd.f32 %v1237, %v1287
      %v1290 = vadd.f32 %v1238, %v1288
      %s1291 = scalar_lea.vmem %s408, 112
      %v1292 = vld [vmem:[%s1291] sm:$0xf]
      %v1293 = vld [vmem:[%s1291 + $0x4] sm:$0xf]
      %v1296 = vunpack.c.l.b16 %v1292
      %v1297 = vunpack.c.l.b16 %v1293
      %v1298 = vpack.c.b16 %v1297, %v1296
      %1300 = vmatpush.bf16.msra.mxu0 %v556
      %1301 = vmatpush.bf16.msra.mxu0 %v555
      %1302 = vmatpush.bf16.msra.mxu0 %v554
      %1303 = vmatpush.bf16.msra.mxu0 %v553
      %1304 = vmatpush.bf16.msra.mxu0 %v552
      %1305 = vmatpush.bf16.msra.mxu0 %v551
      %1306 = vmatpush.bf16.msra.mxu0 %v550
      %1307 = vmatpush.bf16.msra.mxu0 %v549
      %1308 = vmatmul.bf16.gmra.mxu0 %v1298
      %v1309 = vpop.f32.mrf.mxu0
      %v1310 = vadd.f32 %v509, %v1309
      %v1311 = vpop.f32.mrf.mxu0
      %v1312 = vadd.f32 %v509, %v1311
      %1313 = vdwg.mxu0
      %v1314 = vadd.f32 %v1310, 3.0
      %v1315 = vadd.f32 %v1312, 3.0
      %v1316 = vmax.f32 %v1314, 0.0
      %v1317 = vmax.f32 %v1315, 0.0
      %v1318 = vmin.f32 %v1316, 6.0
      %v1319 = vmin.f32 %v1317, 6.0
      %v1320 = vmul.f32 %v1310, %v1318
      %v1321 = vmul.f32 %v1312, %v1319
      %v1322 = vmul.f32 %v1320, %v593
      %v1323 = vmul.f32 %v1321, %v593
      %1325 = vset.pattern.permute.xlu0 0
      %1326 = vperm.xlu0 %1325, %v484
      %v1327 = vpop.permute.xlu0 %1326
      %1330 = vset.pattern.permute.xlu0 0
      %1331 = vperm.xlu0 %1330, %v485
      %v1332 = vpop.permute.xlu0 %1331
      %v1334 = vmul.f32 %v1322, %v1327
      %v1335 = vmul.f32 %v1323, %v1332
      %v1337 = vperm.slane %v428, 0
      %v1339 = vmul.f32 %v1334, %v1337
      %v1340 = vmul.f32 %v1335, %v1337
      %v1341 = vadd.f32 %v1289, %v1339
      %v1342 = vadd.f32 %v1290, %v1340
      %s1343 = scalar_lea.vmem %s408, 120
      %v1344 = vld [vmem:[%s1343] sm:$0xf]
      %v1345 = vld [vmem:[%s1343 + $0x4] sm:$0xf]
      %v1348 = vunpack.c.l.b16 %v1344
      %v1349 = vunpack.c.l.b16 %v1345
      %v1350 = vpack.c.b16 %v1349, %v1348
      %1352 = vmatpush.bf16.msra.mxu0 %v556
      %1353 = vmatpush.bf16.msra.mxu0 %v555
      %1354 = vmatpush.bf16.msra.mxu0 %v554
      %1355 = vmatpush.bf16.msra.mxu0 %v553
      %1356 = vmatpush.bf16.msra.mxu0 %v552
      %1357 = vmatpush.bf16.msra.mxu0 %v551
      %1358 = vmatpush.bf16.msra.mxu0 %v550
      %1359 = vmatpush.bf16.msra.mxu0 %v549
      %1360 = vmatmul.bf16.gmra.mxu0 %v1350
      %v1361 = vpop.f32.mrf.mxu0
      %v1362 = vadd.f32 %v509, %v1361
      %v1363 = vpop.f32.mrf.mxu0
      %v1364 = vadd.f32 %v509, %v1363
      %1365 = vdwg.mxu0
      %v1366 = vadd.f32 %v1362, 3.0
      %v1367 = vadd.f32 %v1364, 3.0
      %v1368 = vmax.f32 %v1366, 0.0
      %v1369 = vmax.f32 %v1367, 0.0
      %v1370 = vmin.f32 %v1368, 6.0
      %v1371 = vmin.f32 %v1369, 6.0
      %v1372 = vmul.f32 %v1362, %v1370
      %v1373 = vmul.f32 %v1364, %v1371
      %v1374 = vmul.f32 %v1372, %v593
      %v1375 = vmul.f32 %v1373, %v593
      %1377 = vset.pattern.permute.xlu0 0
      %1378 = vperm.xlu0 %1377, %v486
      %v1379 = vpop.permute.xlu0 %1378
      %1382 = vset.pattern.permute.xlu0 0
      %1383 = vperm.xlu0 %1382, %v487
      %v1384 = vpop.permute.xlu0 %1383
      %v1386 = vmul.f32 %v1374, %v1379
      %v1387 = vmul.f32 %v1375, %v1384
      %v1389 = vperm.slane %v429, 0
      %v1391 = vmul.f32 %v1386, %v1389
      %v1392 = vmul.f32 %v1387, %v1389
      %v1393 = vadd.f32 %v1341, %v1391
      %v1394 = vadd.f32 %v1342, %v1392
      %s1395 = scalar_lea.vmem %s408, 128
      %v1396 = vld [vmem:[%s1395] sm:$0xf]
      %v1397 = vld [vmem:[%s1395 + $0x4] sm:$0xf]
      %v1400 = vunpack.c.l.b16 %v1396
      %v1401 = vunpack.c.l.b16 %v1397
      %v1402 = vpack.c.b16 %v1401, %v1400
      %1404 = vmatpush.bf16.msra.mxu0 %v556
      %1405 = vmatpush.bf16.msra.mxu0 %v555
      %1406 = vmatpush.bf16.msra.mxu0 %v554
      %1407 = vmatpush.bf16.msra.mxu0 %v553
      %1408 = vmatpush.bf16.msra.mxu0 %v552
      %1409 = vmatpush.bf16.msra.mxu0 %v551
      %1410 = vmatpush.bf16.msra.mxu0 %v550
      %1411 = vmatpush.bf16.msra.mxu0 %v549
      %1412 = vmatmul.bf16.gmra.mxu0 %v1402
      %v1413 = vpop.f32.mrf.mxu0
      %v1414 = vadd.f32 %v509, %v1413
      %v1415 = vpop.f32.mrf.mxu0
      %v1416 = vadd.f32 %v509, %v1415
      %1417 = vdwg.mxu0
      %v1418 = vadd.f32 %v1414, 3.0
      %v1419 = vadd.f32 %v1416, 3.0
      %v1420 = vmax.f32 %v1418, 0.0
      %v1421 = vmax.f32 %v1419, 0.0
      %v1422 = vmin.f32 %v1420, 6.0
      %v1423 = vmin.f32 %v1421, 6.0
      %v1424 = vmul.f32 %v1414, %v1422
      %v1425 = vmul.f32 %v1416, %v1423
      %v1426 = vmul.f32 %v1424, %v593
      %v1427 = vmul.f32 %v1425, %v593
      %1429 = vset.pattern.permute.xlu0 0
      %1430 = vperm.xlu0 %1429, %v488
      %v1431 = vpop.permute.xlu0 %1430
      %1434 = vset.pattern.permute.xlu0 0
      %1435 = vperm.xlu0 %1434, %v489
      %v1436 = vpop.permute.xlu0 %1435
      %v1438 = vmul.f32 %v1426, %v1431
      %v1439 = vmul.f32 %v1427, %v1436
      %v1441 = vperm.slane %v430, 0
      %v1443 = vmul.f32 %v1438, %v1441
      %v1444 = vmul.f32 %v1439, %v1441
      %v1445 = vadd.f32 %v1393, %v1443
      %v1446 = vadd.f32 %v1394, %v1444
      %s1447 = scalar_lea.vmem %s408, 136
      %v1448 = vld [vmem:[%s1447] sm:$0xf]
      %v1449 = vld [vmem:[%s1447 + $0x4] sm:$0xf]
      %v1452 = vunpack.c.l.b16 %v1448
      %v1453 = vunpack.c.l.b16 %v1449
      %v1454 = vpack.c.b16 %v1453, %v1452
      %1456 = vmatpush.bf16.msra.mxu0 %v556
      %1457 = vmatpush.bf16.msra.mxu0 %v555
      %1458 = vmatpush.bf16.msra.mxu0 %v554
      %1459 = vmatpush.bf16.msra.mxu0 %v553
      %1460 = vmatpush.bf16.msra.mxu0 %v552
      %1461 = vmatpush.bf16.msra.mxu0 %v551
      %1462 = vmatpush.bf16.msra.mxu0 %v550
      %1463 = vmatpush.bf16.msra.mxu0 %v549
      %1464 = vmatmul.bf16.gmra.mxu0 %v1454
      %v1465 = vpop.f32.mrf.mxu0
      %v1466 = vadd.f32 %v509, %v1465
      %v1467 = vpop.f32.mrf.mxu0
      %v1468 = vadd.f32 %v509, %v1467
      %1469 = vdwg.mxu0
      %v1470 = vadd.f32 %v1466, 3.0
      %v1471 = vadd.f32 %v1468, 3.0
      %v1472 = vmax.f32 %v1470, 0.0
      %v1473 = vmax.f32 %v1471, 0.0
      %v1474 = vmin.f32 %v1472, 6.0
      %v1475 = vmin.f32 %v1473, 6.0
      %v1476 = vmul.f32 %v1466, %v1474
      %v1477 = vmul.f32 %v1468, %v1475
      %v1478 = vmul.f32 %v1476, %v593
      %v1479 = vmul.f32 %v1477, %v593
      %1481 = vset.pattern.permute.xlu0 0
      %1482 = vperm.xlu0 %1481, %v490
      %v1483 = vpop.permute.xlu0 %1482
      %1486 = vset.pattern.permute.xlu0 0
      %1487 = vperm.xlu0 %1486, %v491
      %v1488 = vpop.permute.xlu0 %1487
      %v1490 = vmul.f32 %v1478, %v1483
      %v1491 = vmul.f32 %v1479, %v1488
      %v1493 = vperm.slane %v431, 0
      %v1495 = vmul.f32 %v1490, %v1493
      %v1496 = vmul.f32 %v1491, %v1493
      %v1497 = vadd.f32 %v1445, %v1495
      %v1498 = vadd.f32 %v1446, %v1496
      %s1499 = scalar_lea.vmem %s408, 144
      %v1500 = vld [vmem:[%s1499] sm:$0xf]
      %v1501 = vld [vmem:[%s1499 + $0x4] sm:$0xf]
      %v1504 = vunpack.c.l.b16 %v1500
      %v1505 = vunpack.c.l.b16 %v1501
      %v1506 = vpack.c.b16 %v1505, %v1504
      %1508 = vmatpush.bf16.msra.mxu0 %v556
      %1509 = vmatpush.bf16.msra.mxu0 %v555
      %1510 = vmatpush.bf16.msra.mxu0 %v554
      %1511 = vmatpush.bf16.msra.mxu0 %v553
      %1512 = vmatpush.bf16.msra.mxu0 %v552
      %1513 = vmatpush.bf16.msra.mxu0 %v551
      %1514 = vmatpush.bf16.msra.mxu0 %v550
      %1515 = vmatpush.bf16.msra.mxu0 %v549
      %1516 = vmatmul.bf16.gmra.mxu0 %v1506
      %v1517 = vpop.f32.mrf.mxu0
      %v1518 = vadd.f32 %v509, %v1517
      %v1519 = vpop.f32.mrf.mxu0
      %v1520 = vadd.f32 %v509, %v1519
      %1521 = vdwg.mxu0
      %v1522 = vadd.f32 %v1518, 3.0
      %v1523 = vadd.f32 %v1520, 3.0
      %v1524 = vmax.f32 %v1522, 0.0
      %v1525 = vmax.f32 %v1523, 0.0
      %v1526 = vmin.f32 %v1524, 6.0
      %v1527 = vmin.f32 %v1525, 6.0
      %v1528 = vmul.f32 %v1518, %v1526
      %v1529 = vmul.f32 %v1520, %v1527
      %v1530 = vmul.f32 %v1528, %v593
      %v1531 = vmul.f32 %v1529, %v593
      %1533 = vset.pattern.permute.xlu0 0
      %1534 = vperm.xlu0 %1533, %v492
      %v1535 = vpop.permute.xlu0 %1534
      %1538 = vset.pattern.permute.xlu0 0
      %1539 = vperm.xlu0 %1538, %v493
      %v1540 = vpop.permute.xlu0 %1539
      %v1542 = vmul.f32 %v1530, %v1535
      %v1543 = vmul.f32 %v1531, %v1540
      %v1545 = vperm.slane %v432, 0
      %v1547 = vmul.f32 %v1542, %v1545
      %v1548 = vmul.f32 %v1543, %v1545
      %v1549 = vadd.f32 %v1497, %v1547
      %v1550 = vadd.f32 %v1498, %v1548
      %s1551 = scalar_lea.vmem %s408, 152
      %v1552 = vld [vmem:[%s1551] sm:$0xf]
      %v1553 = vld [vmem:[%s1551 + $0x4] sm:$0xf]
      %v1556 = vunpack.c.l.b16 %v1552
      %v1557 = vunpack.c.l.b16 %v1553
      %v1558 = vpack.c.b16 %v1557, %v1556
      %1560 = vmatpush.bf16.msra.mxu0 %v556
      %1561 = vmatpush.bf16.msra.mxu0 %v555
      %1562 = vmatpush.bf16.msra.mxu0 %v554
      %1563 = vmatpush.bf16.msra.mxu0 %v553
      %1564 = vmatpush.bf16.msra.mxu0 %v552
      %1565 = vmatpush.bf16.msra.mxu0 %v551
      %1566 = vmatpush.bf16.msra.mxu0 %v550
      %1567 = vmatpush.bf16.msra.mxu0 %v549
      %1568 = vmatmul.bf16.gmra.mxu0 %v1558
      %v1569 = vpop.f32.mrf.mxu0
      %v1570 = vadd.f32 %v509, %v1569
      %v1571 = vpop.f32.mrf.mxu0
      %v1572 = vadd.f32 %v509, %v1571
      %1573 = vdwg.mxu0
      %v1574 = vadd.f32 %v1570, 3.0
      %v1575 = vadd.f32 %v1572, 3.0
      %v1576 = vmax.f32 %v1574, 0.0
      %v1577 = vmax.f32 %v1575, 0.0
      %v1578 = vmin.f32 %v1576, 6.0
      %v1579 = vmin.f32 %v1577, 6.0
      %v1580 = vmul.f32 %v1570, %v1578
      %v1581 = vmul.f32 %v1572, %v1579
      %v1582 = vmul.f32 %v1580, %v593
      %v1583 = vmul.f32 %v1581, %v593
      %1585 = vset.pattern.permute.xlu0 0
      %1586 = vperm.xlu0 %1585, %v494
      %v1587 = vpop.permute.xlu0 %1586
      %1590 = vset.pattern.permute.xlu0 0
      %1591 = vperm.xlu0 %1590, %v495
      %v1592 = vpop.permute.xlu0 %1591
      %v1594 = vmul.f32 %v1582, %v1587
      %v1595 = vmul.f32 %v1583, %v1592
      %v1597 = vperm.slane %v433, 0
      %v1599 = vmul.f32 %v1594, %v1597
      %v1600 = vmul.f32 %v1595, %v1597
      %v1601 = vadd.f32 %v1549, %v1599
      %v1602 = vadd.f32 %v1550, %v1600
      %s1603 = scalar_lea.vmem %s408, 160
      %v1604 = vld [vmem:[%s1603] sm:$0xf]
      %v1605 = vld [vmem:[%s1603 + $0x4] sm:$0xf]
      %v1608 = vunpack.c.l.b16 %v1604
      %v1609 = vunpack.c.l.b16 %v1605
      %v1610 = vpack.c.b16 %v1609, %v1608
      %1612 = vmatpush.bf16.msra.mxu0 %v556
      %1613 = vmatpush.bf16.msra.mxu0 %v555
      %1614 = vmatpush.bf16.msra.mxu0 %v554
      %1615 = vmatpush.bf16.msra.mxu0 %v553
      %1616 = vmatpush.bf16.msra.mxu0 %v552
      %1617 = vmatpush.bf16.msra.mxu0 %v551
      %1618 = vmatpush.bf16.msra.mxu0 %v550
      %1619 = vmatpush.bf16.msra.mxu0 %v549
      %1620 = vmatmul.bf16.gmra.mxu0 %v1610
      %v1621 = vpop.f32.mrf.mxu0
      %v1622 = vadd.f32 %v509, %v1621
      %v1623 = vpop.f32.mrf.mxu0
      %v1624 = vadd.f32 %v509, %v1623
      %1625 = vdwg.mxu0
      %v1626 = vadd.f32 %v1622, 3.0
      %v1627 = vadd.f32 %v1624, 3.0
      %v1628 = vmax.f32 %v1626, 0.0
      %v1629 = vmax.f32 %v1627, 0.0
      %v1630 = vmin.f32 %v1628, 6.0
      %v1631 = vmin.f32 %v1629, 6.0
      %v1632 = vmul.f32 %v1622, %v1630
      %v1633 = vmul.f32 %v1624, %v1631
      %v1634 = vmul.f32 %v1632, %v593
      %v1635 = vmul.f32 %v1633, %v593
      %1637 = vset.pattern.permute.xlu0 0
      %1638 = vperm.xlu0 %1637, %v496
      %v1639 = vpop.permute.xlu0 %1638
      %1642 = vset.pattern.permute.xlu0 0
      %1643 = vperm.xlu0 %1642, %v497
      %v1644 = vpop.permute.xlu0 %1643
      %v1646 = vmul.f32 %v1634, %v1639
      %v1647 = vmul.f32 %v1635, %v1644
      %v1649 = vperm.slane %v434, 0
      %v1651 = vmul.f32 %v1646, %v1649
      %v1652 = vmul.f32 %v1647, %v1649
      %v1653 = vadd.f32 %v1601, %v1651
      %v1654 = vadd.f32 %v1602, %v1652
      %s1655 = scalar_lea.vmem %s408, 168
      %v1656 = vld [vmem:[%s1655] sm:$0xf]
      %v1657 = vld [vmem:[%s1655 + $0x4] sm:$0xf]
      %v1660 = vunpack.c.l.b16 %v1656
      %v1661 = vunpack.c.l.b16 %v1657
      %v1662 = vpack.c.b16 %v1661, %v1660
      %1664 = vmatpush.bf16.msra.mxu0 %v556
      %1665 = vmatpush.bf16.msra.mxu0 %v555
      %1666 = vmatpush.bf16.msra.mxu0 %v554
      %1667 = vmatpush.bf16.msra.mxu0 %v553
      %1668 = vmatpush.bf16.msra.mxu0 %v552
      %1669 = vmatpush.bf16.msra.mxu0 %v551
      %1670 = vmatpush.bf16.msra.mxu0 %v550
      %1671 = vmatpush.bf16.msra.mxu0 %v549
      %1672 = vmatmul.bf16.gmra.mxu0 %v1662
      %v1673 = vpop.f32.mrf.mxu0
      %v1674 = vadd.f32 %v509, %v1673
      %v1675 = vpop.f32.mrf.mxu0
      %v1676 = vadd.f32 %v509, %v1675
      %1677 = vdwg.mxu0
      %v1678 = vadd.f32 %v1674, 3.0
      %v1679 = vadd.f32 %v1676, 3.0
      %v1680 = vmax.f32 %v1678, 0.0
      %v1681 = vmax.f32 %v1679, 0.0
      %v1682 = vmin.f32 %v1680, 6.0
      %v1683 = vmin.f32 %v1681, 6.0
      %v1684 = vmul.f32 %v1674, %v1682
      %v1685 = vmul.f32 %v1676, %v1683
      %v1686 = vmul.f32 %v1684, %v593
      %v1687 = vmul.f32 %v1685, %v593
      %1689 = vset.pattern.permute.xlu0 0
      %1690 = vperm.xlu0 %1689, %v498
      %v1691 = vpop.permute.xlu0 %1690
      %1694 = vset.pattern.permute.xlu0 0
      %1695 = vperm.xlu0 %1694, %v499
      %v1696 = vpop.permute.xlu0 %1695
      %v1698 = vmul.f32 %v1686, %v1691
      %v1699 = vmul.f32 %v1687, %v1696
      %v1701 = vperm.slane %v435, 0
      %v1703 = vmul.f32 %v1698, %v1701
      %v1704 = vmul.f32 %v1699, %v1701
      %v1705 = vadd.f32 %v1653, %v1703
      %v1706 = vadd.f32 %v1654, %v1704
      %s1707 = scalar_lea.vmem %s408, 176
      %v1708 = vld [vmem:[%s1707] sm:$0xf]
      %v1709 = vld [vmem:[%s1707 + $0x4] sm:$0xf]
      %v1712 = vunpack.c.l.b16 %v1708
      %v1713 = vunpack.c.l.b16 %v1709
      %v1714 = vpack.c.b16 %v1713, %v1712
      %1716 = vmatpush.bf16.msra.mxu0 %v556
      %1717 = vmatpush.bf16.msra.mxu0 %v555
      %1718 = vmatpush.bf16.msra.mxu0 %v554
      %1719 = vmatpush.bf16.msra.mxu0 %v553
      %1720 = vmatpush.bf16.msra.mxu0 %v552
      %1721 = vmatpush.bf16.msra.mxu0 %v551
      %1722 = vmatpush.bf16.msra.mxu0 %v550
      %1723 = vmatpush.bf16.msra.mxu0 %v549
      %1724 = vmatmul.bf16.gmra.mxu0 %v1714
      %v1725 = vpop.f32.mrf.mxu0
      %v1726 = vadd.f32 %v509, %v1725
      %v1727 = vpop.f32.mrf.mxu0
      %v1728 = vadd.f32 %v509, %v1727
      %1729 = vdwg.mxu0
      %v1730 = vadd.f32 %v1726, 3.0
      %v1731 = vadd.f32 %v1728, 3.0
      %v1732 = vmax.f32 %v1730, 0.0
      %v1733 = vmax.f32 %v1731, 0.0
      %v1734 = vmin.f32 %v1732, 6.0
      %v1735 = vmin.f32 %v1733, 6.0
      %v1736 = vmul.f32 %v1726, %v1734
      %v1737 = vmul.f32 %v1728, %v1735
      %v1738 = vmul.f32 %v1736, %v593
      %v1739 = vmul.f32 %v1737, %v593
      %1741 = vset.pattern.permute.xlu0 0
      %1742 = vperm.xlu0 %1741, %v500
      %v1743 = vpop.permute.xlu0 %1742
      %1746 = vset.pattern.permute.xlu0 0
      %1747 = vperm.xlu0 %1746, %v501
      %v1748 = vpop.permute.xlu0 %1747
      %v1750 = vmul.f32 %v1738, %v1743
      %v1751 = vmul.f32 %v1739, %v1748
      %v1753 = vperm.slane %v436, 0
      %v1755 = vmul.f32 %v1750, %v1753
      %v1756 = vmul.f32 %v1751, %v1753
      %v1757 = vadd.f32 %v1705, %v1755
      %v1758 = vadd.f32 %v1706, %v1756
      %s1759 = scalar_lea.vmem %s408, 184
      %v1760 = vld [vmem:[%s1759] sm:$0xf]
      %v1761 = vld [vmem:[%s1759 + $0x4] sm:$0xf]
      %v1764 = vunpack.c.l.b16 %v1760
      %v1765 = vunpack.c.l.b16 %v1761
      %v1766 = vpack.c.b16 %v1765, %v1764
      %1768 = vmatpush.bf16.msra.mxu0 %v556
      %1769 = vmatpush.bf16.msra.mxu0 %v555
      %1770 = vmatpush.bf16.msra.mxu0 %v554
      %1771 = vmatpush.bf16.msra.mxu0 %v553
      %1772 = vmatpush.bf16.msra.mxu0 %v552
      %1773 = vmatpush.bf16.msra.mxu0 %v551
      %1774 = vmatpush.bf16.msra.mxu0 %v550
      %1775 = vmatpush.bf16.msra.mxu0 %v549
      %1776 = vmatmul.bf16.gmra.mxu0 %v1766
      %v1777 = vpop.f32.mrf.mxu0
      %v1778 = vadd.f32 %v509, %v1777
      %v1779 = vpop.f32.mrf.mxu0
      %v1780 = vadd.f32 %v509, %v1779
      %1781 = vdwg.mxu0
      %v1782 = vadd.f32 %v1778, 3.0
      %v1783 = vadd.f32 %v1780, 3.0
      %v1784 = vmax.f32 %v1782, 0.0
      %v1785 = vmax.f32 %v1783, 0.0
      %v1786 = vmin.f32 %v1784, 6.0
      %v1787 = vmin.f32 %v1785, 6.0
      %v1788 = vmul.f32 %v1778, %v1786
      %v1789 = vmul.f32 %v1780, %v1787
      %v1790 = vmul.f32 %v1788, %v593
      %v1791 = vmul.f32 %v1789, %v593
      %1793 = vset.pattern.permute.xlu0 0
      %1794 = vperm.xlu0 %1793, %v502
      %v1795 = vpop.permute.xlu0 %1794
      %1798 = vset.pattern.permute.xlu0 0
      %1799 = vperm.xlu0 %1798, %v503
      %v1800 = vpop.permute.xlu0 %1799
      %v1802 = vmul.f32 %v1790, %v1795
      %v1803 = vmul.f32 %v1791, %v1800
      %v1805 = vperm.slane %v437, 0
      %v1807 = vmul.f32 %v1802, %v1805
      %v1808 = vmul.f32 %v1803, %v1805
      %v1809 = vadd.f32 %v1757, %v1807
      %v1810 = vadd.f32 %v1758, %v1808
      %s1811 = scalar_lea.vmem %s408, 192
      %v1812 = vld [vmem:[%s1811] sm:$0xf]
      %v1813 = vld [vmem:[%s1811 + $0x4] sm:$0xf]
      %v1816 = vunpack.c.l.b16 %v1812
      %v1817 = vunpack.c.l.b16 %v1813
      %v1818 = vpack.c.b16 %v1817, %v1816
      %1820 = vmatpush.bf16.msra.mxu0 %v556
      %1821 = vmatpush.bf16.msra.mxu0 %v555
      %1822 = vmatpush.bf16.msra.mxu0 %v554
      %1823 = vmatpush.bf16.msra.mxu0 %v553
      %1824 = vmatpush.bf16.msra.mxu0 %v552
      %1825 = vmatpush.bf16.msra.mxu0 %v551
      %1826 = vmatpush.bf16.msra.mxu0 %v550
      %1827 = vmatpush.bf16.msra.mxu0 %v549
      %1828 = vmatmul.bf16.gmra.mxu0 %v1818
      %v1829 = vpop.f32.mrf.mxu0
      %v1830 = vadd.f32 %v509, %v1829
      %v1831 = vpop.f32.mrf.mxu0
      %v1832 = vadd.f32 %v509, %v1831
      %1833 = vdwg.mxu0
      %v1834 = vadd.f32 %v1830, 3.0
      %v1835 = vadd.f32 %v1832, 3.0
      %v1836 = vmax.f32 %v1834, 0.0
      %v1837 = vmax.f32 %v1835, 0.0
      %v1838 = vmin.f32 %v1836, 6.0
      %v1839 = vmin.f32 %v1837, 6.0
      %v1840 = vmul.f32 %v1830, %v1838
      %v1841 = vmul.f32 %v1832, %v1839
      %v1842 = vmul.f32 %v1840, %v593
      %v1843 = vmul.f32 %v1841, %v593
      %1845 = vset.pattern.permute.xlu0 0
      %1846 = vperm.xlu0 %1845, %v504
      %v1847 = vpop.permute.xlu0 %1846
      %1850 = vset.pattern.permute.xlu0 0
      %1851 = vperm.xlu0 %1850, %v505
      %v1852 = vpop.permute.xlu0 %1851
      %v1854 = vmul.f32 %v1842, %v1847
      %v1855 = vmul.f32 %v1843, %v1852
      %v1857 = vperm.slane %v438, 0
      %v1859 = vmul.f32 %v1854, %v1857
      %v1860 = vmul.f32 %v1855, %v1857
      %v1861 = vadd.f32 %v1809, %v1859
      %v1862 = vadd.f32 %v1810, %v1860
      %v1863 = vld [vmem:[%s5] sm:$0x1]
      %v1865 = vperm.slane %v1863, 0
      %v1867 = vadd.f32 %v1861, %v1865
      %v1868 = vadd.f32 %v1862, %v1865
      %v1869 = vadd.f32 %v1867, 3.0
      %v1870 = vadd.f32 %v1868, 3.0
      %v1871 = vmax.f32 %v1869, 0.0
      %v1872 = vmax.f32 %v1870, 0.0
      %v1873 = vmin.f32 %v1871, 6.0
      %v1874 = vmin.f32 %v1872, 6.0
      %v1875 = vmul.f32 %v1867, %v1873
      %v1876 = vmul.f32 %v1868, %v1874
      %v1877 = vmul.f32 %v1875, %v593
      %v1878 = vmul.f32 %v1876, %v593
      %v1879 = vadd.f32 %v1877, %v1878
      %v1880 = vrot.slane %v1879, 4
      %v1881 = vadd.f32 %v1879, %v1880
      %v1882 = vrot.slane %v1881, 2
      %v1883 = vadd.f32 %v1881, %v1882
      %v1884 = vrot.slane %v1883, 1
      %v1885 = vadd.f32 %v1883, %v1884
      %v1886 = vrcp.pop 16.0
      %v1887 = vmul.f32 16.0, %v1886
      %v1888 = vsub.f32 1.0, %v1887
      %v1889 = vmul.f32 %v1886, %v1888
      %v1890 = vadd.f32 %v1886, %v1889
      %vm1891 = vweird.f32 %v1886
      %v1892 = vsel %vm1891, %v1886, %v1890
      %v1893 = vmul.f32 %v1885, %v1892
      %v1894 = vpack.c.bf16 %v1893, %v1893
      %v1895 = vld [vmem:[%s6] sm:$0xf]
      %v1896 = vld [vmem:[%s6 + $0x4] sm:$0xf]
      %v1897 = vld [vmem:[%s6 + $0x8] sm:$0xf]
      %v1898 = vld [vmem:[%s6 + $0xc] sm:$0xf]
      %v1899 = vld [vmem:[%s6 + $0x10] sm:$0xf]
      %v1900 = vld [vmem:[%s6 + $0x14] sm:$0xf]
      %v1901 = vld [vmem:[%s6 + $0x18] sm:$0xf]
      %v1902 = vld [vmem:[%s6 + $0x1c] sm:$0xf]
      %v1903 = vld [vmem:[%s6 + $0x20] sm:$0xf]
      %v1904 = vld [vmem:[%s6 + $0x24] sm:$0xf]
      %v1905 = vld [vmem:[%s6 + $0x28] sm:$0xf]
      %v1906 = vld [vmem:[%s6 + $0x2c] sm:$0xf]
      %v1907 = vld [vmem:[%s6 + $0x30] sm:$0xf]
      %v1908 = vld [vmem:[%s6 + $0x34] sm:$0xf]
      %v1909 = vld [vmem:[%s6 + $0x38] sm:$0xf]
      %v1910 = vld [vmem:[%s6 + $0x3c] sm:$0xf]
      %v1911 = vld [vmem:[%s7] sm:$0x1]
      %v1928 = vunpack.c.l.b16 %v1895
      %v1929 = vunpack.c.l.b16 %v1896
      %v1930 = vunpack.c.l.b16 %v1897
      %v1931 = vunpack.c.l.b16 %v1898
      %v1932 = vunpack.c.l.b16 %v1899
      %v1933 = vunpack.c.l.b16 %v1900
      %v1934 = vunpack.c.l.b16 %v1901
      %v1935 = vunpack.c.l.b16 %v1902
      %v1936 = vunpack.c.l.b16 %v1903
      %v1937 = vunpack.c.l.b16 %v1904
      %v1938 = vunpack.c.l.b16 %v1905
      %v1939 = vunpack.c.l.b16 %v1906
      %v1940 = vunpack.c.l.b16 %v1907
      %v1941 = vunpack.c.l.b16 %v1908
      %v1942 = vunpack.c.l.b16 %v1909
      %v1943 = vunpack.c.l.b16 %v1910
      %v1944 = vpack.c.b16 %v1929, %v1928
      %v1945 = vpack.c.b16 %v1931, %v1930
      %v1946 = vpack.c.b16 %v1933, %v1932
      %v1947 = vpack.c.b16 %v1935, %v1934
      %v1948 = vpack.c.b16 %v1937, %v1936
      %v1949 = vpack.c.b16 %v1939, %v1938
      %v1950 = vpack.c.b16 %v1941, %v1940
      %v1951 = vpack.c.b16 %v1943, %v1942
      %1960 = vmatpush.bf16.msra.mxu0 %v1951
      %1961 = vmatpush.bf16.msra.mxu0 %v1950
      %1962 = vmatpush.bf16.msra.mxu0 %v1949
      %1963 = vmatpush.bf16.msra.mxu0 %v1948
      %1964 = vmatpush.bf16.msra.mxu0 %v1947
      %1965 = vmatpush.bf16.msra.mxu0 %v1946
      %1966 = vmatpush.bf16.msra.mxu0 %v1945
      %1967 = vmatpush.bf16.msra.mxu0 %v1944
      %1968 = vmatmul.bf16.gmra.mxu0 %v1894
      %v1969 = vpop.f32.mrf.mxu0
      %v1970 = vadd.f32 %v1911, %v1969
      %v1971 = vpop.f32.mrf.mxu0
      %1972 = vdwg.mxu0
      %v1973 = vmax.f32 %v1970, 0.0
      %v1974 = vpack.c.bf16 %v1973, %v1973
      %v1975 = vld [vmem:[%s8] sm:$0xf]
      %v1976 = vld [vmem:[%s8 + $0x4] sm:$0xf]
      %v1977 = vld [vmem:[%s8 + $0x8] sm:$0xf]
      %v1978 = vld [vmem:[%s8 + $0xc] sm:$0xf]
      %v1979 = vld [vmem:[%s8 + $0x10] sm:$0xf]
      %v1980 = vld [vmem:[%s8 + $0x14] sm:$0xf]
      %v1981 = vld [vmem:[%s8 + $0x18] sm:$0xf]
      %v1982 = vld [vmem:[%s8 + $0x1c] sm:$0xf]
      %v1983 = vld [vmem:[%s8 + $0x20] sm:$0xf]
      %v1984 = vld [vmem:[%s8 + $0x24] sm:$0xf]
      %v1985 = vld [vmem:[%s8 + $0x28] sm:$0xf]
      %v1986 = vld [vmem:[%s8 + $0x2c] sm:$0xf]
      %v1987 = vld [vmem:[%s8 + $0x30] sm:$0xf]
      %v1988 = vld [vmem:[%s8 + $0x34] sm:$0xf]
      %v1989 = vld [vmem:[%s8 + $0x38] sm:$0xf]
      %v1990 = vld [vmem:[%s8 + $0x3c] sm:$0xf]
      %v1991 = vld [vmem:[%s9] sm:$0x1]
      %v2008 = vunpack.c.l.b16 %v1975
      %v2009 = vunpack.c.l.b16 %v1976
      %v2010 = vunpack.c.l.b16 %v1977
      %v2011 = vunpack.c.l.b16 %v1978
      %v2012 = vunpack.c.l.b16 %v1979
      %v2013 = vunpack.c.l.b16 %v1980
      %v2014 = vunpack.c.l.b16 %v1981
      %v2015 = vunpack.c.l.b16 %v1982
      %v2016 = vunpack.c.l.b16 %v1983
      %v2017 = vunpack.c.l.b16 %v1984
      %v2018 = vunpack.c.l.b16 %v1985
      %v2019 = vunpack.c.l.b16 %v1986
      %v2020 = vunpack.c.l.b16 %v1987
      %v2021 = vunpack.c.l.b16 %v1988
      %v2022 = vunpack.c.l.b16 %v1989
      %v2023 = vunpack.c.l.b16 %v1990
      %v2024 = vpack.c.b16 %v2009, %v2008
      %v2025 = vpack.c.b16 %v2011, %v2010
      %v2026 = vpack.c.b16 %v2013, %v2012
      %v2027 = vpack.c.b16 %v2015, %v2014
      %v2028 = vpack.c.b16 %v2017, %v2016
      %v2029 = vpack.c.b16 %v2019, %v2018
      %v2030 = vpack.c.b16 %v2021, %v2020
      %v2031 = vpack.c.b16 %v2023, %v2022
      %2040 = vmatpush.bf16.msra.mxu0 %v2031
      %2041 = vmatpush.bf16.msra.mxu0 %v2030
      %2042 = vmatpush.bf16.msra.mxu0 %v2029
      %2043 = vmatpush.bf16.msra.mxu0 %v2028
      %2044 = vmatpush.bf16.msra.mxu0 %v2027
      %2045 = vmatpush.bf16.msra.mxu0 %v2026
      %2046 = vmatpush.bf16.msra.mxu0 %v2025
      %2047 = vmatpush.bf16.msra.mxu0 %v2024
      %2048 = vmatmul.bf16.gmra.mxu0 %v1974
      %v2049 = vpop.f32.mrf.mxu0
      %v2050 = vadd.f32 %v1991, %v2049
      %v2051 = vpop.f32.mrf.mxu0
      %2052 = vdwg.mxu0
      %v2053 = vadd.f32 %v2050, 3.0
      %v2054 = vmax.f32 %v2053, 0.0
      %v2055 = vmin.f32 %v2054, 6.0
      %v2056 = vmul.f32 %v2055, %v593
      %v2057 = vperm.slane %v2056, 0
      %v2058 = vmul.f32 %v1877, %v2057
      %v2059 = vmul.f32 %v1878, %v2057
      %v2060 = vpack.c.bf16 %v2059, %v2058
      %v2061 = vld [vmem:[%s10] sm:$0xf]
      %v2062 = vld [vmem:[%s10 + $0x4] sm:$0xf]
      %v2063 = vld [vmem:[%s10 + $0x8] sm:$0xf]
      %v2064 = vld [vmem:[%s10 + $0xc] sm:$0xf]
      %v2065 = vld [vmem:[%s10 + $0x10] sm:$0xf]
      %v2066 = vld [vmem:[%s10 + $0x14] sm:$0xf]
      %v2067 = vld [vmem:[%s10 + $0x18] sm:$0xf]
      %v2068 = vld [vmem:[%s10 + $0x1c] sm:$0xf]
      %v2069 = vld [vmem:[%s10 + $0x20] sm:$0xf]
      %v2070 = vld [vmem:[%s10 + $0x24] sm:$0xf]
      %v2071 = vld [vmem:[%s10 + $0x28] sm:$0xf]
      %v2072 = vld [vmem:[%s10 + $0x2c] sm:$0xf]
      %v2073 = vld [vmem:[%s10 + $0x30] sm:$0xf]
      %v2074 = vld [vmem:[%s10 + $0x34] sm:$0xf]
      %v2075 = vld [vmem:[%s10 + $0x38] sm:$0xf]
      %v2076 = vld [vmem:[%s10 + $0x3c] sm:$0xf]
      %v2077 = vld [vmem:[%s11] sm:$0x1]
      %v2079 = vperm.slane %v2077, 0
      %v2097 = vunpack.c.l.b16 %v2061
      %v2098 = vunpack.c.l.b16 %v2062
      %v2099 = vunpack.c.l.b16 %v2063
      %v2100 = vunpack.c.l.b16 %v2064
      %v2101 = vunpack.c.l.b16 %v2065
      %v2102 = vunpack.c.l.b16 %v2066
      %v2103 = vunpack.c.l.b16 %v2067
      %v2104 = vunpack.c.l.b16 %v2068
      %v2105 = vunpack.c.l.b16 %v2069
      %v2106 = vunpack.c.l.b16 %v2070
      %v2107 = vunpack.c.l.b16 %v2071
      %v2108 = vunpack.c.l.b16 %v2072
      %v2109 = vunpack.c.l.b16 %v2073
      %v2110 = vunpack.c.l.b16 %v2074
      %v2111 = vunpack.c.l.b16 %v2075
      %v2112 = vunpack.c.l.b16 %v2076
      %v2113 = vpack.c.b16 %v2098, %v2097
      %v2114 = vpack.c.b16 %v2100, %v2099
      %v2115 = vpack.c.b16 %v2102, %v2101
      %v2116 = vpack.c.b16 %v2104, %v2103
      %v2117 = vpack.c.b16 %v2106, %v2105
      %v2118 = vpack.c.b16 %v2108, %v2107
      %v2119 = vpack.c.b16 %v2110, %v2109
      %v2120 = vpack.c.b16 %v2112, %v2111
      %2129 = vmatpush.bf16.msra.mxu0 %v2120
      %2130 = vmatpush.bf16.msra.mxu0 %v2119
      %2131 = vmatpush.bf16.msra.mxu0 %v2118
      %2132 = vmatpush.bf16.msra.mxu0 %v2117
      %2133 = vmatpush.bf16.msra.mxu0 %v2116
      %2134 = vmatpush.bf16.msra.mxu0 %v2115
      %2135 = vmatpush.bf16.msra.mxu0 %v2114
      %2136 = vmatpush.bf16.msra.mxu0 %v2113
      %2137 = vmatmul.bf16.gmra.mxu0 %v2060
      %v2138 = vpop.f32.mrf.mxu0
      %v2139 = vadd.f32 %v2079, %v2138
      %v2140 = vpop.f32.mrf.mxu0
      %v2141 = vadd.f32 %v2079, %v2140
      %2142 = vdwg.mxu0
      %v2143 = vpack.c.bf16 %v2139, %v2139
      %v2144 = vpack.c.bf16 %v2141, %v2141
      %2145 = vst [vmem:[%s413] sm:$0xf] %v2143
      %2146 = vst [vmem:[%s413 + $0x4] sm:$0xf] %v2144
      %p2147 = scmp.lt.s32.totalorder %s23, 1
      %s2148 = scalar_select %p2147, %s23, 1
      %s2149 = smul.addr %s2148, 2
      %s2150 = smul.addr %s2149, 4
      %s2151 = scalar_lea.vmem %s12, %s2150
      // Predicated region
      $region69: #{forward.8} parent=67 // pred_check
        %p2152 = pneg %p298
      $region70: #{forward.8} parent=67 // pred_check_branch
        %2154 = sbr.rel (%p2152) target = $region72
      $region71: #{forward.8} parent=67 // pred_region
        _
      $region72: #{forward.8} parent=67 // pred_fallthru
        _
    $region68: #{forward.8} parent=5 // pred_fallthru
      _
    %p2155 = scmp.le.s32.totalorder 2, %s18
    // Predicated region
    $region73: #{forward.8} parent=5 // pred_check
      %p2156 = pneg %p2155
    $region74: #{forward.8} parent=5 // pred_check_branch
      %2158 = sbr.rel (%p2156) target = $region76
    $region75: #{forward.8} parent=5 // pred_region
      %s2159 = ssub.s32 %s18, 2
      // Predicated region
      $region77: #{forward.8} parent=75 // pred_check
        %p2160 = pneg %p304
      $region78: #{forward.8} parent=75 // pred_check_branch
        %2162 = sbr.rel (%p2160) target = $region80
      $region79: #{forward.8} parent=75 // pred_region
        %p2163 = scmp.lt.s32.totalorder %s24, 1
        %s2164 = scalar_select %p2163, %s24, 1
        %s2165 = smul.addr %s2164, 2
        %s2166 = smul.addr %s2165, 4
        %s2167 = scalar_lea.vmem %s12, %s2166
      $region80: #{forward.8} parent=75 // pred_fallthru
        _
    $region76: #{forward.8} parent=5 // pred_fallthru
      _
  $region6: #{forward.8} parent=0 // loop_footer
    %s22 = sadd.s32 1, %s18
  $region7: #{forward.8} parent=0 // loop_footer_branch
    %17 = sbr.rel target = $region3
  $region8: #{forward.8} parent=0 // loop_exit
    _

</llo_original>
